<compile_context>
chip_gen: v6e
topology: v6e:2x2x1
jax: 0.10.0
libtpu: 0.0.40
codegen_flags: <defaults>
</compile_context>

<pallas_src>
import jax
import jax.numpy as jnp
from jax import lax
from jax.experimental import pallas as pl
from jax.experimental.pallas import tpu as pltpu

_MXU_DTYPE = jnp.bfloat16   # matmul-input dtype (f32 accumulation); set to jnp.float32 for max precision
_BN_EPS = 1e-5              # PyTorch BatchNorm2d default


def _block(x, w, gamma, beta):
    """One fused Block (reflect-pad conv3x3 + BN(batch stats) + ReLU) in NHWC.

    x     : (N, H, W, Cin)  f32
    w     : (9*Cin, Cout)   _MXU_DTYPE, tap-major layout k = (dy*3+dx)*Cin + ci
    gamma : (1, Cout)       f32
    beta  : (1, Cout)       f32
    returns (N, H, W, Cout) f32
    """
    N, H, W, Cin = x.shape
    Cout = w.shape[-1]

    # Reflect padding (PyTorch padding_mode='reflect'), done in-kernel.
    xh = jnp.concatenate([x[:, 1:2], x, x[:, H - 2:H - 1]], axis=1)
    xp = jnp.concatenate([xh[:, :, 1:2], xh, xh[:, :, W - 2:W - 1]], axis=2)

    # im2col: build the patch buffer once -> single MXU matmul with K = 9*Cin.
    taps = [xp[:, dy:dy + H, dx:dx + W, :] for dy in range(3) for dx in range(3)]
    patches = jnp.concatenate(taps, axis=-1).reshape(N * H * W, 9 * Cin)

    acc = jnp.dot(patches.astype(w.dtype), w, preferred_element_type=jnp.float32)

    # Conv bias intentionally omitted: training-mode BN's mean subtraction
    # cancels it exactly, so it is dead compute in the forward pass.

    # BatchNorm2d training-mode batch statistics, single pass over acc.
    m = jnp.float32(N * H * W)
    s = jnp.sum(acc, axis=0, keepdims=True)
    ss = jnp.sum(acc * acc, axis=0, keepdims=True)
    mean = s / m
    var = jnp.maximum(ss / m - mean * mean, 0.0)
    scale = gamma * lax.rsqrt(var + _BN_EPS)
    shift = beta - mean * scale

    # Fused affine epilogue + ReLU (all f32 on the VPU).
    y = jnp.maximum(acc * scale + shift, 0.0)
    return y.reshape(N, H, W, Cout)


def _masks_kernel(x_ref,
                  w1_ref, g1_ref, b1_ref,
                  w2_ref, g2_ref, b2_ref,
                  w3_ref, g3_ref, b3_ref,
                  w4_ref, g4_ref, b4_ref,
                  out_ref):
    """All four Blocks fused; intermediates live entirely in VMEM/vregs."""
    y = _block(x_ref[...], w1_ref[...], g1_ref[...], b1_ref[...])
    y = _block(y, w2_ref[...], g2_ref[...], b2_ref[...])
    y = _block(y, w3_ref[...], g3_ref[...], b3_ref[...])
    y = _block(y, w4_ref[...], g4_ref[...], b4_ref[...])
    out_ref[...] = y  # (N, H, W, 128): lane-dense, unmasked stores


def init_masks_params(key, in_chan=3, features=8):
    """Deterministic synthetic parameters for the 4 Blocks."""
    chans = [(in_chan, features),
             (features, features * 2),
             (features * 2, features * 4),
             (features * 4, features * 8)]
    params = []
    for (cin, cout) in chans:
        key, kw, kb = jax.random.split(key, 3)
        fan_in = cin * 9
        w = jax.random.normal(kw, (9, cin, cout), jnp.float32) * (1.0 / jnp.sqrt(fan_in))
        # Bias kept for interface parity; it is a no-op under training-mode BN.
        b = jax.random.normal(kb, (cout,), jnp.float32) * 0.01
        gamma = jnp.ones((cout,), jnp.float32)
        beta = jnp.zeros((cout,), jnp.float32)
        params.append((w, b, gamma, beta))
    return params


@jax.jit
def masks_forward(x_nchw, params):
    """Full Masks forward. x_nchw: (N, C, H, W) -> (N, 8*features, H, W)."""
    x = jnp.transpose(x_nchw, (0, 2, 3, 1)).astype(jnp.float32)   # NCHW -> NHWC
    N, H, W, _ = x.shape

    # Final block's Cout zero-padded up to a multiple of 128 for a lane-dense
    # compute/epilogue and an unmasked output store; padded channels stay 0.
    c4 = params[-1][0].shape[-1]
    c4_pad = max(128, -(-c4 // 128) * 128)

    args = [x]
    for i, (w, _b, gamma, beta) in enumerate(params):
        cin, cout = w.shape[1], w.shape[2]
        if i == len(params) - 1 and cout < c4_pad:
            w = jnp.pad(w, ((0, 0), (0, 0), (0, c4_pad - cout)))
            gamma = jnp.pad(gamma, (0, c4_pad - cout))
            beta = jnp.pad(beta, (0, c4_pad - cout))
            cout = c4_pad
        args += [w.reshape(9 * cin, cout).astype(_MXU_DTYPE),
                 gamma.reshape(1, cout).astype(jnp.float32),
                 beta.reshape(1, cout).astype(jnp.float32)]

    vmem = pl.BlockSpec(memory_space=pltpu.MemorySpace.VMEM)
    out = pl.pallas_call(
        _masks_kernel,
        out_shape=jax.ShapeDtypeStruct((N, H, W, c4_pad), jnp.float32),
        in_specs=[vmem] * len(args),
        out_specs=vmem,
    )(*args)

    out = out[..., :c4]                       # drop zero-padding channels
    return jnp.transpose(out, (0, 3, 1, 2))   # NHWC -> NCHW


if __name__ == "__main__":
    key = jax.random.PRNGKey(0)
    kx, kp = jax.random.split(key)

    N, C, H, W = 2, 3, 16, 16
    x = jax.random.normal(kx, (N, C, H, W), jnp.float32)
    params = init_masks_params(kp, in_chan=C, features=8)

    out = jax.block_until_ready(masks_forward(x, params))
    assert out.shape == (N, 64, H, W), out.shape
    assert bool(jnp.all(jnp.isfinite(out)))
    print("KERNEL_OK")
</pallas_src>

<mosaic_0001>
module attributes {stable_mosaic.version = 11 : i64} {
  func.func @_masks_kernel(%arg0: memref<2x16x16x3xf32, #tpu.memory_space<vmem>>, %arg1: memref<27x8xbf16, #tpu.memory_space<vmem>>, %arg2: memref<1x8xf32, #tpu.memory_space<vmem>>, %arg3: memref<1x8xf32, #tpu.memory_space<vmem>>, %arg4: memref<72x16xbf16, #tpu.memory_space<vmem>>, %arg5: memref<1x16xf32, #tpu.memory_space<vmem>>, %arg6: memref<1x16xf32, #tpu.memory_space<vmem>>, %arg7: memref<144x32xbf16, #tpu.memory_space<vmem>>, %arg8: memref<1x32xf32, #tpu.memory_space<vmem>>, %arg9: memref<1x32xf32, #tpu.memory_space<vmem>>, %arg10: memref<288x128xbf16, #tpu.memory_space<vmem>>, %arg11: memref<1x128xf32, #tpu.memory_space<vmem>>, %arg12: memref<1x128xf32, #tpu.memory_space<vmem>>, %arg13: memref<2x16x16x128xf32, #tpu.memory_space<vmem>>) attributes {dimension_semantics = [], scalar_prefetch = 0 : i64, scratch_operands = 0 : i64, tpu.core_type = #tpu.core_type<tc>} {
    %c0 = arith.constant 0 : index
    %c0_0 = arith.constant 0 : index
    %c0_1 = arith.constant 0 : index
    %c0_2 = arith.constant 0 : index
    %0 = vector.load %arg0[%c0, %c0_0, %c0_1, %c0_2] : memref<2x16x16x3xf32, #tpu.memory_space<vmem>>, vector<2x16x16x3xf32>
    %c0_3 = arith.constant 0 : index
    %c0_4 = arith.constant 0 : index
    %1 = vector.load %arg1[%c0_3, %c0_4] : memref<27x8xbf16, #tpu.memory_space<vmem>>, vector<27x8xbf16>
    %c0_5 = arith.constant 0 : index
    %c0_6 = arith.constant 0 : index
    %2 = vector.load %arg2[%c0_5, %c0_6] : memref<1x8xf32, #tpu.memory_space<vmem>>, vector<1x8xf32>
    %c0_7 = arith.constant 0 : index
    %c0_8 = arith.constant 0 : index
    %3 = vector.load %arg3[%c0_7, %c0_8] : memref<1x8xf32, #tpu.memory_space<vmem>>, vector<1x8xf32>
    %4 = vector.extract_strided_slice %0 {offsets = [0, 1, 0, 0], sizes = [2, 1, 16, 3], strides = [1, 1, 1, 1]} : vector<2x16x16x3xf32> to vector<2x1x16x3xf32>
    %5 = vector.extract_strided_slice %0 {offsets = [0, 14, 0, 0], sizes = [2, 1, 16, 3], strides = [1, 1, 1, 1]} : vector<2x16x16x3xf32> to vector<2x1x16x3xf32>
    %6 = tpu.concatenate %4, %0, %5 in 1 : vector<2x1x16x3xf32>, vector<2x16x16x3xf32>, vector<2x1x16x3xf32> -> vector<2x18x16x3xf32>
    %7 = vector.extract_strided_slice %6 {offsets = [0, 0, 1, 0], sizes = [2, 18, 1, 3], strides = [1, 1, 1, 1]} : vector<2x18x16x3xf32> to vector<2x18x1x3xf32>
    %8 = vector.extract_strided_slice %6 {offsets = [0, 0, 14, 0], sizes = [2, 18, 1, 3], strides = [1, 1, 1, 1]} : vector<2x18x16x3xf32> to vector<2x18x1x3xf32>
    %9 = tpu.concatenate %7, %6, %8 in 2 : vector<2x18x1x3xf32>, vector<2x18x16x3xf32>, vector<2x18x1x3xf32> -> vector<2x18x18x3xf32>
    %10 = vector.extract_strided_slice %9 {offsets = [0, 0, 0, 0], sizes = [2, 16, 16, 3], strides = [1, 1, 1, 1]} : vector<2x18x18x3xf32> to vector<2x16x16x3xf32>
    %11 = vector.extract_strided_slice %9 {offsets = [0, 0, 1, 0], sizes = [2, 16, 16, 3], strides = [1, 1, 1, 1]} : vector<2x18x18x3xf32> to vector<2x16x16x3xf32>
    %12 = vector.extract_strided_slice %9 {offsets = [0, 0, 2, 0], sizes = [2, 16, 16, 3], strides = [1, 1, 1, 1]} : vector<2x18x18x3xf32> to vector<2x16x16x3xf32>
    %13 = vector.extract_strided_slice %9 {offsets = [0, 1, 0, 0], sizes = [2, 16, 16, 3], strides = [1, 1, 1, 1]} : vector<2x18x18x3xf32> to vector<2x16x16x3xf32>
    %14 = vector.extract_strided_slice %9 {offsets = [0, 1, 1, 0], sizes = [2, 16, 16, 3], strides = [1, 1, 1, 1]} : vector<2x18x18x3xf32> to vector<2x16x16x3xf32>
    %15 = vector.extract_strided_slice %9 {offsets = [0, 1, 2, 0], sizes = [2, 16, 16, 3], strides = [1, 1, 1, 1]} : vector<2x18x18x3xf32> to vector<2x16x16x3xf32>
    %16 = vector.extract_strided_slice %9 {offsets = [0, 2, 0, 0], sizes = [2, 16, 16, 3], strides = [1, 1, 1, 1]} : vector<2x18x18x3xf32> to vector<2x16x16x3xf32>
    %17 = vector.extract_strided_slice %9 {offsets = [0, 2, 1, 0], sizes = [2, 16, 16, 3], strides = [1, 1, 1, 1]} : vector<2x18x18x3xf32> to vector<2x16x16x3xf32>
    %18 = vector.extract_strided_slice %9 {offsets = [0, 2, 2, 0], sizes = [2, 16, 16, 3], strides = [1, 1, 1, 1]} : vector<2x18x18x3xf32> to vector<2x16x16x3xf32>
    %19 = tpu.concatenate %10, %11, %12, %13, %14, %15, %16, %17, %18 in 3 : vector<2x16x16x3xf32>, vector<2x16x16x3xf32>, vector<2x16x16x3xf32>, vector<2x16x16x3xf32>, vector<2x16x16x3xf32>, vector<2x16x16x3xf32>, vector<2x16x16x3xf32>, vector<2x16x16x3xf32>, vector<2x16x16x3xf32> -> vector<2x16x16x27xf32>
    %20 = vector.shape_cast %19 : vector<2x16x16x27xf32> to vector<512x27xf32>
    %21 = arith.truncf %20 : vector<512x27xf32> to vector<512x27xbf16>
    %cst = arith.constant dense<0.000000e+00> : vector<512x8xf32>
    %22 = tpu.matmul %21, %1, %cst {dimension_numbers = #tpu.dot_dimension_numbers<[1], [0], [0], [1], [0, 0, 1, 1], [], []>} : vector<512x27xbf16>, vector<27x8xbf16>, vector<512x8xf32> -> vector<512x8xf32>
    %cst_9 = arith.constant dense<0.000000e+00> : vector<8xf32>
    %23 = vector.multi_reduction <add>, %22, %cst_9 [0] : vector<512x8xf32> to vector<8xf32>
    %24 = vector.shape_cast %23 : vector<8xf32> to vector<1x8xf32>
    %25 = arith.mulf %22, %22 : vector<512x8xf32>
    %cst_10 = arith.constant dense<0.000000e+00> : vector<8xf32>
    %26 = vector.multi_reduction <add>, %25, %cst_10 [0] : vector<512x8xf32> to vector<8xf32>
    %27 = vector.shape_cast %26 : vector<8xf32> to vector<1x8xf32>
    %cst_11 = arith.constant 5.120000e+02 : f32
    %28 = vector.broadcast %cst_11 : f32 to vector<1x8xf32>
    %29 = arith.divf %24, %28 : vector<1x8xf32>
    %cst_12 = arith.constant 5.120000e+02 : f32
    %30 = vector.broadcast %cst_12 : f32 to vector<1x8xf32>
    %31 = arith.divf %27, %30 : vector<1x8xf32>
    %32 = arith.mulf %29, %29 : vector<1x8xf32>
    %33 = arith.subf %31, %32 : vector<1x8xf32>
    %cst_13 = arith.constant 0.000000e+00 : f32
    %34 = vector.broadcast %cst_13 : f32 to vector<1x8xf32>
    %35 = arith.maximumf %33, %34 : vector<1x8xf32>
    %cst_14 = arith.constant 9.99999974E-6 : f32
    %36 = vector.broadcast %cst_14 : f32 to vector<1x8xf32>
    %37 = arith.addf %35, %36 : vector<1x8xf32>
    %38 = math.rsqrt %37 : vector<1x8xf32>
    %39 = arith.mulf %2, %38 : vector<1x8xf32>
    %40 = arith.mulf %29, %39 : vector<1x8xf32>
    %41 = arith.subf %3, %40 : vector<1x8xf32>
    %42 = vector.broadcast %39 : vector<1x8xf32> to vector<512x8xf32>
    %43 = arith.mulf %22, %42 : vector<512x8xf32>
    %44 = vector.broadcast %41 : vector<1x8xf32> to vector<512x8xf32>
    %45 = arith.addf %43, %44 : vector<512x8xf32>
    %cst_15 = arith.constant 0.000000e+00 : f32
    %46 = vector.broadcast %cst_15 : f32 to vector<512x8xf32>
    %47 = arith.maximumf %45, %46 : vector<512x8xf32>
    %48 = vector.shape_cast %47 : vector<512x8xf32> to vector<2x16x16x8xf32>
    %c0_16 = arith.constant 0 : index
    %c0_17 = arith.constant 0 : index
    %49 = vector.load %arg4[%c0_16, %c0_17] : memref<72x16xbf16, #tpu.memory_space<vmem>>, vector<72x16xbf16>
    %c0_18 = arith.constant 0 : index
    %c0_19 = arith.constant 0 : index
    %50 = vector.load %arg5[%c0_18, %c0_19] : memref<1x16xf32, #tpu.memory_space<vmem>>, vector<1x16xf32>
    %c0_20 = arith.constant 0 : index
    %c0_21 = arith.constant 0 : index
    %51 = vector.load %arg6[%c0_20, %c0_21] : memref<1x16xf32, #tpu.memory_space<vmem>>, vector<1x16xf32>
    %52 = vector.extract_strided_slice %48 {offsets = [0, 1, 0, 0], sizes = [2, 1, 16, 8], strides = [1, 1, 1, 1]} : vector<2x16x16x8xf32> to vector<2x1x16x8xf32>
    %53 = vector.extract_strided_slice %48 {offsets = [0, 14, 0, 0], sizes = [2, 1, 16, 8], strides = [1, 1, 1, 1]} : vector<2x16x16x8xf32> to vector<2x1x16x8xf32>
    %54 = tpu.concatenate %52, %48, %53 in 1 : vector<2x1x16x8xf32>, vector<2x16x16x8xf32>, vector<2x1x16x8xf32> -> vector<2x18x16x8xf32>
    %55 = vector.extract_strided_slice %54 {offsets = [0, 0, 1, 0], sizes = [2, 18, 1, 8], strides = [1, 1, 1, 1]} : vector<2x18x16x8xf32> to vector<2x18x1x8xf32>
    %56 = vector.extract_strided_slice %54 {offsets = [0, 0, 14, 0], sizes = [2, 18, 1, 8], strides = [1, 1, 1, 1]} : vector<2x18x16x8xf32> to vector<2x18x1x8xf32>
    %57 = tpu.concatenate %55, %54, %56 in 2 : vector<2x18x1x8xf32>, vector<2x18x16x8xf32>, vector<2x18x1x8xf32> -> vector<2x18x18x8xf32>
    %58 = vector.extract_strided_slice %57 {offsets = [0, 0, 0, 0], sizes = [2, 16, 16, 8], strides = [1, 1, 1, 1]} : vector<2x18x18x8xf32> to vector<2x16x16x8xf32>
    %59 = vector.extract_strided_slice %57 {offsets = [0, 0, 1, 0], sizes = [2, 16, 16, 8], strides = [1, 1, 1, 1]} : vector<2x18x18x8xf32> to vector<2x16x16x8xf32>
    %60 = vector.extract_strided_slice %57 {offsets = [0, 0, 2, 0], sizes = [2, 16, 16, 8], strides = [1, 1, 1, 1]} : vector<2x18x18x8xf32> to vector<2x16x16x8xf32>
    %61 = vector.extract_strided_slice %57 {offsets = [0, 1, 0, 0], sizes = [2, 16, 16, 8], strides = [1, 1, 1, 1]} : vector<2x18x18x8xf32> to vector<2x16x16x8xf32>
    %62 = vector.extract_strided_slice %57 {offsets = [0, 1, 1, 0], sizes = [2, 16, 16, 8], strides = [1, 1, 1, 1]} : vector<2x18x18x8xf32> to vector<2x16x16x8xf32>
    %63 = vector.extract_strided_slice %57 {offsets = [0, 1, 2, 0], sizes = [2, 16, 16, 8], strides = [1, 1, 1, 1]} : vector<2x18x18x8xf32> to vector<2x16x16x8xf32>
    %64 = vector.extract_strided_slice %57 {offsets = [0, 2, 0, 0], sizes = [2, 16, 16, 8], strides = [1, 1, 1, 1]} : vector<2x18x18x8xf32> to vector<2x16x16x8xf32>
    %65 = vector.extract_strided_slice %57 {offsets = [0, 2, 1, 0], sizes = [2, 16, 16, 8], strides = [1, 1, 1, 1]} : vector<2x18x18x8xf32> to vector<2x16x16x8xf32>
    %66 = vector.extract_strided_slice %57 {offsets = [0, 2, 2, 0], sizes = [2, 16, 16, 8], strides = [1, 1, 1, 1]} : vector<2x18x18x8xf32> to vector<2x16x16x8xf32>
    %67 = tpu.concatenate %58, %59, %60, %61, %62, %63, %64, %65, %66 in 3 : vector<2x16x16x8xf32>, vector<2x16x16x8xf32>, vector<2x16x16x8xf32>, vector<2x16x16x8xf32>, vector<2x16x16x8xf32>, vector<2x16x16x8xf32>, vector<2x16x16x8xf32>, vector<2x16x16x8xf32>, vector<2x16x16x8xf32> -> vector<2x16x16x72xf32>
    %68 = vector.shape_cast %67 : vector<2x16x16x72xf32> to vector<512x72xf32>
    %69 = arith.truncf %68 : vector<512x72xf32> to vector<512x72xbf16>
    %cst_22 = arith.constant dense<0.000000e+00> : vector<512x16xf32>
    %70 = tpu.matmul %69, %49, %cst_22 {dimension_numbers = #tpu.dot_dimension_numbers<[1], [0], [0], [1], [0, 0, 1, 1], [], []>} : vector<512x72xbf16>, vector<72x16xbf16>, vector<512x16xf32> -> vector<512x16xf32>
    %cst_23 = arith.constant dense<0.000000e+00> : vector<16xf32>
    %71 = vector.multi_reduction <add>, %70, %cst_23 [0] : vector<512x16xf32> to vector<16xf32>
    %72 = vector.shape_cast %71 : vector<16xf32> to vector<1x16xf32>
    %73 = arith.mulf %70, %70 : vector<512x16xf32>
    %cst_24 = arith.constant dense<0.000000e+00> : vector<16xf32>
    %74 = vector.multi_reduction <add>, %73, %cst_24 [0] : vector<512x16xf32> to vector<16xf32>
    %75 = vector.shape_cast %74 : vector<16xf32> to vector<1x16xf32>
    %cst_25 = arith.constant 5.120000e+02 : f32
    %76 = vector.broadcast %cst_25 : f32 to vector<1x16xf32>
    %77 = arith.divf %72, %76 : vector<1x16xf32>
    %cst_26 = arith.constant 5.120000e+02 : f32
    %78 = vector.broadcast %cst_26 : f32 to vector<1x16xf32>
    %79 = arith.divf %75, %78 : vector<1x16xf32>
    %80 = arith.mulf %77, %77 : vector<1x16xf32>
    %81 = arith.subf %79, %80 : vector<1x16xf32>
    %cst_27 = arith.constant 0.000000e+00 : f32
    %82 = vector.broadcast %cst_27 : f32 to vector<1x16xf32>
    %83 = arith.maximumf %81, %82 : vector<1x16xf32>
    %cst_28 = arith.constant 9.99999974E-6 : f32
    %84 = vector.broadcast %cst_28 : f32 to vector<1x16xf32>
    %85 = arith.addf %83, %84 : vector<1x16xf32>
    %86 = math.rsqrt %85 : vector<1x16xf32>
    %87 = arith.mulf %50, %86 : vector<1x16xf32>
    %88 = arith.mulf %77, %87 : vector<1x16xf32>
    %89 = arith.subf %51, %88 : vector<1x16xf32>
    %90 = vector.broadcast %87 : vector<1x16xf32> to vector<512x16xf32>
    %91 = arith.mulf %70, %90 : vector<512x16xf32>
    %92 = vector.broadcast %89 : vector<1x16xf32> to vector<512x16xf32>
    %93 = arith.addf %91, %92 : vector<512x16xf32>
    %cst_29 = arith.constant 0.000000e+00 : f32
    %94 = vector.broadcast %cst_29 : f32 to vector<512x16xf32>
    %95 = arith.maximumf %93, %94 : vector<512x16xf32>
    %96 = vector.shape_cast %95 : vector<512x16xf32> to vector<2x16x16x16xf32>
    %c0_30 = arith.constant 0 : index
    %c0_31 = arith.constant 0 : index
    %97 = vector.load %arg7[%c0_30, %c0_31] : memref<144x32xbf16, #tpu.memory_space<vmem>>, vector<144x32xbf16>
    %c0_32 = arith.constant 0 : index
    %c0_33 = arith.constant 0 : index
    %98 = vector.load %arg8[%c0_32, %c0_33] : memref<1x32xf32, #tpu.memory_space<vmem>>, vector<1x32xf32>
    %c0_34 = arith.constant 0 : index
    %c0_35 = arith.constant 0 : index
    %99 = vector.load %arg9[%c0_34, %c0_35] : memref<1x32xf32, #tpu.memory_space<vmem>>, vector<1x32xf32>
    %100 = vector.extract_strided_slice %96 {offsets = [0, 1, 0, 0], sizes = [2, 1, 16, 16], strides = [1, 1, 1, 1]} : vector<2x16x16x16xf32> to vector<2x1x16x16xf32>
    %101 = vector.extract_strided_slice %96 {offsets = [0, 14, 0, 0], sizes = [2, 1, 16, 16], strides = [1, 1, 1, 1]} : vector<2x16x16x16xf32> to vector<2x1x16x16xf32>
    %102 = tpu.concatenate %100, %96, %101 in 1 : vector<2x1x16x16xf32>, vector<2x16x16x16xf32>, vector<2x1x16x16xf32> -> vector<2x18x16x16xf32>
    %103 = vector.extract_strided_slice %102 {offsets = [0, 0, 1, 0], sizes = [2, 18, 1, 16], strides = [1, 1, 1, 1]} : vector<2x18x16x16xf32> to vector<2x18x1x16xf32>
    %104 = vector.extract_strided_slice %102 {offsets = [0, 0, 14, 0], sizes = [2, 18, 1, 16], strides = [1, 1, 1, 1]} : vector<2x18x16x16xf32> to vector<2x18x1x16xf32>
    %105 = tpu.concatenate %103, %102, %104 in 2 : vector<2x18x1x16xf32>, vector<2x18x16x16xf32>, vector<2x18x1x16xf32> -> vector<2x18x18x16xf32>
    %106 = vector.extract_strided_slice %105 {offsets = [0, 0, 0, 0], sizes = [2, 16, 16, 16], strides = [1, 1, 1, 1]} : vector<2x18x18x16xf32> to vector<2x16x16x16xf32>
    %107 = vector.extract_strided_slice %105 {offsets = [0, 0, 1, 0], sizes = [2, 16, 16, 16], strides = [1, 1, 1, 1]} : vector<2x18x18x16xf32> to vector<2x16x16x16xf32>
    %108 = vector.extract_strided_slice %105 {offsets = [0, 0, 2, 0], sizes = [2, 16, 16, 16], strides = [1, 1, 1, 1]} : vector<2x18x18x16xf32> to vector<2x16x16x16xf32>
    %109 = vector.extract_strided_slice %105 {offsets = [0, 1, 0, 0], sizes = [2, 16, 16, 16], strides = [1, 1, 1, 1]} : vector<2x18x18x16xf32> to vector<2x16x16x16xf32>
    %110 = vector.extract_strided_slice %105 {offsets = [0, 1, 1, 0], sizes = [2, 16, 16, 16], strides = [1, 1, 1, 1]} : vector<2x18x18x16xf32> to vector<2x16x16x16xf32>
    %111 = vector.extract_strided_slice %105 {offsets = [0, 1, 2, 0], sizes = [2, 16, 16, 16], strides = [1, 1, 1, 1]} : vector<2x18x18x16xf32> to vector<2x16x16x16xf32>
    %112 = vector.extract_strided_slice %105 {offsets = [0, 2, 0, 0], sizes = [2, 16, 16, 16], strides = [1, 1, 1, 1]} : vector<2x18x18x16xf32> to vector<2x16x16x16xf32>
    %113 = vector.extract_strided_slice %105 {offsets = [0, 2, 1, 0], sizes = [2, 16, 16, 16], strides = [1, 1, 1, 1]} : vector<2x18x18x16xf32> to vector<2x16x16x16xf32>
    %114 = vector.extract_strided_slice %105 {offsets = [0, 2, 2, 0], sizes = [2, 16, 16, 16], strides = [1, 1, 1, 1]} : vector<2x18x18x16xf32> to vector<2x16x16x16xf32>
    %115 = tpu.concatenate %106, %107, %108, %109, %110, %111, %112, %113, %114 in 3 : vector<2x16x16x16xf32>, vector<2x16x16x16xf32>, vector<2x16x16x16xf32>, vector<2x16x16x16xf32>, vector<2x16x16x16xf32>, vector<2x16x16x16xf32>, vector<2x16x16x16xf32>, vector<2x16x16x16xf32>, vector<2x16x16x16xf32> -> vector<2x16x16x144xf32>
    %116 = vector.shape_cast %115 : vector<2x16x16x144xf32> to vector<512x144xf32>
    %117 = arith.truncf %116 : vector<512x144xf32> to vector<512x144xbf16>
    %cst_36 = arith.constant dense<0.000000e+00> : vector<512x32xf32>
    %118 = tpu.matmul %117, %97, %cst_36 {dimension_numbers = #tpu.dot_dimension_numbers<[1], [0], [0], [1], [0, 0, 1, 1], [], []>} : vector<512x144xbf16>, vector<144x32xbf16>, vector<512x32xf32> -> vector<512x32xf32>
    %cst_37 = arith.constant dense<0.000000e+00> : vector<32xf32>
    %119 = vector.multi_reduction <add>, %118, %cst_37 [0] : vector<512x32xf32> to vector<32xf32>
    %120 = vector.shape_cast %119 : vector<32xf32> to vector<1x32xf32>
    %121 = arith.mulf %118, %118 : vector<512x32xf32>
    %cst_38 = arith.constant dense<0.000000e+00> : vector<32xf32>
    %122 = vector.multi_reduction <add>, %121, %cst_38 [0] : vector<512x32xf32> to vector<32xf32>
    %123 = vector.shape_cast %122 : vector<32xf32> to vector<1x32xf32>
    %cst_39 = arith.constant 5.120000e+02 : f32
    %124 = vector.broadcast %cst_39 : f32 to vector<1x32xf32>
    %125 = arith.divf %120, %124 : vector<1x32xf32>
    %cst_40 = arith.constant 5.120000e+02 : f32
    %126 = vector.broadcast %cst_40 : f32 to vector<1x32xf32>
    %127 = arith.divf %123, %126 : vector<1x32xf32>
    %128 = arith.mulf %125, %125 : vector<1x32xf32>
    %129 = arith.subf %127, %128 : vector<1x32xf32>
    %cst_41 = arith.constant 0.000000e+00 : f32
    %130 = vector.broadcast %cst_41 : f32 to vector<1x32xf32>
    %131 = arith.maximumf %129, %130 : vector<1x32xf32>
    %cst_42 = arith.constant 9.99999974E-6 : f32
    %132 = vector.broadcast %cst_42 : f32 to vector<1x32xf32>
    %133 = arith.addf %131, %132 : vector<1x32xf32>
    %134 = math.rsqrt %133 : vector<1x32xf32>
    %135 = arith.mulf %98, %134 : vector<1x32xf32>
    %136 = arith.mulf %125, %135 : vector<1x32xf32>
    %137 = arith.subf %99, %136 : vector<1x32xf32>
    %138 = vector.broadcast %135 : vector<1x32xf32> to vector<512x32xf32>
    %139 = arith.mulf %118, %138 : vector<512x32xf32>
    %140 = vector.broadcast %137 : vector<1x32xf32> to vector<512x32xf32>
    %141 = arith.addf %139, %140 : vector<512x32xf32>
    %cst_43 = arith.constant 0.000000e+00 : f32
    %142 = vector.broadcast %cst_43 : f32 to vector<512x32xf32>
    %143 = arith.maximumf %141, %142 : vector<512x32xf32>
    %144 = vector.shape_cast %143 : vector<512x32xf32> to vector<2x16x16x32xf32>
    %c0_44 = arith.constant 0 : index
    %c0_45 = arith.constant 0 : index
    %145 = vector.load %arg10[%c0_44, %c0_45] : memref<288x128xbf16, #tpu.memory_space<vmem>>, vector<288x128xbf16>
    %c0_46 = arith.constant 0 : index
    %c0_47 = arith.constant 0 : index
    %146 = vector.load %arg11[%c0_46, %c0_47] : memref<1x128xf32, #tpu.memory_space<vmem>>, vector<1x128xf32>
    %c0_48 = arith.constant 0 : index
    %c0_49 = arith.constant 0 : index
    %147 = vector.load %arg12[%c0_48, %c0_49] : memref<1x128xf32, #tpu.memory_space<vmem>>, vector<1x128xf32>
    %148 = vector.extract_strided_slice %144 {offsets = [0, 1, 0, 0], sizes = [2, 1, 16, 32], strides = [1, 1, 1, 1]} : vector<2x16x16x32xf32> to vector<2x1x16x32xf32>
    %149 = vector.extract_strided_slice %144 {offsets = [0, 14, 0, 0], sizes = [2, 1, 16, 32], strides = [1, 1, 1, 1]} : vector<2x16x16x32xf32> to vector<2x1x16x32xf32>
    %150 = tpu.concatenate %148, %144, %149 in 1 : vector<2x1x16x32xf32>, vector<2x16x16x32xf32>, vector<2x1x16x32xf32> -> vector<2x18x16x32xf32>
    %151 = vector.extract_strided_slice %150 {offsets = [0, 0, 1, 0], sizes = [2, 18, 1, 32], strides = [1, 1, 1, 1]} : vector<2x18x16x32xf32> to vector<2x18x1x32xf32>
    %152 = vector.extract_strided_slice %150 {offsets = [0, 0, 14, 0], sizes = [2, 18, 1, 32], strides = [1, 1, 1, 1]} : vector<2x18x16x32xf32> to vector<2x18x1x32xf32>
    %153 = tpu.concatenate %151, %150, %152 in 2 : vector<2x18x1x32xf32>, vector<2x18x16x32xf32>, vector<2x18x1x32xf32> -> vector<2x18x18x32xf32>
    %154 = vector.extract_strided_slice %153 {offsets = [0, 0, 0, 0], sizes = [2, 16, 16, 32], strides = [1, 1, 1, 1]} : vector<2x18x18x32xf32> to vector<2x16x16x32xf32>
    %155 = vector.extract_strided_slice %153 {offsets = [0, 0, 1, 0], sizes = [2, 16, 16, 32], strides = [1, 1, 1, 1]} : vector<2x18x18x32xf32> to vector<2x16x16x32xf32>
    %156 = vector.extract_strided_slice %153 {offsets = [0, 0, 2, 0], sizes = [2, 16, 16, 32], strides = [1, 1, 1, 1]} : vector<2x18x18x32xf32> to vector<2x16x16x32xf32>
    %157 = vector.extract_strided_slice %153 {offsets = [0, 1, 0, 0], sizes = [2, 16, 16, 32], strides = [1, 1, 1, 1]} : vector<2x18x18x32xf32> to vector<2x16x16x32xf32>
    %158 = vector.extract_strided_slice %153 {offsets = [0, 1, 1, 0], sizes = [2, 16, 16, 32], strides = [1, 1, 1, 1]} : vector<2x18x18x32xf32> to vector<2x16x16x32xf32>
    %159 = vector.extract_strided_slice %153 {offsets = [0, 1, 2, 0], sizes = [2, 16, 16, 32], strides = [1, 1, 1, 1]} : vector<2x18x18x32xf32> to vector<2x16x16x32xf32>
    %160 = vector.extract_strided_slice %153 {offsets = [0, 2, 0, 0], sizes = [2, 16, 16, 32], strides = [1, 1, 1, 1]} : vector<2x18x18x32xf32> to vector<2x16x16x32xf32>
    %161 = vector.extract_strided_slice %153 {offsets = [0, 2, 1, 0], sizes = [2, 16, 16, 32], strides = [1, 1, 1, 1]} : vector<2x18x18x32xf32> to vector<2x16x16x32xf32>
    %162 = vector.extract_strided_slice %153 {offsets = [0, 2, 2, 0], sizes = [2, 16, 16, 32], strides = [1, 1, 1, 1]} : vector<2x18x18x32xf32> to vector<2x16x16x32xf32>
    %163 = tpu.concatenate %154, %155, %156, %157, %158, %159, %160, %161, %162 in 3 : vector<2x16x16x32xf32>, vector<2x16x16x32xf32>, vector<2x16x16x32xf32>, vector<2x16x16x32xf32>, vector<2x16x16x32xf32>, vector<2x16x16x32xf32>, vector<2x16x16x32xf32>, vector<2x16x16x32xf32>, vector<2x16x16x32xf32> -> vector<2x16x16x288xf32>
    %164 = vector.shape_cast %163 : vector<2x16x16x288xf32> to vector<512x288xf32>
    %165 = arith.truncf %164 : vector<512x288xf32> to vector<512x288xbf16>
    %cst_50 = arith.constant dense<0.000000e+00> : vector<512x128xf32>
    %166 = tpu.matmul %165, %145, %cst_50 {dimension_numbers = #tpu.dot_dimension_numbers<[1], [0], [0], [1], [0, 0, 1, 1], [], []>} : vector<512x288xbf16>, vector<288x128xbf16>, vector<512x128xf32> -> vector<512x128xf32>
    %cst_51 = arith.constant dense<0.000000e+00> : vector<128xf32>
    %167 = vector.multi_reduction <add>, %166, %cst_51 [0] : vector<512x128xf32> to vector<128xf32>
    %168 = vector.shape_cast %167 : vector<128xf32> to vector<1x128xf32>
    %169 = arith.mulf %166, %166 : vector<512x128xf32>
    %cst_52 = arith.constant dense<0.000000e+00> : vector<128xf32>
    %170 = vector.multi_reduction <add>, %169, %cst_52 [0] : vector<512x128xf32> to vector<128xf32>
    %171 = vector.shape_cast %170 : vector<128xf32> to vector<1x128xf32>
    %cst_53 = arith.constant 5.120000e+02 : f32
    %172 = vector.broadcast %cst_53 : f32 to vector<1x128xf32>
    %173 = arith.divf %168, %172 : vector<1x128xf32>
    %cst_54 = arith.constant 5.120000e+02 : f32
    %174 = vector.broadcast %cst_54 : f32 to vector<1x128xf32>
    %175 = arith.divf %171, %174 : vector<1x128xf32>
    %176 = arith.mulf %173, %173 : vector<1x128xf32>
    %177 = arith.subf %175, %176 : vector<1x128xf32>
    %cst_55 = arith.constant 0.000000e+00 : f32
    %178 = vector.broadcast %cst_55 : f32 to vector<1x128xf32>
    %179 = arith.maximumf %177, %178 : vector<1x128xf32>
    %cst_56 = arith.constant 9.99999974E-6 : f32
    %180 = vector.broadcast %cst_56 : f32 to vector<1x128xf32>
    %181 = arith.addf %179, %180 : vector<1x128xf32>
    %182 = math.rsqrt %181 : vector<1x128xf32>
    %183 = arith.mulf %146, %182 : vector<1x128xf32>
    %184 = arith.mulf %173, %183 : vector<1x128xf32>
    %185 = arith.subf %147, %184 : vector<1x128xf32>
    %186 = vector.broadcast %183 : vector<1x128xf32> to vector<512x128xf32>
    %187 = arith.mulf %166, %186 : vector<512x128xf32>
    %188 = vector.broadcast %185 : vector<1x128xf32> to vector<512x128xf32>
    %189 = arith.addf %187, %188 : vector<512x128xf32>
    %cst_57 = arith.constant 0.000000e+00 : f32
    %190 = vector.broadcast %cst_57 : f32 to vector<512x128xf32>
    %191 = arith.maximumf %189, %190 : vector<512x128xf32>
    %192 = vector.shape_cast %191 : vector<512x128xf32> to vector<2x16x16x128xf32>
    %c0_58 = arith.constant 0 : index
    %c0_59 = arith.constant 0 : index
    %c0_60 = arith.constant 0 : index
    %c0_61 = arith.constant 0 : index
    %193 = vector.load %arg13[%c0_58, %c0_59, %c0_60, %c0_61] : memref<2x16x16x128xf32, #tpu.memory_space<vmem>>, vector<2x16x16x128xf32>
    tpu.vector_store %arg13[%c0_58, %c0_59, %c0_60, %c0_61], %192 {strides = array<i32>} : memref<2x16x16x128xf32, #tpu.memory_space<vmem>>, vector<2x16x16x128xf32>,
    return
  }
}

</mosaic_0001>

<llo_original>
// kernel: masks_forward.1
$region0: #{masks_forward.1}
  #allocation0 [shape = 'u32[]', space=smem, size = 0x4, offset = 0x4, fixed_abs, tag = 'smem constant byte address 0x4 - core index']
  #allocation1 [shape = 'u32[144,128]{1,0:T(1,128)}', space=vmem, size = 0x12000, scoped, tag = 'internal scratch']
  %s0 = inlined_call_operand.vmem [shape: f32[2,16,16,3], index: 0, kind: input, shape index: {}]
  %s1 = inlined_call_operand.vmem [shape: bf16[27,8], index: 1, kind: input, shape index: {}]
  %s2 = inlined_call_operand.vmem [shape: f32[1,8], index: 2, kind: input, shape index: {}]
  %s3 = inlined_call_operand.vmem [shape: f32[1,8], index: 3, kind: input, shape index: {}]
  %s4 = inlined_call_operand.vmem [shape: bf16[72,16], index: 4, kind: input, shape index: {}]
  %s5 = inlined_call_operand.vmem [shape: f32[1,16], index: 5, kind: input, shape index: {}]
  %s6 = inlined_call_operand.vmem [shape: f32[1,16], index: 6, kind: input, shape index: {}]
  %s7 = inlined_call_operand.vmem [shape: bf16[144,32], index: 7, kind: input, shape index: {}]
  %s8 = inlined_call_operand.vmem [shape: f32[1,32], index: 8, kind: input, shape index: {}]
  %s9 = inlined_call_operand.vmem [shape: f32[1,32], index: 9, kind: input, shape index: {}]
  %s10 = inlined_call_operand.vmem [shape: bf16[288,128], index: 10, kind: input, shape index: {}]
  %s11 = inlined_call_operand.vmem [shape: f32[1,128], index: 11, kind: input, shape index: {}]
  %s12 = inlined_call_operand.vmem [shape: f32[1,128], index: 12, kind: input, shape index: {}]
  %s13 = inlined_call_operand.vmem [shape: f32[2,16,16,128], index: 13, kind: output, shape index: {}]
  %s14 = sld [smem:[#allocation0]]
  $region62: #{masks_forward.1} parent=0
    _
  %s16 = ssub.s32 1, %s14
  %s17 = scalar_select 0, %s16, %s14
  // Predicated region
  $region2: #{masks_forward.1} parent=0 // pred_check
    _
  $region3: #{masks_forward.1} parent=0 // pred_check_branch
    %19 = sbr.rel (0) target = $region5
  $region4: #{masks_forward.1} parent=0 // pred_region
    _
  $region5: #{masks_forward.1} parent=0 // pred_fallthru
    _
  // Predicated region
  $region6: #{masks_forward.1} parent=0 // pred_check
    _
  $region7: #{masks_forward.1} parent=0 // pred_check_branch
    %21 = sbr.rel (0) target = $region9
  $region8: #{masks_forward.1} parent=0 // pred_region
    _
  $region9: #{masks_forward.1} parent=0 // pred_fallthru
    _
  // Predicated region
  $region10: #{masks_forward.1} parent=0 // pred_check
    _
  $region11: #{masks_forward.1} parent=0 // pred_check_branch
    %23 = sbr.rel (0) target = $region13
  $region12: #{masks_forward.1} parent=0 // pred_region
    _
  $region13: #{masks_forward.1} parent=0 // pred_fallthru
    _
  // Predicated region
  $region14: #{masks_forward.1} parent=0 // pred_check
    _
  $region15: #{masks_forward.1} parent=0 // pred_check_branch
    %25 = sbr.rel (0) target = $region17
  $region16: #{masks_forward.1} parent=0 // pred_region
    _
  $region17: #{masks_forward.1} parent=0 // pred_fallthru
    _
  // Predicated region
  $region18: #{masks_forward.1} parent=0 // pred_check
    _
  $region19: #{masks_forward.1} parent=0 // pred_check_branch
    %27 = sbr.rel (0) target = $region21
  $region20: #{masks_forward.1} parent=0 // pred_region
    _
  $region21: #{masks_forward.1} parent=0 // pred_fallthru
    _
  // Predicated region
  $region22: #{masks_forward.1} parent=0 // pred_check
    _
  $region23: #{masks_forward.1} parent=0 // pred_check_branch
    %29 = sbr.rel (0) target = $region25
  $region24: #{masks_forward.1} parent=0 // pred_region
    _
  $region25: #{masks_forward.1} parent=0 // pred_fallthru
    _
  // Predicated region
  $region26: #{masks_forward.1} parent=0 // pred_check
    _
  $region27: #{masks_forward.1} parent=0 // pred_check_branch
    %31 = sbr.rel (0) target = $region29
  $region28: #{masks_forward.1} parent=0 // pred_region
    _
  $region29: #{masks_forward.1} parent=0 // pred_fallthru
    _
  // Predicated region
  $region30: #{masks_forward.1} parent=0 // pred_check
    _
  $region31: #{masks_forward.1} parent=0 // pred_check_branch
    %33 = sbr.rel (0) target = $region33
  $region32: #{masks_forward.1} parent=0 // pred_region
    _
  $region33: #{masks_forward.1} parent=0 // pred_fallthru
    _
  // Predicated region
  $region34: #{masks_forward.1} parent=0 // pred_check
    _
  $region35: #{masks_forward.1} parent=0 // pred_check_branch
    %35 = sbr.rel (0) target = $region37
  $region36: #{masks_forward.1} parent=0 // pred_region
    _
  $region37: #{masks_forward.1} parent=0 // pred_fallthru
    _
  // Predicated region
  $region38: #{masks_forward.1} parent=0 // pred_check
    _
  $region39: #{masks_forward.1} parent=0 // pred_check_branch
    %37 = sbr.rel (0) target = $region41
  $region40: #{masks_forward.1} parent=0 // pred_region
    _
  $region41: #{masks_forward.1} parent=0 // pred_fallthru
    _
  // Predicated region
  $region42: #{masks_forward.1} parent=0 // pred_check
    _
  $region43: #{masks_forward.1} parent=0 // pred_check_branch
    %39 = sbr.rel (0) target = $region45
  $region44: #{masks_forward.1} parent=0 // pred_region
    _
  $region45: #{masks_forward.1} parent=0 // pred_fallthru
    _
  // Predicated region
  $region46: #{masks_forward.1} parent=0 // pred_check
    _
  $region47: #{masks_forward.1} parent=0 // pred_check_branch
    %41 = sbr.rel (0) target = $region49
  $region48: #{masks_forward.1} parent=0 // pred_region
    _
  $region49: #{masks_forward.1} parent=0 // pred_fallthru
    _
  // Predicated region
  $region50: #{masks_forward.1} parent=0 // pred_check
    _
  $region51: #{masks_forward.1} parent=0 // pred_check_branch
    %43 = sbr.rel (0) target = $region53
  $region52: #{masks_forward.1} parent=0 // pred_region
    _
  $region53: #{masks_forward.1} parent=0 // pred_fallthru
    _
  %v45 = vld [vmem:[%s0] sm:$0xff]
  %v46 = vld [vmem:[%s0 + $0x8] sm:$0xff]
  %v47 = vld [vmem:[%s0 + $0x10] sm:$0xff]
  %v48 = vld [vmem:[%s0 + $0x18] sm:$0xff]
  %v49 = vld [vmem:[%s0 + $0x20] sm:$0xff]
  %v50 = vld [vmem:[%s0 + $0x28] sm:$0xff]
  %v51 = vld [vmem:[%s0 + $0x30] sm:$0xff]
  %v52 = vld [vmem:[%s0 + $0x38] sm:$0xff]
  %v53 = vld [vmem:[%s0 + $0x40] sm:$0xff]
  %v54 = vld [vmem:[%s0 + $0x48] sm:$0xff]
  %v55 = vld [vmem:[%s0 + $0x50] sm:$0xff]
  %v56 = vld [vmem:[%s0 + $0x58] sm:$0xff]
  %v57 = vld [vmem:[%s0 + $0x60] sm:$0xff]
  %v58 = vld [vmem:[%s0 + $0x68] sm:$0xff]
  %v59 = vld [vmem:[%s0 + $0x70] sm:$0xff]
  %v60 = vld [vmem:[%s0 + $0x78] sm:$0xff]
  %v61 = vld [vmem:[%s0 + $0x80] sm:$0xff]
  %v62 = vld [vmem:[%s0 + $0x88] sm:$0xff]
  %v63 = vld [vmem:[%s0 + $0x90] sm:$0xff]
  %v64 = vld [vmem:[%s0 + $0x98] sm:$0xff]
  %v65 = vld [vmem:[%s0 + $0xa0] sm:$0xff]
  %v66 = vld [vmem:[%s0 + $0xa8] sm:$0xff]
  %v67 = vld [vmem:[%s0 + $0xb0] sm:$0xff]
  %v68 = vld [vmem:[%s0 + $0xb8] sm:$0xff]
  %v69 = vld [vmem:[%s0 + $0xc0] sm:$0xff]
  %v70 = vld [vmem:[%s0 + $0xc8] sm:$0xff]
  %v71 = vld [vmem:[%s0 + $0xd0] sm:$0xff]
  %v72 = vld [vmem:[%s0 + $0xd8] sm:$0xff]
  %v73 = vld [vmem:[%s0 + $0xe0] sm:$0xff]
  %v74 = vld [vmem:[%s0 + $0xe8] sm:$0xff]
  %v75 = vld [vmem:[%s0 + $0xf0] sm:$0xff]
  %v76 = vld [vmem:[%s0 + $0xf8] sm:$0xff]
  %v77 = vld [vmem:[%s0 + $0x100] sm:$0xff]
  %v78 = vld [vmem:[%s0 + $0x108] sm:$0xff]
  %v79 = vld [vmem:[%s0 + $0x110] sm:$0xff]
  %v80 = vld [vmem:[%s0 + $0x118] sm:$0xff]
  %v81 = vld [vmem:[%s0 + $0x120] sm:$0xff]
  %v82 = vld [vmem:[%s0 + $0x128] sm:$0xff]
  %v83 = vld [vmem:[%s0 + $0x130] sm:$0xff]
  %v84 = vld [vmem:[%s0 + $0x138] sm:$0xff]
  %v85 = vld [vmem:[%s0 + $0x140] sm:$0xff]
  %v86 = vld [vmem:[%s0 + $0x148] sm:$0xff]
  %v87 = vld [vmem:[%s0 + $0x150] sm:$0xff]
  %v88 = vld [vmem:[%s0 + $0x158] sm:$0xff]
  %v89 = vld [vmem:[%s0 + $0x160] sm:$0xff]
  %v90 = vld [vmem:[%s0 + $0x168] sm:$0xff]
  %v91 = vld [vmem:[%s0 + $0x170] sm:$0xff]
  %v92 = vld [vmem:[%s0 + $0x178] sm:$0xff]
  %v93 = vld [vmem:[%s0 + $0x180] sm:$0xff]
  %v94 = vld [vmem:[%s0 + $0x188] sm:$0xff]
  %v95 = vld [vmem:[%s0 + $0x190] sm:$0xff]
  %v96 = vld [vmem:[%s0 + $0x198] sm:$0xff]
  %v97 = vld [vmem:[%s0 + $0x1a0] sm:$0xff]
  %v98 = vld [vmem:[%s0 + $0x1a8] sm:$0xff]
  %v99 = vld [vmem:[%s0 + $0x1b0] sm:$0xff]
  %v100 = vld [vmem:[%s0 + $0x1b8] sm:$0xff]
  %v101 = vld [vmem:[%s0 + $0x1c0] sm:$0xff]
  %v102 = vld [vmem:[%s0 + $0x1c8] sm:$0xff]
  %v103 = vld [vmem:[%s0 + $0x1d0] sm:$0xff]
  %v104 = vld [vmem:[%s0 + $0x1d8] sm:$0xff]
  %v105 = vld [vmem:[%s0 + $0x1e0] sm:$0xff]
  %v106 = vld [vmem:[%s0 + $0x1e8] sm:$0xff]
  %v107 = vld [vmem:[%s0 + $0x1f0] sm:$0xff]
  %v108 = vld [vmem:[%s0 + $0x1f8] sm:$0xff]
  %v109 = vld [vmem:[%s1] sm:$0xf]
  %v110 = vld [vmem:[%s1 + $0x4] sm:$0xf]
  %v111 = vld [vmem:[%s1 + $0x8] sm:$0xf]
  %v112 = vld [vmem:[%s1 + $0xc] sm:$0x3]
  %v113 = vld [vmem:[%s2] sm:$0x1]
  %v114 = vld [vmem:[%s3] sm:$0x1]
  %v147 = vrot.slane %v47, 1
  %v148 = vrot.slane %v45, 1
  %v149 = vrot.slane %v49, 1
  %v150 = vrot.slane %v51, 1
  %v151 = vrot.slane %v53, 1
  %v152 = vrot.slane %v55, 1
  %v153 = vrot.slane %v57, 1
  %v154 = vrot.slane %v59, 1
  %v155 = vrot.slane %v61, 1
  %v156 = vrot.slane %v63, 1
  %v157 = vrot.slane %v65, 1
  %v158 = vrot.slane %v67, 1
  %v159 = vrot.slane %v69, 1
  %v160 = vrot.slane %v71, 1
  %v161 = vrot.slane %v73, 1
  %v162 = vrot.slane %v75, 1
  %v163 = vrot.slane %v79, 1
  %v164 = vrot.slane %v77, 1
  %v165 = vrot.slane %v81, 1
  %v166 = vrot.slane %v83, 1
  %v167 = vrot.slane %v85, 1
  %v168 = vrot.slane %v87, 1
  %v169 = vrot.slane %v89, 1
  %v170 = vrot.slane %v91, 1
  %v171 = vrot.slane %v93, 1
  %v172 = vrot.slane %v95, 1
  %v173 = vrot.slane %v97, 1
  %v174 = vrot.slane %v99, 1
  %v175 = vrot.slane %v101, 1
  %v176 = vrot.slane %v103, 1
  %v177 = vrot.slane %v105, 1
  %v178 = vrot.slane %v107, 1
  %vm243 = vcmask 1040384
  %v244 = vrot.slane %v47, 7
  %v245 = vrot.slane %v48, 7
  %v246 = vsel %vm243, %v244, %v245
  %v247 = vrot.slane %v45, 7
  %v248 = vrot.slane %v46, 7
  %v249 = vsel %vm243, %v247, %v248
  %v250 = vrot.slane %v49, 7
  %v251 = vrot.slane %v50, 7
  %v252 = vsel %vm243, %v250, %v251
  %v253 = vrot.slane %v51, 7
  %v254 = vrot.slane %v52, 7
  %v255 = vsel %vm243, %v253, %v254
  %v256 = vrot.slane %v53, 7
  %v257 = vrot.slane %v54, 7
  %v258 = vsel %vm243, %v256, %v257
  %v259 = vrot.slane %v55, 7
  %v260 = vrot.slane %v56, 7
  %v261 = vsel %vm243, %v259, %v260
  %v262 = vrot.slane %v57, 7
  %v263 = vrot.slane %v58, 7
  %v264 = vsel %vm243, %v262, %v263
  %v265 = vrot.slane %v59, 7
  %v266 = vrot.slane %v60, 7
  %v267 = vsel %vm243, %v265, %v266
  %v268 = vrot.slane %v61, 7
  %v269 = vrot.slane %v62, 7
  %v270 = vsel %vm243, %v268, %v269
  %v271 = vrot.slane %v63, 7
  %v272 = vrot.slane %v64, 7
  %v273 = vsel %vm243, %v271, %v272
  %v274 = vrot.slane %v65, 7
  %v275 = vrot.slane %v66, 7
  %v276 = vsel %vm243, %v274, %v275
  %v277 = vrot.slane %v67, 7
  %v278 = vrot.slane %v68, 7
  %v279 = vsel %vm243, %v277, %v278
  %v280 = vrot.slane %v69, 7
  %v281 = vrot.slane %v70, 7
  %v282 = vsel %vm243, %v280, %v281
  %v283 = vrot.slane %v71, 7
  %v284 = vrot.slane %v72, 7
  %v285 = vsel %vm243, %v283, %v284
  %v286 = vrot.slane %v73, 7
  %v287 = vrot.slane %v74, 7
  %v288 = vsel %vm243, %v286, %v287
  %v289 = vrot.slane %v75, 7
  %v290 = vrot.slane %v76, 7
  %v291 = vsel %vm243, %v289, %v290
  %v292 = vrot.slane %v79, 7
  %v293 = vrot.slane %v80, 7
  %v294 = vsel %vm243, %v292, %v293
  %v295 = vrot.slane %v77, 7
  %v296 = vrot.slane %v78, 7
  %v297 = vsel %vm243, %v295, %v296
  %v298 = vrot.slane %v81, 7
  %v299 = vrot.slane %v82, 7
  %v300 = vsel %vm243, %v298, %v299
  %v301 = vrot.slane %v83, 7
  %v302 = vrot.slane %v84, 7
  %v303 = vsel %vm243, %v301, %v302
  %v304 = vrot.slane %v85, 7
  %v305 = vrot.slane %v86, 7
  %v306 = vsel %vm243, %v304, %v305
  %v307 = vrot.slane %v87, 7
  %v308 = vrot.slane %v88, 7
  %v309 = vsel %vm243, %v307, %v308
  %v310 = vrot.slane %v89, 7
  %v311 = vrot.slane %v90, 7
  %v312 = vsel %vm243, %v310, %v311
  %v313 = vrot.slane %v91, 7
  %v314 = vrot.slane %v92, 7
  %v315 = vsel %vm243, %v313, %v314
  %v316 = vrot.slane %v93, 7
  %v317 = vrot.slane %v94, 7
  %v318 = vsel %vm243, %v316, %v317
  %v319 = vrot.slane %v95, 7
  %v320 = vrot.slane %v96, 7
  %v321 = vsel %vm243, %v319, %v320
  %v322 = vrot.slane %v97, 7
  %v323 = vrot.slane %v98, 7
  %v324 = vsel %vm243, %v322, %v323
  %v325 = vrot.slane %v99, 7
  %v326 = vrot.slane %v100, 7
  %v327 = vsel %vm243, %v325, %v326
  %v328 = vrot.slane %v101, 7
  %v329 = vrot.slane %v102, 7
  %v330 = vsel %vm243, %v328, %v329
  %v331 = vrot.slane %v103, 7
  %v332 = vrot.slane %v104, 7
  %v333 = vsel %vm243, %v331, %v332
  %v334 = vrot.slane %v105, 7
  %v335 = vrot.slane %v106, 7
  %v336 = vsel %vm243, %v334, %v335
  %v337 = vrot.slane %v107, 7
  %v338 = vrot.slane %v108, 7
  %v339 = vsel %vm243, %v337, %v338
  %v434 = vrot.slane %v48, 5
  %v435 = vrot.slane %v46, 5
  %v436 = vrot.slane %v50, 5
  %v437 = vrot.slane %v52, 5
  %v438 = vrot.slane %v54, 5
  %v439 = vrot.slane %v56, 5
  %v440 = vrot.slane %v58, 5
  %v441 = vrot.slane %v60, 5
  %v442 = vrot.slane %v62, 5
  %v443 = vrot.slane %v64, 5
  %v444 = vrot.slane %v66, 5
  %v445 = vrot.slane %v68, 5
  %v446 = vrot.slane %v70, 5
  %v447 = vrot.slane %v72, 5
  %v448 = vrot.slane %v74, 5
  %v449 = vrot.slane %v76, 5
  %v450 = vrot.slane %v80, 5
  %v451 = vrot.slane %v78, 5
  %v452 = vrot.slane %v82, 5
  %v453 = vrot.slane %v84, 5
  %v454 = vrot.slane %v86, 5
  %v455 = vrot.slane %v88, 5
  %v456 = vrot.slane %v90, 5
  %v457 = vrot.slane %v92, 5
  %v458 = vrot.slane %v94, 5
  %v459 = vrot.slane %v96, 5
  %v460 = vrot.slane %v98, 5
  %v461 = vrot.slane %v100, 5
  %v462 = vrot.slane %v102, 5
  %v463 = vrot.slane %v104, 5
  %v464 = vrot.slane %v106, 5
  %v465 = vrot.slane %v108, 5
  %v498 = vsel %vm243, %v147, %v244
  %v499 = vsel %vm243, %v148, %v247
  %v500 = vsel %vm243, %v149, %v250
  %v501 = vsel %vm243, %v150, %v253
  %v502 = vsel %vm243, %v151, %v256
  %v503 = vsel %vm243, %v152, %v259
  %v504 = vsel %vm243, %v153, %v262
  %v505 = vsel %vm243, %v154, %v265
  %v506 = vsel %vm243, %v155, %v268
  %v507 = vsel %vm243, %v156, %v271
  %v508 = vsel %vm243, %v157, %v274
  %v509 = vsel %vm243, %v158, %v277
  %v510 = vsel %vm243, %v159, %v280
  %v511 = vsel %vm243, %v160, %v283
  %v512 = vsel %vm243, %v161, %v286
  %v513 = vsel %vm243, %v162, %v289
  %v514 = vsel %vm243, %v163, %v292
  %v515 = vsel %vm243, %v164, %v295
  %v516 = vsel %vm243, %v165, %v298
  %v517 = vsel %vm243, %v166, %v301
  %v518 = vsel %vm243, %v167, %v304
  %v519 = vsel %vm243, %v168, %v307
  %v520 = vsel %vm243, %v169, %v310
  %v521 = vsel %vm243, %v170, %v313
  %v522 = vsel %vm243, %v171, %v316
  %v523 = vsel %vm243, %v172, %v319
  %v524 = vsel %vm243, %v173, %v322
  %v525 = vsel %vm243, %v174, %v325
  %v526 = vsel %vm243, %v175, %v328
  %v527 = vsel %vm243, %v176, %v331
  %v528 = vsel %vm243, %v177, %v334
  %v529 = vsel %vm243, %v178, %v337
  %v530 = vsel %vm243, %v245, %v434
  %v531 = vsel %vm243, %v248, %v435
  %v532 = vsel %vm243, %v251, %v436
  %v533 = vsel %vm243, %v254, %v437
  %v534 = vsel %vm243, %v257, %v438
  %v535 = vsel %vm243, %v260, %v439
  %v536 = vsel %vm243, %v263, %v440
  %v537 = vsel %vm243, %v266, %v441
  %v538 = vsel %vm243, %v269, %v442
  %v539 = vsel %vm243, %v272, %v443
  %v540 = vsel %vm243, %v275, %v444
  %v541 = vsel %vm243, %v278, %v445
  %v542 = vsel %vm243, %v281, %v446
  %v543 = vsel %vm243, %v284, %v447
  %v544 = vsel %vm243, %v287, %v448
  %v545 = vsel %vm243, %v290, %v449
  %v546 = vsel %vm243, %v293, %v450
  %v547 = vsel %vm243, %v296, %v451
  %v548 = vsel %vm243, %v299, %v452
  %v549 = vsel %vm243, %v302, %v453
  %v550 = vsel %vm243, %v305, %v454
  %v551 = vsel %vm243, %v308, %v455
  %v552 = vsel %vm243, %v311, %v456
  %v553 = vsel %vm243, %v314, %v457
  %v554 = vsel %vm243, %v317, %v458
  %v555 = vsel %vm243, %v320, %v459
  %v556 = vsel %vm243, %v323, %v460
  %v557 = vsel %vm243, %v326, %v461
  %v558 = vsel %vm243, %v329, %v462
  %v559 = vsel %vm243, %v332, %v463
  %v560 = vsel %vm243, %v335, %v464
  %v561 = vsel %vm243, %v338, %v465
  %vm622 = vcmask 1046528
  %v623 = vrot.slane %v498, 1
  %v624 = vrot.slane %v246, 1
  %v625 = vsel %vm622, %v623, %v624
  %v626 = vrot.slane %v530, 1
  %v627 = vsel %vm622, %v624, %v626
  %v628 = vrot.slane %v499, 1
  %v629 = vrot.slane %v249, 1
  %v630 = vsel %vm622, %v628, %v629
  %v631 = vrot.slane %v531, 1
  %v632 = vsel %vm622, %v629, %v631
  %v633 = vrot.slane %v500, 1
  %v634 = vrot.slane %v252, 1
  %v635 = vsel %vm622, %v633, %v634
  %v636 = vrot.slane %v532, 1
  %v637 = vsel %vm622, %v634, %v636
  %v638 = vrot.slane %v501, 1
  %v639 = vrot.slane %v255, 1
  %v640 = vsel %vm622, %v638, %v639
  %v641 = vrot.slane %v533, 1
  %v642 = vsel %vm622, %v639, %v641
  %v643 = vrot.slane %v502, 1
  %v644 = vrot.slane %v258, 1
  %v645 = vsel %vm622, %v643, %v644
  %v646 = vrot.slane %v534, 1
  %v647 = vsel %vm622, %v644, %v646
  %v648 = vrot.slane %v503, 1
  %v649 = vrot.slane %v261, 1
  %v650 = vsel %vm622, %v648, %v649
  %v651 = vrot.slane %v535, 1
  %v652 = vsel %vm622, %v649, %v651
  %v653 = vrot.slane %v504, 1
  %v654 = vrot.slane %v264, 1
  %v655 = vsel %vm622, %v653, %v654
  %v656 = vrot.slane %v536, 1
  %v657 = vsel %vm622, %v654, %v656
  %v658 = vrot.slane %v505, 1
  %v659 = vrot.slane %v267, 1
  %v660 = vsel %vm622, %v658, %v659
  %v661 = vrot.slane %v537, 1
  %v662 = vsel %vm622, %v659, %v661
  %v663 = vrot.slane %v506, 1
  %v664 = vrot.slane %v270, 1
  %v665 = vsel %vm622, %v663, %v664
  %v666 = vrot.slane %v538, 1
  %v667 = vsel %vm622, %v664, %v666
  %v668 = vrot.slane %v507, 1
  %v669 = vrot.slane %v273, 1
  %v670 = vsel %vm622, %v668, %v669
  %v671 = vrot.slane %v539, 1
  %v672 = vsel %vm622, %v669, %v671
  %v673 = vrot.slane %v508, 1
  %v674 = vrot.slane %v276, 1
  %v675 = vsel %vm622, %v673, %v674
  %v676 = vrot.slane %v540, 1
  %v677 = vsel %vm622, %v674, %v676
  %v678 = vrot.slane %v509, 1
  %v679 = vrot.slane %v279, 1
  %v680 = vsel %vm622, %v678, %v679
  %v681 = vrot.slane %v541, 1
  %v682 = vsel %vm622, %v679, %v681
  %v683 = vrot.slane %v510, 1
  %v684 = vrot.slane %v282, 1
  %v685 = vsel %vm622, %v683, %v684
  %v686 = vrot.slane %v542, 1
  %v687 = vsel %vm622, %v684, %v686
  %v688 = vrot.slane %v511, 1
  %v689 = vrot.slane %v285, 1
  %v690 = vsel %vm622, %v688, %v689
  %v691 = vrot.slane %v543, 1
  %v692 = vsel %vm622, %v689, %v691
  %v693 = vrot.slane %v512, 1
  %v694 = vrot.slane %v288, 1
  %v695 = vsel %vm622, %v693, %v694
  %v696 = vrot.slane %v544, 1
  %v697 = vsel %vm622, %v694, %v696
  %v698 = vrot.slane %v514, 1
  %v699 = vrot.slane %v294, 1
  %v700 = vsel %vm622, %v698, %v699
  %v701 = vrot.slane %v546, 1
  %v702 = vsel %vm622, %v699, %v701
  %v703 = vrot.slane %v515, 1
  %v704 = vrot.slane %v297, 1
  %v705 = vsel %vm622, %v703, %v704
  %v706 = vrot.slane %v547, 1
  %v707 = vsel %vm622, %v704, %v706
  %v708 = vrot.slane %v516, 1
  %v709 = vrot.slane %v300, 1
  %v710 = vsel %vm622, %v708, %v709
  %v711 = vrot.slane %v548, 1
  %v712 = vsel %vm622, %v709, %v711
  %v713 = vrot.slane %v517, 1
  %v714 = vrot.slane %v303, 1
  %v715 = vsel %vm622, %v713, %v714
  %v716 = vrot.slane %v549, 1
  %v717 = vsel %vm622, %v714, %v716
  %v718 = vrot.slane %v518, 1
  %v719 = vrot.slane %v306, 1
  %v720 = vsel %vm622, %v718, %v719
  %v721 = vrot.slane %v550, 1
  %v722 = vsel %vm622, %v719, %v721
  %v723 = vrot.slane %v519, 1
  %v724 = vrot.slane %v309, 1
  %v725 = vsel %vm622, %v723, %v724
  %v726 = vrot.slane %v551, 1
  %v727 = vsel %vm622, %v724, %v726
  %v728 = vrot.slane %v520, 1
  %v729 = vrot.slane %v312, 1
  %v730 = vsel %vm622, %v728, %v729
  %v731 = vrot.slane %v552, 1
  %v732 = vsel %vm622, %v729, %v731
  %v733 = vrot.slane %v521, 1
  %v734 = vrot.slane %v315, 1
  %v735 = vsel %vm622, %v733, %v734
  %v736 = vrot.slane %v553, 1
  %v737 = vsel %vm622, %v734, %v736
  %v738 = vrot.slane %v522, 1
  %v739 = vrot.slane %v318, 1
  %v740 = vsel %vm622, %v738, %v739
  %v741 = vrot.slane %v554, 1
  %v742 = vsel %vm622, %v739, %v741
  %v743 = vrot.slane %v523, 1
  %v744 = vrot.slane %v321, 1
  %v745 = vsel %vm622, %v743, %v744
  %v746 = vrot.slane %v555, 1
  %v747 = vsel %vm622, %v744, %v746
  %v748 = vrot.slane %v524, 1
  %v749 = vrot.slane %v324, 1
  %v750 = vsel %vm622, %v748, %v749
  %v751 = vrot.slane %v556, 1
  %v752 = vsel %vm622, %v749, %v751
  %v753 = vrot.slane %v525, 1
  %v754 = vrot.slane %v327, 1
  %v755 = vsel %vm622, %v753, %v754
  %v756 = vrot.slane %v557, 1
  %v757 = vsel %vm622, %v754, %v756
  %v758 = vrot.slane %v526, 1
  %v759 = vrot.slane %v330, 1
  %v760 = vsel %vm622, %v758, %v759
  %v761 = vrot.slane %v558, 1
  %v762 = vsel %vm622, %v759, %v761
  %v763 = vrot.slane %v527, 1
  %v764 = vrot.slane %v333, 1
  %v765 = vsel %vm622, %v763, %v764
  %v766 = vrot.slane %v559, 1
  %v767 = vsel %vm622, %v764, %v766
  %v768 = vrot.slane %v528, 1
  %v769 = vrot.slane %v336, 1
  %v770 = vsel %vm622, %v768, %v769
  %v771 = vrot.slane %v560, 1
  %v772 = vsel %vm622, %v769, %v771
  %773 = vrot.lane.b32.xlu0 %v625, 3
  %v774 = vpop.permute.xlu0 %773
  %775 = vrot.lane.b32.xlu0 %v627, 3
  %v776 = vpop.permute.xlu0 %775
  %777 = vrot.lane.b32.xlu0 %v630, 3
  %v778 = vpop.permute.xlu0 %777
  %779 = vrot.lane.b32.xlu0 %v632, 3
  %v780 = vpop.permute.xlu0 %779
  %781 = vrot.lane.b32.xlu0 %v635, 3
  %v782 = vpop.permute.xlu0 %781
  %783 = vrot.lane.b32.xlu0 %v637, 3
  %v784 = vpop.permute.xlu0 %783
  %785 = vrot.lane.b32.xlu0 %v640, 3
  %v786 = vpop.permute.xlu0 %785
  %787 = vrot.lane.b32.xlu0 %v642, 3
  %v788 = vpop.permute.xlu0 %787
  %789 = vrot.lane.b32.xlu0 %v645, 3
  %v790 = vpop.permute.xlu0 %789
  %791 = vrot.lane.b32.xlu0 %v647, 3
  %v792 = vpop.permute.xlu0 %791
  %793 = vrot.lane.b32.xlu0 %v650, 3
  %v794 = vpop.permute.xlu0 %793
  %795 = vrot.lane.b32.xlu0 %v652, 3
  %v796 = vpop.permute.xlu0 %795
  %797 = vrot.lane.b32.xlu0 %v655, 3
  %v798 = vpop.permute.xlu0 %797
  %799 = vrot.lane.b32.xlu0 %v657, 3
  %v800 = vpop.permute.xlu0 %799
  %801 = vrot.lane.b32.xlu0 %v660, 3
  %v802 = vpop.permute.xlu0 %801
  %803 = vrot.lane.b32.xlu0 %v662, 3
  %v804 = vpop.permute.xlu0 %803
  %805 = vrot.lane.b32.xlu0 %v665, 3
  %v806 = vpop.permute.xlu0 %805
  %807 = vrot.lane.b32.xlu0 %v667, 3
  %v808 = vpop.permute.xlu0 %807
  %809 = vrot.lane.b32.xlu0 %v670, 3
  %v810 = vpop.permute.xlu0 %809
  %811 = vrot.lane.b32.xlu0 %v672, 3
  %v812 = vpop.permute.xlu0 %811
  %813 = vrot.lane.b32.xlu0 %v675, 3
  %v814 = vpop.permute.xlu0 %813
  %815 = vrot.lane.b32.xlu0 %v677, 3
  %v816 = vpop.permute.xlu0 %815
  %817 = vrot.lane.b32.xlu0 %v680, 3
  %v818 = vpop.permute.xlu0 %817
  %819 = vrot.lane.b32.xlu0 %v682, 3
  %v820 = vpop.permute.xlu0 %819
  %821 = vrot.lane.b32.xlu0 %v685, 3
  %v822 = vpop.permute.xlu0 %821
  %823 = vrot.lane.b32.xlu0 %v687, 3
  %v824 = vpop.permute.xlu0 %823
  %825 = vrot.lane.b32.xlu0 %v690, 3
  %v826 = vpop.permute.xlu0 %825
  %827 = vrot.lane.b32.xlu0 %v692, 3
  %v828 = vpop.permute.xlu0 %827
  %829 = vrot.lane.b32.xlu0 %v695, 3
  %v830 = vpop.permute.xlu0 %829
  %831 = vrot.lane.b32.xlu0 %v697, 3
  %v832 = vpop.permute.xlu0 %831
  %833 = vrot.lane.b32.xlu0 %v700, 3
  %v834 = vpop.permute.xlu0 %833
  %835 = vrot.lane.b32.xlu0 %v702, 3
  %v836 = vpop.permute.xlu0 %835
  %837 = vrot.lane.b32.xlu0 %v705, 3
  %v838 = vpop.permute.xlu0 %837
  %839 = vrot.lane.b32.xlu0 %v707, 3
  %v840 = vpop.permute.xlu0 %839
  %841 = vrot.lane.b32.xlu0 %v710, 3
  %v842 = vpop.permute.xlu0 %841
  %843 = vrot.lane.b32.xlu0 %v712, 3
  %v844 = vpop.permute.xlu0 %843
  %845 = vrot.lane.b32.xlu0 %v715, 3
  %v846 = vpop.permute.xlu0 %845
  %847 = vrot.lane.b32.xlu0 %v717, 3
  %v848 = vpop.permute.xlu0 %847
  %849 = vrot.lane.b32.xlu0 %v720, 3
  %v850 = vpop.permute.xlu0 %849
  %851 = vrot.lane.b32.xlu0 %v722, 3
  %v852 = vpop.permute.xlu0 %851
  %853 = vrot.lane.b32.xlu0 %v725, 3
  %v854 = vpop.permute.xlu0 %853
  %855 = vrot.lane.b32.xlu0 %v727, 3
  %v856 = vpop.permute.xlu0 %855
  %857 = vrot.lane.b32.xlu0 %v730, 3
  %v858 = vpop.permute.xlu0 %857
  %859 = vrot.lane.b32.xlu0 %v732, 3
  %v860 = vpop.permute.xlu0 %859
  %861 = vrot.lane.b32.xlu0 %v735, 3
  %v862 = vpop.permute.xlu0 %861
  %863 = vrot.lane.b32.xlu0 %v737, 3
  %v864 = vpop.permute.xlu0 %863
  %865 = vrot.lane.b32.xlu0 %v740, 3
  %v866 = vpop.permute.xlu0 %865
  %867 = vrot.lane.b32.xlu0 %v742, 3
  %v868 = vpop.permute.xlu0 %867
  %869 = vrot.lane.b32.xlu0 %v745, 3
  %v870 = vpop.permute.xlu0 %869
  %871 = vrot.lane.b32.xlu0 %v747, 3
  %v872 = vpop.permute.xlu0 %871
  %873 = vrot.lane.b32.xlu0 %v750, 3
  %v874 = vpop.permute.xlu0 %873
  %875 = vrot.lane.b32.xlu0 %v752, 3
  %v876 = vpop.permute.xlu0 %875
  %877 = vrot.lane.b32.xlu0 %v755, 3
  %v878 = vpop.permute.xlu0 %877
  %879 = vrot.lane.b32.xlu0 %v757, 3
  %v880 = vpop.permute.xlu0 %879
  %881 = vrot.lane.b32.xlu0 %v760, 3
  %v882 = vpop.permute.xlu0 %881
  %883 = vrot.lane.b32.xlu0 %v762, 3
  %v884 = vpop.permute.xlu0 %883
  %885 = vrot.lane.b32.xlu0 %v765, 3
  %v886 = vpop.permute.xlu0 %885
  %887 = vrot.lane.b32.xlu0 %v767, 3
  %v888 = vpop.permute.xlu0 %887
  %889 = vrot.lane.b32.xlu0 %v770, 3
  %v890 = vpop.permute.xlu0 %889
  %891 = vrot.lane.b32.xlu0 %v772, 3
  %v892 = vpop.permute.xlu0 %891
  %vm953 = vcmask 1045504
  %v954 = vrot.slane %v498, 2
  %v955 = vrot.slane %v246, 2
  %v956 = vsel %vm953, %v954, %v955
  %v957 = vrot.slane %v530, 2
  %v958 = vsel %vm953, %v955, %v957
  %v959 = vrot.slane %v499, 2
  %v960 = vrot.slane %v249, 2
  %v961 = vsel %vm953, %v959, %v960
  %v962 = vrot.slane %v531, 2
  %v963 = vsel %vm953, %v960, %v962
  %v964 = vrot.slane %v500, 2
  %v965 = vrot.slane %v252, 2
  %v966 = vsel %vm953, %v964, %v965
  %v967 = vrot.slane %v532, 2
  %v968 = vsel %vm953, %v965, %v967
  %v969 = vrot.slane %v501, 2
  %v970 = vrot.slane %v255, 2
  %v971 = vsel %vm953, %v969, %v970
  %v972 = vrot.slane %v533, 2
  %v973 = vsel %vm953, %v970, %v972
  %v974 = vrot.slane %v502, 2
  %v975 = vrot.slane %v258, 2
  %v976 = vsel %vm953, %v974, %v975
  %v977 = vrot.slane %v534, 2
  %v978 = vsel %vm953, %v975, %v977
  %v979 = vrot.slane %v503, 2
  %v980 = vrot.slane %v261, 2
  %v981 = vsel %vm953, %v979, %v980
  %v982 = vrot.slane %v535, 2
  %v983 = vsel %vm953, %v980, %v982
  %v984 = vrot.slane %v504, 2
  %v985 = vrot.slane %v264, 2
  %v986 = vsel %vm953, %v984, %v985
  %v987 = vrot.slane %v536, 2
  %v988 = vsel %vm953, %v985, %v987
  %v989 = vrot.slane %v505, 2
  %v990 = vrot.slane %v267, 2
  %v991 = vsel %vm953, %v989, %v990
  %v992 = vrot.slane %v537, 2
  %v993 = vsel %vm953, %v990, %v992
  %v994 = vrot.slane %v506, 2
  %v995 = vrot.slane %v270, 2
  %v996 = vsel %vm953, %v994, %v995
  %v997 = vrot.slane %v538, 2
  %v998 = vsel %vm953, %v995, %v997
  %v999 = vrot.slane %v507, 2
  %v1000 = vrot.slane %v273, 2
  %v1001 = vsel %vm953, %v999, %v1000
  %v1002 = vrot.slane %v539, 2
  %v1003 = vsel %vm953, %v1000, %v1002
  %v1004 = vrot.slane %v508, 2
  %v1005 = vrot.slane %v276, 2
  %v1006 = vsel %vm953, %v1004, %v1005
  %v1007 = vrot.slane %v540, 2
  %v1008 = vsel %vm953, %v1005, %v1007
  %v1009 = vrot.slane %v509, 2
  %v1010 = vrot.slane %v279, 2
  %v1011 = vsel %vm953, %v1009, %v1010
  %v1012 = vrot.slane %v541, 2
  %v1013 = vsel %vm953, %v1010, %v1012
  %v1014 = vrot.slane %v510, 2
  %v1015 = vrot.slane %v282, 2
  %v1016 = vsel %vm953, %v1014, %v1015
  %v1017 = vrot.slane %v542, 2
  %v1018 = vsel %vm953, %v1015, %v1017
  %v1019 = vrot.slane %v511, 2
  %v1020 = vrot.slane %v285, 2
  %v1021 = vsel %vm953, %v1019, %v1020
  %v1022 = vrot.slane %v543, 2
  %v1023 = vsel %vm953, %v1020, %v1022
  %v1024 = vrot.slane %v512, 2
  %v1025 = vrot.slane %v288, 2
  %v1026 = vsel %vm953, %v1024, %v1025
  %v1027 = vrot.slane %v544, 2
  %v1028 = vsel %vm953, %v1025, %v1027
  %v1029 = vrot.slane %v514, 2
  %v1030 = vrot.slane %v294, 2
  %v1031 = vsel %vm953, %v1029, %v1030
  %v1032 = vrot.slane %v546, 2
  %v1033 = vsel %vm953, %v1030, %v1032
  %v1034 = vrot.slane %v515, 2
  %v1035 = vrot.slane %v297, 2
  %v1036 = vsel %vm953, %v1034, %v1035
  %v1037 = vrot.slane %v547, 2
  %v1038 = vsel %vm953, %v1035, %v1037
  %v1039 = vrot.slane %v516, 2
  %v1040 = vrot.slane %v300, 2
  %v1041 = vsel %vm953, %v1039, %v1040
  %v1042 = vrot.slane %v548, 2
  %v1043 = vsel %vm953, %v1040, %v1042
  %v1044 = vrot.slane %v517, 2
  %v1045 = vrot.slane %v303, 2
  %v1046 = vsel %vm953, %v1044, %v1045
  %v1047 = vrot.slane %v549, 2
  %v1048 = vsel %vm953, %v1045, %v1047
  %v1049 = vrot.slane %v518, 2
  %v1050 = vrot.slane %v306, 2
  %v1051 = vsel %vm953, %v1049, %v1050
  %v1052 = vrot.slane %v550, 2
  %v1053 = vsel %vm953, %v1050, %v1052
  %v1054 = vrot.slane %v519, 2
  %v1055 = vrot.slane %v309, 2
  %v1056 = vsel %vm953, %v1054, %v1055
  %v1057 = vrot.slane %v551, 2
  %v1058 = vsel %vm953, %v1055, %v1057
  %v1059 = vrot.slane %v520, 2
  %v1060 = vrot.slane %v312, 2
  %v1061 = vsel %vm953, %v1059, %v1060
  %v1062 = vrot.slane %v552, 2
  %v1063 = vsel %vm953, %v1060, %v1062
  %v1064 = vrot.slane %v521, 2
  %v1065 = vrot.slane %v315, 2
  %v1066 = vsel %vm953, %v1064, %v1065
  %v1067 = vrot.slane %v553, 2
  %v1068 = vsel %vm953, %v1065, %v1067
  %v1069 = vrot.slane %v522, 2
  %v1070 = vrot.slane %v318, 2
  %v1071 = vsel %vm953, %v1069, %v1070
  %v1072 = vrot.slane %v554, 2
  %v1073 = vsel %vm953, %v1070, %v1072
  %v1074 = vrot.slane %v523, 2
  %v1075 = vrot.slane %v321, 2
  %v1076 = vsel %vm953, %v1074, %v1075
  %v1077 = vrot.slane %v555, 2
  %v1078 = vsel %vm953, %v1075, %v1077
  %v1079 = vrot.slane %v524, 2
  %v1080 = vrot.slane %v324, 2
  %v1081 = vsel %vm953, %v1079, %v1080
  %v1082 = vrot.slane %v556, 2
  %v1083 = vsel %vm953, %v1080, %v1082
  %v1084 = vrot.slane %v525, 2
  %v1085 = vrot.slane %v327, 2
  %v1086 = vsel %vm953, %v1084, %v1085
  %v1087 = vrot.slane %v557, 2
  %v1088 = vsel %vm953, %v1085, %v1087
  %v1089 = vrot.slane %v526, 2
  %v1090 = vrot.slane %v330, 2
  %v1091 = vsel %vm953, %v1089, %v1090
  %v1092 = vrot.slane %v558, 2
  %v1093 = vsel %vm953, %v1090, %v1092
  %v1094 = vrot.slane %v527, 2
  %v1095 = vrot.slane %v333, 2
  %v1096 = vsel %vm953, %v1094, %v1095
  %v1097 = vrot.slane %v559, 2
  %v1098 = vsel %vm953, %v1095, %v1097
  %v1099 = vrot.slane %v528, 2
  %v1100 = vrot.slane %v336, 2
  %v1101 = vsel %vm953, %v1099, %v1100
  %v1102 = vrot.slane %v560, 2
  %v1103 = vsel %vm953, %v1100, %v1102
  %1104 = vrot.lane.b32.xlu0 %v956, 6
  %v1105 = vpop.permute.xlu0 %1104
  %1106 = vrot.lane.b32.xlu0 %v958, 6
  %v1107 = vpop.permute.xlu0 %1106
  %1108 = vrot.lane.b32.xlu0 %v961, 6
  %v1109 = vpop.permute.xlu0 %1108
  %1110 = vrot.lane.b32.xlu0 %v963, 6
  %v1111 = vpop.permute.xlu0 %1110
  %1112 = vrot.lane.b32.xlu0 %v966, 6
  %v1113 = vpop.permute.xlu0 %1112
  %1114 = vrot.lane.b32.xlu0 %v968, 6
  %v1115 = vpop.permute.xlu0 %1114
  %1116 = vrot.lane.b32.xlu0 %v971, 6
  %v1117 = vpop.permute.xlu0 %1116
  %1118 = vrot.lane.b32.xlu0 %v973, 6
  %v1119 = vpop.permute.xlu0 %1118
  %1120 = vrot.lane.b32.xlu0 %v976, 6
  %v1121 = vpop.permute.xlu0 %1120
  %1122 = vrot.lane.b32.xlu0 %v978, 6
  %v1123 = vpop.permute.xlu0 %1122
  %1124 = vrot.lane.b32.xlu0 %v981, 6
  %v1125 = vpop.permute.xlu0 %1124
  %1126 = vrot.lane.b32.xlu0 %v983, 6
  %v1127 = vpop.permute.xlu0 %1126
  %1128 = vrot.lane.b32.xlu0 %v986, 6
  %v1129 = vpop.permute.xlu0 %1128
  %1130 = vrot.lane.b32.xlu0 %v988, 6
  %v1131 = vpop.permute.xlu0 %1130
  %1132 = vrot.lane.b32.xlu0 %v991, 6
  %v1133 = vpop.permute.xlu0 %1132
  %1134 = vrot.lane.b32.xlu0 %v993, 6
  %v1135 = vpop.permute.xlu0 %1134
  %1136 = vrot.lane.b32.xlu0 %v996, 6
  %v1137 = vpop.permute.xlu0 %1136
  %1138 = vrot.lane.b32.xlu0 %v998, 6
  %v1139 = vpop.permute.xlu0 %1138
  %1140 = vrot.lane.b32.xlu0 %v1001, 6
  %v1141 = vpop.permute.xlu0 %1140
  %1142 = vrot.lane.b32.xlu0 %v1003, 6
  %v1143 = vpop.permute.xlu0 %1142
  %1144 = vrot.lane.b32.xlu0 %v1006, 6
  %v1145 = vpop.permute.xlu0 %1144
  %1146 = vrot.lane.b32.xlu0 %v1008, 6
  %v1147 = vpop.permute.xlu0 %1146
  %1148 = vrot.lane.b32.xlu0 %v1011, 6
  %v1149 = vpop.permute.xlu0 %1148
  %1150 = vrot.lane.b32.xlu0 %v1013, 6
  %v1151 = vpop.permute.xlu0 %1150
  %1152 = vrot.lane.b32.xlu0 %v1016, 6
  %v1153 = vpop.permute.xlu0 %1152
  %1154 = vrot.lane.b32.xlu0 %v1018, 6
  %v1155 = vpop.permute.xlu0 %1154
  %1156 = vrot.lane.b32.xlu0 %v1021, 6
  %v1157 = vpop.permute.xlu0 %1156
  %1158 = vrot.lane.b32.xlu0 %v1023, 6
  %v1159 = vpop.permute.xlu0 %1158
  %1160 = vrot.lane.b32.xlu0 %v1026, 6
  %v1161 = vpop.permute.xlu0 %1160
  %1162 = vrot.lane.b32.xlu0 %v1028, 6
  %v1163 = vpop.permute.xlu0 %1162
  %1164 = vrot.lane.b32.xlu0 %v1031, 6
  %v1165 = vpop.permute.xlu0 %1164
  %1166 = vrot.lane.b32.xlu0 %v1033, 6
  %v1167 = vpop.permute.xlu0 %1166
  %1168 = vrot.lane.b32.xlu0 %v1036, 6
  %v1169 = vpop.permute.xlu0 %1168
  %1170 = vrot.lane.b32.xlu0 %v1038, 6
  %v1171 = vpop.permute.xlu0 %1170
  %1172 = vrot.lane.b32.xlu0 %v1041, 6
  %v1173 = vpop.permute.xlu0 %1172
  %1174 = vrot.lane.b32.xlu0 %v1043, 6
  %v1175 = vpop.permute.xlu0 %1174
  %1176 = vrot.lane.b32.xlu0 %v1046, 6
  %v1177 = vpop.permute.xlu0 %1176
  %1178 = vrot.lane.b32.xlu0 %v1048, 6
  %v1179 = vpop.permute.xlu0 %1178
  %1180 = vrot.lane.b32.xlu0 %v1051, 6
  %v1181 = vpop.permute.xlu0 %1180
  %1182 = vrot.lane.b32.xlu0 %v1053, 6
  %v1183 = vpop.permute.xlu0 %1182
  %1184 = vrot.lane.b32.xlu0 %v1056, 6
  %v1185 = vpop.permute.xlu0 %1184
  %1186 = vrot.lane.b32.xlu0 %v1058, 6
  %v1187 = vpop.permute.xlu0 %1186
  %1188 = vrot.lane.b32.xlu0 %v1061, 6
  %v1189 = vpop.permute.xlu0 %1188
  %1190 = vrot.lane.b32.xlu0 %v1063, 6
  %v1191 = vpop.permute.xlu0 %1190
  %1192 = vrot.lane.b32.xlu0 %v1066, 6
  %v1193 = vpop.permute.xlu0 %1192
  %1194 = vrot.lane.b32.xlu0 %v1068, 6
  %v1195 = vpop.permute.xlu0 %1194
  %1196 = vrot.lane.b32.xlu0 %v1071, 6
  %v1197 = vpop.permute.xlu0 %1196
  %1198 = vrot.lane.b32.xlu0 %v1073, 6
  %v1199 = vpop.permute.xlu0 %1198
  %1200 = vrot.lane.b32.xlu0 %v1076, 6
  %v1201 = vpop.permute.xlu0 %1200
  %1202 = vrot.lane.b32.xlu0 %v1078, 6
  %v1203 = vpop.permute.xlu0 %1202
  %1204 = vrot.lane.b32.xlu0 %v1081, 6
  %v1205 = vpop.permute.xlu0 %1204
  %1206 = vrot.lane.b32.xlu0 %v1083, 6
  %v1207 = vpop.permute.xlu0 %1206
  %1208 = vrot.lane.b32.xlu0 %v1086, 6
  %v1209 = vpop.permute.xlu0 %1208
  %1210 = vrot.lane.b32.xlu0 %v1088, 6
  %v1211 = vpop.permute.xlu0 %1210
  %1212 = vrot.lane.b32.xlu0 %v1091, 6
  %v1213 = vpop.permute.xlu0 %1212
  %1214 = vrot.lane.b32.xlu0 %v1093, 6
  %v1215 = vpop.permute.xlu0 %1214
  %1216 = vrot.lane.b32.xlu0 %v1096, 6
  %v1217 = vpop.permute.xlu0 %1216
  %1218 = vrot.lane.b32.xlu0 %v1098, 6
  %v1219 = vpop.permute.xlu0 %1218
  %1220 = vrot.lane.b32.xlu0 %v1101, 6
  %v1221 = vpop.permute.xlu0 %1220
  %1222 = vrot.lane.b32.xlu0 %v1103, 6
  %v1223 = vpop.permute.xlu0 %1222
  %1286 = vrot.lane.b32.xlu0 %v499, 9
  %v1287 = vpop.permute.xlu0 %1286
  %1288 = vrot.lane.b32.xlu0 %v249, 9
  %v1289 = vpop.permute.xlu0 %1288
  %1290 = vrot.lane.b32.xlu0 %v498, 9
  %v1291 = vpop.permute.xlu0 %1290
  %1292 = vrot.lane.b32.xlu0 %v246, 9
  %v1293 = vpop.permute.xlu0 %1292
  %1294 = vrot.lane.b32.xlu0 %v500, 9
  %v1295 = vpop.permute.xlu0 %1294
  %1296 = vrot.lane.b32.xlu0 %v252, 9
  %v1297 = vpop.permute.xlu0 %1296
  %1298 = vrot.lane.b32.xlu0 %v501, 9
  %v1299 = vpop.permute.xlu0 %1298
  %1300 = vrot.lane.b32.xlu0 %v255, 9
  %v1301 = vpop.permute.xlu0 %1300
  %1302 = vrot.lane.b32.xlu0 %v502, 9
  %v1303 = vpop.permute.xlu0 %1302
  %1304 = vrot.lane.b32.xlu0 %v258, 9
  %v1305 = vpop.permute.xlu0 %1304
  %1306 = vrot.lane.b32.xlu0 %v503, 9
  %v1307 = vpop.permute.xlu0 %1306
  %1308 = vrot.lane.b32.xlu0 %v261, 9
  %v1309 = vpop.permute.xlu0 %1308
  %1310 = vrot.lane.b32.xlu0 %v504, 9
  %v1311 = vpop.permute.xlu0 %1310
  %1312 = vrot.lane.b32.xlu0 %v264, 9
  %v1313 = vpop.permute.xlu0 %1312
  %1314 = vrot.lane.b32.xlu0 %v505, 9
  %v1315 = vpop.permute.xlu0 %1314
  %1316 = vrot.lane.b32.xlu0 %v267, 9
  %v1317 = vpop.permute.xlu0 %1316
  %1318 = vrot.lane.b32.xlu0 %v506, 9
  %v1319 = vpop.permute.xlu0 %1318
  %1320 = vrot.lane.b32.xlu0 %v270, 9
  %v1321 = vpop.permute.xlu0 %1320
  %1322 = vrot.lane.b32.xlu0 %v507, 9
  %v1323 = vpop.permute.xlu0 %1322
  %1324 = vrot.lane.b32.xlu0 %v273, 9
  %v1325 = vpop.permute.xlu0 %1324
  %1326 = vrot.lane.b32.xlu0 %v508, 9
  %v1327 = vpop.permute.xlu0 %1326
  %1328 = vrot.lane.b32.xlu0 %v276, 9
  %v1329 = vpop.permute.xlu0 %1328
  %1330 = vrot.lane.b32.xlu0 %v509, 9
  %v1331 = vpop.permute.xlu0 %1330
  %1332 = vrot.lane.b32.xlu0 %v279, 9
  %v1333 = vpop.permute.xlu0 %1332
  %1334 = vrot.lane.b32.xlu0 %v510, 9
  %v1335 = vpop.permute.xlu0 %1334
  %1336 = vrot.lane.b32.xlu0 %v282, 9
  %v1337 = vpop.permute.xlu0 %1336
  %1338 = vrot.lane.b32.xlu0 %v511, 9
  %v1339 = vpop.permute.xlu0 %1338
  %1340 = vrot.lane.b32.xlu0 %v285, 9
  %v1341 = vpop.permute.xlu0 %1340
  %1342 = vrot.lane.b32.xlu0 %v512, 9
  %v1343 = vpop.permute.xlu0 %1342
  %1344 = vrot.lane.b32.xlu0 %v288, 9
  %v1345 = vpop.permute.xlu0 %1344
  %1346 = vrot.lane.b32.xlu0 %v513, 9
  %v1347 = vpop.permute.xlu0 %1346
  %1348 = vrot.lane.b32.xlu0 %v291, 9
  %v1349 = vpop.permute.xlu0 %1348
  %1350 = vrot.lane.b32.xlu0 %v515, 9
  %v1351 = vpop.permute.xlu0 %1350
  %1352 = vrot.lane.b32.xlu0 %v297, 9
  %v1353 = vpop.permute.xlu0 %1352
  %1354 = vrot.lane.b32.xlu0 %v514, 9
  %v1355 = vpop.permute.xlu0 %1354
  %1356 = vrot.lane.b32.xlu0 %v294, 9
  %v1357 = vpop.permute.xlu0 %1356
  %1358 = vrot.lane.b32.xlu0 %v516, 9
  %v1359 = vpop.permute.xlu0 %1358
  %1360 = vrot.lane.b32.xlu0 %v300, 9
  %v1361 = vpop.permute.xlu0 %1360
  %1362 = vrot.lane.b32.xlu0 %v517, 9
  %v1363 = vpop.permute.xlu0 %1362
  %1364 = vrot.lane.b32.xlu0 %v303, 9
  %v1365 = vpop.permute.xlu0 %1364
  %1366 = vrot.lane.b32.xlu0 %v518, 9
  %v1367 = vpop.permute.xlu0 %1366
  %1368 = vrot.lane.b32.xlu0 %v306, 9
  %v1369 = vpop.permute.xlu0 %1368
  %1370 = vrot.lane.b32.xlu0 %v519, 9
  %v1371 = vpop.permute.xlu0 %1370
  %1372 = vrot.lane.b32.xlu0 %v309, 9
  %v1373 = vpop.permute.xlu0 %1372
  %1374 = vrot.lane.b32.xlu0 %v520, 9
  %v1375 = vpop.permute.xlu0 %1374
  %1376 = vrot.lane.b32.xlu0 %v312, 9
  %v1377 = vpop.permute.xlu0 %1376
  %1378 = vrot.lane.b32.xlu0 %v521, 9
  %v1379 = vpop.permute.xlu0 %1378
  %1380 = vrot.lane.b32.xlu0 %v315, 9
  %v1381 = vpop.permute.xlu0 %1380
  %1382 = vrot.lane.b32.xlu0 %v522, 9
  %v1383 = vpop.permute.xlu0 %1382
  %1384 = vrot.lane.b32.xlu0 %v318, 9
  %v1385 = vpop.permute.xlu0 %1384
  %1386 = vrot.lane.b32.xlu0 %v523, 9
  %v1387 = vpop.permute.xlu0 %1386
  %1388 = vrot.lane.b32.xlu0 %v321, 9
  %v1389 = vpop.permute.xlu0 %1388
  %1390 = vrot.lane.b32.xlu0 %v524, 9
  %v1391 = vpop.permute.xlu0 %1390
  %1392 = vrot.lane.b32.xlu0 %v324, 9
  %v1393 = vpop.permute.xlu0 %1392
  %1394 = vrot.lane.b32.xlu0 %v525, 9
  %v1395 = vpop.permute.xlu0 %1394
  %1396 = vrot.lane.b32.xlu0 %v327, 9
  %v1397 = vpop.permute.xlu0 %1396
  %1398 = vrot.lane.b32.xlu0 %v526, 9
  %v1399 = vpop.permute.xlu0 %1398
  %1400 = vrot.lane.b32.xlu0 %v330, 9
  %v1401 = vpop.permute.xlu0 %1400
  %1402 = vrot.lane.b32.xlu0 %v527, 9
  %v1403 = vpop.permute.xlu0 %1402
  %1404 = vrot.lane.b32.xlu0 %v333, 9
  %v1405 = vpop.permute.xlu0 %1404
  %1406 = vrot.lane.b32.xlu0 %v528, 9
  %v1407 = vpop.permute.xlu0 %1406
  %1408 = vrot.lane.b32.xlu0 %v336, 9
  %v1409 = vpop.permute.xlu0 %1408
  %1410 = vrot.lane.b32.xlu0 %v529, 9
  %v1411 = vpop.permute.xlu0 %1410
  %1412 = vrot.lane.b32.xlu0 %v339, 9
  %v1413 = vpop.permute.xlu0 %1412
  %v1480 = vrot.slane %v513, 1
  %v1481 = vrot.slane %v291, 1
  %v1482 = vsel %vm622, %v1480, %v1481
  %v1483 = vrot.slane %v545, 1
  %v1484 = vsel %vm622, %v1481, %v1483
  %v1485 = vrot.slane %v529, 1
  %v1486 = vrot.slane %v339, 1
  %v1487 = vsel %vm622, %v1485, %v1486
  %v1488 = vrot.slane %v561, 1
  %v1489 = vsel %vm622, %v1486, %v1488
  %1490 = vrot.lane.b32.xlu0 %v630, 12
  %v1491 = vpop.permute.xlu0 %1490
  %1492 = vrot.lane.b32.xlu0 %v632, 12
  %v1493 = vpop.permute.xlu0 %1492
  %1494 = vrot.lane.b32.xlu0 %v625, 12
  %v1495 = vpop.permute.xlu0 %1494
  %1496 = vrot.lane.b32.xlu0 %v627, 12
  %v1497 = vpop.permute.xlu0 %1496
  %1498 = vrot.lane.b32.xlu0 %v635, 12
  %v1499 = vpop.permute.xlu0 %1498
  %1500 = vrot.lane.b32.xlu0 %v637, 12
  %v1501 = vpop.permute.xlu0 %1500
  %1502 = vrot.lane.b32.xlu0 %v640, 12
  %v1503 = vpop.permute.xlu0 %1502
  %1504 = vrot.lane.b32.xlu0 %v642, 12
  %v1505 = vpop.permute.xlu0 %1504
  %1506 = vrot.lane.b32.xlu0 %v645, 12
  %v1507 = vpop.permute.xlu0 %1506
  %1508 = vrot.lane.b32.xlu0 %v647, 12
  %v1509 = vpop.permute.xlu0 %1508
  %1510 = vrot.lane.b32.xlu0 %v650, 12
  %v1511 = vpop.permute.xlu0 %1510
  %1512 = vrot.lane.b32.xlu0 %v652, 12
  %v1513 = vpop.permute.xlu0 %1512
  %1514 = vrot.lane.b32.xlu0 %v655, 12
  %v1515 = vpop.permute.xlu0 %1514
  %1516 = vrot.lane.b32.xlu0 %v657, 12
  %v1517 = vpop.permute.xlu0 %1516
  %1518 = vrot.lane.b32.xlu0 %v660, 12
  %v1519 = vpop.permute.xlu0 %1518
  %1520 = vrot.lane.b32.xlu0 %v662, 12
  %v1521 = vpop.permute.xlu0 %1520
  %1522 = vrot.lane.b32.xlu0 %v665, 12
  %v1523 = vpop.permute.xlu0 %1522
  %1524 = vrot.lane.b32.xlu0 %v667, 12
  %v1525 = vpop.permute.xlu0 %1524
  %1526 = vrot.lane.b32.xlu0 %v670, 12
  %v1527 = vpop.permute.xlu0 %1526
  %1528 = vrot.lane.b32.xlu0 %v672, 12
  %v1529 = vpop.permute.xlu0 %1528
  %1530 = vrot.lane.b32.xlu0 %v675, 12
  %v1531 = vpop.permute.xlu0 %1530
  %1532 = vrot.lane.b32.xlu0 %v677, 12
  %v1533 = vpop.permute.xlu0 %1532
  %1534 = vrot.lane.b32.xlu0 %v680, 12
  %v1535 = vpop.permute.xlu0 %1534
  %1536 = vrot.lane.b32.xlu0 %v682, 12
  %v1537 = vpop.permute.xlu0 %1536
  %1538 = vrot.lane.b32.xlu0 %v685, 12
  %v1539 = vpop.permute.xlu0 %1538
  %1540 = vrot.lane.b32.xlu0 %v687, 12
  %v1541 = vpop.permute.xlu0 %1540
  %1542 = vrot.lane.b32.xlu0 %v690, 12
  %v1543 = vpop.permute.xlu0 %1542
  %1544 = vrot.lane.b32.xlu0 %v692, 12
  %v1545 = vpop.permute.xlu0 %1544
  %1546 = vrot.lane.b32.xlu0 %v695, 12
  %v1547 = vpop.permute.xlu0 %1546
  %1548 = vrot.lane.b32.xlu0 %v697, 12
  %v1549 = vpop.permute.xlu0 %1548
  %1550 = vrot.lane.b32.xlu0 %v1482, 12
  %v1551 = vpop.permute.xlu0 %1550
  %1552 = vrot.lane.b32.xlu0 %v1484, 12
  %v1553 = vpop.permute.xlu0 %1552
  %1554 = vrot.lane.b32.xlu0 %v705, 12
  %v1555 = vpop.permute.xlu0 %1554
  %1556 = vrot.lane.b32.xlu0 %v707, 12
  %v1557 = vpop.permute.xlu0 %1556
  %1558 = vrot.lane.b32.xlu0 %v700, 12
  %v1559 = vpop.permute.xlu0 %1558
  %1560 = vrot.lane.b32.xlu0 %v702, 12
  %v1561 = vpop.permute.xlu0 %1560
  %1562 = vrot.lane.b32.xlu0 %v710, 12
  %v1563 = vpop.permute.xlu0 %1562
  %1564 = vrot.lane.b32.xlu0 %v712, 12
  %v1565 = vpop.permute.xlu0 %1564
  %1566 = vrot.lane.b32.xlu0 %v715, 12
  %v1567 = vpop.permute.xlu0 %1566
  %1568 = vrot.lane.b32.xlu0 %v717, 12
  %v1569 = vpop.permute.xlu0 %1568
  %1570 = vrot.lane.b32.xlu0 %v720, 12
  %v1571 = vpop.permute.xlu0 %1570
  %1572 = vrot.lane.b32.xlu0 %v722, 12
  %v1573 = vpop.permute.xlu0 %1572
  %1574 = vrot.lane.b32.xlu0 %v725, 12
  %v1575 = vpop.permute.xlu0 %1574
  %1576 = vrot.lane.b32.xlu0 %v727, 12
  %v1577 = vpop.permute.xlu0 %1576
  %1578 = vrot.lane.b32.xlu0 %v730, 12
  %v1579 = vpop.permute.xlu0 %1578
  %1580 = vrot.lane.b32.xlu0 %v732, 12
  %v1581 = vpop.permute.xlu0 %1580
  %1582 = vrot.lane.b32.xlu0 %v735, 12
  %v1583 = vpop.permute.xlu0 %1582
  %1584 = vrot.lane.b32.xlu0 %v737, 12
  %v1585 = vpop.permute.xlu0 %1584
  %1586 = vrot.lane.b32.xlu0 %v740, 12
  %v1587 = vpop.permute.xlu0 %1586
  %1588 = vrot.lane.b32.xlu0 %v742, 12
  %v1589 = vpop.permute.xlu0 %1588
  %1590 = vrot.lane.b32.xlu0 %v745, 12
  %v1591 = vpop.permute.xlu0 %1590
  %1592 = vrot.lane.b32.xlu0 %v747, 12
  %v1593 = vpop.permute.xlu0 %1592
  %1594 = vrot.lane.b32.xlu0 %v750, 12
  %v1595 = vpop.permute.xlu0 %1594
  %1596 = vrot.lane.b32.xlu0 %v752, 12
  %v1597 = vpop.permute.xlu0 %1596
  %1598 = vrot.lane.b32.xlu0 %v755, 12
  %v1599 = vpop.permute.xlu0 %1598
  %1600 = vrot.lane.b32.xlu0 %v757, 12
  %v1601 = vpop.permute.xlu0 %1600
  %1602 = vrot.lane.b32.xlu0 %v760, 12
  %v1603 = vpop.permute.xlu0 %1602
  %1604 = vrot.lane.b32.xlu0 %v762, 12
  %v1605 = vpop.permute.xlu0 %1604
  %1606 = vrot.lane.b32.xlu0 %v765, 12
  %v1607 = vpop.permute.xlu0 %1606
  %1608 = vrot.lane.b32.xlu0 %v767, 12
  %v1609 = vpop.permute.xlu0 %1608
  %1610 = vrot.lane.b32.xlu0 %v770, 12
  %v1611 = vpop.permute.xlu0 %1610
  %1612 = vrot.lane.b32.xlu0 %v772, 12
  %v1613 = vpop.permute.xlu0 %1612
  %1614 = vrot.lane.b32.xlu0 %v1487, 12
  %v1615 = vpop.permute.xlu0 %1614
  %1616 = vrot.lane.b32.xlu0 %v1489, 12
  %v1617 = vpop.permute.xlu0 %1616
  %v1682 = vrot.slane %v513, 2
  %v1683 = vrot.slane %v291, 2
  %v1684 = vsel %vm953, %v1682, %v1683
  %v1685 = vrot.slane %v545, 2
  %v1686 = vsel %vm953, %v1683, %v1685
  %v1687 = vrot.slane %v529, 2
  %v1688 = vrot.slane %v339, 2
  %v1689 = vsel %vm953, %v1687, %v1688
  %v1690 = vrot.slane %v561, 2
  %v1691 = vsel %vm953, %v1688, %v1690
  %1692 = vrot.lane.b32.xlu0 %v961, 15
  %v1693 = vpop.permute.xlu0 %1692
  %1694 = vrot.lane.b32.xlu0 %v963, 15
  %v1695 = vpop.permute.xlu0 %1694
  %1696 = vrot.lane.b32.xlu0 %v956, 15
  %v1697 = vpop.permute.xlu0 %1696
  %1698 = vrot.lane.b32.xlu0 %v958, 15
  %v1699 = vpop.permute.xlu0 %1698
  %1700 = vrot.lane.b32.xlu0 %v966, 15
  %v1701 = vpop.permute.xlu0 %1700
  %1702 = vrot.lane.b32.xlu0 %v968, 15
  %v1703 = vpop.permute.xlu0 %1702
  %1704 = vrot.lane.b32.xlu0 %v971, 15
  %v1705 = vpop.permute.xlu0 %1704
  %1706 = vrot.lane.b32.xlu0 %v973, 15
  %v1707 = vpop.permute.xlu0 %1706
  %1708 = vrot.lane.b32.xlu0 %v976, 15
  %v1709 = vpop.permute.xlu0 %1708
  %1710 = vrot.lane.b32.xlu0 %v978, 15
  %v1711 = vpop.permute.xlu0 %1710
  %1712 = vrot.lane.b32.xlu0 %v981, 15
  %v1713 = vpop.permute.xlu0 %1712
  %1714 = vrot.lane.b32.xlu0 %v983, 15
  %v1715 = vpop.permute.xlu0 %1714
  %1716 = vrot.lane.b32.xlu0 %v986, 15
  %v1717 = vpop.permute.xlu0 %1716
  %1718 = vrot.lane.b32.xlu0 %v988, 15
  %v1719 = vpop.permute.xlu0 %1718
  %1720 = vrot.lane.b32.xlu0 %v991, 15
  %v1721 = vpop.permute.xlu0 %1720
  %1722 = vrot.lane.b32.xlu0 %v993, 15
  %v1723 = vpop.permute.xlu0 %1722
  %1724 = vrot.lane.b32.xlu0 %v996, 15
  %v1725 = vpop.permute.xlu0 %1724
  %1726 = vrot.lane.b32.xlu0 %v998, 15
  %v1727 = vpop.permute.xlu0 %1726
  %1728 = vrot.lane.b32.xlu0 %v1001, 15
  %v1729 = vpop.permute.xlu0 %1728
  %1730 = vrot.lane.b32.xlu0 %v1003, 15
  %v1731 = vpop.permute.xlu0 %1730
  %1732 = vrot.lane.b32.xlu0 %v1006, 15
  %v1733 = vpop.permute.xlu0 %1732
  %1734 = vrot.lane.b32.xlu0 %v1008, 15
  %v1735 = vpop.permute.xlu0 %1734
  %1736 = vrot.lane.b32.xlu0 %v1011, 15
  %v1737 = vpop.permute.xlu0 %1736
  %1738 = vrot.lane.b32.xlu0 %v1013, 15
  %v1739 = vpop.permute.xlu0 %1738
  %1740 = vrot.lane.b32.xlu0 %v1016, 15
  %v1741 = vpop.permute.xlu0 %1740
  %1742 = vrot.lane.b32.xlu0 %v1018, 15
  %v1743 = vpop.permute.xlu0 %1742
  %1744 = vrot.lane.b32.xlu0 %v1021, 15
  %v1745 = vpop.permute.xlu0 %1744
  %1746 = vrot.lane.b32.xlu0 %v1023, 15
  %v1747 = vpop.permute.xlu0 %1746
  %1748 = vrot.lane.b32.xlu0 %v1026, 15
  %v1749 = vpop.permute.xlu0 %1748
  %1750 = vrot.lane.b32.xlu0 %v1028, 15
  %v1751 = vpop.permute.xlu0 %1750
  %1752 = vrot.lane.b32.xlu0 %v1684, 15
  %v1753 = vpop.permute.xlu0 %1752
  %1754 = vrot.lane.b32.xlu0 %v1686, 15
  %v1755 = vpop.permute.xlu0 %1754
  %1756 = vrot.lane.b32.xlu0 %v1036, 15
  %v1757 = vpop.permute.xlu0 %1756
  %1758 = vrot.lane.b32.xlu0 %v1038, 15
  %v1759 = vpop.permute.xlu0 %1758
  %1760 = vrot.lane.b32.xlu0 %v1031, 15
  %v1761 = vpop.permute.xlu0 %1760
  %1762 = vrot.lane.b32.xlu0 %v1033, 15
  %v1763 = vpop.permute.xlu0 %1762
  %1764 = vrot.lane.b32.xlu0 %v1041, 15
  %v1765 = vpop.permute.xlu0 %1764
  %1766 = vrot.lane.b32.xlu0 %v1043, 15
  %v1767 = vpop.permute.xlu0 %1766
  %1768 = vrot.lane.b32.xlu0 %v1046, 15
  %v1769 = vpop.permute.xlu0 %1768
  %1770 = vrot.lane.b32.xlu0 %v1048, 15
  %v1771 = vpop.permute.xlu0 %1770
  %1772 = vrot.lane.b32.xlu0 %v1051, 15
  %v1773 = vpop.permute.xlu0 %1772
  %1774 = vrot.lane.b32.xlu0 %v1053, 15
  %v1775 = vpop.permute.xlu0 %1774
  %1776 = vrot.lane.b32.xlu0 %v1056, 15
  %v1777 = vpop.permute.xlu0 %1776
  %1778 = vrot.lane.b32.xlu0 %v1058, 15
  %v1779 = vpop.permute.xlu0 %1778
  %1780 = vrot.lane.b32.xlu0 %v1061, 15
  %v1781 = vpop.permute.xlu0 %1780
  %1782 = vrot.lane.b32.xlu0 %v1063, 15
  %v1783 = vpop.permute.xlu0 %1782
  %1784 = vrot.lane.b32.xlu0 %v1066, 15
  %v1785 = vpop.permute.xlu0 %1784
  %1786 = vrot.lane.b32.xlu0 %v1068, 15
  %v1787 = vpop.permute.xlu0 %1786
  %1788 = vrot.lane.b32.xlu0 %v1071, 15
  %v1789 = vpop.permute.xlu0 %1788
  %1790 = vrot.lane.b32.xlu0 %v1073, 15
  %v1791 = vpop.permute.xlu0 %1790
  %1792 = vrot.lane.b32.xlu0 %v1076, 15
  %v1793 = vpop.permute.xlu0 %1792
  %1794 = vrot.lane.b32.xlu0 %v1078, 15
  %v1795 = vpop.permute.xlu0 %1794
  %1796 = vrot.lane.b32.xlu0 %v1081, 15
  %v1797 = vpop.permute.xlu0 %1796
  %1798 = vrot.lane.b32.xlu0 %v1083, 15
  %v1799 = vpop.permute.xlu0 %1798
  %1800 = vrot.lane.b32.xlu0 %v1086, 15
  %v1801 = vpop.permute.xlu0 %1800
  %1802 = vrot.lane.b32.xlu0 %v1088, 15
  %v1803 = vpop.permute.xlu0 %1802
  %1804 = vrot.lane.b32.xlu0 %v1091, 15
  %v1805 = vpop.permute.xlu0 %1804
  %1806 = vrot.lane.b32.xlu0 %v1093, 15
  %v1807 = vpop.permute.xlu0 %1806
  %1808 = vrot.lane.b32.xlu0 %v1096, 15
  %v1809 = vpop.permute.xlu0 %1808
  %1810 = vrot.lane.b32.xlu0 %v1098, 15
  %v1811 = vpop.permute.xlu0 %1810
  %1812 = vrot.lane.b32.xlu0 %v1101, 15
  %v1813 = vpop.permute.xlu0 %1812
  %1814 = vrot.lane.b32.xlu0 %v1103, 15
  %v1815 = vpop.permute.xlu0 %1814
  %1816 = vrot.lane.b32.xlu0 %v1689, 15
  %v1817 = vpop.permute.xlu0 %1816
  %1818 = vrot.lane.b32.xlu0 %v1691, 15
  %v1819 = vpop.permute.xlu0 %1818
  %1884 = vrot.lane.b32.xlu0 %v498, 18
  %v1885 = vpop.permute.xlu0 %1884
  %1886 = vrot.lane.b32.xlu0 %v246, 18
  %v1887 = vpop.permute.xlu0 %1886
  %1888 = vrot.lane.b32.xlu0 %v500, 18
  %v1889 = vpop.permute.xlu0 %1888
  %1890 = vrot.lane.b32.xlu0 %v252, 18
  %v1891 = vpop.permute.xlu0 %1890
  %1892 = vrot.lane.b32.xlu0 %v501, 18
  %v1893 = vpop.permute.xlu0 %1892
  %1894 = vrot.lane.b32.xlu0 %v255, 18
  %v1895 = vpop.permute.xlu0 %1894
  %1896 = vrot.lane.b32.xlu0 %v502, 18
  %v1897 = vpop.permute.xlu0 %1896
  %1898 = vrot.lane.b32.xlu0 %v258, 18
  %v1899 = vpop.permute.xlu0 %1898
  %1900 = vrot.lane.b32.xlu0 %v503, 18
  %v1901 = vpop.permute.xlu0 %1900
  %1902 = vrot.lane.b32.xlu0 %v261, 18
  %v1903 = vpop.permute.xlu0 %1902
  %1904 = vrot.lane.b32.xlu0 %v504, 18
  %v1905 = vpop.permute.xlu0 %1904
  %1906 = vrot.lane.b32.xlu0 %v264, 18
  %v1907 = vpop.permute.xlu0 %1906
  %1908 = vrot.lane.b32.xlu0 %v505, 18
  %v1909 = vpop.permute.xlu0 %1908
  %1910 = vrot.lane.b32.xlu0 %v267, 18
  %v1911 = vpop.permute.xlu0 %1910
  %1912 = vrot.lane.b32.xlu0 %v506, 18
  %v1913 = vpop.permute.xlu0 %1912
  %1914 = vrot.lane.b32.xlu0 %v270, 18
  %v1915 = vpop.permute.xlu0 %1914
  %1916 = vrot.lane.b32.xlu0 %v507, 18
  %v1917 = vpop.permute.xlu0 %1916
  %1918 = vrot.lane.b32.xlu0 %v273, 18
  %v1919 = vpop.permute.xlu0 %1918
  %1920 = vrot.lane.b32.xlu0 %v508, 18
  %v1921 = vpop.permute.xlu0 %1920
  %1922 = vrot.lane.b32.xlu0 %v276, 18
  %v1923 = vpop.permute.xlu0 %1922
  %1924 = vrot.lane.b32.xlu0 %v509, 18
  %v1925 = vpop.permute.xlu0 %1924
  %1926 = vrot.lane.b32.xlu0 %v279, 18
  %v1927 = vpop.permute.xlu0 %1926
  %1928 = vrot.lane.b32.xlu0 %v510, 18
  %v1929 = vpop.permute.xlu0 %1928
  %1930 = vrot.lane.b32.xlu0 %v282, 18
  %v1931 = vpop.permute.xlu0 %1930
  %1932 = vrot.lane.b32.xlu0 %v511, 18
  %v1933 = vpop.permute.xlu0 %1932
  %1934 = vrot.lane.b32.xlu0 %v285, 18
  %v1935 = vpop.permute.xlu0 %1934
  %1936 = vrot.lane.b32.xlu0 %v512, 18
  %v1937 = vpop.permute.xlu0 %1936
  %1938 = vrot.lane.b32.xlu0 %v288, 18
  %v1939 = vpop.permute.xlu0 %1938
  %1940 = vrot.lane.b32.xlu0 %v513, 18
  %v1941 = vpop.permute.xlu0 %1940
  %1942 = vrot.lane.b32.xlu0 %v291, 18
  %v1943 = vpop.permute.xlu0 %1942
  %1944 = vrot.lane.b32.xlu0 %v514, 18
  %v1945 = vpop.permute.xlu0 %1944
  %1946 = vrot.lane.b32.xlu0 %v294, 18
  %v1947 = vpop.permute.xlu0 %1946
  %1948 = vrot.lane.b32.xlu0 %v516, 18
  %v1949 = vpop.permute.xlu0 %1948
  %1950 = vrot.lane.b32.xlu0 %v300, 18
  %v1951 = vpop.permute.xlu0 %1950
  %1952 = vrot.lane.b32.xlu0 %v517, 18
  %v1953 = vpop.permute.xlu0 %1952
  %1954 = vrot.lane.b32.xlu0 %v303, 18
  %v1955 = vpop.permute.xlu0 %1954
  %1956 = vrot.lane.b32.xlu0 %v518, 18
  %v1957 = vpop.permute.xlu0 %1956
  %1958 = vrot.lane.b32.xlu0 %v306, 18
  %v1959 = vpop.permute.xlu0 %1958
  %1960 = vrot.lane.b32.xlu0 %v519, 18
  %v1961 = vpop.permute.xlu0 %1960
  %1962 = vrot.lane.b32.xlu0 %v309, 18
  %v1963 = vpop.permute.xlu0 %1962
  %1964 = vrot.lane.b32.xlu0 %v520, 18
  %v1965 = vpop.permute.xlu0 %1964
  %1966 = vrot.lane.b32.xlu0 %v312, 18
  %v1967 = vpop.permute.xlu0 %1966
  %1968 = vrot.lane.b32.xlu0 %v521, 18
  %v1969 = vpop.permute.xlu0 %1968
  %1970 = vrot.lane.b32.xlu0 %v315, 18
  %v1971 = vpop.permute.xlu0 %1970
  %1972 = vrot.lane.b32.xlu0 %v522, 18
  %v1973 = vpop.permute.xlu0 %1972
  %1974 = vrot.lane.b32.xlu0 %v318, 18
  %v1975 = vpop.permute.xlu0 %1974
  %1976 = vrot.lane.b32.xlu0 %v523, 18
  %v1977 = vpop.permute.xlu0 %1976
  %1978 = vrot.lane.b32.xlu0 %v321, 18
  %v1979 = vpop.permute.xlu0 %1978
  %1980 = vrot.lane.b32.xlu0 %v524, 18
  %v1981 = vpop.permute.xlu0 %1980
  %1982 = vrot.lane.b32.xlu0 %v324, 18
  %v1983 = vpop.permute.xlu0 %1982
  %1984 = vrot.lane.b32.xlu0 %v525, 18
  %v1985 = vpop.permute.xlu0 %1984
  %1986 = vrot.lane.b32.xlu0 %v327, 18
  %v1987 = vpop.permute.xlu0 %1986
  %1988 = vrot.lane.b32.xlu0 %v526, 18
  %v1989 = vpop.permute.xlu0 %1988
  %1990 = vrot.lane.b32.xlu0 %v330, 18
  %v1991 = vpop.permute.xlu0 %1990
  %1992 = vrot.lane.b32.xlu0 %v527, 18
  %v1993 = vpop.permute.xlu0 %1992
  %1994 = vrot.lane.b32.xlu0 %v333, 18
  %v1995 = vpop.permute.xlu0 %1994
  %1996 = vrot.lane.b32.xlu0 %v528, 18
  %v1997 = vpop.permute.xlu0 %1996
  %1998 = vrot.lane.b32.xlu0 %v336, 18
  %v1999 = vpop.permute.xlu0 %1998
  %2000 = vrot.lane.b32.xlu0 %v529, 18
  %v2001 = vpop.permute.xlu0 %2000
  %2002 = vrot.lane.b32.xlu0 %v339, 18
  %v2003 = vpop.permute.xlu0 %2002
  %2064 = vrot.lane.b32.xlu0 %v625, 21
  %v2065 = vpop.permute.xlu0 %2064
  %2066 = vrot.lane.b32.xlu0 %v627, 21
  %v2067 = vpop.permute.xlu0 %2066
  %2068 = vrot.lane.b32.xlu0 %v635, 21
  %v2069 = vpop.permute.xlu0 %2068
  %2070 = vrot.lane.b32.xlu0 %v637, 21
  %v2071 = vpop.permute.xlu0 %2070
  %2072 = vrot.lane.b32.xlu0 %v640, 21
  %v2073 = vpop.permute.xlu0 %2072
  %2074 = vrot.lane.b32.xlu0 %v642, 21
  %v2075 = vpop.permute.xlu0 %2074
  %2076 = vrot.lane.b32.xlu0 %v645, 21
  %v2077 = vpop.permute.xlu0 %2076
  %2078 = vrot.lane.b32.xlu0 %v647, 21
  %v2079 = vpop.permute.xlu0 %2078
  %2080 = vrot.lane.b32.xlu0 %v650, 21
  %v2081 = vpop.permute.xlu0 %2080
  %2082 = vrot.lane.b32.xlu0 %v652, 21
  %v2083 = vpop.permute.xlu0 %2082
  %2084 = vrot.lane.b32.xlu0 %v655, 21
  %v2085 = vpop.permute.xlu0 %2084
  %2086 = vrot.lane.b32.xlu0 %v657, 21
  %v2087 = vpop.permute.xlu0 %2086
  %2088 = vrot.lane.b32.xlu0 %v660, 21
  %v2089 = vpop.permute.xlu0 %2088
  %2090 = vrot.lane.b32.xlu0 %v662, 21
  %v2091 = vpop.permute.xlu0 %2090
  %2092 = vrot.lane.b32.xlu0 %v665, 21
  %v2093 = vpop.permute.xlu0 %2092
  %2094 = vrot.lane.b32.xlu0 %v667, 21
  %v2095 = vpop.permute.xlu0 %2094
  %2096 = vrot.lane.b32.xlu0 %v670, 21
  %v2097 = vpop.permute.xlu0 %2096
  %2098 = vrot.lane.b32.xlu0 %v672, 21
  %v2099 = vpop.permute.xlu0 %2098
  %2100 = vrot.lane.b32.xlu0 %v675, 21
  %v2101 = vpop.permute.xlu0 %2100
  %2102 = vrot.lane.b32.xlu0 %v677, 21
  %v2103 = vpop.permute.xlu0 %2102
  %2104 = vrot.lane.b32.xlu0 %v680, 21
  %v2105 = vpop.permute.xlu0 %2104
  %2106 = vrot.lane.b32.xlu0 %v682, 21
  %v2107 = vpop.permute.xlu0 %2106
  %2108 = vrot.lane.b32.xlu0 %v685, 21
  %v2109 = vpop.permute.xlu0 %2108
  %2110 = vrot.lane.b32.xlu0 %v687, 21
  %v2111 = vpop.permute.xlu0 %2110
  %2112 = vrot.lane.b32.xlu0 %v690, 21
  %v2113 = vpop.permute.xlu0 %2112
  %2114 = vrot.lane.b32.xlu0 %v692, 21
  %v2115 = vpop.permute.xlu0 %2114
  %2116 = vrot.lane.b32.xlu0 %v695, 21
  %v2117 = vpop.permute.xlu0 %2116
  %2118 = vrot.lane.b32.xlu0 %v697, 21
  %v2119 = vpop.permute.xlu0 %2118
  %2120 = vrot.lane.b32.xlu0 %v1482, 21
  %v2121 = vpop.permute.xlu0 %2120
  %2122 = vrot.lane.b32.xlu0 %v1484, 21
  %v2123 = vpop.permute.xlu0 %2122
  %2124 = vrot.lane.b32.xlu0 %v700, 21
  %v2125 = vpop.permute.xlu0 %2124
  %2126 = vrot.lane.b32.xlu0 %v702, 21
  %v2127 = vpop.permute.xlu0 %2126
  %2128 = vrot.lane.b32.xlu0 %v710, 21
  %v2129 = vpop.permute.xlu0 %2128
  %2130 = vrot.lane.b32.xlu0 %v712, 21
  %v2131 = vpop.permute.xlu0 %2130
  %2132 = vrot.lane.b32.xlu0 %v715, 21
  %v2133 = vpop.permute.xlu0 %2132
  %2134 = vrot.lane.b32.xlu0 %v717, 21
  %v2135 = vpop.permute.xlu0 %2134
  %2136 = vrot.lane.b32.xlu0 %v720, 21
  %v2137 = vpop.permute.xlu0 %2136
  %2138 = vrot.lane.b32.xlu0 %v722, 21
  %v2139 = vpop.permute.xlu0 %2138
  %2140 = vrot.lane.b32.xlu0 %v725, 21
  %v2141 = vpop.permute.xlu0 %2140
  %2142 = vrot.lane.b32.xlu0 %v727, 21
  %v2143 = vpop.permute.xlu0 %2142
  %2144 = vrot.lane.b32.xlu0 %v730, 21
  %v2145 = vpop.permute.xlu0 %2144
  %2146 = vrot.lane.b32.xlu0 %v732, 21
  %v2147 = vpop.permute.xlu0 %2146
  %2148 = vrot.lane.b32.xlu0 %v735, 21
  %v2149 = vpop.permute.xlu0 %2148
  %2150 = vrot.lane.b32.xlu0 %v737, 21
  %v2151 = vpop.permute.xlu0 %2150
  %2152 = vrot.lane.b32.xlu0 %v740, 21
  %v2153 = vpop.permute.xlu0 %2152
  %2154 = vrot.lane.b32.xlu0 %v742, 21
  %v2155 = vpop.permute.xlu0 %2154
  %2156 = vrot.lane.b32.xlu0 %v745, 21
  %v2157 = vpop.permute.xlu0 %2156
  %2158 = vrot.lane.b32.xlu0 %v747, 21
  %v2159 = vpop.permute.xlu0 %2158
  %2160 = vrot.lane.b32.xlu0 %v750, 21
  %v2161 = vpop.permute.xlu0 %2160
  %2162 = vrot.lane.b32.xlu0 %v752, 21
  %v2163 = vpop.permute.xlu0 %2162
  %2164 = vrot.lane.b32.xlu0 %v755, 21
  %v2165 = vpop.permute.xlu0 %2164
  %2166 = vrot.lane.b32.xlu0 %v757, 21
  %v2167 = vpop.permute.xlu0 %2166
  %2168 = vrot.lane.b32.xlu0 %v760, 21
  %v2169 = vpop.permute.xlu0 %2168
  %2170 = vrot.lane.b32.xlu0 %v762, 21
  %v2171 = vpop.permute.xlu0 %2170
  %2172 = vrot.lane.b32.xlu0 %v765, 21
  %v2173 = vpop.permute.xlu0 %2172
  %2174 = vrot.lane.b32.xlu0 %v767, 21
  %v2175 = vpop.permute.xlu0 %2174
  %2176 = vrot.lane.b32.xlu0 %v770, 21
  %v2177 = vpop.permute.xlu0 %2176
  %2178 = vrot.lane.b32.xlu0 %v772, 21
  %v2179 = vpop.permute.xlu0 %2178
  %2180 = vrot.lane.b32.xlu0 %v1487, 21
  %v2181 = vpop.permute.xlu0 %2180
  %2182 = vrot.lane.b32.xlu0 %v1489, 21
  %v2183 = vpop.permute.xlu0 %2182
  %2244 = vrot.lane.b32.xlu0 %v956, 24
  %v2245 = vpop.permute.xlu0 %2244
  %2246 = vrot.lane.b32.xlu0 %v958, 24
  %v2247 = vpop.permute.xlu0 %2246
  %2248 = vrot.lane.b32.xlu0 %v966, 24
  %v2249 = vpop.permute.xlu0 %2248
  %2250 = vrot.lane.b32.xlu0 %v968, 24
  %v2251 = vpop.permute.xlu0 %2250
  %2252 = vrot.lane.b32.xlu0 %v971, 24
  %v2253 = vpop.permute.xlu0 %2252
  %2254 = vrot.lane.b32.xlu0 %v973, 24
  %v2255 = vpop.permute.xlu0 %2254
  %2256 = vrot.lane.b32.xlu0 %v976, 24
  %v2257 = vpop.permute.xlu0 %2256
  %2258 = vrot.lane.b32.xlu0 %v978, 24
  %v2259 = vpop.permute.xlu0 %2258
  %2260 = vrot.lane.b32.xlu0 %v981, 24
  %v2261 = vpop.permute.xlu0 %2260
  %2262 = vrot.lane.b32.xlu0 %v983, 24
  %v2263 = vpop.permute.xlu0 %2262
  %2264 = vrot.lane.b32.xlu0 %v986, 24
  %v2265 = vpop.permute.xlu0 %2264
  %2266 = vrot.lane.b32.xlu0 %v988, 24
  %v2267 = vpop.permute.xlu0 %2266
  %2268 = vrot.lane.b32.xlu0 %v991, 24
  %v2269 = vpop.permute.xlu0 %2268
  %2270 = vrot.lane.b32.xlu0 %v993, 24
  %v2271 = vpop.permute.xlu0 %2270
  %2272 = vrot.lane.b32.xlu0 %v996, 24
  %v2273 = vpop.permute.xlu0 %2272
  %2274 = vrot.lane.b32.xlu0 %v998, 24
  %v2275 = vpop.permute.xlu0 %2274
  %2276 = vrot.lane.b32.xlu0 %v1001, 24
  %v2277 = vpop.permute.xlu0 %2276
  %2278 = vrot.lane.b32.xlu0 %v1003, 24
  %v2279 = vpop.permute.xlu0 %2278
  %2280 = vrot.lane.b32.xlu0 %v1006, 24
  %v2281 = vpop.permute.xlu0 %2280
  %2282 = vrot.lane.b32.xlu0 %v1008, 24
  %v2283 = vpop.permute.xlu0 %2282
  %2284 = vrot.lane.b32.xlu0 %v1011, 24
  %v2285 = vpop.permute.xlu0 %2284
  %2286 = vrot.lane.b32.xlu0 %v1013, 24
  %v2287 = vpop.permute.xlu0 %2286
  %2288 = vrot.lane.b32.xlu0 %v1016, 24
  %v2289 = vpop.permute.xlu0 %2288
  %2290 = vrot.lane.b32.xlu0 %v1018, 24
  %v2291 = vpop.permute.xlu0 %2290
  %2292 = vrot.lane.b32.xlu0 %v1021, 24
  %v2293 = vpop.permute.xlu0 %2292
  %2294 = vrot.lane.b32.xlu0 %v1023, 24
  %v2295 = vpop.permute.xlu0 %2294
  %2296 = vrot.lane.b32.xlu0 %v1026, 24
  %v2297 = vpop.permute.xlu0 %2296
  %2298 = vrot.lane.b32.xlu0 %v1028, 24
  %v2299 = vpop.permute.xlu0 %2298
  %2300 = vrot.lane.b32.xlu0 %v1684, 24
  %v2301 = vpop.permute.xlu0 %2300
  %2302 = vrot.lane.b32.xlu0 %v1686, 24
  %v2303 = vpop.permute.xlu0 %2302
  %2304 = vrot.lane.b32.xlu0 %v1031, 24
  %v2305 = vpop.permute.xlu0 %2304
  %2306 = vrot.lane.b32.xlu0 %v1033, 24
  %v2307 = vpop.permute.xlu0 %2306
  %2308 = vrot.lane.b32.xlu0 %v1041, 24
  %v2309 = vpop.permute.xlu0 %2308
  %2310 = vrot.lane.b32.xlu0 %v1043, 24
  %v2311 = vpop.permute.xlu0 %2310
  %2312 = vrot.lane.b32.xlu0 %v1046, 24
  %v2313 = vpop.permute.xlu0 %2312
  %2314 = vrot.lane.b32.xlu0 %v1048, 24
  %v2315 = vpop.permute.xlu0 %2314
  %2316 = vrot.lane.b32.xlu0 %v1051, 24
  %v2317 = vpop.permute.xlu0 %2316
  %2318 = vrot.lane.b32.xlu0 %v1053, 24
  %v2319 = vpop.permute.xlu0 %2318
  %2320 = vrot.lane.b32.xlu0 %v1056, 24
  %v2321 = vpop.permute.xlu0 %2320
  %2322 = vrot.lane.b32.xlu0 %v1058, 24
  %v2323 = vpop.permute.xlu0 %2322
  %2324 = vrot.lane.b32.xlu0 %v1061, 24
  %v2325 = vpop.permute.xlu0 %2324
  %2326 = vrot.lane.b32.xlu0 %v1063, 24
  %v2327 = vpop.permute.xlu0 %2326
  %2328 = vrot.lane.b32.xlu0 %v1066, 24
  %v2329 = vpop.permute.xlu0 %2328
  %2330 = vrot.lane.b32.xlu0 %v1068, 24
  %v2331 = vpop.permute.xlu0 %2330
  %2332 = vrot.lane.b32.xlu0 %v1071, 24
  %v2333 = vpop.permute.xlu0 %2332
  %2334 = vrot.lane.b32.xlu0 %v1073, 24
  %v2335 = vpop.permute.xlu0 %2334
  %2336 = vrot.lane.b32.xlu0 %v1076, 24
  %v2337 = vpop.permute.xlu0 %2336
  %2338 = vrot.lane.b32.xlu0 %v1078, 24
  %v2339 = vpop.permute.xlu0 %2338
  %2340 = vrot.lane.b32.xlu0 %v1081, 24
  %v2341 = vpop.permute.xlu0 %2340
  %2342 = vrot.lane.b32.xlu0 %v1083, 24
  %v2343 = vpop.permute.xlu0 %2342
  %2344 = vrot.lane.b32.xlu0 %v1086, 24
  %v2345 = vpop.permute.xlu0 %2344
  %2346 = vrot.lane.b32.xlu0 %v1088, 24
  %v2347 = vpop.permute.xlu0 %2346
  %2348 = vrot.lane.b32.xlu0 %v1091, 24
  %v2349 = vpop.permute.xlu0 %2348
  %2350 = vrot.lane.b32.xlu0 %v1093, 24
  %v2351 = vpop.permute.xlu0 %2350
  %2352 = vrot.lane.b32.xlu0 %v1096, 24
  %v2353 = vpop.permute.xlu0 %2352
  %2354 = vrot.lane.b32.xlu0 %v1098, 24
  %v2355 = vpop.permute.xlu0 %2354
  %2356 = vrot.lane.b32.xlu0 %v1101, 24
  %v2357 = vpop.permute.xlu0 %2356
  %2358 = vrot.lane.b32.xlu0 %v1103, 24
  %v2359 = vpop.permute.xlu0 %2358
  %2360 = vrot.lane.b32.xlu0 %v1689, 24
  %v2361 = vpop.permute.xlu0 %2360
  %2362 = vrot.lane.b32.xlu0 %v1691, 24
  %v2363 = vpop.permute.xlu0 %2362
  %vm2424 = vcmask 23552
  %v2425 = vsel %vm2424, %v498, %v774
  %v2426 = vsel %vm2424, %v246, %v776
  %v2427 = vsel %vm2424, %v499, %v778
  %v2428 = vsel %vm2424, %v249, %v780
  %v2429 = vsel %vm2424, %v500, %v782
  %v2430 = vsel %vm2424, %v252, %v784
  %v2431 = vsel %vm2424, %v501, %v786
  %v2432 = vsel %vm2424, %v255, %v788
  %v2433 = vsel %vm2424, %v502, %v790
  %v2434 = vsel %vm2424, %v258, %v792
  %v2435 = vsel %vm2424, %v503, %v794
  %v2436 = vsel %vm2424, %v261, %v796
  %v2437 = vsel %vm2424, %v504, %v798
  %v2438 = vsel %vm2424, %v264, %v800
  %v2439 = vsel %vm2424, %v505, %v802
  %v2440 = vsel %vm2424, %v267, %v804
  %v2441 = vsel %vm2424, %v506, %v806
  %v2442 = vsel %vm2424, %v270, %v808
  %v2443 = vsel %vm2424, %v507, %v810
  %v2444 = vsel %vm2424, %v273, %v812
  %v2445 = vsel %vm2424, %v508, %v814
  %v2446 = vsel %vm2424, %v276, %v816
  %v2447 = vsel %vm2424, %v509, %v818
  %v2448 = vsel %vm2424, %v279, %v820
  %v2449 = vsel %vm2424, %v510, %v822
  %v2450 = vsel %vm2424, %v282, %v824
  %v2451 = vsel %vm2424, %v511, %v826
  %v2452 = vsel %vm2424, %v285, %v828
  %v2453 = vsel %vm2424, %v512, %v830
  %v2454 = vsel %vm2424, %v288, %v832
  %v2455 = vsel %vm2424, %v514, %v834
  %v2456 = vsel %vm2424, %v294, %v836
  %v2457 = vsel %vm2424, %v515, %v838
  %v2458 = vsel %vm2424, %v297, %v840
  %v2459 = vsel %vm2424, %v516, %v842
  %v2460 = vsel %vm2424, %v300, %v844
  %v2461 = vsel %vm2424, %v517, %v846
  %v2462 = vsel %vm2424, %v303, %v848
  %v2463 = vsel %vm2424, %v518, %v850
  %v2464 = vsel %vm2424, %v306, %v852
  %v2465 = vsel %vm2424, %v519, %v854
  %v2466 = vsel %vm2424, %v309, %v856
  %v2467 = vsel %vm2424, %v520, %v858
  %v2468 = vsel %vm2424, %v312, %v860
  %v2469 = vsel %vm2424, %v521, %v862
  %v2470 = vsel %vm2424, %v315, %v864
  %v2471 = vsel %vm2424, %v522, %v866
  %v2472 = vsel %vm2424, %v318, %v868
  %v2473 = vsel %vm2424, %v523, %v870
  %v2474 = vsel %vm2424, %v321, %v872
  %v2475 = vsel %vm2424, %v524, %v874
  %v2476 = vsel %vm2424, %v324, %v876
  %v2477 = vsel %vm2424, %v525, %v878
  %v2478 = vsel %vm2424, %v327, %v880
  %v2479 = vsel %vm2424, %v526, %v882
  %v2480 = vsel %vm2424, %v330, %v884
  %v2481 = vsel %vm2424, %v527, %v886
  %v2482 = vsel %vm2424, %v333, %v888
  %v2483 = vsel %vm2424, %v528, %v890
  %v2484 = vsel %vm2424, %v336, %v892
  %vm2485 = vcmask 48128
  %v2486 = vsel %vm2485, %v2425, %v1105
  %v2487 = vsel %vm2485, %v2426, %v1107
  %v2488 = vsel %vm2485, %v2427, %v1109
  %v2489 = vsel %vm2485, %v2428, %v1111
  %v2490 = vsel %vm2485, %v2429, %v1113
  %v2491 = vsel %vm2485, %v2430, %v1115
  %v2492 = vsel %vm2485, %v2431, %v1117
  %v2493 = vsel %vm2485, %v2432, %v1119
  %v2494 = vsel %vm2485, %v2433, %v1121
  %v2495 = vsel %vm2485, %v2434, %v1123
  %v2496 = vsel %vm2485, %v2435, %v1125
  %v2497 = vsel %vm2485, %v2436, %v1127
  %v2498 = vsel %vm2485, %v2437, %v1129
  %v2499 = vsel %vm2485, %v2438, %v1131
  %v2500 = vsel %vm2485, %v2439, %v1133
  %v2501 = vsel %vm2485, %v2440, %v1135
  %v2502 = vsel %vm2485, %v2441, %v1137
  %v2503 = vsel %vm2485, %v2442, %v1139
  %v2504 = vsel %vm2485, %v2443, %v1141
  %v2505 = vsel %vm2485, %v2444, %v1143
  %v2506 = vsel %vm2485, %v2445, %v1145
  %v2507 = vsel %vm2485, %v2446, %v1147
  %v2508 = vsel %vm2485, %v2447, %v1149
  %v2509 = vsel %vm2485, %v2448, %v1151
  %v2510 = vsel %vm2485, %v2449, %v1153
  %v2511 = vsel %vm2485, %v2450, %v1155
  %v2512 = vsel %vm2485, %v2451, %v1157
  %v2513 = vsel %vm2485, %v2452, %v1159
  %v2514 = vsel %vm2485, %v2453, %v1161
  %v2515 = vsel %vm2485, %v2454, %v1163
  %v2516 = vsel %vm2485, %v2455, %v1165
  %v2517 = vsel %vm2485, %v2456, %v1167
  %v2518 = vsel %vm2485, %v2457, %v1169
  %v2519 = vsel %vm2485, %v2458, %v1171
  %v2520 = vsel %vm2485, %v2459, %v1173
  %v2521 = vsel %vm2485, %v2460, %v1175
  %v2522 = vsel %vm2485, %v2461, %v1177
  %v2523 = vsel %vm2485, %v2462, %v1179
  %v2524 = vsel %vm2485, %v2463, %v1181
  %v2525 = vsel %vm2485, %v2464, %v1183
  %v2526 = vsel %vm2485, %v2465, %v1185
  %v2527 = vsel %vm2485, %v2466, %v1187
  %v2528 = vsel %vm2485, %v2467, %v1189
  %v2529 = vsel %vm2485, %v2468, %v1191
  %v2530 = vsel %vm2485, %v2469, %v1193
  %v2531 = vsel %vm2485, %v2470, %v1195
  %v2532 = vsel %vm2485, %v2471, %v1197
  %v2533 = vsel %vm2485, %v2472, %v1199
  %v2534 = vsel %vm2485, %v2473, %v1201
  %v2535 = vsel %vm2485, %v2474, %v1203
  %v2536 = vsel %vm2485, %v2475, %v1205
  %v2537 = vsel %vm2485, %v2476, %v1207
  %v2538 = vsel %vm2485, %v2477, %v1209
  %v2539 = vsel %vm2485, %v2478, %v1211
  %v2540 = vsel %vm2485, %v2479, %v1213
  %v2541 = vsel %vm2485, %v2480, %v1215
  %v2542 = vsel %vm2485, %v2481, %v1217
  %v2543 = vsel %vm2485, %v2482, %v1219
  %v2544 = vsel %vm2485, %v2483, %v1221
  %v2545 = vsel %vm2485, %v2484, %v1223
  %vm2546 = vcmask 72704
  %v2547 = vsel %vm2546, %v2486, %v1287
  %v2548 = vsel %vm2546, %v2487, %v1289
  %v2549 = vsel %vm2546, %v2488, %v1291
  %v2550 = vsel %vm2546, %v2489, %v1293
  %v2551 = vsel %vm2546, %v2486, %v1295
  %v2552 = vsel %vm2546, %v2487, %v1297
  %v2553 = vsel %vm2546, %v2490, %v1299
  %v2554 = vsel %vm2546, %v2491, %v1301
  %v2555 = vsel %vm2546, %v2492, %v1303
  %v2556 = vsel %vm2546, %v2493, %v1305
  %v2557 = vsel %vm2546, %v2494, %v1307
  %v2558 = vsel %vm2546, %v2495, %v1309
  %v2559 = vsel %vm2546, %v2496, %v1311
  %v2560 = vsel %vm2546, %v2497, %v1313
  %v2561 = vsel %vm2546, %v2498, %v1315
  %v2562 = vsel %vm2546, %v2499, %v1317
  %v2563 = vsel %vm2546, %v2500, %v1319
  %v2564 = vsel %vm2546, %v2501, %v1321
  %v2565 = vsel %vm2546, %v2502, %v1323
  %v2566 = vsel %vm2546, %v2503, %v1325
  %v2567 = vsel %vm2546, %v2504, %v1327
  %v2568 = vsel %vm2546, %v2505, %v1329
  %v2569 = vsel %vm2546, %v2506, %v1331
  %v2570 = vsel %vm2546, %v2507, %v1333
  %v2571 = vsel %vm2546, %v2508, %v1335
  %v2572 = vsel %vm2546, %v2509, %v1337
  %v2573 = vsel %vm2546, %v2510, %v1339
  %v2574 = vsel %vm2546, %v2511, %v1341
  %v2575 = vsel %vm2546, %v2512, %v1343
  %v2576 = vsel %vm2546, %v2513, %v1345
  %v2577 = vsel %vm2546, %v2514, %v1347
  %v2578 = vsel %vm2546, %v2515, %v1349
  %v2579 = vsel %vm2546, %v2516, %v1351
  %v2580 = vsel %vm2546, %v2517, %v1353
  %v2581 = vsel %vm2546, %v2518, %v1355
  %v2582 = vsel %vm2546, %v2519, %v1357
  %v2583 = vsel %vm2546, %v2516, %v1359
  %v2584 = vsel %vm2546, %v2517, %v1361
  %v2585 = vsel %vm2546, %v2520, %v1363
  %v2586 = vsel %vm2546, %v2521, %v1365
  %v2587 = vsel %vm2546, %v2522, %v1367
  %v2588 = vsel %vm2546, %v2523, %v1369
  %v2589 = vsel %vm2546, %v2524, %v1371
  %v2590 = vsel %vm2546, %v2525, %v1373
  %v2591 = vsel %vm2546, %v2526, %v1375
  %v2592 = vsel %vm2546, %v2527, %v1377
  %v2593 = vsel %vm2546, %v2528, %v1379
  %v2594 = vsel %vm2546, %v2529, %v1381
  %v2595 = vsel %vm2546, %v2530, %v1383
  %v2596 = vsel %vm2546, %v2531, %v1385
  %v2597 = vsel %vm2546, %v2532, %v1387
  %v2598 = vsel %vm2546, %v2533, %v1389
  %v2599 = vsel %vm2546, %v2534, %v1391
  %v2600 = vsel %vm2546, %v2535, %v1393
  %v2601 = vsel %vm2546, %v2536, %v1395
  %v2602 = vsel %vm2546, %v2537, %v1397
  %v2603 = vsel %vm2546, %v2538, %v1399
  %v2604 = vsel %vm2546, %v2539, %v1401
  %v2605 = vsel %vm2546, %v2540, %v1403
  %v2606 = vsel %vm2546, %v2541, %v1405
  %v2607 = vsel %vm2546, %v2542, %v1407
  %v2608 = vsel %vm2546, %v2543, %v1409
  %v2609 = vsel %vm2546, %v2544, %v1411
  %v2610 = vsel %vm2546, %v2545, %v1413
  %vm2611 = vcmask 97280
  %v2612 = vsel %vm2611, %v2547, %v1491
  %v2613 = vsel %vm2611, %v2548, %v1493
  %v2614 = vsel %vm2611, %v2549, %v1495
  %v2615 = vsel %vm2611, %v2550, %v1497
  %v2616 = vsel %vm2611, %v2551, %v1499
  %v2617 = vsel %vm2611, %v2552, %v1501
  %v2618 = vsel %vm2611, %v2553, %v1503
  %v2619 = vsel %vm2611, %v2554, %v1505
  %v2620 = vsel %vm2611, %v2555, %v1507
  %v2621 = vsel %vm2611, %v2556, %v1509
  %v2622 = vsel %vm2611, %v2557, %v1511
  %v2623 = vsel %vm2611, %v2558, %v1513
  %v2624 = vsel %vm2611, %v2559, %v1515
  %v2625 = vsel %vm2611, %v2560, %v1517
  %v2626 = vsel %vm2611, %v2561, %v1519
  %v2627 = vsel %vm2611, %v2562, %v1521
  %v2628 = vsel %vm2611, %v2563, %v1523
  %v2629 = vsel %vm2611, %v2564, %v1525
  %v2630 = vsel %vm2611, %v2565, %v1527
  %v2631 = vsel %vm2611, %v2566, %v1529
  %v2632 = vsel %vm2611, %v2567, %v1531
  %v2633 = vsel %vm2611, %v2568, %v1533
  %v2634 = vsel %vm2611, %v2569, %v1535
  %v2635 = vsel %vm2611, %v2570, %v1537
  %v2636 = vsel %vm2611, %v2571, %v1539
  %v2637 = vsel %vm2611, %v2572, %v1541
  %v2638 = vsel %vm2611, %v2573, %v1543
  %v2639 = vsel %vm2611, %v2574, %v1545
  %v2640 = vsel %vm2611, %v2575, %v1547
  %v2641 = vsel %vm2611, %v2576, %v1549
  %v2642 = vsel %vm2611, %v2577, %v1551
  %v2643 = vsel %vm2611, %v2578, %v1553
  %v2644 = vsel %vm2611, %v2579, %v1555
  %v2645 = vsel %vm2611, %v2580, %v1557
  %v2646 = vsel %vm2611, %v2581, %v1559
  %v2647 = vsel %vm2611, %v2582, %v1561
  %v2648 = vsel %vm2611, %v2583, %v1563
  %v2649 = vsel %vm2611, %v2584, %v1565
  %v2650 = vsel %vm2611, %v2585, %v1567
  %v2651 = vsel %vm2611, %v2586, %v1569
  %v2652 = vsel %vm2611, %v2587, %v1571
  %v2653 = vsel %vm2611, %v2588, %v1573
  %v2654 = vsel %vm2611, %v2589, %v1575
  %v2655 = vsel %vm2611, %v2590, %v1577
  %v2656 = vsel %vm2611, %v2591, %v1579
  %v2657 = vsel %vm2611, %v2592, %v1581
  %v2658 = vsel %vm2611, %v2593, %v1583
  %v2659 = vsel %vm2611, %v2594, %v1585
  %v2660 = vsel %vm2611, %v2595, %v1587
  %v2661 = vsel %vm2611, %v2596, %v1589
  %v2662 = vsel %vm2611, %v2597, %v1591
  %v2663 = vsel %vm2611, %v2598, %v1593
  %v2664 = vsel %vm2611, %v2599, %v1595
  %v2665 = vsel %vm2611, %v2600, %v1597
  %v2666 = vsel %vm2611, %v2601, %v1599
  %v2667 = vsel %vm2611, %v2602, %v1601
  %v2668 = vsel %vm2611, %v2603, %v1603
  %v2669 = vsel %vm2611, %v2604, %v1605
  %v2670 = vsel %vm2611, %v2605, %v1607
  %v2671 = vsel %vm2611, %v2606, %v1609
  %v2672 = vsel %vm2611, %v2607, %v1611
  %v2673 = vsel %vm2611, %v2608, %v1613
  %v2674 = vsel %vm2611, %v2609, %v1615
  %v2675 = vsel %vm2611, %v2610, %v1617
  %vm2676 = vcmask 121856
  %v2677 = vsel %vm2676, %v2612, %v1693
  %v2678 = vsel %vm2676, %v2613, %v1695
  %v2679 = vsel %vm2676, %v2614, %v1697
  %v2680 = vsel %vm2676, %v2615, %v1699
  %v2681 = vsel %vm2676, %v2616, %v1701
  %v2682 = vsel %vm2676, %v2617, %v1703
  %v2683 = vsel %vm2676, %v2618, %v1705
  %v2684 = vsel %vm2676, %v2619, %v1707
  %v2685 = vsel %vm2676, %v2620, %v1709
  %v2686 = vsel %vm2676, %v2621, %v1711
  %v2687 = vsel %vm2676, %v2622, %v1713
  %v2688 = vsel %vm2676, %v2623, %v1715
  %v2689 = vsel %vm2676, %v2624, %v1717
  %v2690 = vsel %vm2676, %v2625, %v1719
  %v2691 = vsel %vm2676, %v2626, %v1721
  %v2692 = vsel %vm2676, %v2627, %v1723
  %v2693 = vsel %vm2676, %v2628, %v1725
  %v2694 = vsel %vm2676, %v2629, %v1727
  %v2695 = vsel %vm2676, %v2630, %v1729
  %v2696 = vsel %vm2676, %v2631, %v1731
  %v2697 = vsel %vm2676, %v2632, %v1733
  %v2698 = vsel %vm2676, %v2633, %v1735
  %v2699 = vsel %vm2676, %v2634, %v1737
  %v2700 = vsel %vm2676, %v2635, %v1739
  %v2701 = vsel %vm2676, %v2636, %v1741
  %v2702 = vsel %vm2676, %v2637, %v1743
  %v2703 = vsel %vm2676, %v2638, %v1745
  %v2704 = vsel %vm2676, %v2639, %v1747
  %v2705 = vsel %vm2676, %v2640, %v1749
  %v2706 = vsel %vm2676, %v2641, %v1751
  %v2707 = vsel %vm2676, %v2642, %v1753
  %v2708 = vsel %vm2676, %v2643, %v1755
  %v2709 = vsel %vm2676, %v2644, %v1757
  %v2710 = vsel %vm2676, %v2645, %v1759
  %v2711 = vsel %vm2676, %v2646, %v1761
  %v2712 = vsel %vm2676, %v2647, %v1763
  %v2713 = vsel %vm2676, %v2648, %v1765
  %v2714 = vsel %vm2676, %v2649, %v1767
  %v2715 = vsel %vm2676, %v2650, %v1769
  %v2716 = vsel %vm2676, %v2651, %v1771
  %v2717 = vsel %vm2676, %v2652, %v1773
  %v2718 = vsel %vm2676, %v2653, %v1775
  %v2719 = vsel %vm2676, %v2654, %v1777
  %v2720 = vsel %vm2676, %v2655, %v1779
  %v2721 = vsel %vm2676, %v2656, %v1781
  %v2722 = vsel %vm2676, %v2657, %v1783
  %v2723 = vsel %vm2676, %v2658, %v1785
  %v2724 = vsel %vm2676, %v2659, %v1787
  %v2725 = vsel %vm2676, %v2660, %v1789
  %v2726 = vsel %vm2676, %v2661, %v1791
  %v2727 = vsel %vm2676, %v2662, %v1793
  %v2728 = vsel %vm2676, %v2663, %v1795
  %v2729 = vsel %vm2676, %v2664, %v1797
  %v2730 = vsel %vm2676, %v2665, %v1799
  %v2731 = vsel %vm2676, %v2666, %v1801
  %v2732 = vsel %vm2676, %v2667, %v1803
  %v2733 = vsel %vm2676, %v2668, %v1805
  %v2734 = vsel %vm2676, %v2669, %v1807
  %v2735 = vsel %vm2676, %v2670, %v1809
  %v2736 = vsel %vm2676, %v2671, %v1811
  %v2737 = vsel %vm2676, %v2672, %v1813
  %v2738 = vsel %vm2676, %v2673, %v1815
  %v2739 = vsel %vm2676, %v2674, %v1817
  %v2740 = vsel %vm2676, %v2675, %v1819
  %vm2741 = vcmask 146432
  %v2742 = vsel %vm2741, %v2677, %v1885
  %v2743 = vsel %vm2741, %v2678, %v1887
  %v2744 = vsel %vm2741, %v2679, %v1889
  %v2745 = vsel %vm2741, %v2680, %v1891
  %v2746 = vsel %vm2741, %v2681, %v1893
  %v2747 = vsel %vm2741, %v2682, %v1895
  %v2748 = vsel %vm2741, %v2683, %v1897
  %v2749 = vsel %vm2741, %v2684, %v1899
  %v2750 = vsel %vm2741, %v2685, %v1901
  %v2751 = vsel %vm2741, %v2686, %v1903
  %v2752 = vsel %vm2741, %v2687, %v1905
  %v2753 = vsel %vm2741, %v2688, %v1907
  %v2754 = vsel %vm2741, %v2689, %v1909
  %v2755 = vsel %vm2741, %v2690, %v1911
  %v2756 = vsel %vm2741, %v2691, %v1913
  %v2757 = vsel %vm2741, %v2692, %v1915
  %v2758 = vsel %vm2741, %v2693, %v1917
  %v2759 = vsel %vm2741, %v2694, %v1919
  %v2760 = vsel %vm2741, %v2695, %v1921
  %v2761 = vsel %vm2741, %v2696, %v1923
  %v2762 = vsel %vm2741, %v2697, %v1925
  %v2763 = vsel %vm2741, %v2698, %v1927
  %v2764 = vsel %vm2741, %v2699, %v1929
  %v2765 = vsel %vm2741, %v2700, %v1931
  %v2766 = vsel %vm2741, %v2701, %v1933
  %v2767 = vsel %vm2741, %v2702, %v1935
  %v2768 = vsel %vm2741, %v2703, %v1937
  %v2769 = vsel %vm2741, %v2704, %v1939
  %v2770 = vsel %vm2741, %v2705, %v1941
  %v2771 = vsel %vm2741, %v2706, %v1943
  %v2772 = vsel %vm2741, %v2707, %v1937
  %v2773 = vsel %vm2741, %v2708, %v1939
  %v2774 = vsel %vm2741, %v2709, %v1945
  %v2775 = vsel %vm2741, %v2710, %v1947
  %v2776 = vsel %vm2741, %v2711, %v1949
  %v2777 = vsel %vm2741, %v2712, %v1951
  %v2778 = vsel %vm2741, %v2713, %v1953
  %v2779 = vsel %vm2741, %v2714, %v1955
  %v2780 = vsel %vm2741, %v2715, %v1957
  %v2781 = vsel %vm2741, %v2716, %v1959
  %v2782 = vsel %vm2741, %v2717, %v1961
  %v2783 = vsel %vm2741, %v2718, %v1963
  %v2784 = vsel %vm2741, %v2719, %v1965
  %v2785 = vsel %vm2741, %v2720, %v1967
  %v2786 = vsel %vm2741, %v2721, %v1969
  %v2787 = vsel %vm2741, %v2722, %v1971
  %v2788 = vsel %vm2741, %v2723, %v1973
  %v2789 = vsel %vm2741, %v2724, %v1975
  %v2790 = vsel %vm2741, %v2725, %v1977
  %v2791 = vsel %vm2741, %v2726, %v1979
  %v2792 = vsel %vm2741, %v2727, %v1981
  %v2793 = vsel %vm2741, %v2728, %v1983
  %v2794 = vsel %vm2741, %v2729, %v1985
  %v2795 = vsel %vm2741, %v2730, %v1987
  %v2796 = vsel %vm2741, %v2731, %v1989
  %v2797 = vsel %vm2741, %v2732, %v1991
  %v2798 = vsel %vm2741, %v2733, %v1993
  %v2799 = vsel %vm2741, %v2734, %v1995
  %v2800 = vsel %vm2741, %v2735, %v1997
  %v2801 = vsel %vm2741, %v2736, %v1999
  %v2802 = vsel %vm2741, %v2737, %v2001
  %v2803 = vsel %vm2741, %v2738, %v2003
  %v2804 = vsel %vm2741, %v2739, %v1997
  %v2805 = vsel %vm2741, %v2740, %v1999
  %vm2806 = vcmask 171008
  %v2807 = vsel %vm2806, %v2742, %v2065
  %v2808 = vsel %vm2806, %v2743, %v2067
  %v2809 = vsel %vm2806, %v2744, %v2069
  %v2810 = vsel %vm2806, %v2745, %v2071
  %v2811 = vsel %vm2806, %v2746, %v2073
  %v2812 = vsel %vm2806, %v2747, %v2075
  %v2813 = vsel %vm2806, %v2748, %v2077
  %v2814 = vsel %vm2806, %v2749, %v2079
  %v2815 = vsel %vm2806, %v2750, %v2081
  %v2816 = vsel %vm2806, %v2751, %v2083
  %v2817 = vsel %vm2806, %v2752, %v2085
  %v2818 = vsel %vm2806, %v2753, %v2087
  %v2819 = vsel %vm2806, %v2754, %v2089
  %v2820 = vsel %vm2806, %v2755, %v2091
  %v2821 = vsel %vm2806, %v2756, %v2093
  %v2822 = vsel %vm2806, %v2757, %v2095
  %v2823 = vsel %vm2806, %v2758, %v2097
  %v2824 = vsel %vm2806, %v2759, %v2099
  %v2825 = vsel %vm2806, %v2760, %v2101
  %v2826 = vsel %vm2806, %v2761, %v2103
  %v2827 = vsel %vm2806, %v2762, %v2105
  %v2828 = vsel %vm2806, %v2763, %v2107
  %v2829 = vsel %vm2806, %v2764, %v2109
  %v2830 = vsel %vm2806, %v2765, %v2111
  %v2831 = vsel %vm2806, %v2766, %v2113
  %v2832 = vsel %vm2806, %v2767, %v2115
  %v2833 = vsel %vm2806, %v2768, %v2117
  %v2834 = vsel %vm2806, %v2769, %v2119
  %v2835 = vsel %vm2806, %v2770, %v2121
  %v2836 = vsel %vm2806, %v2771, %v2123
  %v2837 = vsel %vm2806, %v2772, %v2117
  %v2838 = vsel %vm2806, %v2773, %v2119
  %v2839 = vsel %vm2806, %v2774, %v2125
  %v2840 = vsel %vm2806, %v2775, %v2127
  %v2841 = vsel %vm2806, %v2776, %v2129
  %v2842 = vsel %vm2806, %v2777, %v2131
  %v2843 = vsel %vm2806, %v2778, %v2133
  %v2844 = vsel %vm2806, %v2779, %v2135
  %v2845 = vsel %vm2806, %v2780, %v2137
  %v2846 = vsel %vm2806, %v2781, %v2139
  %v2847 = vsel %vm2806, %v2782, %v2141
  %v2848 = vsel %vm2806, %v2783, %v2143
  %v2849 = vsel %vm2806, %v2784, %v2145
  %v2850 = vsel %vm2806, %v2785, %v2147
  %v2851 = vsel %vm2806, %v2786, %v2149
  %v2852 = vsel %vm2806, %v2787, %v2151
  %v2853 = vsel %vm2806, %v2788, %v2153
  %v2854 = vsel %vm2806, %v2789, %v2155
  %v2855 = vsel %vm2806, %v2790, %v2157
  %v2856 = vsel %vm2806, %v2791, %v2159
  %v2857 = vsel %vm2806, %v2792, %v2161
  %v2858 = vsel %vm2806, %v2793, %v2163
  %v2859 = vsel %vm2806, %v2794, %v2165
  %v2860 = vsel %vm2806, %v2795, %v2167
  %v2861 = vsel %vm2806, %v2796, %v2169
  %v2862 = vsel %vm2806, %v2797, %v2171
  %v2863 = vsel %vm2806, %v2798, %v2173
  %v2864 = vsel %vm2806, %v2799, %v2175
  %v2865 = vsel %vm2806, %v2800, %v2177
  %v2866 = vsel %vm2806, %v2801, %v2179
  %v2867 = vsel %vm2806, %v2802, %v2181
  %v2868 = vsel %vm2806, %v2803, %v2183
  %v2869 = vsel %vm2806, %v2804, %v2177
  %v2870 = vsel %vm2806, %v2805, %v2179
  %vm2871 = vcmask 195584
  %v2872 = vsel %vm2871, %v2807, %v2245
  %v2873 = vsel %vm2871, %v2808, %v2247
  %v2874 = vsel %vm2871, %v2809, %v2249
  %v2875 = vsel %vm2871, %v2810, %v2251
  %v2876 = vsel %vm2871, %v2811, %v2253
  %v2877 = vsel %vm2871, %v2812, %v2255
  %v2878 = vsel %vm2871, %v2813, %v2257
  %v2879 = vsel %vm2871, %v2814, %v2259
  %v2880 = vsel %vm2871, %v2815, %v2261
  %v2881 = vsel %vm2871, %v2816, %v2263
  %v2882 = vsel %vm2871, %v2817, %v2265
  %v2883 = vsel %vm2871, %v2818, %v2267
  %v2884 = vsel %vm2871, %v2819, %v2269
  %v2885 = vsel %vm2871, %v2820, %v2271
  %v2886 = vsel %vm2871, %v2821, %v2273
  %v2887 = vsel %vm2871, %v2822, %v2275
  %v2888 = vsel %vm2871, %v2823, %v2277
  %v2889 = vsel %vm2871, %v2824, %v2279
  %v2890 = vsel %vm2871, %v2825, %v2281
  %v2891 = vsel %vm2871, %v2826, %v2283
  %v2892 = vsel %vm2871, %v2827, %v2285
  %v2893 = vsel %vm2871, %v2828, %v2287
  %v2894 = vsel %vm2871, %v2829, %v2289
  %v2895 = vsel %vm2871, %v2830, %v2291
  %v2896 = vsel %vm2871, %v2831, %v2293
  %v2897 = vsel %vm2871, %v2832, %v2295
  %v2898 = vsel %vm2871, %v2833, %v2297
  %v2899 = vsel %vm2871, %v2834, %v2299
  %v2900 = vsel %vm2871, %v2835, %v2301
  %v2901 = vsel %vm2871, %v2836, %v2303
  %v2902 = vsel %vm2871, %v2837, %v2297
  %v2903 = vsel %vm2871, %v2838, %v2299
  %v2904 = vsel %vm2871, %v2839, %v2305
  %v2905 = vsel %vm2871, %v2840, %v2307
  %v2906 = vsel %vm2871, %v2841, %v2309
  %v2907 = vsel %vm2871, %v2842, %v2311
  %v2908 = vsel %vm2871, %v2843, %v2313
  %v2909 = vsel %vm2871, %v2844, %v2315
  %v2910 = vsel %vm2871, %v2845, %v2317
  %v2911 = vsel %vm2871, %v2846, %v2319
  %v2912 = vsel %vm2871, %v2847, %v2321
  %v2913 = vsel %vm2871, %v2848, %v2323
  %v2914 = vsel %vm2871, %v2849, %v2325
  %v2915 = vsel %vm2871, %v2850, %v2327
  %v2916 = vsel %vm2871, %v2851, %v2329
  %v2917 = vsel %vm2871, %v2852, %v2331
  %v2918 = vsel %vm2871, %v2853, %v2333
  %v2919 = vsel %vm2871, %v2854, %v2335
  %v2920 = vsel %vm2871, %v2855, %v2337
  %v2921 = vsel %vm2871, %v2856, %v2339
  %v2922 = vsel %vm2871, %v2857, %v2341
  %v2923 = vsel %vm2871, %v2858, %v2343
  %v2924 = vsel %vm2871, %v2859, %v2345
  %v2925 = vsel %vm2871, %v2860, %v2347
  %v2926 = vsel %vm2871, %v2861, %v2349
  %v2927 = vsel %vm2871, %v2862, %v2351
  %v2928 = vsel %vm2871, %v2863, %v2353
  %v2929 = vsel %vm2871, %v2864, %v2355
  %v2930 = vsel %vm2871, %v2865, %v2357
  %v2931 = vsel %vm2871, %v2866, %v2359
  %v2932 = vsel %vm2871, %v2867, %v2361
  %v2933 = vsel %vm2871, %v2868, %v2363
  %v2934 = vsel %vm2871, %v2869, %v2357
  %v2935 = vsel %vm2871, %v2870, %v2359
  %v2936 = vpack.c.bf16 %v2873, %v2872
  %v2937 = vpack.c.bf16 %v2875, %v2874
  %v2938 = vpack.c.bf16 %v2877, %v2876
  %v2939 = vpack.c.bf16 %v2879, %v2878
  %v2940 = vpack.c.bf16 %v2881, %v2880
  %v2941 = vpack.c.bf16 %v2883, %v2882
  %v2942 = vpack.c.bf16 %v2885, %v2884
  %v2943 = vpack.c.bf16 %v2887, %v2886
  %v2944 = vpack.c.bf16 %v2889, %v2888
  %v2945 = vpack.c.bf16 %v2891, %v2890
  %v2946 = vpack.c.bf16 %v2893, %v2892
  %v2947 = vpack.c.bf16 %v2895, %v2894
  %v2948 = vpack.c.bf16 %v2897, %v2896
  %v2949 = vpack.c.bf16 %v2899, %v2898
  %v2950 = vpack.c.bf16 %v2901, %v2900
  %v2951 = vpack.c.bf16 %v2903, %v2902
  %v2952 = vpack.c.bf16 %v2905, %v2904
  %v2953 = vpack.c.bf16 %v2907, %v2906
  %v2954 = vpack.c.bf16 %v2909, %v2908
  %v2955 = vpack.c.bf16 %v2911, %v2910
  %v2956 = vpack.c.bf16 %v2913, %v2912
  %v2957 = vpack.c.bf16 %v2915, %v2914
  %v2958 = vpack.c.bf16 %v2917, %v2916
  %v2959 = vpack.c.bf16 %v2919, %v2918
  %v2960 = vpack.c.bf16 %v2921, %v2920
  %v2961 = vpack.c.bf16 %v2923, %v2922
  %v2962 = vpack.c.bf16 %v2925, %v2924
  %v2963 = vpack.c.bf16 %v2927, %v2926
  %v2964 = vpack.c.bf16 %v2929, %v2928
  %v2965 = vpack.c.bf16 %v2931, %v2930
  %v2966 = vpack.c.bf16 %v2933, %v2932
  %v2967 = vpack.c.bf16 %v2935, %v2934
  %v2972 = vunpack.c.l.b16 %v109
  %v2973 = vunpack.c.l.b16 %v110
  %v2974 = vunpack.c.l.b16 %v111
  %v2975 = vunpack.c.l.b16 %v112
  %v2976 = vpack.c.b16 %v2973, %v2972
  %v2977 = vpack.c.b16 %v2975, %v2974
  %vm2979 = vcmask 220160
  %v2981 = vsel %vm2979, %v2936, 0
  %v2984 = vsel %vm2979, %v2937, 0
  %v2987 = vsel %vm2979, %v2938, 0
  %v2990 = vsel %vm2979, %v2939, 0
  %v2993 = vsel %vm2979, %v2940, 0
  %v2996 = vsel %vm2979, %v2941, 0
  %v2999 = vsel %vm2979, %v2942, 0
  %v3002 = vsel %vm2979, %v2943, 0
  %v3005 = vsel %vm2979, %v2944, 0
  %v3008 = vsel %vm2979, %v2945, 0
  %v3011 = vsel %vm2979, %v2946, 0
  %v3014 = vsel %vm2979, %v2947, 0
  %v3017 = vsel %vm2979, %v2948, 0
  %v3020 = vsel %vm2979, %v2949, 0
  %v3023 = vsel %vm2979, %v2950, 0
  %v3026 = vsel %vm2979, %v2951, 0
  %v3029 = vsel %vm2979, %v2952, 0
  %v3032 = vsel %vm2979, %v2953, 0
  %v3035 = vsel %vm2979, %v2954, 0
  %v3038 = vsel %vm2979, %v2955, 0
  %v3041 = vsel %vm2979, %v2956, 0
  %v3044 = vsel %vm2979, %v2957, 0
  %v3047 = vsel %vm2979, %v2958, 0
  %v3050 = vsel %vm2979, %v2959, 0
  %v3053 = vsel %vm2979, %v2960, 0
  %v3056 = vsel %vm2979, %v2961, 0
  %v3059 = vsel %vm2979, %v2962, 0
  %v3062 = vsel %vm2979, %v2963, 0
  %v3065 = vsel %vm2979, %v2964, 0
  %v3068 = vsel %vm2979, %v2965, 0
  %v3071 = vsel %vm2979, %v2966, 0
  %v3074 = vsel %vm2979, %v2967, 0
  %vm3076 = vcmask 1044480
  %v3077 = vsel %vm3076, 4294967295, 65535
  %v3078 = vsel %vm953, %v3077, 0
  %v3080 = vand.u32 %v2977, %v3078
  %3082 = vmatprep.subr.bf16.mxu0 0
  %3083 = vmatpush1.bf16.msra.mxu0 0
  %3084 = vmatprep.subr.bf16.mxu0 0
  %3085 = vmatpush1.bf16.msra.mxu0 0
  %3086 = vmatprep.subr.bf16.mxu0 0
  %3087 = vmatpush1.bf16.msra.mxu0 0
  %3088 = vmatprep.subr.bf16.mxu0 0
  %3089 = vmatpush1.bf16.msra.mxu0 0
  %3090 = vmatprep.subr.bf16.mxu0 0
  %3091 = vmatpush1.bf16.msra.mxu0 0
  %3092 = vmatprep.subr.bf16.mxu0 0
  %3093 = vmatpush1.bf16.msra.mxu0 0
  %3094 = vmatprep.subr.bf16.mxu0 0
  %3095 = vmatpush1.bf16.msra.mxu0 %v3080
  %3096 = vmatprep.subr.bf16.mxu0 0
  %3097 = vmatpush1.bf16.msra.mxu0 %v2976
  %3098 = vmatprep.subr.bf16.mxu0 0
  %3099 = vmatpush2.bf16.msra.mxu0 0
  %3100 = vmatprep.subr.bf16.mxu0 0
  %3101 = vmatpush2.bf16.msra.mxu0 0
  %3102 = vmatprep.subr.bf16.mxu0 0
  %3103 = vmatpush2.bf16.msra.mxu0 0
  %3104 = vmatprep.subr.bf16.mxu0 0
  %3105 = vmatpush2.bf16.msra.mxu0 0
  %3106 = vmatprep.subr.bf16.mxu0 0
  %3107 = vmatpush2.bf16.msra.mxu0 0
  %3108 = vmatprep.subr.bf16.mxu0 0
  %3109 = vmatpush2.bf16.msra.mxu0 0
  %3110 = vmatprep.subr.bf16.mxu0 0
  %3111 = vmatpush2.bf16.msra.mxu0 0
  %3112 = vmatprep.subr.bf16.mxu0 0
  %3113 = vmatpush2.bf16.msra.mxu0 0
  %3114 = vmatprep.mubr.bf16.mxu0 0
  %3115 = vmatmul.mubr.bf16.gmra.mxu0 %v2981
  %v3116 = vpop.f32.mrf.mxu0
  %v3117 = vadd.f32 0.0, %v3116
  %v3118 = vpop.f32.mrf.mxu0
  %v3119 = vpop.f32.mrf.mxu0
  %v3120 = vadd.f32 0.0, %v3119
  %v3121 = vpop.f32.mrf.mxu0
  %3122 = vmatprep.mubr.bf16.mxu0 0
  %3123 = vmatmul.mubr.bf16.gmra.mxu0 %v2984
  %v3124 = vpop.f32.mrf.mxu0
  %v3125 = vadd.f32 0.0, %v3124
  %v3126 = vpop.f32.mrf.mxu0
  %v3127 = vpop.f32.mrf.mxu0
  %v3128 = vadd.f32 0.0, %v3127
  %v3129 = vpop.f32.mrf.mxu0
  %3130 = vmatprep.mubr.bf16.mxu0 0
  %3131 = vmatmul.mubr.bf16.gmra.mxu0 %v2987
  %v3132 = vpop.f32.mrf.mxu0
  %v3133 = vadd.f32 0.0, %v3132
  %v3134 = vpop.f32.mrf.mxu0
  %v3135 = vpop.f32.mrf.mxu0
  %v3136 = vadd.f32 0.0, %v3135
  %v3137 = vpop.f32.mrf.mxu0
  %3138 = vmatprep.mubr.bf16.mxu0 0
  %3139 = vmatmul.mubr.bf16.gmra.mxu0 %v2990
  %v3140 = vpop.f32.mrf.mxu0
  %v3141 = vadd.f32 0.0, %v3140
  %v3142 = vpop.f32.mrf.mxu0
  %v3143 = vpop.f32.mrf.mxu0
  %v3144 = vadd.f32 0.0, %v3143
  %v3145 = vpop.f32.mrf.mxu0
  %3146 = vmatprep.mubr.bf16.mxu0 0
  %3147 = vmatmul.mubr.bf16.gmra.mxu0 %v2993
  %v3148 = vpop.f32.mrf.mxu0
  %v3149 = vadd.f32 0.0, %v3148
  %v3150 = vpop.f32.mrf.mxu0
  %v3151 = vpop.f32.mrf.mxu0
  %v3152 = vadd.f32 0.0, %v3151
  %v3153 = vpop.f32.mrf.mxu0
  %3154 = vmatprep.mubr.bf16.mxu0 0
  %3155 = vmatmul.mubr.bf16.gmra.mxu0 %v2996
  %v3156 = vpop.f32.mrf.mxu0
  %v3157 = vadd.f32 0.0, %v3156
  %v3158 = vpop.f32.mrf.mxu0
  %v3159 = vpop.f32.mrf.mxu0
  %v3160 = vadd.f32 0.0, %v3159
  %v3161 = vpop.f32.mrf.mxu0
  %3162 = vmatprep.mubr.bf16.mxu0 0
  %3163 = vmatmul.mubr.bf16.gmra.mxu0 %v2999
  %v3164 = vpop.f32.mrf.mxu0
  %v3165 = vadd.f32 0.0, %v3164
  %v3166 = vpop.f32.mrf.mxu0
  %v3167 = vpop.f32.mrf.mxu0
  %v3168 = vadd.f32 0.0, %v3167
  %v3169 = vpop.f32.mrf.mxu0
  %3170 = vmatprep.mubr.bf16.mxu0 0
  %3171 = vmatmul.mubr.bf16.gmra.mxu0 %v3002
  %v3172 = vpop.f32.mrf.mxu0
  %v3173 = vadd.f32 0.0, %v3172
  %v3174 = vpop.f32.mrf.mxu0
  %v3175 = vpop.f32.mrf.mxu0
  %v3176 = vadd.f32 0.0, %v3175
  %v3177 = vpop.f32.mrf.mxu0
  %3178 = vmatprep.mubr.bf16.mxu0 0
  %3179 = vmatmul.mubr.bf16.gmra.mxu0 %v3005
  %v3180 = vpop.f32.mrf.mxu0
  %v3181 = vadd.f32 0.0, %v3180
  %v3182 = vpop.f32.mrf.mxu0
  %v3183 = vpop.f32.mrf.mxu0
  %v3184 = vadd.f32 0.0, %v3183
  %v3185 = vpop.f32.mrf.mxu0
  %3186 = vmatprep.mubr.bf16.mxu0 0
  %3187 = vmatmul.mubr.bf16.gmra.mxu0 %v3008
  %v3188 = vpop.f32.mrf.mxu0
  %v3189 = vadd.f32 0.0, %v3188
  %v3190 = vpop.f32.mrf.mxu0
  %v3191 = vpop.f32.mrf.mxu0
  %v3192 = vadd.f32 0.0, %v3191
  %v3193 = vpop.f32.mrf.mxu0
  %3194 = vmatprep.mubr.bf16.mxu0 0
  %3195 = vmatmul.mubr.bf16.gmra.mxu0 %v3011
  %v3196 = vpop.f32.mrf.mxu0
  %v3197 = vadd.f32 0.0, %v3196
  %v3198 = vpop.f32.mrf.mxu0
  %v3199 = vpop.f32.mrf.mxu0
  %v3200 = vadd.f32 0.0, %v3199
  %v3201 = vpop.f32.mrf.mxu0
  %3202 = vmatprep.mubr.bf16.mxu0 0
  %3203 = vmatmul.mubr.bf16.gmra.mxu0 %v3014
  %v3204 = vpop.f32.mrf.mxu0
  %v3205 = vadd.f32 0.0, %v3204
  %v3206 = vpop.f32.mrf.mxu0
  %v3207 = vpop.f32.mrf.mxu0
  %v3208 = vadd.f32 0.0, %v3207
  %v3209 = vpop.f32.mrf.mxu0
  %3210 = vmatprep.mubr.bf16.mxu0 0
  %3211 = vmatmul.mubr.bf16.gmra.mxu0 %v3017
  %v3212 = vpop.f32.mrf.mxu0
  %v3213 = vadd.f32 0.0, %v3212
  %v3214 = vpop.f32.mrf.mxu0
  %v3215 = vpop.f32.mrf.mxu0
  %v3216 = vadd.f32 0.0, %v3215
  %v3217 = vpop.f32.mrf.mxu0
  %3218 = vmatprep.mubr.bf16.mxu0 0
  %3219 = vmatmul.mubr.bf16.gmra.mxu0 %v3020
  %v3220 = vpop.f32.mrf.mxu0
  %v3221 = vadd.f32 0.0, %v3220
  %v3222 = vpop.f32.mrf.mxu0
  %v3223 = vpop.f32.mrf.mxu0
  %v3224 = vadd.f32 0.0, %v3223
  %v3225 = vpop.f32.mrf.mxu0
  %3226 = vmatprep.mubr.bf16.mxu0 0
  %3227 = vmatmul.mubr.bf16.gmra.mxu0 %v3023
  %v3228 = vpop.f32.mrf.mxu0
  %v3229 = vadd.f32 0.0, %v3228
  %v3230 = vpop.f32.mrf.mxu0
  %v3231 = vpop.f32.mrf.mxu0
  %v3232 = vadd.f32 0.0, %v3231
  %v3233 = vpop.f32.mrf.mxu0
  %3234 = vmatprep.mubr.bf16.mxu0 0
  %3235 = vmatmul.mubr.bf16.gmra.mxu0 %v3026
  %v3236 = vpop.f32.mrf.mxu0
  %v3237 = vadd.f32 0.0, %v3236
  %v3238 = vpop.f32.mrf.mxu0
  %v3239 = vpop.f32.mrf.mxu0
  %v3240 = vadd.f32 0.0, %v3239
  %v3241 = vpop.f32.mrf.mxu0
  %3242 = vmatprep.mubr.bf16.mxu0 0
  %3243 = vmatmul.mubr.bf16.gmra.mxu0 %v3029
  %v3244 = vpop.f32.mrf.mxu0
  %v3245 = vadd.f32 0.0, %v3244
  %v3246 = vpop.f32.mrf.mxu0
  %v3247 = vpop.f32.mrf.mxu0
  %v3248 = vadd.f32 0.0, %v3247
  %v3249 = vpop.f32.mrf.mxu0
  %3250 = vmatprep.mubr.bf16.mxu0 0
  %3251 = vmatmul.mubr.bf16.gmra.mxu0 %v3032
  %v3252 = vpop.f32.mrf.mxu0
  %v3253 = vadd.f32 0.0, %v3252
  %v3254 = vpop.f32.mrf.mxu0
  %v3255 = vpop.f32.mrf.mxu0
  %v3256 = vadd.f32 0.0, %v3255
  %v3257 = vpop.f32.mrf.mxu0
  %3258 = vmatprep.mubr.bf16.mxu0 0
  %3259 = vmatmul.mubr.bf16.gmra.mxu0 %v3035
  %v3260 = vpop.f32.mrf.mxu0
  %v3261 = vadd.f32 0.0, %v3260
  %v3262 = vpop.f32.mrf.mxu0
  %v3263 = vpop.f32.mrf.mxu0
  %v3264 = vadd.f32 0.0, %v3263
  %v3265 = vpop.f32.mrf.mxu0
  %3266 = vmatprep.mubr.bf16.mxu0 0
  %3267 = vmatmul.mubr.bf16.gmra.mxu0 %v3038
  %v3268 = vpop.f32.mrf.mxu0
  %v3269 = vadd.f32 0.0, %v3268
  %v3270 = vpop.f32.mrf.mxu0
  %v3271 = vpop.f32.mrf.mxu0
  %v3272 = vadd.f32 0.0, %v3271
  %v3273 = vpop.f32.mrf.mxu0
  %3274 = vmatprep.mubr.bf16.mxu0 0
  %3275 = vmatmul.mubr.bf16.gmra.mxu0 %v3041
  %v3276 = vpop.f32.mrf.mxu0
  %v3277 = vadd.f32 0.0, %v3276
  %v3278 = vpop.f32.mrf.mxu0
  %v3279 = vpop.f32.mrf.mxu0
  %v3280 = vadd.f32 0.0, %v3279
  %v3281 = vpop.f32.mrf.mxu0
  %3282 = vmatprep.mubr.bf16.mxu0 0
  %3283 = vmatmul.mubr.bf16.gmra.mxu0 %v3044
  %v3284 = vpop.f32.mrf.mxu0
  %v3285 = vadd.f32 0.0, %v3284
  %v3286 = vpop.f32.mrf.mxu0
  %v3287 = vpop.f32.mrf.mxu0
  %v3288 = vadd.f32 0.0, %v3287
  %v3289 = vpop.f32.mrf.mxu0
  %3290 = vmatprep.mubr.bf16.mxu0 0
  %3291 = vmatmul.mubr.bf16.gmra.mxu0 %v3047
  %v3292 = vpop.f32.mrf.mxu0
  %v3293 = vadd.f32 0.0, %v3292
  %v3294 = vpop.f32.mrf.mxu0
  %v3295 = vpop.f32.mrf.mxu0
  %v3296 = vadd.f32 0.0, %v3295
  %v3297 = vpop.f32.mrf.mxu0
  %3298 = vmatprep.mubr.bf16.mxu0 0
  %3299 = vmatmul.mubr.bf16.gmra.mxu0 %v3050
  %v3300 = vpop.f32.mrf.mxu0
  %v3301 = vadd.f32 0.0, %v3300
  %v3302 = vpop.f32.mrf.mxu0
  %v3303 = vpop.f32.mrf.mxu0
  %v3304 = vadd.f32 0.0, %v3303
  %v3305 = vpop.f32.mrf.mxu0
  %3306 = vmatprep.mubr.bf16.mxu0 0
  %3307 = vmatmul.mubr.bf16.gmra.mxu0 %v3053
  %v3308 = vpop.f32.mrf.mxu0
  %v3309 = vadd.f32 0.0, %v3308
  %v3310 = vpop.f32.mrf.mxu0
  %v3311 = vpop.f32.mrf.mxu0
  %v3312 = vadd.f32 0.0, %v3311
  %v3313 = vpop.f32.mrf.mxu0
  %3314 = vmatprep.mubr.bf16.mxu0 0
  %3315 = vmatmul.mubr.bf16.gmra.mxu0 %v3056
  %v3316 = vpop.f32.mrf.mxu0
  %v3317 = vadd.f32 0.0, %v3316
  %v3318 = vpop.f32.mrf.mxu0
  %v3319 = vpop.f32.mrf.mxu0
  %v3320 = vadd.f32 0.0, %v3319
  %v3321 = vpop.f32.mrf.mxu0
  %3322 = vmatprep.mubr.bf16.mxu0 0
  %3323 = vmatmul.mubr.bf16.gmra.mxu0 %v3059
  %v3324 = vpop.f32.mrf.mxu0
  %v3325 = vadd.f32 0.0, %v3324
  %v3326 = vpop.f32.mrf.mxu0
  %v3327 = vpop.f32.mrf.mxu0
  %v3328 = vadd.f32 0.0, %v3327
  %v3329 = vpop.f32.mrf.mxu0
  %3330 = vmatprep.mubr.bf16.mxu0 0
  %3331 = vmatmul.mubr.bf16.gmra.mxu0 %v3062
  %v3332 = vpop.f32.mrf.mxu0
  %v3333 = vadd.f32 0.0, %v3332
  %v3334 = vpop.f32.mrf.mxu0
  %v3335 = vpop.f32.mrf.mxu0
  %v3336 = vadd.f32 0.0, %v3335
  %v3337 = vpop.f32.mrf.mxu0
  %3338 = vmatprep.mubr.bf16.mxu0 0
  %3339 = vmatmul.mubr.bf16.gmra.mxu0 %v3065
  %v3340 = vpop.f32.mrf.mxu0
  %v3341 = vadd.f32 0.0, %v3340
  %v3342 = vpop.f32.mrf.mxu0
  %v3343 = vpop.f32.mrf.mxu0
  %v3344 = vadd.f32 0.0, %v3343
  %v3345 = vpop.f32.mrf.mxu0
  %3346 = vmatprep.mubr.bf16.mxu0 0
  %3347 = vmatmul.mubr.bf16.gmra.mxu0 %v3068
  %v3348 = vpop.f32.mrf.mxu0
  %v3349 = vadd.f32 0.0, %v3348
  %v3350 = vpop.f32.mrf.mxu0
  %v3351 = vpop.f32.mrf.mxu0
  %v3352 = vadd.f32 0.0, %v3351
  %v3353 = vpop.f32.mrf.mxu0
  %3354 = vmatprep.mubr.bf16.mxu0 0
  %3355 = vmatmul.mubr.bf16.gmra.mxu0 %v3071
  %v3356 = vpop.f32.mrf.mxu0
  %v3357 = vadd.f32 0.0, %v3356
  %v3358 = vpop.f32.mrf.mxu0
  %v3359 = vpop.f32.mrf.mxu0
  %v3360 = vadd.f32 0.0, %v3359
  %v3361 = vpop.f32.mrf.mxu0
  %3362 = vmatprep.mubr.bf16.mxu0 0
  %3363 = vmatmul.mubr.bf16.gmra.mxu0 %v3074
  %v3364 = vpop.f32.mrf.mxu0
  %v3365 = vadd.f32 0.0, %v3364
  %v3366 = vpop.f32.mrf.mxu0
  %v3367 = vpop.f32.mrf.mxu0
  %v3368 = vadd.f32 0.0, %v3367
  %v3369 = vpop.f32.mrf.mxu0
  %3370 = vdwg.mxu0
  %vm3371 = vcmask 64512
  %v3372 = vsel %vm3371, %v3117, 0.0
  %v3373 = vsel %vm3371, %v3120, 0.0
  %v3374 = vadd.f32 %v3372, %v3373
  %v3375 = vsel %vm3371, %v3125, 0.0
  %v3376 = vadd.f32 %v3374, %v3375
  %v3377 = vsel %vm3371, %v3128, 0.0
  %v3378 = vadd.f32 %v3376, %v3377
  %v3379 = vsel %vm3371, %v3133, 0.0
  %v3380 = vadd.f32 %v3378, %v3379
  %v3381 = vsel %vm3371, %v3136, 0.0
  %v3382 = vadd.f32 %v3380, %v3381
  %v3383 = vsel %vm3371, %v3141, 0.0
  %v3384 = vadd.f32 %v3382, %v3383
  %v3385 = vsel %vm3371, %v3144, 0.0
  %v3386 = vadd.f32 %v3384, %v3385
  %v3387 = vsel %vm3371, %v3149, 0.0
  %v3388 = vadd.f32 %v3386, %v3387
  %v3389 = vsel %vm3371, %v3152, 0.0
  %v3390 = vadd.f32 %v3388, %v3389
  %v3391 = vsel %vm3371, %v3157, 0.0
  %v3392 = vadd.f32 %v3390, %v3391
  %v3393 = vsel %vm3371, %v3160, 0.0
  %v3394 = vadd.f32 %v3392, %v3393
  %v3395 = vsel %vm3371, %v3165, 0.0
  %v3396 = vadd.f32 %v3394, %v3395
  %v3397 = vsel %vm3371, %v3168, 0.0
  %v3398 = vadd.f32 %v3396, %v3397
  %v3399 = vsel %vm3371, %v3173, 0.0
  %v3400 = vadd.f32 %v3398, %v3399
  %v3401 = vsel %vm3371, %v3176, 0.0
  %v3402 = vadd.f32 %v3400, %v3401
  %v3403 = vsel %vm3371, %v3181, 0.0
  %v3404 = vadd.f32 %v3402, %v3403
  %v3405 = vsel %vm3371, %v3184, 0.0
  %v3406 = vadd.f32 %v3404, %v3405
  %v3407 = vsel %vm3371, %v3189, 0.0
  %v3408 = vadd.f32 %v3406, %v3407
  %v3409 = vsel %vm3371, %v3192, 0.0
  %v3410 = vadd.f32 %v3408, %v3409
  %v3411 = vsel %vm3371, %v3197, 0.0
  %v3412 = vadd.f32 %v3410, %v3411
  %v3413 = vsel %vm3371, %v3200, 0.0
  %v3414 = vadd.f32 %v3412, %v3413
  %v3415 = vsel %vm3371, %v3205, 0.0
  %v3416 = vadd.f32 %v3414, %v3415
  %v3417 = vsel %vm3371, %v3208, 0.0
  %v3418 = vadd.f32 %v3416, %v3417
  %v3419 = vsel %vm3371, %v3213, 0.0
  %v3420 = vadd.f32 %v3418, %v3419
  %v3421 = vsel %vm3371, %v3216, 0.0
  %v3422 = vadd.f32 %v3420, %v3421
  %v3423 = vsel %vm3371, %v3221, 0.0
  %v3424 = vadd.f32 %v3422, %v3423
  %v3425 = vsel %vm3371, %v3224, 0.0
  %v3426 = vadd.f32 %v3424, %v3425
  %v3427 = vsel %vm3371, %v3229, 0.0
  %v3428 = vadd.f32 %v3426, %v3427
  %v3429 = vsel %vm3371, %v3232, 0.0
  %v3430 = vadd.f32 %v3428, %v3429
  %v3431 = vsel %vm3371, %v3237, 0.0
  %v3432 = vadd.f32 %v3430, %v3431
  %v3433 = vsel %vm3371, %v3240, 0.0
  %v3434 = vadd.f32 %v3432, %v3433
  %v3435 = vsel %vm3371, %v3245, 0.0
  %v3436 = vadd.f32 %v3434, %v3435
  %v3437 = vsel %vm3371, %v3248, 0.0
  %v3438 = vadd.f32 %v3436, %v3437
  %v3439 = vsel %vm3371, %v3253, 0.0
  %v3440 = vadd.f32 %v3438, %v3439
  %v3441 = vsel %vm3371, %v3256, 0.0
  %v3442 = vadd.f32 %v3440, %v3441
  %v3443 = vsel %vm3371, %v3261, 0.0
  %v3444 = vadd.f32 %v3442, %v3443
  %v3445 = vsel %vm3371, %v3264, 0.0
  %v3446 = vadd.f32 %v3444, %v3445
  %v3447 = vsel %vm3371, %v3269, 0.0
  %v3448 = vadd.f32 %v3446, %v3447
  %v3449 = vsel %vm3371, %v3272, 0.0
  %v3450 = vadd.f32 %v3448, %v3449
  %v3451 = vsel %vm3371, %v3277, 0.0
  %v3452 = vadd.f32 %v3450, %v3451
  %v3453 = vsel %vm3371, %v3280, 0.0
  %v3454 = vadd.f32 %v3452, %v3453
  %v3455 = vsel %vm3371, %v3285, 0.0
  %v3456 = vadd.f32 %v3454, %v3455
  %v3457 = vsel %vm3371, %v3288, 0.0
  %v3458 = vadd.f32 %v3456, %v3457
  %v3459 = vsel %vm3371, %v3293, 0.0
  %v3460 = vadd.f32 %v3458, %v3459
  %v3461 = vsel %vm3371, %v3296, 0.0
  %v3462 = vadd.f32 %v3460, %v3461
  %v3463 = vsel %vm3371, %v3301, 0.0
  %v3464 = vadd.f32 %v3462, %v3463
  %v3465 = vsel %vm3371, %v3304, 0.0
  %v3466 = vadd.f32 %v3464, %v3465
  %v3467 = vsel %vm3371, %v3309, 0.0
  %v3468 = vadd.f32 %v3466, %v3467
  %v3469 = vsel %vm3371, %v3312, 0.0
  %v3470 = vadd.f32 %v3468, %v3469
  %v3471 = vsel %vm3371, %v3317, 0.0
  %v3472 = vadd.f32 %v3470, %v3471
  %v3473 = vsel %vm3371, %v3320, 0.0
  %v3474 = vadd.f32 %v3472, %v3473
  %v3475 = vsel %vm3371, %v3325, 0.0
  %v3476 = vadd.f32 %v3474, %v3475
  %v3477 = vsel %vm3371, %v3328, 0.0
  %v3478 = vadd.f32 %v3476, %v3477
  %v3479 = vsel %vm3371, %v3333, 0.0
  %v3480 = vadd.f32 %v3478, %v3479
  %v3481 = vsel %vm3371, %v3336, 0.0
  %v3482 = vadd.f32 %v3480, %v3481
  %v3483 = vsel %vm3371, %v3341, 0.0
  %v3484 = vadd.f32 %v3482, %v3483
  %v3485 = vsel %vm3371, %v3344, 0.0
  %v3486 = vadd.f32 %v3484, %v3485
  %v3487 = vsel %vm3371, %v3349, 0.0
  %v3488 = vadd.f32 %v3486, %v3487
  %v3489 = vsel %vm3371, %v3352, 0.0
  %v3490 = vadd.f32 %v3488, %v3489
  %v3491 = vsel %vm3371, %v3357, 0.0
  %v3492 = vadd.f32 %v3490, %v3491
  %v3493 = vsel %vm3371, %v3360, 0.0
  %v3494 = vadd.f32 %v3492, %v3493
  %v3495 = vsel %vm3371, %v3365, 0.0
  %v3496 = vadd.f32 %v3494, %v3495
  %v3497 = vsel %vm3371, %v3368, 0.0
  %v3498 = vadd.f32 %v3496, %v3497
  %v3499 = vrot.slane %v3498, 4
  %v3500 = vadd.f32 %v3498, %v3499
  %v3501 = vrot.slane %v3500, 2
  %v3502 = vadd.f32 %v3500, %v3501
  %v3503 = vrot.slane %v3502, 1
  %v3504 = vadd.f32 %v3502, %v3503
  %v3505 = vmul.f32 %v3117, %v3117
  %v3506 = vmul.f32 %v3120, %v3120
  %v3507 = vmul.f32 %v3125, %v3125
  %v3508 = vmul.f32 %v3128, %v3128
  %v3509 = vmul.f32 %v3133, %v3133
  %v3510 = vmul.f32 %v3136, %v3136
  %v3511 = vmul.f32 %v3141, %v3141
  %v3512 = vmul.f32 %v3144, %v3144
  %v3513 = vmul.f32 %v3149, %v3149
  %v3514 = vmul.f32 %v3152, %v3152
  %v3515 = vmul.f32 %v3157, %v3157
  %v3516 = vmul.f32 %v3160, %v3160
  %v3517 = vmul.f32 %v3165, %v3165
  %v3518 = vmul.f32 %v3168, %v3168
  %v3519 = vmul.f32 %v3173, %v3173
  %v3520 = vmul.f32 %v3176, %v3176
  %v3521 = vmul.f32 %v3181, %v3181
  %v3522 = vmul.f32 %v3184, %v3184
  %v3523 = vmul.f32 %v3189, %v3189
  %v3524 = vmul.f32 %v3192, %v3192
  %v3525 = vmul.f32 %v3197, %v3197
  %v3526 = vmul.f32 %v3200, %v3200
  %v3527 = vmul.f32 %v3205, %v3205
  %v3528 = vmul.f32 %v3208, %v3208
  %v3529 = vmul.f32 %v3213, %v3213
  %v3530 = vmul.f32 %v3216, %v3216
  %v3531 = vmul.f32 %v3221, %v3221
  %v3532 = vmul.f32 %v3224, %v3224
  %v3533 = vmul.f32 %v3229, %v3229
  %v3534 = vmul.f32 %v3232, %v3232
  %v3535 = vmul.f32 %v3237, %v3237
  %v3536 = vmul.f32 %v3240, %v3240
  %v3537 = vmul.f32 %v3245, %v3245
  %v3538 = vmul.f32 %v3248, %v3248
  %v3539 = vmul.f32 %v3253, %v3253
  %v3540 = vmul.f32 %v3256, %v3256
  %v3541 = vmul.f32 %v3261, %v3261
  %v3542 = vmul.f32 %v3264, %v3264
  %v3543 = vmul.f32 %v3269, %v3269
  %v3544 = vmul.f32 %v3272, %v3272
  %v3545 = vmul.f32 %v3277, %v3277
  %v3546 = vmul.f32 %v3280, %v3280
  %v3547 = vmul.f32 %v3285, %v3285
  %v3548 = vmul.f32 %v3288, %v3288
  %v3549 = vmul.f32 %v3293, %v3293
  %v3550 = vmul.f32 %v3296, %v3296
  %v3551 = vmul.f32 %v3301, %v3301
  %v3552 = vmul.f32 %v3304, %v3304
  %v3553 = vmul.f32 %v3309, %v3309
  %v3554 = vmul.f32 %v3312, %v3312
  %v3555 = vmul.f32 %v3317, %v3317
  %v3556 = vmul.f32 %v3320, %v3320
  %v3557 = vmul.f32 %v3325, %v3325
  %v3558 = vmul.f32 %v3328, %v3328
  %v3559 = vmul.f32 %v3333, %v3333
  %v3560 = vmul.f32 %v3336, %v3336
  %v3561 = vmul.f32 %v3341, %v3341
  %v3562 = vmul.f32 %v3344, %v3344
  %v3563 = vmul.f32 %v3349, %v3349
  %v3564 = vmul.f32 %v3352, %v3352
  %v3565 = vmul.f32 %v3357, %v3357
  %v3566 = vmul.f32 %v3360, %v3360
  %v3567 = vmul.f32 %v3365, %v3365
  %v3568 = vmul.f32 %v3368, %v3368
  %v3569 = vsel %vm3371, %v3505, 0.0
  %v3570 = vsel %vm3371, %v3506, 0.0
  %v3571 = vadd.f32 %v3569, %v3570
  %v3572 = vsel %vm3371, %v3507, 0.0
  %v3573 = vadd.f32 %v3571, %v3572
  %v3574 = vsel %vm3371, %v3508, 0.0
  %v3575 = vadd.f32 %v3573, %v3574
  %v3576 = vsel %vm3371, %v3509, 0.0
  %v3577 = vadd.f32 %v3575, %v3576
  %v3578 = vsel %vm3371, %v3510, 0.0
  %v3579 = vadd.f32 %v3577, %v3578
  %v3580 = vsel %vm3371, %v3511, 0.0
  %v3581 = vadd.f32 %v3579, %v3580
  %v3582 = vsel %vm3371, %v3512, 0.0
  %v3583 = vadd.f32 %v3581, %v3582
  %v3584 = vsel %vm3371, %v3513, 0.0
  %v3585 = vadd.f32 %v3583, %v3584
  %v3586 = vsel %vm3371, %v3514, 0.0
  %v3587 = vadd.f32 %v3585, %v3586
  %v3588 = vsel %vm3371, %v3515, 0.0
  %v3589 = vadd.f32 %v3587, %v3588
  %v3590 = vsel %vm3371, %v3516, 0.0
  %v3591 = vadd.f32 %v3589, %v3590
  %v3592 = vsel %vm3371, %v3517, 0.0
  %v3593 = vadd.f32 %v3591, %v3592
  %v3594 = vsel %vm3371, %v3518, 0.0
  %v3595 = vadd.f32 %v3593, %v3594
  %v3596 = vsel %vm3371, %v3519, 0.0
  %v3597 = vadd.f32 %v3595, %v3596
  %v3598 = vsel %vm3371, %v3520, 0.0
  %v3599 = vadd.f32 %v3597, %v3598
  %v3600 = vsel %vm3371, %v3521, 0.0
  %v3601 = vadd.f32 %v3599, %v3600
  %v3602 = vsel %vm3371, %v3522, 0.0
  %v3603 = vadd.f32 %v3601, %v3602
  %v3604 = vsel %vm3371, %v3523, 0.0
  %v3605 = vadd.f32 %v3603, %v3604
  %v3606 = vsel %vm3371, %v3524, 0.0
  %v3607 = vadd.f32 %v3605, %v3606
  %v3608 = vsel %vm3371, %v3525, 0.0
  %v3609 = vadd.f32 %v3607, %v3608
  %v3610 = vsel %vm3371, %v3526, 0.0
  %v3611 = vadd.f32 %v3609, %v3610
  %v3612 = vsel %vm3371, %v3527, 0.0
  %v3613 = vadd.f32 %v3611, %v3612
  %v3614 = vsel %vm3371, %v3528, 0.0
  %v3615 = vadd.f32 %v3613, %v3614
  %v3616 = vsel %vm3371, %v3529, 0.0
  %v3617 = vadd.f32 %v3615, %v3616
  %v3618 = vsel %vm3371, %v3530, 0.0
  %v3619 = vadd.f32 %v3617, %v3618
  %v3620 = vsel %vm3371, %v3531, 0.0
  %v3621 = vadd.f32 %v3619, %v3620
  %v3622 = vsel %vm3371, %v3532, 0.0
  %v3623 = vadd.f32 %v3621, %v3622
  %v3624 = vsel %vm3371, %v3533, 0.0
  %v3625 = vadd.f32 %v3623, %v3624
  %v3626 = vsel %vm3371, %v3534, 0.0
  %v3627 = vadd.f32 %v3625, %v3626
  %v3628 = vsel %vm3371, %v3535, 0.0
  %v3629 = vadd.f32 %v3627, %v3628
  %v3630 = vsel %vm3371, %v3536, 0.0
  %v3631 = vadd.f32 %v3629, %v3630
  %v3632 = vsel %vm3371, %v3537, 0.0
  %v3633 = vadd.f32 %v3631, %v3632
  %v3634 = vsel %vm3371, %v3538, 0.0
  %v3635 = vadd.f32 %v3633, %v3634
  %v3636 = vsel %vm3371, %v3539, 0.0
  %v3637 = vadd.f32 %v3635, %v3636
  %v3638 = vsel %vm3371, %v3540, 0.0
  %v3639 = vadd.f32 %v3637, %v3638
  %v3640 = vsel %vm3371, %v3541, 0.0
  %v3641 = vadd.f32 %v3639, %v3640
  %v3642 = vsel %vm3371, %v3542, 0.0
  %v3643 = vadd.f32 %v3641, %v3642
  %v3644 = vsel %vm3371, %v3543, 0.0
  %v3645 = vadd.f32 %v3643, %v3644
  %v3646 = vsel %vm3371, %v3544, 0.0
  %v3647 = vadd.f32 %v3645, %v3646
  %v3648 = vsel %vm3371, %v3545, 0.0
  %v3649 = vadd.f32 %v3647, %v3648
  %v3650 = vsel %vm3371, %v3546, 0.0
  %v3651 = vadd.f32 %v3649, %v3650
  %v3652 = vsel %vm3371, %v3547, 0.0
  %v3653 = vadd.f32 %v3651, %v3652
  %v3654 = vsel %vm3371, %v3548, 0.0
  %v3655 = vadd.f32 %v3653, %v3654
  %v3656 = vsel %vm3371, %v3549, 0.0
  %v3657 = vadd.f32 %v3655, %v3656
  %v3658 = vsel %vm3371, %v3550, 0.0
  %v3659 = vadd.f32 %v3657, %v3658
  %v3660 = vsel %vm3371, %v3551, 0.0
  %v3661 = vadd.f32 %v3659, %v3660
  %v3662 = vsel %vm3371, %v3552, 0.0
  %v3663 = vadd.f32 %v3661, %v3662
  %v3664 = vsel %vm3371, %v3553, 0.0
  %v3665 = vadd.f32 %v3663, %v3664
  %v3666 = vsel %vm3371, %v3554, 0.0
  %v3667 = vadd.f32 %v3665, %v3666
  %v3668 = vsel %vm3371, %v3555, 0.0
  %v3669 = vadd.f32 %v3667, %v3668
  %v3670 = vsel %vm3371, %v3556, 0.0
  %v3671 = vadd.f32 %v3669, %v3670
  %v3672 = vsel %vm3371, %v3557, 0.0
  %v3673 = vadd.f32 %v3671, %v3672
  %v3674 = vsel %vm3371, %v3558, 0.0
  %v3675 = vadd.f32 %v3673, %v3674
  %v3676 = vsel %vm3371, %v3559, 0.0
  %v3677 = vadd.f32 %v3675, %v3676
  %v3678 = vsel %vm3371, %v3560, 0.0
  %v3679 = vadd.f32 %v3677, %v3678
  %v3680 = vsel %vm3371, %v3561, 0.0
  %v3681 = vadd.f32 %v3679, %v3680
  %v3682 = vsel %vm3371, %v3562, 0.0
  %v3683 = vadd.f32 %v3681, %v3682
  %v3684 = vsel %vm3371, %v3563, 0.0
  %v3685 = vadd.f32 %v3683, %v3684
  %v3686 = vsel %vm3371, %v3564, 0.0
  %v3687 = vadd.f32 %v3685, %v3686
  %v3688 = vsel %vm3371, %v3565, 0.0
  %v3689 = vadd.f32 %v3687, %v3688
  %v3690 = vsel %vm3371, %v3566, 0.0
  %v3691 = vadd.f32 %v3689, %v3690
  %v3692 = vsel %vm3371, %v3567, 0.0
  %v3693 = vadd.f32 %v3691, %v3692
  %v3694 = vsel %vm3371, %v3568, 0.0
  %v3695 = vadd.f32 %v3693, %v3694
  %v3696 = vrot.slane %v3695, 4
  %v3697 = vadd.f32 %v3695, %v3696
  %v3698 = vrot.slane %v3697, 2
  %v3699 = vadd.f32 %v3697, %v3698
  %v3700 = vrot.slane %v3699, 1
  %v3701 = vadd.f32 %v3699, %v3700
  %v3702 = vrcp.pop 512.0
  %v3703 = vmul.f32 %v3504, %v3702
  %v3704 = vmul.f32 %v3701, %v3702
  %v3705 = vmul.f32 %v3703, %v3703
  %v3706 = vsub.f32 %v3704, %v3705
  %v3707 = vmax.f32 %v3706, 0.0
  %v3708 = vadd.f32 %v3707, 1e-05
  %v3709 = vrsqrt.pop %v3708
  %v3710 = vmul.f32 %v113, %v3709
  %v3711 = vmul.f32 %v3703, %v3710
  %v3712 = vsub.f32 %v114, %v3711
  %v3714 = vlaneseq
  %v3715 = vshrl.u32 %v3714, 7
  %v3716 = vsub.s32 0, %v3715
  %v3717 = vrot.slane %v3710, %v3716
  %v3719 = vmul.f32 %v3117, %v3717
  %v3720 = vmul.f32 %v3120, %v3717
  %v3721 = vmul.f32 %v3125, %v3717
  %v3722 = vmul.f32 %v3128, %v3717
  %v3723 = vmul.f32 %v3133, %v3717
  %v3724 = vmul.f32 %v3136, %v3717
  %v3725 = vmul.f32 %v3141, %v3717
  %v3726 = vmul.f32 %v3144, %v3717
  %v3727 = vmul.f32 %v3149, %v3717
  %v3728 = vmul.f32 %v3152, %v3717
  %v3729 = vmul.f32 %v3157, %v3717
  %v3730 = vmul.f32 %v3160, %v3717
  %v3731 = vmul.f32 %v3165, %v3717
  %v3732 = vmul.f32 %v3168, %v3717
  %v3733 = vmul.f32 %v3173, %v3717
  %v3734 = vmul.f32 %v3176, %v3717
  %v3735 = vmul.f32 %v3181, %v3717
  %v3736 = vmul.f32 %v3184, %v3717
  %v3737 = vmul.f32 %v3189, %v3717
  %v3738 = vmul.f32 %v3192, %v3717
  %v3739 = vmul.f32 %v3197, %v3717
  %v3740 = vmul.f32 %v3200, %v3717
  %v3741 = vmul.f32 %v3205, %v3717
  %v3742 = vmul.f32 %v3208, %v3717
  %v3743 = vmul.f32 %v3213, %v3717
  %v3744 = vmul.f32 %v3216, %v3717
  %v3745 = vmul.f32 %v3221, %v3717
  %v3746 = vmul.f32 %v3224, %v3717
  %v3747 = vmul.f32 %v3229, %v3717
  %v3748 = vmul.f32 %v3232, %v3717
  %v3749 = vmul.f32 %v3237, %v3717
  %v3750 = vmul.f32 %v3240, %v3717
  %v3751 = vmul.f32 %v3245, %v3717
  %v3752 = vmul.f32 %v3248, %v3717
  %v3753 = vmul.f32 %v3253, %v3717
  %v3754 = vmul.f32 %v3256, %v3717
  %v3755 = vmul.f32 %v3261, %v3717
  %v3756 = vmul.f32 %v3264, %v3717
  %v3757 = vmul.f32 %v3269, %v3717
  %v3758 = vmul.f32 %v3272, %v3717
  %v3759 = vmul.f32 %v3277, %v3717
  %v3760 = vmul.f32 %v3280, %v3717
  %v3761 = vmul.f32 %v3285, %v3717
  %v3762 = vmul.f32 %v3288, %v3717
  %v3763 = vmul.f32 %v3293, %v3717
  %v3764 = vmul.f32 %v3296, %v3717
  %v3765 = vmul.f32 %v3301, %v3717
  %v3766 = vmul.f32 %v3304, %v3717
  %v3767 = vmul.f32 %v3309, %v3717
  %v3768 = vmul.f32 %v3312, %v3717
  %v3769 = vmul.f32 %v3317, %v3717
  %v3770 = vmul.f32 %v3320, %v3717
  %v3771 = vmul.f32 %v3325, %v3717
  %v3772 = vmul.f32 %v3328, %v3717
  %v3773 = vmul.f32 %v3333, %v3717
  %v3774 = vmul.f32 %v3336, %v3717
  %v3775 = vmul.f32 %v3341, %v3717
  %v3776 = vmul.f32 %v3344, %v3717
  %v3777 = vmul.f32 %v3349, %v3717
  %v3778 = vmul.f32 %v3352, %v3717
  %v3779 = vmul.f32 %v3357, %v3717
  %v3780 = vmul.f32 %v3360, %v3717
  %v3781 = vmul.f32 %v3365, %v3717
  %v3782 = vmul.f32 %v3368, %v3717
  %v3784 = vlaneseq
  %v3785 = vshrl.u32 %v3784, 7
  %v3786 = vsub.s32 0, %v3785
  %v3787 = vrot.slane %v3712, %v3786
  %v3789 = vadd.f32 %v3719, %v3787
  %v3790 = vadd.f32 %v3720, %v3787
  %v3791 = vadd.f32 %v3721, %v3787
  %v3792 = vadd.f32 %v3722, %v3787
  %v3793 = vadd.f32 %v3723, %v3787
  %v3794 = vadd.f32 %v3724, %v3787
  %v3795 = vadd.f32 %v3725, %v3787
  %v3796 = vadd.f32 %v3726, %v3787
  %v3797 = vadd.f32 %v3727, %v3787
  %v3798 = vadd.f32 %v3728, %v3787
  %v3799 = vadd.f32 %v3729, %v3787
  %v3800 = vadd.f32 %v3730, %v3787
  %v3801 = vadd.f32 %v3731, %v3787
  %v3802 = vadd.f32 %v3732, %v3787
  %v3803 = vadd.f32 %v3733, %v3787
  %v3804 = vadd.f32 %v3734, %v3787
  %v3805 = vadd.f32 %v3735, %v3787
  %v3806 = vadd.f32 %v3736, %v3787
  %v3807 = vadd.f32 %v3737, %v3787
  %v3808 = vadd.f32 %v3738, %v3787
  %v3809 = vadd.f32 %v3739, %v3787
  %v3810 = vadd.f32 %v3740, %v3787
  %v3811 = vadd.f32 %v3741, %v3787
  %v3812 = vadd.f32 %v3742, %v3787
  %v3813 = vadd.f32 %v3743, %v3787
  %v3814 = vadd.f32 %v3744, %v3787
  %v3815 = vadd.f32 %v3745, %v3787
  %v3816 = vadd.f32 %v3746, %v3787
  %v3817 = vadd.f32 %v3747, %v3787
  %v3818 = vadd.f32 %v3748, %v3787
  %v3819 = vadd.f32 %v3749, %v3787
  %v3820 = vadd.f32 %v3750, %v3787
  %v3821 = vadd.f32 %v3751, %v3787
  %v3822 = vadd.f32 %v3752, %v3787
  %v3823 = vadd.f32 %v3753, %v3787
  %v3824 = vadd.f32 %v3754, %v3787
  %v3825 = vadd.f32 %v3755, %v3787
  %v3826 = vadd.f32 %v3756, %v3787
  %v3827 = vadd.f32 %v3757, %v3787
  %v3828 = vadd.f32 %v3758, %v3787
  %v3829 = vadd.f32 %v3759, %v3787
  %v3830 = vadd.f32 %v3760, %v3787
  %v3831 = vadd.f32 %v3761, %v3787
  %v3832 = vadd.f32 %v3762, %v3787
  %v3833 = vadd.f32 %v3763, %v3787
  %v3834 = vadd.f32 %v3764, %v3787
  %v3835 = vadd.f32 %v3765, %v3787
  %v3836 = vadd.f32 %v3766, %v3787
  %v3837 = vadd.f32 %v3767, %v3787
  %v3838 = vadd.f32 %v3768, %v3787
  %v3839 = vadd.f32 %v3769, %v3787
  %v3840 = vadd.f32 %v3770, %v3787
  %v3841 = vadd.f32 %v3771, %v3787
  %v3842 = vadd.f32 %v3772, %v3787
  %v3843 = vadd.f32 %v3773, %v3787
  %v3844 = vadd.f32 %v3774, %v3787
  %v3845 = vadd.f32 %v3775, %v3787
  %v3846 = vadd.f32 %v3776, %v3787
  %v3847 = vadd.f32 %v3777, %v3787
  %v3848 = vadd.f32 %v3778, %v3787
  %v3849 = vadd.f32 %v3779, %v3787
  %v3850 = vadd.f32 %v3780, %v3787
  %v3851 = vadd.f32 %v3781, %v3787
  %v3852 = vadd.f32 %v3782, %v3787
  %v3853 = vmax.f32 %v3789, 0.0
  %v3854 = vmax.f32 %v3790, 0.0
  %v3855 = vmax.f32 %v3791, 0.0
  %v3856 = vmax.f32 %v3792, 0.0
  %v3857 = vmax.f32 %v3793, 0.0
  %v3858 = vmax.f32 %v3794, 0.0
  %v3859 = vmax.f32 %v3795, 0.0
  %v3860 = vmax.f32 %v3796, 0.0
  %v3861 = vmax.f32 %v3797, 0.0
  %v3862 = vmax.f32 %v3798, 0.0
  %v3863 = vmax.f32 %v3799, 0.0
  %v3864 = vmax.f32 %v3800, 0.0
  %v3865 = vmax.f32 %v3801, 0.0
  %v3866 = vmax.f32 %v3802, 0.0
  %v3867 = vmax.f32 %v3803, 0.0
  %v3868 = vmax.f32 %v3804, 0.0
  %v3869 = vmax.f32 %v3805, 0.0
  %v3870 = vmax.f32 %v3806, 0.0
  %v3871 = vmax.f32 %v3807, 0.0
  %v3872 = vmax.f32 %v3808, 0.0
  %v3873 = vmax.f32 %v3809, 0.0
  %v3874 = vmax.f32 %v3810, 0.0
  %v3875 = vmax.f32 %v3811, 0.0
  %v3876 = vmax.f32 %v3812, 0.0
  %v3877 = vmax.f32 %v3813, 0.0
  %v3878 = vmax.f32 %v3814, 0.0
  %v3879 = vmax.f32 %v3815, 0.0
  %v3880 = vmax.f32 %v3816, 0.0
  %v3881 = vmax.f32 %v3817, 0.0
  %v3882 = vmax.f32 %v3818, 0.0
  %v3883 = vmax.f32 %v3819, 0.0
  %v3884 = vmax.f32 %v3820, 0.0
  %v3885 = vmax.f32 %v3821, 0.0
  %v3886 = vmax.f32 %v3822, 0.0
  %v3887 = vmax.f32 %v3823, 0.0
  %v3888 = vmax.f32 %v3824, 0.0
  %v3889 = vmax.f32 %v3825, 0.0
  %v3890 = vmax.f32 %v3826, 0.0
  %v3891 = vmax.f32 %v3827, 0.0
  %v3892 = vmax.f32 %v3828, 0.0
  %v3893 = vmax.f32 %v3829, 0.0
  %v3894 = vmax.f32 %v3830, 0.0
  %v3895 = vmax.f32 %v3831, 0.0
  %v3896 = vmax.f32 %v3832, 0.0
  %v3897 = vmax.f32 %v3833, 0.0
  %v3898 = vmax.f32 %v3834, 0.0
  %v3899 = vmax.f32 %v3835, 0.0
  %v3900 = vmax.f32 %v3836, 0.0
  %v3901 = vmax.f32 %v3837, 0.0
  %v3902 = vmax.f32 %v3838, 0.0
  %v3903 = vmax.f32 %v3839, 0.0
  %v3904 = vmax.f32 %v3840, 0.0
  %v3905 = vmax.f32 %v3841, 0.0
  %v3906 = vmax.f32 %v3842, 0.0
  %v3907 = vmax.f32 %v3843, 0.0
  %v3908 = vmax.f32 %v3844, 0.0
  %v3909 = vmax.f32 %v3845, 0.0
  %v3910 = vmax.f32 %v3846, 0.0
  %v3911 = vmax.f32 %v3847, 0.0
  %v3912 = vmax.f32 %v3848, 0.0
  %v3913 = vmax.f32 %v3849, 0.0
  %v3914 = vmax.f32 %v3850, 0.0
  %v3915 = vmax.f32 %v3851, 0.0
  %v3916 = vmax.f32 %v3852, 0.0
  %v3917 = vld [vmem:[%s4] sm:$0xf]
  %v3918 = vld [vmem:[%s4 + $0x4] sm:$0xf]
  %v3919 = vld [vmem:[%s4 + $0x8] sm:$0xf]
  %v3920 = vld [vmem:[%s4 + $0xc] sm:$0xf]
  %v3921 = vld [vmem:[%s4 + $0x10] sm:$0xf]
  %v3922 = vld [vmem:[%s4 + $0x14] sm:$0xf]
  %v3923 = vld [vmem:[%s4 + $0x18] sm:$0xf]
  %v3924 = vld [vmem:[%s4 + $0x1c] sm:$0xf]
  %v3925 = vld [vmem:[%s4 + $0x20] sm:$0xf]
  %v3926 = vld [vmem:[%s5] sm:$0x1]
  %v3927 = vld [vmem:[%s6] sm:$0x1]
  %v3960 = vrot.slane %v3855, 1
  %v3961 = vrot.slane %v3853, 1
  %v3962 = vrot.slane %v3857, 1
  %v3963 = vrot.slane %v3859, 1
  %v3964 = vrot.slane %v3861, 1
  %v3965 = vrot.slane %v3863, 1
  %v3966 = vrot.slane %v3865, 1
  %v3967 = vrot.slane %v3867, 1
  %v3968 = vrot.slane %v3869, 1
  %v3969 = vrot.slane %v3871, 1
  %v3970 = vrot.slane %v3873, 1
  %v3971 = vrot.slane %v3875, 1
  %v3972 = vrot.slane %v3877, 1
  %v3973 = vrot.slane %v3879, 1
  %v3974 = vrot.slane %v3881, 1
  %v3975 = vrot.slane %v3883, 1
  %v3976 = vrot.slane %v3887, 1
  %v3977 = vrot.slane %v3885, 1
  %v3978 = vrot.slane %v3889, 1
  %v3979 = vrot.slane %v3891, 1
  %v3980 = vrot.slane %v3893, 1
  %v3981 = vrot.slane %v3895, 1
  %v3982 = vrot.slane %v3897, 1
  %v3983 = vrot.slane %v3899, 1
  %v3984 = vrot.slane %v3901, 1
  %v3985 = vrot.slane %v3903, 1
  %v3986 = vrot.slane %v3905, 1
  %v3987 = vrot.slane %v3907, 1
  %v3988 = vrot.slane %v3909, 1
  %v3989 = vrot.slane %v3911, 1
  %v3990 = vrot.slane %v3913, 1
  %v3991 = vrot.slane %v3915, 1
  %v4056 = vrot.slane %v3855, 7
  %v4057 = vrot.slane %v3856, 7
  %v4058 = vsel %vm243, %v4056, %v4057
  %v4059 = vrot.slane %v3853, 7
  %v4060 = vrot.slane %v3854, 7
  %v4061 = vsel %vm243, %v4059, %v4060
  %v4062 = vrot.slane %v3857, 7
  %v4063 = vrot.slane %v3858, 7
  %v4064 = vsel %vm243, %v4062, %v4063
  %v4065 = vrot.slane %v3859, 7
  %v4066 = vrot.slane %v3860, 7
  %v4067 = vsel %vm243, %v4065, %v4066
  %v4068 = vrot.slane %v3861, 7
  %v4069 = vrot.slane %v3862, 7
  %v4070 = vsel %vm243, %v4068, %v4069
  %v4071 = vrot.slane %v3863, 7
  %v4072 = vrot.slane %v3864, 7
  %v4073 = vsel %vm243, %v4071, %v4072
  %v4074 = vrot.slane %v3865, 7
  %v4075 = vrot.slane %v3866, 7
  %v4076 = vsel %vm243, %v4074, %v4075
  %v4077 = vrot.slane %v3867, 7
  %v4078 = vrot.slane %v3868, 7
  %v4079 = vsel %vm243, %v4077, %v4078
  %v4080 = vrot.slane %v3869, 7
  %v4081 = vrot.slane %v3870, 7
  %v4082 = vsel %vm243, %v4080, %v4081
  %v4083 = vrot.slane %v3871, 7
  %v4084 = vrot.slane %v3872, 7
  %v4085 = vsel %vm243, %v4083, %v4084
  %v4086 = vrot.slane %v3873, 7
  %v4087 = vrot.slane %v3874, 7
  %v4088 = vsel %vm243, %v4086, %v4087
  %v4089 = vrot.slane %v3875, 7
  %v4090 = vrot.slane %v3876, 7
  %v4091 = vsel %vm243, %v4089, %v4090
  %v4092 = vrot.slane %v3877, 7
  %v4093 = vrot.slane %v3878, 7
  %v4094 = vsel %vm243, %v4092, %v4093
  %v4095 = vrot.slane %v3879, 7
  %v4096 = vrot.slane %v3880, 7
  %v4097 = vsel %vm243, %v4095, %v4096
  %v4098 = vrot.slane %v3881, 7
  %v4099 = vrot.slane %v3882, 7
  %v4100 = vsel %vm243, %v4098, %v4099
  %v4101 = vrot.slane %v3883, 7
  %v4102 = vrot.slane %v3884, 7
  %v4103 = vsel %vm243, %v4101, %v4102
  %v4104 = vrot.slane %v3887, 7
  %v4105 = vrot.slane %v3888, 7
  %v4106 = vsel %vm243, %v4104, %v4105
  %v4107 = vrot.slane %v3885, 7
  %v4108 = vrot.slane %v3886, 7
  %v4109 = vsel %vm243, %v4107, %v4108
  %v4110 = vrot.slane %v3889, 7
  %v4111 = vrot.slane %v3890, 7
  %v4112 = vsel %vm243, %v4110, %v4111
  %v4113 = vrot.slane %v3891, 7
  %v4114 = vrot.slane %v3892, 7
  %v4115 = vsel %vm243, %v4113, %v4114
  %v4116 = vrot.slane %v3893, 7
  %v4117 = vrot.slane %v3894, 7
  %v4118 = vsel %vm243, %v4116, %v4117
  %v4119 = vrot.slane %v3895, 7
  %v4120 = vrot.slane %v3896, 7
  %v4121 = vsel %vm243, %v4119, %v4120
  %v4122 = vrot.slane %v3897, 7
  %v4123 = vrot.slane %v3898, 7
  %v4124 = vsel %vm243, %v4122, %v4123
  %v4125 = vrot.slane %v3899, 7
  %v4126 = vrot.slane %v3900, 7
  %v4127 = vsel %vm243, %v4125, %v4126
  %v4128 = vrot.slane %v3901, 7
  %v4129 = vrot.slane %v3902, 7
  %v4130 = vsel %vm243, %v4128, %v4129
  %v4131 = vrot.slane %v3903, 7
  %v4132 = vrot.slane %v3904, 7
  %v4133 = vsel %vm243, %v4131, %v4132
  %v4134 = vrot.slane %v3905, 7
  %v4135 = vrot.slane %v3906, 7
  %v4136 = vsel %vm243, %v4134, %v4135
  %v4137 = vrot.slane %v3907, 7
  %v4138 = vrot.slane %v3908, 7
  %v4139 = vsel %vm243, %v4137, %v4138
  %v4140 = vrot.slane %v3909, 7
  %v4141 = vrot.slane %v3910, 7
  %v4142 = vsel %vm243, %v4140, %v4141
  %v4143 = vrot.slane %v3911, 7
  %v4144 = vrot.slane %v3912, 7
  %v4145 = vsel %vm243, %v4143, %v4144
  %v4146 = vrot.slane %v3913, 7
  %v4147 = vrot.slane %v3914, 7
  %v4148 = vsel %vm243, %v4146, %v4147
  %v4149 = vrot.slane %v3915, 7
  %v4150 = vrot.slane %v3916, 7
  %v4151 = vsel %vm243, %v4149, %v4150
  %v4246 = vrot.slane %v3856, 5
  %v4247 = vrot.slane %v3854, 5
  %v4248 = vrot.slane %v3858, 5
  %v4249 = vrot.slane %v3860, 5
  %v4250 = vrot.slane %v3862, 5
  %v4251 = vrot.slane %v3864, 5
  %v4252 = vrot.slane %v3866, 5
  %v4253 = vrot.slane %v3868, 5
  %v4254 = vrot.slane %v3870, 5
  %v4255 = vrot.slane %v3872, 5
  %v4256 = vrot.slane %v3874, 5
  %v4257 = vrot.slane %v3876, 5
  %v4258 = vrot.slane %v3878, 5
  %v4259 = vrot.slane %v3880, 5
  %v4260 = vrot.slane %v3882, 5
  %v4261 = vrot.slane %v3884, 5
  %v4262 = vrot.slane %v3888, 5
  %v4263 = vrot.slane %v3886, 5
  %v4264 = vrot.slane %v3890, 5
  %v4265 = vrot.slane %v3892, 5
  %v4266 = vrot.slane %v3894, 5
  %v4267 = vrot.slane %v3896, 5
  %v4268 = vrot.slane %v3898, 5
  %v4269 = vrot.slane %v3900, 5
  %v4270 = vrot.slane %v3902, 5
  %v4271 = vrot.slane %v3904, 5
  %v4272 = vrot.slane %v3906, 5
  %v4273 = vrot.slane %v3908, 5
  %v4274 = vrot.slane %v3910, 5
  %v4275 = vrot.slane %v3912, 5
  %v4276 = vrot.slane %v3914, 5
  %v4277 = vrot.slane %v3916, 5
  %v4310 = vsel %vm243, %v3960, %v4056
  %v4311 = vsel %vm243, %v3961, %v4059
  %v4312 = vsel %vm243, %v3962, %v4062
  %v4313 = vsel %vm243, %v3963, %v4065
  %v4314 = vsel %vm243, %v3964, %v4068
  %v4315 = vsel %vm243, %v3965, %v4071
  %v4316 = vsel %vm243, %v3966, %v4074
  %v4317 = vsel %vm243, %v3967, %v4077
  %v4318 = vsel %vm243, %v3968, %v4080
  %v4319 = vsel %vm243, %v3969, %v4083
  %v4320 = vsel %vm243, %v3970, %v4086
  %v4321 = vsel %vm243, %v3971, %v4089
  %v4322 = vsel %vm243, %v3972, %v4092
  %v4323 = vsel %vm243, %v3973, %v4095
  %v4324 = vsel %vm243, %v3974, %v4098
  %v4325 = vsel %vm243, %v3975, %v4101
  %v4326 = vsel %vm243, %v3976, %v4104
  %v4327 = vsel %vm243, %v3977, %v4107
  %v4328 = vsel %vm243, %v3978, %v4110
  %v4329 = vsel %vm243, %v3979, %v4113
  %v4330 = vsel %vm243, %v3980, %v4116
  %v4331 = vsel %vm243, %v3981, %v4119
  %v4332 = vsel %vm243, %v3982, %v4122
  %v4333 = vsel %vm243, %v3983, %v4125
  %v4334 = vsel %vm243, %v3984, %v4128
  %v4335 = vsel %vm243, %v3985, %v4131
  %v4336 = vsel %vm243, %v3986, %v4134
  %v4337 = vsel %vm243, %v3987, %v4137
  %v4338 = vsel %vm243, %v3988, %v4140
  %v4339 = vsel %vm243, %v3989, %v4143
  %v4340 = vsel %vm243, %v3990, %v4146
  %v4341 = vsel %vm243, %v3991, %v4149
  %v4342 = vsel %vm243, %v4057, %v4246
  %v4343 = vsel %vm243, %v4060, %v4247
  %v4344 = vsel %vm243, %v4063, %v4248
  %v4345 = vsel %vm243, %v4066, %v4249
  %v4346 = vsel %vm243, %v4069, %v4250
  %v4347 = vsel %vm243, %v4072, %v4251
  %v4348 = vsel %vm243, %v4075, %v4252
  %v4349 = vsel %vm243, %v4078, %v4253
  %v4350 = vsel %vm243, %v4081, %v4254
  %v4351 = vsel %vm243, %v4084, %v4255
  %v4352 = vsel %vm243, %v4087, %v4256
  %v4353 = vsel %vm243, %v4090, %v4257
  %v4354 = vsel %vm243, %v4093, %v4258
  %v4355 = vsel %vm243, %v4096, %v4259
  %v4356 = vsel %vm243, %v4099, %v4260
  %v4357 = vsel %vm243, %v4102, %v4261
  %v4358 = vsel %vm243, %v4105, %v4262
  %v4359 = vsel %vm243, %v4108, %v4263
  %v4360 = vsel %vm243, %v4111, %v4264
  %v4361 = vsel %vm243, %v4114, %v4265
  %v4362 = vsel %vm243, %v4117, %v4266
  %v4363 = vsel %vm243, %v4120, %v4267
  %v4364 = vsel %vm243, %v4123, %v4268
  %v4365 = vsel %vm243, %v4126, %v4269
  %v4366 = vsel %vm243, %v4129, %v4270
  %v4367 = vsel %vm243, %v4132, %v4271
  %v4368 = vsel %vm243, %v4135, %v4272
  %v4369 = vsel %vm243, %v4138, %v4273
  %v4370 = vsel %vm243, %v4141, %v4274
  %v4371 = vsel %vm243, %v4144, %v4275
  %v4372 = vsel %vm243, %v4147, %v4276
  %v4373 = vsel %vm243, %v4150, %v4277
  %v4434 = vrot.slane %v4310, 1
  %v4435 = vrot.slane %v4058, 1
  %v4436 = vsel %vm622, %v4434, %v4435
  %v4437 = vrot.slane %v4342, 1
  %v4438 = vsel %vm622, %v4435, %v4437
  %v4439 = vrot.slane %v4311, 1
  %v4440 = vrot.slane %v4061, 1
  %v4441 = vsel %vm622, %v4439, %v4440
  %v4442 = vrot.slane %v4343, 1
  %v4443 = vsel %vm622, %v4440, %v4442
  %v4444 = vrot.slane %v4312, 1
  %v4445 = vrot.slane %v4064, 1
  %v4446 = vsel %vm622, %v4444, %v4445
  %v4447 = vrot.slane %v4344, 1
  %v4448 = vsel %vm622, %v4445, %v4447
  %v4449 = vrot.slane %v4313, 1
  %v4450 = vrot.slane %v4067, 1
  %v4451 = vsel %vm622, %v4449, %v4450
  %v4452 = vrot.slane %v4345, 1
  %v4453 = vsel %vm622, %v4450, %v4452
  %v4454 = vrot.slane %v4314, 1
  %v4455 = vrot.slane %v4070, 1
  %v4456 = vsel %vm622, %v4454, %v4455
  %v4457 = vrot.slane %v4346, 1
  %v4458 = vsel %vm622, %v4455, %v4457
  %v4459 = vrot.slane %v4315, 1
  %v4460 = vrot.slane %v4073, 1
  %v4461 = vsel %vm622, %v4459, %v4460
  %v4462 = vrot.slane %v4347, 1
  %v4463 = vsel %vm622, %v4460, %v4462
  %v4464 = vrot.slane %v4316, 1
  %v4465 = vrot.slane %v4076, 1
  %v4466 = vsel %vm622, %v4464, %v4465
  %v4467 = vrot.slane %v4348, 1
  %v4468 = vsel %vm622, %v4465, %v4467
  %v4469 = vrot.slane %v4317, 1
  %v4470 = vrot.slane %v4079, 1
  %v4471 = vsel %vm622, %v4469, %v4470
  %v4472 = vrot.slane %v4349, 1
  %v4473 = vsel %vm622, %v4470, %v4472
  %v4474 = vrot.slane %v4318, 1
  %v4475 = vrot.slane %v4082, 1
  %v4476 = vsel %vm622, %v4474, %v4475
  %v4477 = vrot.slane %v4350, 1
  %v4478 = vsel %vm622, %v4475, %v4477
  %v4479 = vrot.slane %v4319, 1
  %v4480 = vrot.slane %v4085, 1
  %v4481 = vsel %vm622, %v4479, %v4480
  %v4482 = vrot.slane %v4351, 1
  %v4483 = vsel %vm622, %v4480, %v4482
  %v4484 = vrot.slane %v4320, 1
  %v4485 = vrot.slane %v4088, 1
  %v4486 = vsel %vm622, %v4484, %v4485
  %v4487 = vrot.slane %v4352, 1
  %v4488 = vsel %vm622, %v4485, %v4487
  %v4489 = vrot.slane %v4321, 1
  %v4490 = vrot.slane %v4091, 1
  %v4491 = vsel %vm622, %v4489, %v4490
  %v4492 = vrot.slane %v4353, 1
  %v4493 = vsel %vm622, %v4490, %v4492
  %v4494 = vrot.slane %v4322, 1
  %v4495 = vrot.slane %v4094, 1
  %v4496 = vsel %vm622, %v4494, %v4495
  %v4497 = vrot.slane %v4354, 1
  %v4498 = vsel %vm622, %v4495, %v4497
  %v4499 = vrot.slane %v4323, 1
  %v4500 = vrot.slane %v4097, 1
  %v4501 = vsel %vm622, %v4499, %v4500
  %v4502 = vrot.slane %v4355, 1
  %v4503 = vsel %vm622, %v4500, %v4502
  %v4504 = vrot.slane %v4324, 1
  %v4505 = vrot.slane %v4100, 1
  %v4506 = vsel %vm622, %v4504, %v4505
  %v4507 = vrot.slane %v4356, 1
  %v4508 = vsel %vm622, %v4505, %v4507
  %v4509 = vrot.slane %v4326, 1
  %v4510 = vrot.slane %v4106, 1
  %v4511 = vsel %vm622, %v4509, %v4510
  %v4512 = vrot.slane %v4358, 1
  %v4513 = vsel %vm622, %v4510, %v4512
  %v4514 = vrot.slane %v4327, 1
  %v4515 = vrot.slane %v4109, 1
  %v4516 = vsel %vm622, %v4514, %v4515
  %v4517 = vrot.slane %v4359, 1
  %v4518 = vsel %vm622, %v4515, %v4517
  %v4519 = vrot.slane %v4328, 1
  %v4520 = vrot.slane %v4112, 1
  %v4521 = vsel %vm622, %v4519, %v4520
  %v4522 = vrot.slane %v4360, 1
  %v4523 = vsel %vm622, %v4520, %v4522
  %v4524 = vrot.slane %v4329, 1
  %v4525 = vrot.slane %v4115, 1
  %v4526 = vsel %vm622, %v4524, %v4525
  %v4527 = vrot.slane %v4361, 1
  %v4528 = vsel %vm622, %v4525, %v4527
  %v4529 = vrot.slane %v4330, 1
  %v4530 = vrot.slane %v4118, 1
  %v4531 = vsel %vm622, %v4529, %v4530
  %v4532 = vrot.slane %v4362, 1
  %v4533 = vsel %vm622, %v4530, %v4532
  %v4534 = vrot.slane %v4331, 1
  %v4535 = vrot.slane %v4121, 1
  %v4536 = vsel %vm622, %v4534, %v4535
  %v4537 = vrot.slane %v4363, 1
  %v4538 = vsel %vm622, %v4535, %v4537
  %v4539 = vrot.slane %v4332, 1
  %v4540 = vrot.slane %v4124, 1
  %v4541 = vsel %vm622, %v4539, %v4540
  %v4542 = vrot.slane %v4364, 1
  %v4543 = vsel %vm622, %v4540, %v4542
  %v4544 = vrot.slane %v4333, 1
  %v4545 = vrot.slane %v4127, 1
  %v4546 = vsel %vm622, %v4544, %v4545
  %v4547 = vrot.slane %v4365, 1
  %v4548 = vsel %vm622, %v4545, %v4547
  %v4549 = vrot.slane %v4334, 1
  %v4550 = vrot.slane %v4130, 1
  %v4551 = vsel %vm622, %v4549, %v4550
  %v4552 = vrot.slane %v4366, 1
  %v4553 = vsel %vm622, %v4550, %v4552
  %v4554 = vrot.slane %v4335, 1
  %v4555 = vrot.slane %v4133, 1
  %v4556 = vsel %vm622, %v4554, %v4555
  %v4557 = vrot.slane %v4367, 1
  %v4558 = vsel %vm622, %v4555, %v4557
  %v4559 = vrot.slane %v4336, 1
  %v4560 = vrot.slane %v4136, 1
  %v4561 = vsel %vm622, %v4559, %v4560
  %v4562 = vrot.slane %v4368, 1
  %v4563 = vsel %vm622, %v4560, %v4562
  %v4564 = vrot.slane %v4337, 1
  %v4565 = vrot.slane %v4139, 1
  %v4566 = vsel %vm622, %v4564, %v4565
  %v4567 = vrot.slane %v4369, 1
  %v4568 = vsel %vm622, %v4565, %v4567
  %v4569 = vrot.slane %v4338, 1
  %v4570 = vrot.slane %v4142, 1
  %v4571 = vsel %vm622, %v4569, %v4570
  %v4572 = vrot.slane %v4370, 1
  %v4573 = vsel %vm622, %v4570, %v4572
  %v4574 = vrot.slane %v4339, 1
  %v4575 = vrot.slane %v4145, 1
  %v4576 = vsel %vm622, %v4574, %v4575
  %v4577 = vrot.slane %v4371, 1
  %v4578 = vsel %vm622, %v4575, %v4577
  %v4579 = vrot.slane %v4340, 1
  %v4580 = vrot.slane %v4148, 1
  %v4581 = vsel %vm622, %v4579, %v4580
  %v4582 = vrot.slane %v4372, 1
  %v4583 = vsel %vm622, %v4580, %v4582
  %4584 = vrot.lane.b32.xlu0 %v4436, 8
  %v4585 = vpop.permute.xlu0 %4584
  %4586 = vrot.lane.b32.xlu0 %v4438, 8
  %v4587 = vpop.permute.xlu0 %4586
  %4588 = vrot.lane.b32.xlu0 %v4441, 8
  %v4589 = vpop.permute.xlu0 %4588
  %4590 = vrot.lane.b32.xlu0 %v4443, 8
  %v4591 = vpop.permute.xlu0 %4590
  %4592 = vrot.lane.b32.xlu0 %v4446, 8
  %v4593 = vpop.permute.xlu0 %4592
  %4594 = vrot.lane.b32.xlu0 %v4448, 8
  %v4595 = vpop.permute.xlu0 %4594
  %4596 = vrot.lane.b32.xlu0 %v4451, 8
  %v4597 = vpop.permute.xlu0 %4596
  %4598 = vrot.lane.b32.xlu0 %v4453, 8
  %v4599 = vpop.permute.xlu0 %4598
  %4600 = vrot.lane.b32.xlu0 %v4456, 8
  %v4601 = vpop.permute.xlu0 %4600
  %4602 = vrot.lane.b32.xlu0 %v4458, 8
  %v4603 = vpop.permute.xlu0 %4602
  %4604 = vrot.lane.b32.xlu0 %v4461, 8
  %v4605 = vpop.permute.xlu0 %4604
  %4606 = vrot.lane.b32.xlu0 %v4463, 8
  %v4607 = vpop.permute.xlu0 %4606
  %4608 = vrot.lane.b32.xlu0 %v4466, 8
  %v4609 = vpop.permute.xlu0 %4608
  %4610 = vrot.lane.b32.xlu0 %v4468, 8
  %v4611 = vpop.permute.xlu0 %4610
  %4612 = vrot.lane.b32.xlu0 %v4471, 8
  %v4613 = vpop.permute.xlu0 %4612
  %4614 = vrot.lane.b32.xlu0 %v4473, 8
  %v4615 = vpop.permute.xlu0 %4614
  %4616 = vrot.lane.b32.xlu0 %v4476, 8
  %v4617 = vpop.permute.xlu0 %4616
  %4618 = vrot.lane.b32.xlu0 %v4478, 8
  %v4619 = vpop.permute.xlu0 %4618
  %4620 = vrot.lane.b32.xlu0 %v4481, 8
  %v4621 = vpop.permute.xlu0 %4620
  %4622 = vrot.lane.b32.xlu0 %v4483, 8
  %v4623 = vpop.permute.xlu0 %4622
  %4624 = vrot.lane.b32.xlu0 %v4486, 8
  %v4625 = vpop.permute.xlu0 %4624
  %4626 = vrot.lane.b32.xlu0 %v4488, 8
  %v4627 = vpop.permute.xlu0 %4626
  %4628 = vrot.lane.b32.xlu0 %v4491, 8
  %v4629 = vpop.permute.xlu0 %4628
  %4630 = vrot.lane.b32.xlu0 %v4493, 8
  %v4631 = vpop.permute.xlu0 %4630
  %4632 = vrot.lane.b32.xlu0 %v4496, 8
  %v4633 = vpop.permute.xlu0 %4632
  %4634 = vrot.lane.b32.xlu0 %v4498, 8
  %v4635 = vpop.permute.xlu0 %4634
  %4636 = vrot.lane.b32.xlu0 %v4501, 8
  %v4637 = vpop.permute.xlu0 %4636
  %4638 = vrot.lane.b32.xlu0 %v4503, 8
  %v4639 = vpop.permute.xlu0 %4638
  %4640 = vrot.lane.b32.xlu0 %v4506, 8
  %v4641 = vpop.permute.xlu0 %4640
  %4642 = vrot.lane.b32.xlu0 %v4508, 8
  %v4643 = vpop.permute.xlu0 %4642
  %4644 = vrot.lane.b32.xlu0 %v4511, 8
  %v4645 = vpop.permute.xlu0 %4644
  %4646 = vrot.lane.b32.xlu0 %v4513, 8
  %v4647 = vpop.permute.xlu0 %4646
  %4648 = vrot.lane.b32.xlu0 %v4516, 8
  %v4649 = vpop.permute.xlu0 %4648
  %4650 = vrot.lane.b32.xlu0 %v4518, 8
  %v4651 = vpop.permute.xlu0 %4650
  %4652 = vrot.lane.b32.xlu0 %v4521, 8
  %v4653 = vpop.permute.xlu0 %4652
  %4654 = vrot.lane.b32.xlu0 %v4523, 8
  %v4655 = vpop.permute.xlu0 %4654
  %4656 = vrot.lane.b32.xlu0 %v4526, 8
  %v4657 = vpop.permute.xlu0 %4656
  %4658 = vrot.lane.b32.xlu0 %v4528, 8
  %v4659 = vpop.permute.xlu0 %4658
  %4660 = vrot.lane.b32.xlu0 %v4531, 8
  %v4661 = vpop.permute.xlu0 %4660
  %4662 = vrot.lane.b32.xlu0 %v4533, 8
  %v4663 = vpop.permute.xlu0 %4662
  %4664 = vrot.lane.b32.xlu0 %v4536, 8
  %v4665 = vpop.permute.xlu0 %4664
  %4666 = vrot.lane.b32.xlu0 %v4538, 8
  %v4667 = vpop.permute.xlu0 %4666
  %4668 = vrot.lane.b32.xlu0 %v4541, 8
  %v4669 = vpop.permute.xlu0 %4668
  %4670 = vrot.lane.b32.xlu0 %v4543, 8
  %v4671 = vpop.permute.xlu0 %4670
  %4672 = vrot.lane.b32.xlu0 %v4546, 8
  %v4673 = vpop.permute.xlu0 %4672
  %4674 = vrot.lane.b32.xlu0 %v4548, 8
  %v4675 = vpop.permute.xlu0 %4674
  %4676 = vrot.lane.b32.xlu0 %v4551, 8
  %v4677 = vpop.permute.xlu0 %4676
  %4678 = vrot.lane.b32.xlu0 %v4553, 8
  %v4679 = vpop.permute.xlu0 %4678
  %4680 = vrot.lane.b32.xlu0 %v4556, 8
  %v4681 = vpop.permute.xlu0 %4680
  %4682 = vrot.lane.b32.xlu0 %v4558, 8
  %v4683 = vpop.permute.xlu0 %4682
  %4684 = vrot.lane.b32.xlu0 %v4561, 8
  %v4685 = vpop.permute.xlu0 %4684
  %4686 = vrot.lane.b32.xlu0 %v4563, 8
  %v4687 = vpop.permute.xlu0 %4686
  %4688 = vrot.lane.b32.xlu0 %v4566, 8
  %v4689 = vpop.permute.xlu0 %4688
  %4690 = vrot.lane.b32.xlu0 %v4568, 8
  %v4691 = vpop.permute.xlu0 %4690
  %4692 = vrot.lane.b32.xlu0 %v4571, 8
  %v4693 = vpop.permute.xlu0 %4692
  %4694 = vrot.lane.b32.xlu0 %v4573, 8
  %v4695 = vpop.permute.xlu0 %4694
  %4696 = vrot.lane.b32.xlu0 %v4576, 8
  %v4697 = vpop.permute.xlu0 %4696
  %4698 = vrot.lane.b32.xlu0 %v4578, 8
  %v4699 = vpop.permute.xlu0 %4698
  %4700 = vrot.lane.b32.xlu0 %v4581, 8
  %v4701 = vpop.permute.xlu0 %4700
  %4702 = vrot.lane.b32.xlu0 %v4583, 8
  %v4703 = vpop.permute.xlu0 %4702
  %v4764 = vrot.slane %v4310, 2
  %v4765 = vrot.slane %v4058, 2
  %v4766 = vsel %vm953, %v4764, %v4765
  %v4767 = vrot.slane %v4342, 2
  %v4768 = vsel %vm953, %v4765, %v4767
  %v4769 = vrot.slane %v4311, 2
  %v4770 = vrot.slane %v4061, 2
  %v4771 = vsel %vm953, %v4769, %v4770
  %v4772 = vrot.slane %v4343, 2
  %v4773 = vsel %vm953, %v4770, %v4772
  %v4774 = vrot.slane %v4312, 2
  %v4775 = vrot.slane %v4064, 2
  %v4776 = vsel %vm953, %v4774, %v4775
  %v4777 = vrot.slane %v4344, 2
  %v4778 = vsel %vm953, %v4775, %v4777
  %v4779 = vrot.slane %v4313, 2
  %v4780 = vrot.slane %v4067, 2
  %v4781 = vsel %vm953, %v4779, %v4780
  %v4782 = vrot.slane %v4345, 2
  %v4783 = vsel %vm953, %v4780, %v4782
  %v4784 = vrot.slane %v4314, 2
  %v4785 = vrot.slane %v4070, 2
  %v4786 = vsel %vm953, %v4784, %v4785
  %v4787 = vrot.slane %v4346, 2
  %v4788 = vsel %vm953, %v4785, %v4787
  %v4789 = vrot.slane %v4315, 2
  %v4790 = vrot.slane %v4073, 2
  %v4791 = vsel %vm953, %v4789, %v4790
  %v4792 = vrot.slane %v4347, 2
  %v4793 = vsel %vm953, %v4790, %v4792
  %v4794 = vrot.slane %v4316, 2
  %v4795 = vrot.slane %v4076, 2
  %v4796 = vsel %vm953, %v4794, %v4795
  %v4797 = vrot.slane %v4348, 2
  %v4798 = vsel %vm953, %v4795, %v4797
  %v4799 = vrot.slane %v4317, 2
  %v4800 = vrot.slane %v4079, 2
  %v4801 = vsel %vm953, %v4799, %v4800
  %v4802 = vrot.slane %v4349, 2
  %v4803 = vsel %vm953, %v4800, %v4802
  %v4804 = vrot.slane %v4318, 2
  %v4805 = vrot.slane %v4082, 2
  %v4806 = vsel %vm953, %v4804, %v4805
  %v4807 = vrot.slane %v4350, 2
  %v4808 = vsel %vm953, %v4805, %v4807
  %v4809 = vrot.slane %v4319, 2
  %v4810 = vrot.slane %v4085, 2
  %v4811 = vsel %vm953, %v4809, %v4810
  %v4812 = vrot.slane %v4351, 2
  %v4813 = vsel %vm953, %v4810, %v4812
  %v4814 = vrot.slane %v4320, 2
  %v4815 = vrot.slane %v4088, 2
  %v4816 = vsel %vm953, %v4814, %v4815
  %v4817 = vrot.slane %v4352, 2
  %v4818 = vsel %vm953, %v4815, %v4817
  %v4819 = vrot.slane %v4321, 2
  %v4820 = vrot.slane %v4091, 2
  %v4821 = vsel %vm953, %v4819, %v4820
  %v4822 = vrot.slane %v4353, 2
  %v4823 = vsel %vm953, %v4820, %v4822
  %v4824 = vrot.slane %v4322, 2
  %v4825 = vrot.slane %v4094, 2
  %v4826 = vsel %vm953, %v4824, %v4825
  %v4827 = vrot.slane %v4354, 2
  %v4828 = vsel %vm953, %v4825, %v4827
  %v4829 = vrot.slane %v4323, 2
  %v4830 = vrot.slane %v4097, 2
  %v4831 = vsel %vm953, %v4829, %v4830
  %v4832 = vrot.slane %v4355, 2
  %v4833 = vsel %vm953, %v4830, %v4832
  %v4834 = vrot.slane %v4324, 2
  %v4835 = vrot.slane %v4100, 2
  %v4836 = vsel %vm953, %v4834, %v4835
  %v4837 = vrot.slane %v4356, 2
  %v4838 = vsel %vm953, %v4835, %v4837
  %v4839 = vrot.slane %v4326, 2
  %v4840 = vrot.slane %v4106, 2
  %v4841 = vsel %vm953, %v4839, %v4840
  %v4842 = vrot.slane %v4358, 2
  %v4843 = vsel %vm953, %v4840, %v4842
  %v4844 = vrot.slane %v4327, 2
  %v4845 = vrot.slane %v4109, 2
  %v4846 = vsel %vm953, %v4844, %v4845
  %v4847 = vrot.slane %v4359, 2
  %v4848 = vsel %vm953, %v4845, %v4847
  %v4849 = vrot.slane %v4328, 2
  %v4850 = vrot.slane %v4112, 2
  %v4851 = vsel %vm953, %v4849, %v4850
  %v4852 = vrot.slane %v4360, 2
  %v4853 = vsel %vm953, %v4850, %v4852
  %v4854 = vrot.slane %v4329, 2
  %v4855 = vrot.slane %v4115, 2
  %v4856 = vsel %vm953, %v4854, %v4855
  %v4857 = vrot.slane %v4361, 2
  %v4858 = vsel %vm953, %v4855, %v4857
  %v4859 = vrot.slane %v4330, 2
  %v4860 = vrot.slane %v4118, 2
  %v4861 = vsel %vm953, %v4859, %v4860
  %v4862 = vrot.slane %v4362, 2
  %v4863 = vsel %vm953, %v4860, %v4862
  %v4864 = vrot.slane %v4331, 2
  %v4865 = vrot.slane %v4121, 2
  %v4866 = vsel %vm953, %v4864, %v4865
  %v4867 = vrot.slane %v4363, 2
  %v4868 = vsel %vm953, %v4865, %v4867
  %v4869 = vrot.slane %v4332, 2
  %v4870 = vrot.slane %v4124, 2
  %v4871 = vsel %vm953, %v4869, %v4870
  %v4872 = vrot.slane %v4364, 2
  %v4873 = vsel %vm953, %v4870, %v4872
  %v4874 = vrot.slane %v4333, 2
  %v4875 = vrot.slane %v4127, 2
  %v4876 = vsel %vm953, %v4874, %v4875
  %v4877 = vrot.slane %v4365, 2
  %v4878 = vsel %vm953, %v4875, %v4877
  %v4879 = vrot.slane %v4334, 2
  %v4880 = vrot.slane %v4130, 2
  %v4881 = vsel %vm953, %v4879, %v4880
  %v4882 = vrot.slane %v4366, 2
  %v4883 = vsel %vm953, %v4880, %v4882
  %v4884 = vrot.slane %v4335, 2
  %v4885 = vrot.slane %v4133, 2
  %v4886 = vsel %vm953, %v4884, %v4885
  %v4887 = vrot.slane %v4367, 2
  %v4888 = vsel %vm953, %v4885, %v4887
  %v4889 = vrot.slane %v4336, 2
  %v4890 = vrot.slane %v4136, 2
  %v4891 = vsel %vm953, %v4889, %v4890
  %v4892 = vrot.slane %v4368, 2
  %v4893 = vsel %vm953, %v4890, %v4892
  %v4894 = vrot.slane %v4337, 2
  %v4895 = vrot.slane %v4139, 2
  %v4896 = vsel %vm953, %v4894, %v4895
  %v4897 = vrot.slane %v4369, 2
  %v4898 = vsel %vm953, %v4895, %v4897
  %v4899 = vrot.slane %v4338, 2
  %v4900 = vrot.slane %v4142, 2
  %v4901 = vsel %vm953, %v4899, %v4900
  %v4902 = vrot.slane %v4370, 2
  %v4903 = vsel %vm953, %v4900, %v4902
  %v4904 = vrot.slane %v4339, 2
  %v4905 = vrot.slane %v4145, 2
  %v4906 = vsel %vm953, %v4904, %v4905
  %v4907 = vrot.slane %v4371, 2
  %v4908 = vsel %vm953, %v4905, %v4907
  %v4909 = vrot.slane %v4340, 2
  %v4910 = vrot.slane %v4148, 2
  %v4911 = vsel %vm953, %v4909, %v4910
  %v4912 = vrot.slane %v4372, 2
  %v4913 = vsel %vm953, %v4910, %v4912
  %4914 = vrot.lane.b32.xlu0 %v4766, 16
  %v4915 = vpop.permute.xlu0 %4914
  %4916 = vrot.lane.b32.xlu0 %v4768, 16
  %v4917 = vpop.permute.xlu0 %4916
  %4918 = vrot.lane.b32.xlu0 %v4771, 16
  %v4919 = vpop.permute.xlu0 %4918
  %4920 = vrot.lane.b32.xlu0 %v4773, 16
  %v4921 = vpop.permute.xlu0 %4920
  %4922 = vrot.lane.b32.xlu0 %v4776, 16
  %v4923 = vpop.permute.xlu0 %4922
  %4924 = vrot.lane.b32.xlu0 %v4778, 16
  %v4925 = vpop.permute.xlu0 %4924
  %4926 = vrot.lane.b32.xlu0 %v4781, 16
  %v4927 = vpop.permute.xlu0 %4926
  %4928 = vrot.lane.b32.xlu0 %v4783, 16
  %v4929 = vpop.permute.xlu0 %4928
  %4930 = vrot.lane.b32.xlu0 %v4786, 16
  %v4931 = vpop.permute.xlu0 %4930
  %4932 = vrot.lane.b32.xlu0 %v4788, 16
  %v4933 = vpop.permute.xlu0 %4932
  %4934 = vrot.lane.b32.xlu0 %v4791, 16
  %v4935 = vpop.permute.xlu0 %4934
  %4936 = vrot.lane.b32.xlu0 %v4793, 16
  %v4937 = vpop.permute.xlu0 %4936
  %4938 = vrot.lane.b32.xlu0 %v4796, 16
  %v4939 = vpop.permute.xlu0 %4938
  %4940 = vrot.lane.b32.xlu0 %v4798, 16
  %v4941 = vpop.permute.xlu0 %4940
  %4942 = vrot.lane.b32.xlu0 %v4801, 16
  %v4943 = vpop.permute.xlu0 %4942
  %4944 = vrot.lane.b32.xlu0 %v4803, 16
  %v4945 = vpop.permute.xlu0 %4944
  %4946 = vrot.lane.b32.xlu0 %v4806, 16
  %v4947 = vpop.permute.xlu0 %4946
  %4948 = vrot.lane.b32.xlu0 %v4808, 16
  %v4949 = vpop.permute.xlu0 %4948
  %4950 = vrot.lane.b32.xlu0 %v4811, 16
  %v4951 = vpop.permute.xlu0 %4950
  %4952 = vrot.lane.b32.xlu0 %v4813, 16
  %v4953 = vpop.permute.xlu0 %4952
  %4954 = vrot.lane.b32.xlu0 %v4816, 16
  %v4955 = vpop.permute.xlu0 %4954
  %4956 = vrot.lane.b32.xlu0 %v4818, 16
  %v4957 = vpop.permute.xlu0 %4956
  %4958 = vrot.lane.b32.xlu0 %v4821, 16
  %v4959 = vpop.permute.xlu0 %4958
  %4960 = vrot.lane.b32.xlu0 %v4823, 16
  %v4961 = vpop.permute.xlu0 %4960
  %4962 = vrot.lane.b32.xlu0 %v4826, 16
  %v4963 = vpop.permute.xlu0 %4962
  %4964 = vrot.lane.b32.xlu0 %v4828, 16
  %v4965 = vpop.permute.xlu0 %4964
  %4966 = vrot.lane.b32.xlu0 %v4831, 16
  %v4967 = vpop.permute.xlu0 %4966
  %4968 = vrot.lane.b32.xlu0 %v4833, 16
  %v4969 = vpop.permute.xlu0 %4968
  %4970 = vrot.lane.b32.xlu0 %v4836, 16
  %v4971 = vpop.permute.xlu0 %4970
  %4972 = vrot.lane.b32.xlu0 %v4838, 16
  %v4973 = vpop.permute.xlu0 %4972
  %4974 = vrot.lane.b32.xlu0 %v4841, 16
  %v4975 = vpop.permute.xlu0 %4974
  %4976 = vrot.lane.b32.xlu0 %v4843, 16
  %v4977 = vpop.permute.xlu0 %4976
  %4978 = vrot.lane.b32.xlu0 %v4846, 16
  %v4979 = vpop.permute.xlu0 %4978
  %4980 = vrot.lane.b32.xlu0 %v4848, 16
  %v4981 = vpop.permute.xlu0 %4980
  %4982 = vrot.lane.b32.xlu0 %v4851, 16
  %v4983 = vpop.permute.xlu0 %4982
  %4984 = vrot.lane.b32.xlu0 %v4853, 16
  %v4985 = vpop.permute.xlu0 %4984
  %4986 = vrot.lane.b32.xlu0 %v4856, 16
  %v4987 = vpop.permute.xlu0 %4986
  %4988 = vrot.lane.b32.xlu0 %v4858, 16
  %v4989 = vpop.permute.xlu0 %4988
  %4990 = vrot.lane.b32.xlu0 %v4861, 16
  %v4991 = vpop.permute.xlu0 %4990
  %4992 = vrot.lane.b32.xlu0 %v4863, 16
  %v4993 = vpop.permute.xlu0 %4992
  %4994 = vrot.lane.b32.xlu0 %v4866, 16
  %v4995 = vpop.permute.xlu0 %4994
  %4996 = vrot.lane.b32.xlu0 %v4868, 16
  %v4997 = vpop.permute.xlu0 %4996
  %4998 = vrot.lane.b32.xlu0 %v4871, 16
  %v4999 = vpop.permute.xlu0 %4998
  %5000 = vrot.lane.b32.xlu0 %v4873, 16
  %v5001 = vpop.permute.xlu0 %5000
  %5002 = vrot.lane.b32.xlu0 %v4876, 16
  %v5003 = vpop.permute.xlu0 %5002
  %5004 = vrot.lane.b32.xlu0 %v4878, 16
  %v5005 = vpop.permute.xlu0 %5004
  %5006 = vrot.lane.b32.xlu0 %v4881, 16
  %v5007 = vpop.permute.xlu0 %5006
  %5008 = vrot.lane.b32.xlu0 %v4883, 16
  %v5009 = vpop.permute.xlu0 %5008
  %5010 = vrot.lane.b32.xlu0 %v4886, 16
  %v5011 = vpop.permute.xlu0 %5010
  %5012 = vrot.lane.b32.xlu0 %v4888, 16
  %v5013 = vpop.permute.xlu0 %5012
  %5014 = vrot.lane.b32.xlu0 %v4891, 16
  %v5015 = vpop.permute.xlu0 %5014
  %5016 = vrot.lane.b32.xlu0 %v4893, 16
  %v5017 = vpop.permute.xlu0 %5016
  %5018 = vrot.lane.b32.xlu0 %v4896, 16
  %v5019 = vpop.permute.xlu0 %5018
  %5020 = vrot.lane.b32.xlu0 %v4898, 16
  %v5021 = vpop.permute.xlu0 %5020
  %5022 = vrot.lane.b32.xlu0 %v4901, 16
  %v5023 = vpop.permute.xlu0 %5022
  %5024 = vrot.lane.b32.xlu0 %v4903, 16
  %v5025 = vpop.permute.xlu0 %5024
  %5026 = vrot.lane.b32.xlu0 %v4906, 16
  %v5027 = vpop.permute.xlu0 %5026
  %5028 = vrot.lane.b32.xlu0 %v4908, 16
  %v5029 = vpop.permute.xlu0 %5028
  %5030 = vrot.lane.b32.xlu0 %v4911, 16
  %v5031 = vpop.permute.xlu0 %5030
  %5032 = vrot.lane.b32.xlu0 %v4913, 16
  %v5033 = vpop.permute.xlu0 %5032
  %5096 = vrot.lane.b32.xlu0 %v4311, 24
  %v5097 = vpop.permute.xlu0 %5096
  %5098 = vrot.lane.b32.xlu0 %v4061, 24
  %v5099 = vpop.permute.xlu0 %5098
  %5100 = vrot.lane.b32.xlu0 %v4310, 24
  %v5101 = vpop.permute.xlu0 %5100
  %5102 = vrot.lane.b32.xlu0 %v4058, 24
  %v5103 = vpop.permute.xlu0 %5102
  %5104 = vrot.lane.b32.xlu0 %v4312, 24
  %v5105 = vpop.permute.xlu0 %5104
  %5106 = vrot.lane.b32.xlu0 %v4064, 24
  %v5107 = vpop.permute.xlu0 %5106
  %5108 = vrot.lane.b32.xlu0 %v4313, 24
  %v5109 = vpop.permute.xlu0 %5108
  %5110 = vrot.lane.b32.xlu0 %v4067, 24
  %v5111 = vpop.permute.xlu0 %5110
  %5112 = vrot.lane.b32.xlu0 %v4314, 24
  %v5113 = vpop.permute.xlu0 %5112
  %5114 = vrot.lane.b32.xlu0 %v4070, 24
  %v5115 = vpop.permute.xlu0 %5114
  %5116 = vrot.lane.b32.xlu0 %v4315, 24
  %v5117 = vpop.permute.xlu0 %5116
  %5118 = vrot.lane.b32.xlu0 %v4073, 24
  %v5119 = vpop.permute.xlu0 %5118
  %5120 = vrot.lane.b32.xlu0 %v4316, 24
  %v5121 = vpop.permute.xlu0 %5120
  %5122 = vrot.lane.b32.xlu0 %v4076, 24
  %v5123 = vpop.permute.xlu0 %5122
  %5124 = vrot.lane.b32.xlu0 %v4317, 24
  %v5125 = vpop.permute.xlu0 %5124
  %5126 = vrot.lane.b32.xlu0 %v4079, 24
  %v5127 = vpop.permute.xlu0 %5126
  %5128 = vrot.lane.b32.xlu0 %v4318, 24
  %v5129 = vpop.permute.xlu0 %5128
  %5130 = vrot.lane.b32.xlu0 %v4082, 24
  %v5131 = vpop.permute.xlu0 %5130
  %5132 = vrot.lane.b32.xlu0 %v4319, 24
  %v5133 = vpop.permute.xlu0 %5132
  %5134 = vrot.lane.b32.xlu0 %v4085, 24
  %v5135 = vpop.permute.xlu0 %5134
  %5136 = vrot.lane.b32.xlu0 %v4320, 24
  %v5137 = vpop.permute.xlu0 %5136
  %5138 = vrot.lane.b32.xlu0 %v4088, 24
  %v5139 = vpop.permute.xlu0 %5138
  %5140 = vrot.lane.b32.xlu0 %v4321, 24
  %v5141 = vpop.permute.xlu0 %5140
  %5142 = vrot.lane.b32.xlu0 %v4091, 24
  %v5143 = vpop.permute.xlu0 %5142
  %5144 = vrot.lane.b32.xlu0 %v4322, 24
  %v5145 = vpop.permute.xlu0 %5144
  %5146 = vrot.lane.b32.xlu0 %v4094, 24
  %v5147 = vpop.permute.xlu0 %5146
  %5148 = vrot.lane.b32.xlu0 %v4323, 24
  %v5149 = vpop.permute.xlu0 %5148
  %5150 = vrot.lane.b32.xlu0 %v4097, 24
  %v5151 = vpop.permute.xlu0 %5150
  %5152 = vrot.lane.b32.xlu0 %v4324, 24
  %v5153 = vpop.permute.xlu0 %5152
  %5154 = vrot.lane.b32.xlu0 %v4100, 24
  %v5155 = vpop.permute.xlu0 %5154
  %5156 = vrot.lane.b32.xlu0 %v4325, 24
  %v5157 = vpop.permute.xlu0 %5156
  %5158 = vrot.lane.b32.xlu0 %v4103, 24
  %v5159 = vpop.permute.xlu0 %5158
  %5160 = vrot.lane.b32.xlu0 %v4327, 24
  %v5161 = vpop.permute.xlu0 %5160
  %5162 = vrot.lane.b32.xlu0 %v4109, 24
  %v5163 = vpop.permute.xlu0 %5162
  %5164 = vrot.lane.b32.xlu0 %v4326, 24
  %v5165 = vpop.permute.xlu0 %5164
  %5166 = vrot.lane.b32.xlu0 %v4106, 24
  %v5167 = vpop.permute.xlu0 %5166
  %5168 = vrot.lane.b32.xlu0 %v4328, 24
  %v5169 = vpop.permute.xlu0 %5168
  %5170 = vrot.lane.b32.xlu0 %v4112, 24
  %v5171 = vpop.permute.xlu0 %5170
  %5172 = vrot.lane.b32.xlu0 %v4329, 24
  %v5173 = vpop.permute.xlu0 %5172
  %5174 = vrot.lane.b32.xlu0 %v4115, 24
  %v5175 = vpop.permute.xlu0 %5174
  %5176 = vrot.lane.b32.xlu0 %v4330, 24
  %v5177 = vpop.permute.xlu0 %5176
  %5178 = vrot.lane.b32.xlu0 %v4118, 24
  %v5179 = vpop.permute.xlu0 %5178
  %5180 = vrot.lane.b32.xlu0 %v4331, 24
  %v5181 = vpop.permute.xlu0 %5180
  %5182 = vrot.lane.b32.xlu0 %v4121, 24
  %v5183 = vpop.permute.xlu0 %5182
  %5184 = vrot.lane.b32.xlu0 %v4332, 24
  %v5185 = vpop.permute.xlu0 %5184
  %5186 = vrot.lane.b32.xlu0 %v4124, 24
  %v5187 = vpop.permute.xlu0 %5186
  %5188 = vrot.lane.b32.xlu0 %v4333, 24
  %v5189 = vpop.permute.xlu0 %5188
  %5190 = vrot.lane.b32.xlu0 %v4127, 24
  %v5191 = vpop.permute.xlu0 %5190
  %5192 = vrot.lane.b32.xlu0 %v4334, 24
  %v5193 = vpop.permute.xlu0 %5192
  %5194 = vrot.lane.b32.xlu0 %v4130, 24
  %v5195 = vpop.permute.xlu0 %5194
  %5196 = vrot.lane.b32.xlu0 %v4335, 24
  %v5197 = vpop.permute.xlu0 %5196
  %5198 = vrot.lane.b32.xlu0 %v4133, 24
  %v5199 = vpop.permute.xlu0 %5198
  %5200 = vrot.lane.b32.xlu0 %v4336, 24
  %v5201 = vpop.permute.xlu0 %5200
  %5202 = vrot.lane.b32.xlu0 %v4136, 24
  %v5203 = vpop.permute.xlu0 %5202
  %5204 = vrot.lane.b32.xlu0 %v4337, 24
  %v5205 = vpop.permute.xlu0 %5204
  %5206 = vrot.lane.b32.xlu0 %v4139, 24
  %v5207 = vpop.permute.xlu0 %5206
  %5208 = vrot.lane.b32.xlu0 %v4338, 24
  %v5209 = vpop.permute.xlu0 %5208
  %5210 = vrot.lane.b32.xlu0 %v4142, 24
  %v5211 = vpop.permute.xlu0 %5210
  %5212 = vrot.lane.b32.xlu0 %v4339, 24
  %v5213 = vpop.permute.xlu0 %5212
  %5214 = vrot.lane.b32.xlu0 %v4145, 24
  %v5215 = vpop.permute.xlu0 %5214
  %5216 = vrot.lane.b32.xlu0 %v4340, 24
  %v5217 = vpop.permute.xlu0 %5216
  %5218 = vrot.lane.b32.xlu0 %v4148, 24
  %v5219 = vpop.permute.xlu0 %5218
  %5220 = vrot.lane.b32.xlu0 %v4341, 24
  %v5221 = vpop.permute.xlu0 %5220
  %5222 = vrot.lane.b32.xlu0 %v4151, 24
  %v5223 = vpop.permute.xlu0 %5222
  %v5290 = vrot.slane %v4325, 1
  %v5291 = vrot.slane %v4103, 1
  %v5292 = vsel %vm622, %v5290, %v5291
  %v5293 = vrot.slane %v4357, 1
  %v5294 = vsel %vm622, %v5291, %v5293
  %v5295 = vrot.slane %v4341, 1
  %v5296 = vrot.slane %v4151, 1
  %v5297 = vsel %vm622, %v5295, %v5296
  %v5298 = vrot.slane %v4373, 1
  %v5299 = vsel %vm622, %v5296, %v5298
  %5300 = vrot.lane.b32.xlu0 %v4441, 32
  %v5301 = vpop.permute.xlu0 %5300
  %5302 = vrot.lane.b32.xlu0 %v4443, 32
  %v5303 = vpop.permute.xlu0 %5302
  %5304 = vrot.lane.b32.xlu0 %v4436, 32
  %v5305 = vpop.permute.xlu0 %5304
  %5306 = vrot.lane.b32.xlu0 %v4438, 32
  %v5307 = vpop.permute.xlu0 %5306
  %5308 = vrot.lane.b32.xlu0 %v4446, 32
  %v5309 = vpop.permute.xlu0 %5308
  %5310 = vrot.lane.b32.xlu0 %v4448, 32
  %v5311 = vpop.permute.xlu0 %5310
  %5312 = vrot.lane.b32.xlu0 %v4451, 32
  %v5313 = vpop.permute.xlu0 %5312
  %5314 = vrot.lane.b32.xlu0 %v4453, 32
  %v5315 = vpop.permute.xlu0 %5314
  %5316 = vrot.lane.b32.xlu0 %v4456, 32
  %v5317 = vpop.permute.xlu0 %5316
  %5318 = vrot.lane.b32.xlu0 %v4458, 32
  %v5319 = vpop.permute.xlu0 %5318
  %5320 = vrot.lane.b32.xlu0 %v4461, 32
  %v5321 = vpop.permute.xlu0 %5320
  %5322 = vrot.lane.b32.xlu0 %v4463, 32
  %v5323 = vpop.permute.xlu0 %5322
  %5324 = vrot.lane.b32.xlu0 %v4466, 32
  %v5325 = vpop.permute.xlu0 %5324
  %5326 = vrot.lane.b32.xlu0 %v4468, 32
  %v5327 = vpop.permute.xlu0 %5326
  %5328 = vrot.lane.b32.xlu0 %v4471, 32
  %v5329 = vpop.permute.xlu0 %5328
  %5330 = vrot.lane.b32.xlu0 %v4473, 32
  %v5331 = vpop.permute.xlu0 %5330
  %5332 = vrot.lane.b32.xlu0 %v4476, 32
  %v5333 = vpop.permute.xlu0 %5332
  %5334 = vrot.lane.b32.xlu0 %v4478, 32
  %v5335 = vpop.permute.xlu0 %5334
  %5336 = vrot.lane.b32.xlu0 %v4481, 32
  %v5337 = vpop.permute.xlu0 %5336
  %5338 = vrot.lane.b32.xlu0 %v4483, 32
  %v5339 = vpop.permute.xlu0 %5338
  %5340 = vrot.lane.b32.xlu0 %v4486, 32
  %v5341 = vpop.permute.xlu0 %5340
  %5342 = vrot.lane.b32.xlu0 %v4488, 32
  %v5343 = vpop.permute.xlu0 %5342
  %5344 = vrot.lane.b32.xlu0 %v4491, 32
  %v5345 = vpop.permute.xlu0 %5344
  %5346 = vrot.lane.b32.xlu0 %v4493, 32
  %v5347 = vpop.permute.xlu0 %5346
  %5348 = vrot.lane.b32.xlu0 %v4496, 32
  %v5349 = vpop.permute.xlu0 %5348
  %5350 = vrot.lane.b32.xlu0 %v4498, 32
  %v5351 = vpop.permute.xlu0 %5350
  %5352 = vrot.lane.b32.xlu0 %v4501, 32
  %v5353 = vpop.permute.xlu0 %5352
  %5354 = vrot.lane.b32.xlu0 %v4503, 32
  %v5355 = vpop.permute.xlu0 %5354
  %5356 = vrot.lane.b32.xlu0 %v4506, 32
  %v5357 = vpop.permute.xlu0 %5356
  %5358 = vrot.lane.b32.xlu0 %v4508, 32
  %v5359 = vpop.permute.xlu0 %5358
  %5360 = vrot.lane.b32.xlu0 %v5292, 32
  %v5361 = vpop.permute.xlu0 %5360
  %5362 = vrot.lane.b32.xlu0 %v5294, 32
  %v5363 = vpop.permute.xlu0 %5362
  %5364 = vrot.lane.b32.xlu0 %v4516, 32
  %v5365 = vpop.permute.xlu0 %5364
  %5366 = vrot.lane.b32.xlu0 %v4518, 32
  %v5367 = vpop.permute.xlu0 %5366
  %5368 = vrot.lane.b32.xlu0 %v4511, 32
  %v5369 = vpop.permute.xlu0 %5368
  %5370 = vrot.lane.b32.xlu0 %v4513, 32
  %v5371 = vpop.permute.xlu0 %5370
  %5372 = vrot.lane.b32.xlu0 %v4521, 32
  %v5373 = vpop.permute.xlu0 %5372
  %5374 = vrot.lane.b32.xlu0 %v4523, 32
  %v5375 = vpop.permute.xlu0 %5374
  %5376 = vrot.lane.b32.xlu0 %v4526, 32
  %v5377 = vpop.permute.xlu0 %5376
  %5378 = vrot.lane.b32.xlu0 %v4528, 32
  %v5379 = vpop.permute.xlu0 %5378
  %5380 = vrot.lane.b32.xlu0 %v4531, 32
  %v5381 = vpop.permute.xlu0 %5380
  %5382 = vrot.lane.b32.xlu0 %v4533, 32
  %v5383 = vpop.permute.xlu0 %5382
  %5384 = vrot.lane.b32.xlu0 %v4536, 32
  %v5385 = vpop.permute.xlu0 %5384
  %5386 = vrot.lane.b32.xlu0 %v4538, 32
  %v5387 = vpop.permute.xlu0 %5386
  %5388 = vrot.lane.b32.xlu0 %v4541, 32
  %v5389 = vpop.permute.xlu0 %5388
  %5390 = vrot.lane.b32.xlu0 %v4543, 32
  %v5391 = vpop.permute.xlu0 %5390
  %5392 = vrot.lane.b32.xlu0 %v4546, 32
  %v5393 = vpop.permute.xlu0 %5392
  %5394 = vrot.lane.b32.xlu0 %v4548, 32
  %v5395 = vpop.permute.xlu0 %5394
  %5396 = vrot.lane.b32.xlu0 %v4551, 32
  %v5397 = vpop.permute.xlu0 %5396
  %5398 = vrot.lane.b32.xlu0 %v4553, 32
  %v5399 = vpop.permute.xlu0 %5398
  %5400 = vrot.lane.b32.xlu0 %v4556, 32
  %v5401 = vpop.permute.xlu0 %5400
  %5402 = vrot.lane.b32.xlu0 %v4558, 32
  %v5403 = vpop.permute.xlu0 %5402
  %5404 = vrot.lane.b32.xlu0 %v4561, 32
  %v5405 = vpop.permute.xlu0 %5404
  %5406 = vrot.lane.b32.xlu0 %v4563, 32
  %v5407 = vpop.permute.xlu0 %5406
  %5408 = vrot.lane.b32.xlu0 %v4566, 32
  %v5409 = vpop.permute.xlu0 %5408
  %5410 = vrot.lane.b32.xlu0 %v4568, 32
  %v5411 = vpop.permute.xlu0 %5410
  %5412 = vrot.lane.b32.xlu0 %v4571, 32
  %v5413 = vpop.permute.xlu0 %5412
  %5414 = vrot.lane.b32.xlu0 %v4573, 32
  %v5415 = vpop.permute.xlu0 %5414
  %5416 = vrot.lane.b32.xlu0 %v4576, 32
  %v5417 = vpop.permute.xlu0 %5416
  %5418 = vrot.lane.b32.xlu0 %v4578, 32
  %v5419 = vpop.permute.xlu0 %5418
  %5420 = vrot.lane.b32.xlu0 %v4581, 32
  %v5421 = vpop.permute.xlu0 %5420
  %5422 = vrot.lane.b32.xlu0 %v4583, 32
  %v5423 = vpop.permute.xlu0 %5422
  %5424 = vrot.lane.b32.xlu0 %v5297, 32
  %v5425 = vpop.permute.xlu0 %5424
  %5426 = vrot.lane.b32.xlu0 %v5299, 32
  %v5427 = vpop.permute.xlu0 %5426
  %v5492 = vrot.slane %v4325, 2
  %v5493 = vrot.slane %v4103, 2
  %v5494 = vsel %vm953, %v5492, %v5493
  %v5495 = vrot.slane %v4357, 2
  %v5496 = vsel %vm953, %v5493, %v5495
  %v5497 = vrot.slane %v4341, 2
  %v5498 = vrot.slane %v4151, 2
  %v5499 = vsel %vm953, %v5497, %v5498
  %v5500 = vrot.slane %v4373, 2
  %v5501 = vsel %vm953, %v5498, %v5500
  %5502 = vrot.lane.b32.xlu0 %v4771, 40
  %v5503 = vpop.permute.xlu0 %5502
  %5504 = vrot.lane.b32.xlu0 %v4773, 40
  %v5505 = vpop.permute.xlu0 %5504
  %5506 = vrot.lane.b32.xlu0 %v4766, 40
  %v5507 = vpop.permute.xlu0 %5506
  %5508 = vrot.lane.b32.xlu0 %v4768, 40
  %v5509 = vpop.permute.xlu0 %5508
  %5510 = vrot.lane.b32.xlu0 %v4776, 40
  %v5511 = vpop.permute.xlu0 %5510
  %5512 = vrot.lane.b32.xlu0 %v4778, 40
  %v5513 = vpop.permute.xlu0 %5512
  %5514 = vrot.lane.b32.xlu0 %v4781, 40
  %v5515 = vpop.permute.xlu0 %5514
  %5516 = vrot.lane.b32.xlu0 %v4783, 40
  %v5517 = vpop.permute.xlu0 %5516
  %5518 = vrot.lane.b32.xlu0 %v4786, 40
  %v5519 = vpop.permute.xlu0 %5518
  %5520 = vrot.lane.b32.xlu0 %v4788, 40
  %v5521 = vpop.permute.xlu0 %5520
  %5522 = vrot.lane.b32.xlu0 %v4791, 40
  %v5523 = vpop.permute.xlu0 %5522
  %5524 = vrot.lane.b32.xlu0 %v4793, 40
  %v5525 = vpop.permute.xlu0 %5524
  %5526 = vrot.lane.b32.xlu0 %v4796, 40
  %v5527 = vpop.permute.xlu0 %5526
  %5528 = vrot.lane.b32.xlu0 %v4798, 40
  %v5529 = vpop.permute.xlu0 %5528
  %5530 = vrot.lane.b32.xlu0 %v4801, 40
  %v5531 = vpop.permute.xlu0 %5530
  %5532 = vrot.lane.b32.xlu0 %v4803, 40
  %v5533 = vpop.permute.xlu0 %5532
  %5534 = vrot.lane.b32.xlu0 %v4806, 40
  %v5535 = vpop.permute.xlu0 %5534
  %5536 = vrot.lane.b32.xlu0 %v4808, 40
  %v5537 = vpop.permute.xlu0 %5536
  %5538 = vrot.lane.b32.xlu0 %v4811, 40
  %v5539 = vpop.permute.xlu0 %5538
  %5540 = vrot.lane.b32.xlu0 %v4813, 40
  %v5541 = vpop.permute.xlu0 %5540
  %5542 = vrot.lane.b32.xlu0 %v4816, 40
  %v5543 = vpop.permute.xlu0 %5542
  %5544 = vrot.lane.b32.xlu0 %v4818, 40
  %v5545 = vpop.permute.xlu0 %5544
  %5546 = vrot.lane.b32.xlu0 %v4821, 40
  %v5547 = vpop.permute.xlu0 %5546
  %5548 = vrot.lane.b32.xlu0 %v4823, 40
  %v5549 = vpop.permute.xlu0 %5548
  %5550 = vrot.lane.b32.xlu0 %v4826, 40
  %v5551 = vpop.permute.xlu0 %5550
  %5552 = vrot.lane.b32.xlu0 %v4828, 40
  %v5553 = vpop.permute.xlu0 %5552
  %5554 = vrot.lane.b32.xlu0 %v4831, 40
  %v5555 = vpop.permute.xlu0 %5554
  %5556 = vrot.lane.b32.xlu0 %v4833, 40
  %v5557 = vpop.permute.xlu0 %5556
  %5558 = vrot.lane.b32.xlu0 %v4836, 40
  %v5559 = vpop.permute.xlu0 %5558
  %5560 = vrot.lane.b32.xlu0 %v4838, 40
  %v5561 = vpop.permute.xlu0 %5560
  %5562 = vrot.lane.b32.xlu0 %v5494, 40
  %v5563 = vpop.permute.xlu0 %5562
  %5564 = vrot.lane.b32.xlu0 %v5496, 40
  %v5565 = vpop.permute.xlu0 %5564
  %5566 = vrot.lane.b32.xlu0 %v4846, 40
  %v5567 = vpop.permute.xlu0 %5566
  %5568 = vrot.lane.b32.xlu0 %v4848, 40
  %v5569 = vpop.permute.xlu0 %5568
  %5570 = vrot.lane.b32.xlu0 %v4841, 40
  %v5571 = vpop.permute.xlu0 %5570
  %5572 = vrot.lane.b32.xlu0 %v4843, 40
  %v5573 = vpop.permute.xlu0 %5572
  %5574 = vrot.lane.b32.xlu0 %v4851, 40
  %v5575 = vpop.permute.xlu0 %5574
  %5576 = vrot.lane.b32.xlu0 %v4853, 40
  %v5577 = vpop.permute.xlu0 %5576
  %5578 = vrot.lane.b32.xlu0 %v4856, 40
  %v5579 = vpop.permute.xlu0 %5578
  %5580 = vrot.lane.b32.xlu0 %v4858, 40
  %v5581 = vpop.permute.xlu0 %5580
  %5582 = vrot.lane.b32.xlu0 %v4861, 40
  %v5583 = vpop.permute.xlu0 %5582
  %5584 = vrot.lane.b32.xlu0 %v4863, 40
  %v5585 = vpop.permute.xlu0 %5584
  %5586 = vrot.lane.b32.xlu0 %v4866, 40
  %v5587 = vpop.permute.xlu0 %5586
  %5588 = vrot.lane.b32.xlu0 %v4868, 40
  %v5589 = vpop.permute.xlu0 %5588
  %5590 = vrot.lane.b32.xlu0 %v4871, 40
  %v5591 = vpop.permute.xlu0 %5590
  %5592 = vrot.lane.b32.xlu0 %v4873, 40
  %v5593 = vpop.permute.xlu0 %5592
  %5594 = vrot.lane.b32.xlu0 %v4876, 40
  %v5595 = vpop.permute.xlu0 %5594
  %5596 = vrot.lane.b32.xlu0 %v4878, 40
  %v5597 = vpop.permute.xlu0 %5596
  %5598 = vrot.lane.b32.xlu0 %v4881, 40
  %v5599 = vpop.permute.xlu0 %5598
  %5600 = vrot.lane.b32.xlu0 %v4883, 40
  %v5601 = vpop.permute.xlu0 %5600
  %5602 = vrot.lane.b32.xlu0 %v4886, 40
  %v5603 = vpop.permute.xlu0 %5602
  %5604 = vrot.lane.b32.xlu0 %v4888, 40
  %v5605 = vpop.permute.xlu0 %5604
  %5606 = vrot.lane.b32.xlu0 %v4891, 40
  %v5607 = vpop.permute.xlu0 %5606
  %5608 = vrot.lane.b32.xlu0 %v4893, 40
  %v5609 = vpop.permute.xlu0 %5608
  %5610 = vrot.lane.b32.xlu0 %v4896, 40
  %v5611 = vpop.permute.xlu0 %5610
  %5612 = vrot.lane.b32.xlu0 %v4898, 40
  %v5613 = vpop.permute.xlu0 %5612
  %5614 = vrot.lane.b32.xlu0 %v4901, 40
  %v5615 = vpop.permute.xlu0 %5614
  %5616 = vrot.lane.b32.xlu0 %v4903, 40
  %v5617 = vpop.permute.xlu0 %5616
  %5618 = vrot.lane.b32.xlu0 %v4906, 40
  %v5619 = vpop.permute.xlu0 %5618
  %5620 = vrot.lane.b32.xlu0 %v4908, 40
  %v5621 = vpop.permute.xlu0 %5620
  %5622 = vrot.lane.b32.xlu0 %v4911, 40
  %v5623 = vpop.permute.xlu0 %5622
  %5624 = vrot.lane.b32.xlu0 %v4913, 40
  %v5625 = vpop.permute.xlu0 %5624
  %5626 = vrot.lane.b32.xlu0 %v5499, 40
  %v5627 = vpop.permute.xlu0 %5626
  %5628 = vrot.lane.b32.xlu0 %v5501, 40
  %v5629 = vpop.permute.xlu0 %5628
  %5694 = vrot.lane.b32.xlu0 %v4310, 48
  %v5695 = vpop.permute.xlu0 %5694
  %5696 = vrot.lane.b32.xlu0 %v4058, 48
  %v5697 = vpop.permute.xlu0 %5696
  %5698 = vrot.lane.b32.xlu0 %v4312, 48
  %v5699 = vpop.permute.xlu0 %5698
  %5700 = vrot.lane.b32.xlu0 %v4064, 48
  %v5701 = vpop.permute.xlu0 %5700
  %5702 = vrot.lane.b32.xlu0 %v4313, 48
  %v5703 = vpop.permute.xlu0 %5702
  %5704 = vrot.lane.b32.xlu0 %v4067, 48
  %v5705 = vpop.permute.xlu0 %5704
  %5706 = vrot.lane.b32.xlu0 %v4314, 48
  %v5707 = vpop.permute.xlu0 %5706
  %5708 = vrot.lane.b32.xlu0 %v4070, 48
  %v5709 = vpop.permute.xlu0 %5708
  %5710 = vrot.lane.b32.xlu0 %v4315, 48
  %v5711 = vpop.permute.xlu0 %5710
  %5712 = vrot.lane.b32.xlu0 %v4073, 48
  %v5713 = vpop.permute.xlu0 %5712
  %5714 = vrot.lane.b32.xlu0 %v4316, 48
  %v5715 = vpop.permute.xlu0 %5714
  %5716 = vrot.lane.b32.xlu0 %v4076, 48
  %v5717 = vpop.permute.xlu0 %5716
  %5718 = vrot.lane.b32.xlu0 %v4317, 48
  %v5719 = vpop.permute.xlu0 %5718
  %5720 = vrot.lane.b32.xlu0 %v4079, 48
  %v5721 = vpop.permute.xlu0 %5720
  %5722 = vrot.lane.b32.xlu0 %v4318, 48
  %v5723 = vpop.permute.xlu0 %5722
  %5724 = vrot.lane.b32.xlu0 %v4082, 48
  %v5725 = vpop.permute.xlu0 %5724
  %5726 = vrot.lane.b32.xlu0 %v4319, 48
  %v5727 = vpop.permute.xlu0 %5726
  %5728 = vrot.lane.b32.xlu0 %v4085, 48
  %v5729 = vpop.permute.xlu0 %5728
  %5730 = vrot.lane.b32.xlu0 %v4320, 48
  %v5731 = vpop.permute.xlu0 %5730
  %5732 = vrot.lane.b32.xlu0 %v4088, 48
  %v5733 = vpop.permute.xlu0 %5732
  %5734 = vrot.lane.b32.xlu0 %v4321, 48
  %v5735 = vpop.permute.xlu0 %5734
  %5736 = vrot.lane.b32.xlu0 %v4091, 48
  %v5737 = vpop.permute.xlu0 %5736
  %5738 = vrot.lane.b32.xlu0 %v4322, 48
  %v5739 = vpop.permute.xlu0 %5738
  %5740 = vrot.lane.b32.xlu0 %v4094, 48
  %v5741 = vpop.permute.xlu0 %5740
  %5742 = vrot.lane.b32.xlu0 %v4323, 48
  %v5743 = vpop.permute.xlu0 %5742
  %5744 = vrot.lane.b32.xlu0 %v4097, 48
  %v5745 = vpop.permute.xlu0 %5744
  %5746 = vrot.lane.b32.xlu0 %v4324, 48
  %v5747 = vpop.permute.xlu0 %5746
  %5748 = vrot.lane.b32.xlu0 %v4100, 48
  %v5749 = vpop.permute.xlu0 %5748
  %5750 = vrot.lane.b32.xlu0 %v4325, 48
  %v5751 = vpop.permute.xlu0 %5750
  %5752 = vrot.lane.b32.xlu0 %v4103, 48
  %v5753 = vpop.permute.xlu0 %5752
  %5754 = vrot.lane.b32.xlu0 %v4326, 48
  %v5755 = vpop.permute.xlu0 %5754
  %5756 = vrot.lane.b32.xlu0 %v4106, 48
  %v5757 = vpop.permute.xlu0 %5756
  %5758 = vrot.lane.b32.xlu0 %v4328, 48
  %v5759 = vpop.permute.xlu0 %5758
  %5760 = vrot.lane.b32.xlu0 %v4112, 48
  %v5761 = vpop.permute.xlu0 %5760
  %5762 = vrot.lane.b32.xlu0 %v4329, 48
  %v5763 = vpop.permute.xlu0 %5762
  %5764 = vrot.lane.b32.xlu0 %v4115, 48
  %v5765 = vpop.permute.xlu0 %5764
  %5766 = vrot.lane.b32.xlu0 %v4330, 48
  %v5767 = vpop.permute.xlu0 %5766
  %5768 = vrot.lane.b32.xlu0 %v4118, 48
  %v5769 = vpop.permute.xlu0 %5768
  %5770 = vrot.lane.b32.xlu0 %v4331, 48
  %v5771 = vpop.permute.xlu0 %5770
  %5772 = vrot.lane.b32.xlu0 %v4121, 48
  %v5773 = vpop.permute.xlu0 %5772
  %5774 = vrot.lane.b32.xlu0 %v4332, 48
  %v5775 = vpop.permute.xlu0 %5774
  %5776 = vrot.lane.b32.xlu0 %v4124, 48
  %v5777 = vpop.permute.xlu0 %5776
  %5778 = vrot.lane.b32.xlu0 %v4333, 48
  %v5779 = vpop.permute.xlu0 %5778
  %5780 = vrot.lane.b32.xlu0 %v4127, 48
  %v5781 = vpop.permute.xlu0 %5780
  %5782 = vrot.lane.b32.xlu0 %v4334, 48
  %v5783 = vpop.permute.xlu0 %5782
  %5784 = vrot.lane.b32.xlu0 %v4130, 48
  %v5785 = vpop.permute.xlu0 %5784
  %5786 = vrot.lane.b32.xlu0 %v4335, 48
  %v5787 = vpop.permute.xlu0 %5786
  %5788 = vrot.lane.b32.xlu0 %v4133, 48
  %v5789 = vpop.permute.xlu0 %5788
  %5790 = vrot.lane.b32.xlu0 %v4336, 48
  %v5791 = vpop.permute.xlu0 %5790
  %5792 = vrot.lane.b32.xlu0 %v4136, 48
  %v5793 = vpop.permute.xlu0 %5792
  %5794 = vrot.lane.b32.xlu0 %v4337, 48
  %v5795 = vpop.permute.xlu0 %5794
  %5796 = vrot.lane.b32.xlu0 %v4139, 48
  %v5797 = vpop.permute.xlu0 %5796
  %5798 = vrot.lane.b32.xlu0 %v4338, 48
  %v5799 = vpop.permute.xlu0 %5798
  %5800 = vrot.lane.b32.xlu0 %v4142, 48
  %v5801 = vpop.permute.xlu0 %5800
  %5802 = vrot.lane.b32.xlu0 %v4339, 48
  %v5803 = vpop.permute.xlu0 %5802
  %5804 = vrot.lane.b32.xlu0 %v4145, 48
  %v5805 = vpop.permute.xlu0 %5804
  %5806 = vrot.lane.b32.xlu0 %v4340, 48
  %v5807 = vpop.permute.xlu0 %5806
  %5808 = vrot.lane.b32.xlu0 %v4148, 48
  %v5809 = vpop.permute.xlu0 %5808
  %5810 = vrot.lane.b32.xlu0 %v4341, 48
  %v5811 = vpop.permute.xlu0 %5810
  %5812 = vrot.lane.b32.xlu0 %v4151, 48
  %v5813 = vpop.permute.xlu0 %5812
  %5874 = vrot.lane.b32.xlu0 %v4436, 56
  %v5875 = vpop.permute.xlu0 %5874
  %5876 = vrot.lane.b32.xlu0 %v4438, 56
  %v5877 = vpop.permute.xlu0 %5876
  %5878 = vrot.lane.b32.xlu0 %v4446, 56
  %v5879 = vpop.permute.xlu0 %5878
  %5880 = vrot.lane.b32.xlu0 %v4448, 56
  %v5881 = vpop.permute.xlu0 %5880
  %5882 = vrot.lane.b32.xlu0 %v4451, 56
  %v5883 = vpop.permute.xlu0 %5882
  %5884 = vrot.lane.b32.xlu0 %v4453, 56
  %v5885 = vpop.permute.xlu0 %5884
  %5886 = vrot.lane.b32.xlu0 %v4456, 56
  %v5887 = vpop.permute.xlu0 %5886
  %5888 = vrot.lane.b32.xlu0 %v4458, 56
  %v5889 = vpop.permute.xlu0 %5888
  %5890 = vrot.lane.b32.xlu0 %v4461, 56
  %v5891 = vpop.permute.xlu0 %5890
  %5892 = vrot.lane.b32.xlu0 %v4463, 56
  %v5893 = vpop.permute.xlu0 %5892
  %5894 = vrot.lane.b32.xlu0 %v4466, 56
  %v5895 = vpop.permute.xlu0 %5894
  %5896 = vrot.lane.b32.xlu0 %v4468, 56
  %v5897 = vpop.permute.xlu0 %5896
  %5898 = vrot.lane.b32.xlu0 %v4471, 56
  %v5899 = vpop.permute.xlu0 %5898
  %5900 = vrot.lane.b32.xlu0 %v4473, 56
  %v5901 = vpop.permute.xlu0 %5900
  %5902 = vrot.lane.b32.xlu0 %v4476, 56
  %v5903 = vpop.permute.xlu0 %5902
  %5904 = vrot.lane.b32.xlu0 %v4478, 56
  %v5905 = vpop.permute.xlu0 %5904
  %5906 = vrot.lane.b32.xlu0 %v4481, 56
  %v5907 = vpop.permute.xlu0 %5906
  %5908 = vrot.lane.b32.xlu0 %v4483, 56
  %v5909 = vpop.permute.xlu0 %5908
  %5910 = vrot.lane.b32.xlu0 %v4486, 56
  %v5911 = vpop.permute.xlu0 %5910
  %5912 = vrot.lane.b32.xlu0 %v4488, 56
  %v5913 = vpop.permute.xlu0 %5912
  %5914 = vrot.lane.b32.xlu0 %v4491, 56
  %v5915 = vpop.permute.xlu0 %5914
  %5916 = vrot.lane.b32.xlu0 %v4493, 56
  %v5917 = vpop.permute.xlu0 %5916
  %5918 = vrot.lane.b32.xlu0 %v4496, 56
  %v5919 = vpop.permute.xlu0 %5918
  %5920 = vrot.lane.b32.xlu0 %v4498, 56
  %v5921 = vpop.permute.xlu0 %5920
  %5922 = vrot.lane.b32.xlu0 %v4501, 56
  %v5923 = vpop.permute.xlu0 %5922
  %5924 = vrot.lane.b32.xlu0 %v4503, 56
  %v5925 = vpop.permute.xlu0 %5924
  %5926 = vrot.lane.b32.xlu0 %v4506, 56
  %v5927 = vpop.permute.xlu0 %5926
  %5928 = vrot.lane.b32.xlu0 %v4508, 56
  %v5929 = vpop.permute.xlu0 %5928
  %5930 = vrot.lane.b32.xlu0 %v5292, 56
  %v5931 = vpop.permute.xlu0 %5930
  %5932 = vrot.lane.b32.xlu0 %v5294, 56
  %v5933 = vpop.permute.xlu0 %5932
  %5934 = vrot.lane.b32.xlu0 %v4511, 56
  %v5935 = vpop.permute.xlu0 %5934
  %5936 = vrot.lane.b32.xlu0 %v4513, 56
  %v5937 = vpop.permute.xlu0 %5936
  %5938 = vrot.lane.b32.xlu0 %v4521, 56
  %v5939 = vpop.permute.xlu0 %5938
  %5940 = vrot.lane.b32.xlu0 %v4523, 56
  %v5941 = vpop.permute.xlu0 %5940
  %5942 = vrot.lane.b32.xlu0 %v4526, 56
  %v5943 = vpop.permute.xlu0 %5942
  %5944 = vrot.lane.b32.xlu0 %v4528, 56
  %v5945 = vpop.permute.xlu0 %5944
  %5946 = vrot.lane.b32.xlu0 %v4531, 56
  %v5947 = vpop.permute.xlu0 %5946
  %5948 = vrot.lane.b32.xlu0 %v4533, 56
  %v5949 = vpop.permute.xlu0 %5948
  %5950 = vrot.lane.b32.xlu0 %v4536, 56
  %v5951 = vpop.permute.xlu0 %5950
  %5952 = vrot.lane.b32.xlu0 %v4538, 56
  %v5953 = vpop.permute.xlu0 %5952
  %5954 = vrot.lane.b32.xlu0 %v4541, 56
  %v5955 = vpop.permute.xlu0 %5954
  %5956 = vrot.lane.b32.xlu0 %v4543, 56
  %v5957 = vpop.permute.xlu0 %5956
  %5958 = vrot.lane.b32.xlu0 %v4546, 56
  %v5959 = vpop.permute.xlu0 %5958
  %5960 = vrot.lane.b32.xlu0 %v4548, 56
  %v5961 = vpop.permute.xlu0 %5960
  %5962 = vrot.lane.b32.xlu0 %v4551, 56
  %v5963 = vpop.permute.xlu0 %5962
  %5964 = vrot.lane.b32.xlu0 %v4553, 56
  %v5965 = vpop.permute.xlu0 %5964
  %5966 = vrot.lane.b32.xlu0 %v4556, 56
  %v5967 = vpop.permute.xlu0 %5966
  %5968 = vrot.lane.b32.xlu0 %v4558, 56
  %v5969 = vpop.permute.xlu0 %5968
  %5970 = vrot.lane.b32.xlu0 %v4561, 56
  %v5971 = vpop.permute.xlu0 %5970
  %5972 = vrot.lane.b32.xlu0 %v4563, 56
  %v5973 = vpop.permute.xlu0 %5972
  %5974 = vrot.lane.b32.xlu0 %v4566, 56
  %v5975 = vpop.permute.xlu0 %5974
  %5976 = vrot.lane.b32.xlu0 %v4568, 56
  %v5977 = vpop.permute.xlu0 %5976
  %5978 = vrot.lane.b32.xlu0 %v4571, 56
  %v5979 = vpop.permute.xlu0 %5978
  %5980 = vrot.lane.b32.xlu0 %v4573, 56
  %v5981 = vpop.permute.xlu0 %5980
  %5982 = vrot.lane.b32.xlu0 %v4576, 56
  %v5983 = vpop.permute.xlu0 %5982
  %5984 = vrot.lane.b32.xlu0 %v4578, 56
  %v5985 = vpop.permute.xlu0 %5984
  %5986 = vrot.lane.b32.xlu0 %v4581, 56
  %v5987 = vpop.permute.xlu0 %5986
  %5988 = vrot.lane.b32.xlu0 %v4583, 56
  %v5989 = vpop.permute.xlu0 %5988
  %5990 = vrot.lane.b32.xlu0 %v5297, 56
  %v5991 = vpop.permute.xlu0 %5990
  %5992 = vrot.lane.b32.xlu0 %v5299, 56
  %v5993 = vpop.permute.xlu0 %5992
  %6054 = vrot.lane.b32.xlu0 %v4766, 64
  %v6055 = vpop.permute.xlu0 %6054
  %6056 = vrot.lane.b32.xlu0 %v4768, 64
  %v6057 = vpop.permute.xlu0 %6056
  %6058 = vrot.lane.b32.xlu0 %v4776, 64
  %v6059 = vpop.permute.xlu0 %6058
  %6060 = vrot.lane.b32.xlu0 %v4778, 64
  %v6061 = vpop.permute.xlu0 %6060
  %6062 = vrot.lane.b32.xlu0 %v4781, 64
  %v6063 = vpop.permute.xlu0 %6062
  %6064 = vrot.lane.b32.xlu0 %v4783, 64
  %v6065 = vpop.permute.xlu0 %6064
  %6066 = vrot.lane.b32.xlu0 %v4786, 64
  %v6067 = vpop.permute.xlu0 %6066
  %6068 = vrot.lane.b32.xlu0 %v4788, 64
  %v6069 = vpop.permute.xlu0 %6068
  %6070 = vrot.lane.b32.xlu0 %v4791, 64
  %v6071 = vpop.permute.xlu0 %6070
  %6072 = vrot.lane.b32.xlu0 %v4793, 64
  %v6073 = vpop.permute.xlu0 %6072
  %6074 = vrot.lane.b32.xlu0 %v4796, 64
  %v6075 = vpop.permute.xlu0 %6074
  %6076 = vrot.lane.b32.xlu0 %v4798, 64
  %v6077 = vpop.permute.xlu0 %6076
  %6078 = vrot.lane.b32.xlu0 %v4801, 64
  %v6079 = vpop.permute.xlu0 %6078
  %6080 = vrot.lane.b32.xlu0 %v4803, 64
  %v6081 = vpop.permute.xlu0 %6080
  %6082 = vrot.lane.b32.xlu0 %v4806, 64
  %v6083 = vpop.permute.xlu0 %6082
  %6084 = vrot.lane.b32.xlu0 %v4808, 64
  %v6085 = vpop.permute.xlu0 %6084
  %6086 = vrot.lane.b32.xlu0 %v4811, 64
  %v6087 = vpop.permute.xlu0 %6086
  %6088 = vrot.lane.b32.xlu0 %v4813, 64
  %v6089 = vpop.permute.xlu0 %6088
  %6090 = vrot.lane.b32.xlu0 %v4816, 64
  %v6091 = vpop.permute.xlu0 %6090
  %6092 = vrot.lane.b32.xlu0 %v4818, 64
  %v6093 = vpop.permute.xlu0 %6092
  %6094 = vrot.lane.b32.xlu0 %v4821, 64
  %v6095 = vpop.permute.xlu0 %6094
  %6096 = vrot.lane.b32.xlu0 %v4823, 64
  %v6097 = vpop.permute.xlu0 %6096
  %6098 = vrot.lane.b32.xlu0 %v4826, 64
  %v6099 = vpop.permute.xlu0 %6098
  %6100 = vrot.lane.b32.xlu0 %v4828, 64
  %v6101 = vpop.permute.xlu0 %6100
  %6102 = vrot.lane.b32.xlu0 %v4831, 64
  %v6103 = vpop.permute.xlu0 %6102
  %6104 = vrot.lane.b32.xlu0 %v4833, 64
  %v6105 = vpop.permute.xlu0 %6104
  %6106 = vrot.lane.b32.xlu0 %v4836, 64
  %v6107 = vpop.permute.xlu0 %6106
  %6108 = vrot.lane.b32.xlu0 %v4838, 64
  %v6109 = vpop.permute.xlu0 %6108
  %6110 = vrot.lane.b32.xlu0 %v5494, 64
  %v6111 = vpop.permute.xlu0 %6110
  %6112 = vrot.lane.b32.xlu0 %v5496, 64
  %v6113 = vpop.permute.xlu0 %6112
  %6114 = vrot.lane.b32.xlu0 %v4841, 64
  %v6115 = vpop.permute.xlu0 %6114
  %6116 = vrot.lane.b32.xlu0 %v4843, 64
  %v6117 = vpop.permute.xlu0 %6116
  %6118 = vrot.lane.b32.xlu0 %v4851, 64
  %v6119 = vpop.permute.xlu0 %6118
  %6120 = vrot.lane.b32.xlu0 %v4853, 64
  %v6121 = vpop.permute.xlu0 %6120
  %6122 = vrot.lane.b32.xlu0 %v4856, 64
  %v6123 = vpop.permute.xlu0 %6122
  %6124 = vrot.lane.b32.xlu0 %v4858, 64
  %v6125 = vpop.permute.xlu0 %6124
  %6126 = vrot.lane.b32.xlu0 %v4861, 64
  %v6127 = vpop.permute.xlu0 %6126
  %6128 = vrot.lane.b32.xlu0 %v4863, 64
  %v6129 = vpop.permute.xlu0 %6128
  %6130 = vrot.lane.b32.xlu0 %v4866, 64
  %v6131 = vpop.permute.xlu0 %6130
  %6132 = vrot.lane.b32.xlu0 %v4868, 64
  %v6133 = vpop.permute.xlu0 %6132
  %6134 = vrot.lane.b32.xlu0 %v4871, 64
  %v6135 = vpop.permute.xlu0 %6134
  %6136 = vrot.lane.b32.xlu0 %v4873, 64
  %v6137 = vpop.permute.xlu0 %6136
  %6138 = vrot.lane.b32.xlu0 %v4876, 64
  %v6139 = vpop.permute.xlu0 %6138
  %6140 = vrot.lane.b32.xlu0 %v4878, 64
  %v6141 = vpop.permute.xlu0 %6140
  %6142 = vrot.lane.b32.xlu0 %v4881, 64
  %v6143 = vpop.permute.xlu0 %6142
  %6144 = vrot.lane.b32.xlu0 %v4883, 64
  %v6145 = vpop.permute.xlu0 %6144
  %6146 = vrot.lane.b32.xlu0 %v4886, 64
  %v6147 = vpop.permute.xlu0 %6146
  %6148 = vrot.lane.b32.xlu0 %v4888, 64
  %v6149 = vpop.permute.xlu0 %6148
  %6150 = vrot.lane.b32.xlu0 %v4891, 64
  %v6151 = vpop.permute.xlu0 %6150
  %6152 = vrot.lane.b32.xlu0 %v4893, 64
  %v6153 = vpop.permute.xlu0 %6152
  %6154 = vrot.lane.b32.xlu0 %v4896, 64
  %v6155 = vpop.permute.xlu0 %6154
  %6156 = vrot.lane.b32.xlu0 %v4898, 64
  %v6157 = vpop.permute.xlu0 %6156
  %6158 = vrot.lane.b32.xlu0 %v4901, 64
  %v6159 = vpop.permute.xlu0 %6158
  %6160 = vrot.lane.b32.xlu0 %v4903, 64
  %v6161 = vpop.permute.xlu0 %6160
  %6162 = vrot.lane.b32.xlu0 %v4906, 64
  %v6163 = vpop.permute.xlu0 %6162
  %6164 = vrot.lane.b32.xlu0 %v4908, 64
  %v6165 = vpop.permute.xlu0 %6164
  %6166 = vrot.lane.b32.xlu0 %v4911, 64
  %v6167 = vpop.permute.xlu0 %6166
  %6168 = vrot.lane.b32.xlu0 %v4913, 64
  %v6169 = vpop.permute.xlu0 %6168
  %6170 = vrot.lane.b32.xlu0 %v5499, 64
  %v6171 = vpop.permute.xlu0 %6170
  %6172 = vrot.lane.b32.xlu0 %v5501, 64
  %v6173 = vpop.permute.xlu0 %6172
  %v6234 = vsel %vm3371, %v4310, %v4585
  %v6235 = vsel %vm3371, %v4058, %v4587
  %v6236 = vsel %vm3371, %v4311, %v4589
  %v6237 = vsel %vm3371, %v4061, %v4591
  %v6238 = vsel %vm3371, %v4312, %v4593
  %v6239 = vsel %vm3371, %v4064, %v4595
  %v6240 = vsel %vm3371, %v4313, %v4597
  %v6241 = vsel %vm3371, %v4067, %v4599
  %v6242 = vsel %vm3371, %v4314, %v4601
  %v6243 = vsel %vm3371, %v4070, %v4603
  %v6244 = vsel %vm3371, %v4315, %v4605
  %v6245 = vsel %vm3371, %v4073, %v4607
  %v6246 = vsel %vm3371, %v4316, %v4609
  %v6247 = vsel %vm3371, %v4076, %v4611
  %v6248 = vsel %vm3371, %v4317, %v4613
  %v6249 = vsel %vm3371, %v4079, %v4615
  %v6250 = vsel %vm3371, %v4318, %v4617
  %v6251 = vsel %vm3371, %v4082, %v4619
  %v6252 = vsel %vm3371, %v4319, %v4621
  %v6253 = vsel %vm3371, %v4085, %v4623
  %v6254 = vsel %vm3371, %v4320, %v4625
  %v6255 = vsel %vm3371, %v4088, %v4627
  %v6256 = vsel %vm3371, %v4321, %v4629
  %v6257 = vsel %vm3371, %v4091, %v4631
  %v6258 = vsel %vm3371, %v4322, %v4633
  %v6259 = vsel %vm3371, %v4094, %v4635
  %v6260 = vsel %vm3371, %v4323, %v4637
  %v6261 = vsel %vm3371, %v4097, %v4639
  %v6262 = vsel %vm3371, %v4324, %v4641
  %v6263 = vsel %vm3371, %v4100, %v4643
  %v6264 = vsel %vm3371, %v4326, %v4645
  %v6265 = vsel %vm3371, %v4106, %v4647
  %v6266 = vsel %vm3371, %v4327, %v4649
  %v6267 = vsel %vm3371, %v4109, %v4651
  %v6268 = vsel %vm3371, %v4328, %v4653
  %v6269 = vsel %vm3371, %v4112, %v4655
  %v6270 = vsel %vm3371, %v4329, %v4657
  %v6271 = vsel %vm3371, %v4115, %v4659
  %v6272 = vsel %vm3371, %v4330, %v4661
  %v6273 = vsel %vm3371, %v4118, %v4663
  %v6274 = vsel %vm3371, %v4331, %v4665
  %v6275 = vsel %vm3371, %v4121, %v4667
  %v6276 = vsel %vm3371, %v4332, %v4669
  %v6277 = vsel %vm3371, %v4124, %v4671
  %v6278 = vsel %vm3371, %v4333, %v4673
  %v6279 = vsel %vm3371, %v4127, %v4675
  %v6280 = vsel %vm3371, %v4334, %v4677
  %v6281 = vsel %vm3371, %v4130, %v4679
  %v6282 = vsel %vm3371, %v4335, %v4681
  %v6283 = vsel %vm3371, %v4133, %v4683
  %v6284 = vsel %vm3371, %v4336, %v4685
  %v6285 = vsel %vm3371, %v4136, %v4687
  %v6286 = vsel %vm3371, %v4337, %v4689
  %v6287 = vsel %vm3371, %v4139, %v4691
  %v6288 = vsel %vm3371, %v4338, %v4693
  %v6289 = vsel %vm3371, %v4142, %v4695
  %v6290 = vsel %vm3371, %v4339, %v4697
  %v6291 = vsel %vm3371, %v4145, %v4699
  %v6292 = vsel %vm3371, %v4340, %v4701
  %v6293 = vsel %vm3371, %v4148, %v4703
  %vm6294 = vcmask 130048
  %v6295 = vsel %vm6294, %v6234, %v4915
  %v6296 = vsel %vm6294, %v6235, %v4917
  %v6297 = vsel %vm6294, %v6236, %v4919
  %v6298 = vsel %vm6294, %v6237, %v4921
  %v6299 = vsel %vm6294, %v6238, %v4923
  %v6300 = vsel %vm6294, %v6239, %v4925
  %v6301 = vsel %vm6294, %v6240, %v4927
  %v6302 = vsel %vm6294, %v6241, %v4929
  %v6303 = vsel %vm6294, %v6242, %v4931
  %v6304 = vsel %vm6294, %v6243, %v4933
  %v6305 = vsel %vm6294, %v6244, %v4935
  %v6306 = vsel %vm6294, %v6245, %v4937
  %v6307 = vsel %vm6294, %v6246, %v4939
  %v6308 = vsel %vm6294, %v6247, %v4941
  %v6309 = vsel %vm6294, %v6248, %v4943
  %v6310 = vsel %vm6294, %v6249, %v4945
  %v6311 = vsel %vm6294, %v6250, %v4947
  %v6312 = vsel %vm6294, %v6251, %v4949
  %v6313 = vsel %vm6294, %v6252, %v4951
  %v6314 = vsel %vm6294, %v6253, %v4953
  %v6315 = vsel %vm6294, %v6254, %v4955
  %v6316 = vsel %vm6294, %v6255, %v4957
  %v6317 = vsel %vm6294, %v6256, %v4959
  %v6318 = vsel %vm6294, %v6257, %v4961
  %v6319 = vsel %vm6294, %v6258, %v4963
  %v6320 = vsel %vm6294, %v6259, %v4965
  %v6321 = vsel %vm6294, %v6260, %v4967
  %v6322 = vsel %vm6294, %v6261, %v4969
  %v6323 = vsel %vm6294, %v6262, %v4971
  %v6324 = vsel %vm6294, %v6263, %v4973
  %v6325 = vsel %vm6294, %v6264, %v4975
  %v6326 = vsel %vm6294, %v6265, %v4977
  %v6327 = vsel %vm6294, %v6266, %v4979
  %v6328 = vsel %vm6294, %v6267, %v4981
  %v6329 = vsel %vm6294, %v6268, %v4983
  %v6330 = vsel %vm6294, %v6269, %v4985
  %v6331 = vsel %vm6294, %v6270, %v4987
  %v6332 = vsel %vm6294, %v6271, %v4989
  %v6333 = vsel %vm6294, %v6272, %v4991
  %v6334 = vsel %vm6294, %v6273, %v4993
  %v6335 = vsel %vm6294, %v6274, %v4995
  %v6336 = vsel %vm6294, %v6275, %v4997
  %v6337 = vsel %vm6294, %v6276, %v4999
  %v6338 = vsel %vm6294, %v6277, %v5001
  %v6339 = vsel %vm6294, %v6278, %v5003
  %v6340 = vsel %vm6294, %v6279, %v5005
  %v6341 = vsel %vm6294, %v6280, %v5007
  %v6342 = vsel %vm6294, %v6281, %v5009
  %v6343 = vsel %vm6294, %v6282, %v5011
  %v6344 = vsel %vm6294, %v6283, %v5013
  %v6345 = vsel %vm6294, %v6284, %v5015
  %v6346 = vsel %vm6294, %v6285, %v5017
  %v6347 = vsel %vm6294, %v6286, %v5019
  %v6348 = vsel %vm6294, %v6287, %v5021
  %v6349 = vsel %vm6294, %v6288, %v5023
  %v6350 = vsel %vm6294, %v6289, %v5025
  %v6351 = vsel %vm6294, %v6290, %v5027
  %v6352 = vsel %vm6294, %v6291, %v5029
  %v6353 = vsel %vm6294, %v6292, %v5031
  %v6354 = vsel %vm6294, %v6293, %v5033
  %v6355 = vsel %vm2871, %v6295, %v5097
  %v6356 = vsel %vm2871, %v6296, %v5099
  %v6357 = vsel %vm2871, %v6297, %v5101
  %v6358 = vsel %vm2871, %v6298, %v5103
  %v6359 = vsel %vm2871, %v6295, %v5105
  %v6360 = vsel %vm2871, %v6296, %v5107
  %v6361 = vsel %vm2871, %v6299, %v5109
  %v6362 = vsel %vm2871, %v6300, %v5111
  %v6363 = vsel %vm2871, %v6301, %v5113
  %v6364 = vsel %vm2871, %v6302, %v5115
  %v6365 = vsel %vm2871, %v6303, %v5117
  %v6366 = vsel %vm2871, %v6304, %v5119
  %v6367 = vsel %vm2871, %v6305, %v5121
  %v6368 = vsel %vm2871, %v6306, %v5123
  %v6369 = vsel %vm2871, %v6307, %v5125
  %v6370 = vsel %vm2871, %v6308, %v5127
  %v6371 = vsel %vm2871, %v6309, %v5129
  %v6372 = vsel %vm2871, %v6310, %v5131
  %v6373 = vsel %vm2871, %v6311, %v5133
  %v6374 = vsel %vm2871, %v6312, %v5135
  %v6375 = vsel %vm2871, %v6313, %v5137
  %v6376 = vsel %vm2871, %v6314, %v5139
  %v6377 = vsel %vm2871, %v6315, %v5141
  %v6378 = vsel %vm2871, %v6316, %v5143
  %v6379 = vsel %vm2871, %v6317, %v5145
  %v6380 = vsel %vm2871, %v6318, %v5147
  %v6381 = vsel %vm2871, %v6319, %v5149
  %v6382 = vsel %vm2871, %v6320, %v5151
  %v6383 = vsel %vm2871, %v6321, %v5153
  %v6384 = vsel %vm2871, %v6322, %v5155
  %v6385 = vsel %vm2871, %v6323, %v5157
  %v6386 = vsel %vm2871, %v6324, %v5159
  %v6387 = vsel %vm2871, %v6325, %v5161
  %v6388 = vsel %vm2871, %v6326, %v5163
  %v6389 = vsel %vm2871, %v6327, %v5165
  %v6390 = vsel %vm2871, %v6328, %v5167
  %v6391 = vsel %vm2871, %v6325, %v5169
  %v6392 = vsel %vm2871, %v6326, %v5171
  %v6393 = vsel %vm2871, %v6329, %v5173
  %v6394 = vsel %vm2871, %v6330, %v5175
  %v6395 = vsel %vm2871, %v6331, %v5177
  %v6396 = vsel %vm2871, %v6332, %v5179
  %v6397 = vsel %vm2871, %v6333, %v5181
  %v6398 = vsel %vm2871, %v6334, %v5183
  %v6399 = vsel %vm2871, %v6335, %v5185
  %v6400 = vsel %vm2871, %v6336, %v5187
  %v6401 = vsel %vm2871, %v6337, %v5189
  %v6402 = vsel %vm2871, %v6338, %v5191
  %v6403 = vsel %vm2871, %v6339, %v5193
  %v6404 = vsel %vm2871, %v6340, %v5195
  %v6405 = vsel %vm2871, %v6341, %v5197
  %v6406 = vsel %vm2871, %v6342, %v5199
  %v6407 = vsel %vm2871, %v6343, %v5201
  %v6408 = vsel %vm2871, %v6344, %v5203
  %v6409 = vsel %vm2871, %v6345, %v5205
  %v6410 = vsel %vm2871, %v6346, %v5207
  %v6411 = vsel %vm2871, %v6347, %v5209
  %v6412 = vsel %vm2871, %v6348, %v5211
  %v6413 = vsel %vm2871, %v6349, %v5213
  %v6414 = vsel %vm2871, %v6350, %v5215
  %v6415 = vsel %vm2871, %v6351, %v5217
  %v6416 = vsel %vm2871, %v6352, %v5219
  %v6417 = vsel %vm2871, %v6353, %v5221
  %v6418 = vsel %vm2871, %v6354, %v5223
  %vm6419 = vcmask 261120
  %v6420 = vsel %vm6419, %v6355, %v5301
  %v6421 = vsel %vm6419, %v6356, %v5303
  %v6422 = vsel %vm6419, %v6357, %v5305
  %v6423 = vsel %vm6419, %v6358, %v5307
  %v6424 = vsel %vm6419, %v6359, %v5309
  %v6425 = vsel %vm6419, %v6360, %v5311
  %v6426 = vsel %vm6419, %v6361, %v5313
  %v6427 = vsel %vm6419, %v6362, %v5315
  %v6428 = vsel %vm6419, %v6363, %v5317
  %v6429 = vsel %vm6419, %v6364, %v5319
  %v6430 = vsel %vm6419, %v6365, %v5321
  %v6431 = vsel %vm6419, %v6366, %v5323
  %v6432 = vsel %vm6419, %v6367, %v5325
  %v6433 = vsel %vm6419, %v6368, %v5327
  %v6434 = vsel %vm6419, %v6369, %v5329
  %v6435 = vsel %vm6419, %v6370, %v5331
  %v6436 = vsel %vm6419, %v6371, %v5333
  %v6437 = vsel %vm6419, %v6372, %v5335
  %v6438 = vsel %vm6419, %v6373, %v5337
  %v6439 = vsel %vm6419, %v6374, %v5339
  %v6440 = vsel %vm6419, %v6375, %v5341
  %v6441 = vsel %vm6419, %v6376, %v5343
  %v6442 = vsel %vm6419, %v6377, %v5345
  %v6443 = vsel %vm6419, %v6378, %v5347
  %v6444 = vsel %vm6419, %v6379, %v5349
  %v6445 = vsel %vm6419, %v6380, %v5351
  %v6446 = vsel %vm6419, %v6381, %v5353
  %v6447 = vsel %vm6419, %v6382, %v5355
  %v6448 = vsel %vm6419, %v6383, %v5357
  %v6449 = vsel %vm6419, %v6384, %v5359
  %v6450 = vsel %vm6419, %v6385, %v5361
  %v6451 = vsel %vm6419, %v6386, %v5363
  %v6452 = vsel %vm6419, %v6387, %v5365
  %v6453 = vsel %vm6419, %v6388, %v5367
  %v6454 = vsel %vm6419, %v6389, %v5369
  %v6455 = vsel %vm6419, %v6390, %v5371
  %v6456 = vsel %vm6419, %v6391, %v5373
  %v6457 = vsel %vm6419, %v6392, %v5375
  %v6458 = vsel %vm6419, %v6393, %v5377
  %v6459 = vsel %vm6419, %v6394, %v5379
  %v6460 = vsel %vm6419, %v6395, %v5381
  %v6461 = vsel %vm6419, %v6396, %v5383
  %v6462 = vsel %vm6419, %v6397, %v5385
  %v6463 = vsel %vm6419, %v6398, %v5387
  %v6464 = vsel %vm6419, %v6399, %v5389
  %v6465 = vsel %vm6419, %v6400, %v5391
  %v6466 = vsel %vm6419, %v6401, %v5393
  %v6467 = vsel %vm6419, %v6402, %v5395
  %v6468 = vsel %vm6419, %v6403, %v5397
  %v6469 = vsel %vm6419, %v6404, %v5399
  %v6470 = vsel %vm6419, %v6405, %v5401
  %v6471 = vsel %vm6419, %v6406, %v5403
  %v6472 = vsel %vm6419, %v6407, %v5405
  %v6473 = vsel %vm6419, %v6408, %v5407
  %v6474 = vsel %vm6419, %v6409, %v5409
  %v6475 = vsel %vm6419, %v6410, %v5411
  %v6476 = vsel %vm6419, %v6411, %v5413
  %v6477 = vsel %vm6419, %v6412, %v5415
  %v6478 = vsel %vm6419, %v6413, %v5417
  %v6479 = vsel %vm6419, %v6414, %v5419
  %v6480 = vsel %vm6419, %v6415, %v5421
  %v6481 = vsel %vm6419, %v6416, %v5423
  %v6482 = vsel %vm6419, %v6417, %v5425
  %v6483 = vsel %vm6419, %v6418, %v5427
  %vm6484 = vcmask 326656
  %v6485 = vsel %vm6484, %v6420, %v5503
  %v6486 = vsel %vm6484, %v6421, %v5505
  %v6487 = vsel %vm6484, %v6422, %v5507
  %v6488 = vsel %vm6484, %v6423, %v5509
  %v6489 = vsel %vm6484, %v6424, %v5511
  %v6490 = vsel %vm6484, %v6425, %v5513
  %v6491 = vsel %vm6484, %v6426, %v5515
  %v6492 = vsel %vm6484, %v6427, %v5517
  %v6493 = vsel %vm6484, %v6428, %v5519
  %v6494 = vsel %vm6484, %v6429, %v5521
  %v6495 = vsel %vm6484, %v6430, %v5523
  %v6496 = vsel %vm6484, %v6431, %v5525
  %v6497 = vsel %vm6484, %v6432, %v5527
  %v6498 = vsel %vm6484, %v6433, %v5529
  %v6499 = vsel %vm6484, %v6434, %v5531
  %v6500 = vsel %vm6484, %v6435, %v5533
  %v6501 = vsel %vm6484, %v6436, %v5535
  %v6502 = vsel %vm6484, %v6437, %v5537
  %v6503 = vsel %vm6484, %v6438, %v5539
  %v6504 = vsel %vm6484, %v6439, %v5541
  %v6505 = vsel %vm6484, %v6440, %v5543
  %v6506 = vsel %vm6484, %v6441, %v5545
  %v6507 = vsel %vm6484, %v6442, %v5547
  %v6508 = vsel %vm6484, %v6443, %v5549
  %v6509 = vsel %vm6484, %v6444, %v5551
  %v6510 = vsel %vm6484, %v6445, %v5553
  %v6511 = vsel %vm6484, %v6446, %v5555
  %v6512 = vsel %vm6484, %v6447, %v5557
  %v6513 = vsel %vm6484, %v6448, %v5559
  %v6514 = vsel %vm6484, %v6449, %v5561
  %v6515 = vsel %vm6484, %v6450, %v5563
  %v6516 = vsel %vm6484, %v6451, %v5565
  %v6517 = vsel %vm6484, %v6452, %v5567
  %v6518 = vsel %vm6484, %v6453, %v5569
  %v6519 = vsel %vm6484, %v6454, %v5571
  %v6520 = vsel %vm6484, %v6455, %v5573
  %v6521 = vsel %vm6484, %v6456, %v5575
  %v6522 = vsel %vm6484, %v6457, %v5577
  %v6523 = vsel %vm6484, %v6458, %v5579
  %v6524 = vsel %vm6484, %v6459, %v5581
  %v6525 = vsel %vm6484, %v6460, %v5583
  %v6526 = vsel %vm6484, %v6461, %v5585
  %v6527 = vsel %vm6484, %v6462, %v5587
  %v6528 = vsel %vm6484, %v6463, %v5589
  %v6529 = vsel %vm6484, %v6464, %v5591
  %v6530 = vsel %vm6484, %v6465, %v5593
  %v6531 = vsel %vm6484, %v6466, %v5595
  %v6532 = vsel %vm6484, %v6467, %v5597
  %v6533 = vsel %vm6484, %v6468, %v5599
  %v6534 = vsel %vm6484, %v6469, %v5601
  %v6535 = vsel %vm6484, %v6470, %v5603
  %v6536 = vsel %vm6484, %v6471, %v5605
  %v6537 = vsel %vm6484, %v6472, %v5607
  %v6538 = vsel %vm6484, %v6473, %v5609
  %v6539 = vsel %vm6484, %v6474, %v5611
  %v6540 = vsel %vm6484, %v6475, %v5613
  %v6541 = vsel %vm6484, %v6476, %v5615
  %v6542 = vsel %vm6484, %v6477, %v5617
  %v6543 = vsel %vm6484, %v6478, %v5619
  %v6544 = vsel %vm6484, %v6479, %v5621
  %v6545 = vsel %vm6484, %v6480, %v5623
  %v6546 = vsel %vm6484, %v6481, %v5625
  %v6547 = vsel %vm6484, %v6482, %v5627
  %v6548 = vsel %vm6484, %v6483, %v5629
  %vm6549 = vcmask 392192
  %v6550 = vsel %vm6549, %v6485, %v5695
  %v6551 = vsel %vm6549, %v6486, %v5697
  %v6552 = vsel %vm6549, %v6487, %v5699
  %v6553 = vsel %vm6549, %v6488, %v5701
  %v6554 = vsel %vm6549, %v6489, %v5703
  %v6555 = vsel %vm6549, %v6490, %v5705
  %v6556 = vsel %vm6549, %v6491, %v5707
  %v6557 = vsel %vm6549, %v6492, %v5709
  %v6558 = vsel %vm6549, %v6493, %v5711
  %v6559 = vsel %vm6549, %v6494, %v5713
  %v6560 = vsel %vm6549, %v6495, %v5715
  %v6561 = vsel %vm6549, %v6496, %v5717
  %v6562 = vsel %vm6549, %v6497, %v5719
  %v6563 = vsel %vm6549, %v6498, %v5721
  %v6564 = vsel %vm6549, %v6499, %v5723
  %v6565 = vsel %vm6549, %v6500, %v5725
  %v6566 = vsel %vm6549, %v6501, %v5727
  %v6567 = vsel %vm6549, %v6502, %v5729
  %v6568 = vsel %vm6549, %v6503, %v5731
  %v6569 = vsel %vm6549, %v6504, %v5733
  %v6570 = vsel %vm6549, %v6505, %v5735
  %v6571 = vsel %vm6549, %v6506, %v5737
  %v6572 = vsel %vm6549, %v6507, %v5739
  %v6573 = vsel %vm6549, %v6508, %v5741
  %v6574 = vsel %vm6549, %v6509, %v5743
  %v6575 = vsel %vm6549, %v6510, %v5745
  %v6576 = vsel %vm6549, %v6511, %v5747
  %v6577 = vsel %vm6549, %v6512, %v5749
  %v6578 = vsel %vm6549, %v6513, %v5751
  %v6579 = vsel %vm6549, %v6514, %v5753
  %v6580 = vsel %vm6549, %v6515, %v5747
  %v6581 = vsel %vm6549, %v6516, %v5749
  %v6582 = vsel %vm6549, %v6517, %v5755
  %v6583 = vsel %vm6549, %v6518, %v5757
  %v6584 = vsel %vm6549, %v6519, %v5759
  %v6585 = vsel %vm6549, %v6520, %v5761
  %v6586 = vsel %vm6549, %v6521, %v5763
  %v6587 = vsel %vm6549, %v6522, %v5765
  %v6588 = vsel %vm6549, %v6523, %v5767
  %v6589 = vsel %vm6549, %v6524, %v5769
  %v6590 = vsel %vm6549, %v6525, %v5771
  %v6591 = vsel %vm6549, %v6526, %v5773
  %v6592 = vsel %vm6549, %v6527, %v5775
  %v6593 = vsel %vm6549, %v6528, %v5777
  %v6594 = vsel %vm6549, %v6529, %v5779
  %v6595 = vsel %vm6549, %v6530, %v5781
  %v6596 = vsel %vm6549, %v6531, %v5783
  %v6597 = vsel %vm6549, %v6532, %v5785
  %v6598 = vsel %vm6549, %v6533, %v5787
  %v6599 = vsel %vm6549, %v6534, %v5789
  %v6600 = vsel %vm6549, %v6535, %v5791
  %v6601 = vsel %vm6549, %v6536, %v5793
  %v6602 = vsel %vm6549, %v6537, %v5795
  %v6603 = vsel %vm6549, %v6538, %v5797
  %v6604 = vsel %vm6549, %v6539, %v5799
  %v6605 = vsel %vm6549, %v6540, %v5801
  %v6606 = vsel %vm6549, %v6541, %v5803
  %v6607 = vsel %vm6549, %v6542, %v5805
  %v6608 = vsel %vm6549, %v6543, %v5807
  %v6609 = vsel %vm6549, %v6544, %v5809
  %v6610 = vsel %vm6549, %v6545, %v5811
  %v6611 = vsel %vm6549, %v6546, %v5813
  %v6612 = vsel %vm6549, %v6547, %v5807
  %v6613 = vsel %vm6549, %v6548, %v5809
  %vm6614 = vcmask 457728
  %v6615 = vsel %vm6614, %v6550, %v5875
  %v6616 = vsel %vm6614, %v6551, %v5877
  %v6617 = vsel %vm6614, %v6552, %v5879
  %v6618 = vsel %vm6614, %v6553, %v5881
  %v6619 = vsel %vm6614, %v6554, %v5883
  %v6620 = vsel %vm6614, %v6555, %v5885
  %v6621 = vsel %vm6614, %v6556, %v5887
  %v6622 = vsel %vm6614, %v6557, %v5889
  %v6623 = vsel %vm6614, %v6558, %v5891
  %v6624 = vsel %vm6614, %v6559, %v5893
  %v6625 = vsel %vm6614, %v6560, %v5895
  %v6626 = vsel %vm6614, %v6561, %v5897
  %v6627 = vsel %vm6614, %v6562, %v5899
  %v6628 = vsel %vm6614, %v6563, %v5901
  %v6629 = vsel %vm6614, %v6564, %v5903
  %v6630 = vsel %vm6614, %v6565, %v5905
  %v6631 = vsel %vm6614, %v6566, %v5907
  %v6632 = vsel %vm6614, %v6567, %v5909
  %v6633 = vsel %vm6614, %v6568, %v5911
  %v6634 = vsel %vm6614, %v6569, %v5913
  %v6635 = vsel %vm6614, %v6570, %v5915
  %v6636 = vsel %vm6614, %v6571, %v5917
  %v6637 = vsel %vm6614, %v6572, %v5919
  %v6638 = vsel %vm6614, %v6573, %v5921
  %v6639 = vsel %vm6614, %v6574, %v5923
  %v6640 = vsel %vm6614, %v6575, %v5925
  %v6641 = vsel %vm6614, %v6576, %v5927
  %v6642 = vsel %vm6614, %v6577, %v5929
  %v6643 = vsel %vm6614, %v6578, %v5931
  %v6644 = vsel %vm6614, %v6579, %v5933
  %v6645 = vsel %vm6614, %v6580, %v5927
  %v6646 = vsel %vm6614, %v6581, %v5929
  %v6647 = vsel %vm6614, %v6582, %v5935
  %v6648 = vsel %vm6614, %v6583, %v5937
  %v6649 = vsel %vm6614, %v6584, %v5939
  %v6650 = vsel %vm6614, %v6585, %v5941
  %v6651 = vsel %vm6614, %v6586, %v5943
  %v6652 = vsel %vm6614, %v6587, %v5945
  %v6653 = vsel %vm6614, %v6588, %v5947
  %v6654 = vsel %vm6614, %v6589, %v5949
  %v6655 = vsel %vm6614, %v6590, %v5951
  %v6656 = vsel %vm6614, %v6591, %v5953
  %v6657 = vsel %vm6614, %v6592, %v5955
  %v6658 = vsel %vm6614, %v6593, %v5957
  %v6659 = vsel %vm6614, %v6594, %v5959
  %v6660 = vsel %vm6614, %v6595, %v5961
  %v6661 = vsel %vm6614, %v6596, %v5963
  %v6662 = vsel %vm6614, %v6597, %v5965
  %v6663 = vsel %vm6614, %v6598, %v5967
  %v6664 = vsel %vm6614, %v6599, %v5969
  %v6665 = vsel %vm6614, %v6600, %v5971
  %v6666 = vsel %vm6614, %v6601, %v5973
  %v6667 = vsel %vm6614, %v6602, %v5975
  %v6668 = vsel %vm6614, %v6603, %v5977
  %v6669 = vsel %vm6614, %v6604, %v5979
  %v6670 = vsel %vm6614, %v6605, %v5981
  %v6671 = vsel %vm6614, %v6606, %v5983
  %v6672 = vsel %vm6614, %v6607, %v5985
  %v6673 = vsel %vm6614, %v6608, %v5987
  %v6674 = vsel %vm6614, %v6609, %v5989
  %v6675 = vsel %vm6614, %v6610, %v5991
  %v6676 = vsel %vm6614, %v6611, %v5993
  %v6677 = vsel %vm6614, %v6612, %v5987
  %v6678 = vsel %vm6614, %v6613, %v5989
  %vm6679 = vcmask 523264
  %v6680 = vsel %vm6679, %v6615, %v6055
  %v6681 = vsel %vm6679, %v6616, %v6057
  %v6682 = vsel %vm6679, %v6617, %v6059
  %v6683 = vsel %vm6679, %v6618, %v6061
  %v6684 = vsel %vm6679, %v6619, %v6063
  %v6685 = vsel %vm6679, %v6620, %v6065
  %v6686 = vsel %vm6679, %v6621, %v6067
  %v6687 = vsel %vm6679, %v6622, %v6069
  %v6688 = vsel %vm6679, %v6623, %v6071
  %v6689 = vsel %vm6679, %v6624, %v6073
  %v6690 = vsel %vm6679, %v6625, %v6075
  %v6691 = vsel %vm6679, %v6626, %v6077
  %v6692 = vsel %vm6679, %v6627, %v6079
  %v6693 = vsel %vm6679, %v6628, %v6081
  %v6694 = vsel %vm6679, %v6629, %v6083
  %v6695 = vsel %vm6679, %v6630, %v6085
  %v6696 = vsel %vm6679, %v6631, %v6087
  %v6697 = vsel %vm6679, %v6632, %v6089
  %v6698 = vsel %vm6679, %v6633, %v6091
  %v6699 = vsel %vm6679, %v6634, %v6093
  %v6700 = vsel %vm6679, %v6635, %v6095
  %v6701 = vsel %vm6679, %v6636, %v6097
  %v6702 = vsel %vm6679, %v6637, %v6099
  %v6703 = vsel %vm6679, %v6638, %v6101
  %v6704 = vsel %vm6679, %v6639, %v6103
  %v6705 = vsel %vm6679, %v6640, %v6105
  %v6706 = vsel %vm6679, %v6641, %v6107
  %v6707 = vsel %vm6679, %v6642, %v6109
  %v6708 = vsel %vm6679, %v6643, %v6111
  %v6709 = vsel %vm6679, %v6644, %v6113
  %v6710 = vsel %vm6679, %v6645, %v6107
  %v6711 = vsel %vm6679, %v6646, %v6109
  %v6712 = vsel %vm6679, %v6647, %v6115
  %v6713 = vsel %vm6679, %v6648, %v6117
  %v6714 = vsel %vm6679, %v6649, %v6119
  %v6715 = vsel %vm6679, %v6650, %v6121
  %v6716 = vsel %vm6679, %v6651, %v6123
  %v6717 = vsel %vm6679, %v6652, %v6125
  %v6718 = vsel %vm6679, %v6653, %v6127
  %v6719 = vsel %vm6679, %v6654, %v6129
  %v6720 = vsel %vm6679, %v6655, %v6131
  %v6721 = vsel %vm6679, %v6656, %v6133
  %v6722 = vsel %vm6679, %v6657, %v6135
  %v6723 = vsel %vm6679, %v6658, %v6137
  %v6724 = vsel %vm6679, %v6659, %v6139
  %v6725 = vsel %vm6679, %v6660, %v6141
  %v6726 = vsel %vm6679, %v6661, %v6143
  %v6727 = vsel %vm6679, %v6662, %v6145
  %v6728 = vsel %vm6679, %v6663, %v6147
  %v6729 = vsel %vm6679, %v6664, %v6149
  %v6730 = vsel %vm6679, %v6665, %v6151
  %v6731 = vsel %vm6679, %v6666, %v6153
  %v6732 = vsel %vm6679, %v6667, %v6155
  %v6733 = vsel %vm6679, %v6668, %v6157
  %v6734 = vsel %vm6679, %v6669, %v6159
  %v6735 = vsel %vm6679, %v6670, %v6161
  %v6736 = vsel %vm6679, %v6671, %v6163
  %v6737 = vsel %vm6679, %v6672, %v6165
  %v6738 = vsel %vm6679, %v6673, %v6167
  %v6739 = vsel %vm6679, %v6674, %v6169
  %v6740 = vsel %vm6679, %v6675, %v6171
  %v6741 = vsel %vm6679, %v6676, %v6173
  %v6742 = vsel %vm6679, %v6677, %v6167
  %v6743 = vsel %vm6679, %v6678, %v6169
  %v6744 = vpack.c.bf16 %v6681, %v6680
  %v6745 = vpack.c.bf16 %v6683, %v6682
  %v6746 = vpack.c.bf16 %v6685, %v6684
  %v6747 = vpack.c.bf16 %v6687, %v6686
  %v6748 = vpack.c.bf16 %v6689, %v6688
  %v6749 = vpack.c.bf16 %v6691, %v6690
  %v6750 = vpack.c.bf16 %v6693, %v6692
  %v6751 = vpack.c.bf16 %v6695, %v6694
  %v6752 = vpack.c.bf16 %v6697, %v6696
  %v6753 = vpack.c.bf16 %v6699, %v6698
  %v6754 = vpack.c.bf16 %v6701, %v6700
  %v6755 = vpack.c.bf16 %v6703, %v6702
  %v6756 = vpack.c.bf16 %v6705, %v6704
  %v6757 = vpack.c.bf16 %v6707, %v6706
  %v6758 = vpack.c.bf16 %v6709, %v6708
  %v6759 = vpack.c.bf16 %v6711, %v6710
  %v6760 = vpack.c.bf16 %v6713, %v6712
  %v6761 = vpack.c.bf16 %v6715, %v6714
  %v6762 = vpack.c.bf16 %v6717, %v6716
  %v6763 = vpack.c.bf16 %v6719, %v6718
  %v6764 = vpack.c.bf16 %v6721, %v6720
  %v6765 = vpack.c.bf16 %v6723, %v6722
  %v6766 = vpack.c.bf16 %v6725, %v6724
  %v6767 = vpack.c.bf16 %v6727, %v6726
  %v6768 = vpack.c.bf16 %v6729, %v6728
  %v6769 = vpack.c.bf16 %v6731, %v6730
  %v6770 = vpack.c.bf16 %v6733, %v6732
  %v6771 = vpack.c.bf16 %v6735, %v6734
  %v6772 = vpack.c.bf16 %v6737, %v6736
  %v6773 = vpack.c.bf16 %v6739, %v6738
  %v6774 = vpack.c.bf16 %v6741, %v6740
  %v6775 = vpack.c.bf16 %v6743, %v6742
  %v6785 = vunpack.c.l.b16 %v3917
  %v6786 = vunpack.c.l.b16 %v3918
  %v6787 = vunpack.c.l.b16 %v3919
  %v6788 = vunpack.c.l.b16 %v3920
  %v6789 = vunpack.c.l.b16 %v3921
  %v6790 = vunpack.c.l.b16 %v3922
  %v6791 = vunpack.c.l.b16 %v3923
  %v6792 = vunpack.c.l.b16 %v3924
  %v6793 = vunpack.c.l.b16 %v3925
  %v6794 = vpack.c.b16 %v6786, %v6785
  %v6795 = vpack.c.b16 %v6788, %v6787
  %v6796 = vpack.c.b16 %v6790, %v6789
  %v6797 = vpack.c.b16 %v6792, %v6791
  %v6798 = vpack.c.b16 %v6793, %v6793
  %vm6803 = vcmask 588800
  %v6805 = vsel %vm6803, %v6744, 0
  %v6808 = vsel %vm6803, %v6745, 0
  %v6811 = vsel %vm6803, %v6746, 0
  %v6814 = vsel %vm6803, %v6747, 0
  %v6817 = vsel %vm6803, %v6748, 0
  %v6820 = vsel %vm6803, %v6749, 0
  %v6823 = vsel %vm6803, %v6750, 0
  %v6826 = vsel %vm6803, %v6751, 0
  %v6829 = vsel %vm6803, %v6752, 0
  %v6832 = vsel %vm6803, %v6753, 0
  %v6835 = vsel %vm6803, %v6754, 0
  %v6838 = vsel %vm6803, %v6755, 0
  %v6841 = vsel %vm6803, %v6756, 0
  %v6844 = vsel %vm6803, %v6757, 0
  %v6847 = vsel %vm6803, %v6758, 0
  %v6850 = vsel %vm6803, %v6759, 0
  %v6853 = vsel %vm6803, %v6760, 0
  %v6856 = vsel %vm6803, %v6761, 0
  %v6859 = vsel %vm6803, %v6762, 0
  %v6862 = vsel %vm6803, %v6763, 0
  %v6865 = vsel %vm6803, %v6764, 0
  %v6868 = vsel %vm6803, %v6765, 0
  %v6871 = vsel %vm6803, %v6766, 0
  %v6874 = vsel %vm6803, %v6767, 0
  %v6877 = vsel %vm6803, %v6768, 0
  %v6880 = vsel %vm6803, %v6769, 0
  %v6883 = vsel %vm6803, %v6770, 0
  %v6886 = vsel %vm6803, %v6771, 0
  %v6889 = vsel %vm6803, %v6772, 0
  %v6892 = vsel %vm6803, %v6773, 0
  %v6895 = vsel %vm6803, %v6774, 0
  %v6898 = vsel %vm6803, %v6775, 0
  %vm6900 = vcmask 1043456
  %v6902 = vsel %vm6900, %v6798, 0
  %6904 = vmatprep.subr.bf16.mxu0 0
  %6905 = vmatpush1.bf16.msra.mxu0 0
  %6906 = vmatprep.subr.bf16.mxu0 0
  %6907 = vmatpush1.bf16.msra.mxu0 0
  %6908 = vmatprep.subr.bf16.mxu0 0
  %6909 = vmatpush1.bf16.msra.mxu0 0
  %6910 = vmatprep.subr.bf16.mxu0 0
  %6911 = vmatpush1.bf16.msra.mxu0 %v6902
  %6912 = vmatprep.subr.bf16.mxu0 0
  %6913 = vmatpush1.bf16.msra.mxu0 %v6797
  %6914 = vmatprep.subr.bf16.mxu0 0
  %6915 = vmatpush1.bf16.msra.mxu0 %v6796
  %6916 = vmatprep.subr.bf16.mxu0 0
  %6917 = vmatpush1.bf16.msra.mxu0 %v6795
  %6918 = vmatprep.subr.bf16.mxu0 0
  %6919 = vmatpush1.bf16.msra.mxu0 %v6794
  %6920 = vmatprep.subr.bf16.mxu0 0
  %6921 = vmatpush2.bf16.msra.mxu0 0
  %6922 = vmatprep.subr.bf16.mxu0 0
  %6923 = vmatpush2.bf16.msra.mxu0 0
  %6924 = vmatprep.subr.bf16.mxu0 0
  %6925 = vmatpush2.bf16.msra.mxu0 0
  %6926 = vmatprep.subr.bf16.mxu0 0
  %6927 = vmatpush2.bf16.msra.mxu0 0
  %6928 = vmatprep.subr.bf16.mxu0 0
  %6929 = vmatpush2.bf16.msra.mxu0 0
  %6930 = vmatprep.subr.bf16.mxu0 0
  %6931 = vmatpush2.bf16.msra.mxu0 0
  %6932 = vmatprep.subr.bf16.mxu0 0
  %6933 = vmatpush2.bf16.msra.mxu0 0
  %6934 = vmatprep.subr.bf16.mxu0 0
  %6935 = vmatpush2.bf16.msra.mxu0 0
  %6936 = vmatprep.mubr.bf16.mxu0 0
  %6937 = vmatmul.mubr.bf16.gmra.mxu0 %v6805
  %v6938 = vpop.f32.mrf.mxu0
  %v6939 = vadd.f32 0.0, %v6938
  %v6940 = vpop.f32.mrf.mxu0
  %v6941 = vpop.f32.mrf.mxu0
  %v6942 = vadd.f32 0.0, %v6941
  %v6943 = vpop.f32.mrf.mxu0
  %6944 = vmatprep.mubr.bf16.mxu0 0
  %6945 = vmatmul.mubr.bf16.gmra.mxu0 %v6808
  %v6946 = vpop.f32.mrf.mxu0
  %v6947 = vadd.f32 0.0, %v6946
  %v6948 = vpop.f32.mrf.mxu0
  %v6949 = vpop.f32.mrf.mxu0
  %v6950 = vadd.f32 0.0, %v6949
  %v6951 = vpop.f32.mrf.mxu0
  %6952 = vmatprep.mubr.bf16.mxu0 0
  %6953 = vmatmul.mubr.bf16.gmra.mxu0 %v6811
  %v6954 = vpop.f32.mrf.mxu0
  %v6955 = vadd.f32 0.0, %v6954
  %v6956 = vpop.f32.mrf.mxu0
  %v6957 = vpop.f32.mrf.mxu0
  %v6958 = vadd.f32 0.0, %v6957
  %v6959 = vpop.f32.mrf.mxu0
  %6960 = vmatprep.mubr.bf16.mxu0 0
  %6961 = vmatmul.mubr.bf16.gmra.mxu0 %v6814
  %v6962 = vpop.f32.mrf.mxu0
  %v6963 = vadd.f32 0.0, %v6962
  %v6964 = vpop.f32.mrf.mxu0
  %v6965 = vpop.f32.mrf.mxu0
  %v6966 = vadd.f32 0.0, %v6965
  %v6967 = vpop.f32.mrf.mxu0
  %6968 = vmatprep.mubr.bf16.mxu0 0
  %6969 = vmatmul.mubr.bf16.gmra.mxu0 %v6817
  %v6970 = vpop.f32.mrf.mxu0
  %v6971 = vadd.f32 0.0, %v6970
  %v6972 = vpop.f32.mrf.mxu0
  %v6973 = vpop.f32.mrf.mxu0
  %v6974 = vadd.f32 0.0, %v6973
  %v6975 = vpop.f32.mrf.mxu0
  %6976 = vmatprep.mubr.bf16.mxu0 0
  %6977 = vmatmul.mubr.bf16.gmra.mxu0 %v6820
  %v6978 = vpop.f32.mrf.mxu0
  %v6979 = vadd.f32 0.0, %v6978
  %v6980 = vpop.f32.mrf.mxu0
  %v6981 = vpop.f32.mrf.mxu0
  %v6982 = vadd.f32 0.0, %v6981
  %v6983 = vpop.f32.mrf.mxu0
  %6984 = vmatprep.mubr.bf16.mxu0 0
  %6985 = vmatmul.mubr.bf16.gmra.mxu0 %v6823
  %v6986 = vpop.f32.mrf.mxu0
  %v6987 = vadd.f32 0.0, %v6986
  %v6988 = vpop.f32.mrf.mxu0
  %v6989 = vpop.f32.mrf.mxu0
  %v6990 = vadd.f32 0.0, %v6989
  %v6991 = vpop.f32.mrf.mxu0
  %6992 = vmatprep.mubr.bf16.mxu0 0
  %6993 = vmatmul.mubr.bf16.gmra.mxu0 %v6826
  %v6994 = vpop.f32.mrf.mxu0
  %v6995 = vadd.f32 0.0, %v6994
  %v6996 = vpop.f32.mrf.mxu0
  %v6997 = vpop.f32.mrf.mxu0
  %v6998 = vadd.f32 0.0, %v6997
  %v6999 = vpop.f32.mrf.mxu0
  %7000 = vmatprep.mubr.bf16.mxu0 0
  %7001 = vmatmul.mubr.bf16.gmra.mxu0 %v6829
  %v7002 = vpop.f32.mrf.mxu0
  %v7003 = vadd.f32 0.0, %v7002
  %v7004 = vpop.f32.mrf.mxu0
  %v7005 = vpop.f32.mrf.mxu0
  %v7006 = vadd.f32 0.0, %v7005
  %v7007 = vpop.f32.mrf.mxu0
  %7008 = vmatprep.mubr.bf16.mxu0 0
  %7009 = vmatmul.mubr.bf16.gmra.mxu0 %v6832
  %v7010 = vpop.f32.mrf.mxu0
  %v7011 = vadd.f32 0.0, %v7010
  %v7012 = vpop.f32.mrf.mxu0
  %v7013 = vpop.f32.mrf.mxu0
  %v7014 = vadd.f32 0.0, %v7013
  %v7015 = vpop.f32.mrf.mxu0
  %7016 = vmatprep.mubr.bf16.mxu0 0
  %7017 = vmatmul.mubr.bf16.gmra.mxu0 %v6835
  %v7018 = vpop.f32.mrf.mxu0
  %v7019 = vadd.f32 0.0, %v7018
  %v7020 = vpop.f32.mrf.mxu0
  %v7021 = vpop.f32.mrf.mxu0
  %v7022 = vadd.f32 0.0, %v7021
  %v7023 = vpop.f32.mrf.mxu0
  %7024 = vmatprep.mubr.bf16.mxu0 0
  %7025 = vmatmul.mubr.bf16.gmra.mxu0 %v6838
  %v7026 = vpop.f32.mrf.mxu0
  %v7027 = vadd.f32 0.0, %v7026
  %v7028 = vpop.f32.mrf.mxu0
  %v7029 = vpop.f32.mrf.mxu0
  %v7030 = vadd.f32 0.0, %v7029
  %v7031 = vpop.f32.mrf.mxu0
  %7032 = vmatprep.mubr.bf16.mxu0 0
  %7033 = vmatmul.mubr.bf16.gmra.mxu0 %v6841
  %v7034 = vpop.f32.mrf.mxu0
  %v7035 = vadd.f32 0.0, %v7034
  %v7036 = vpop.f32.mrf.mxu0
  %v7037 = vpop.f32.mrf.mxu0
  %v7038 = vadd.f32 0.0, %v7037
  %v7039 = vpop.f32.mrf.mxu0
  %7040 = vmatprep.mubr.bf16.mxu0 0
  %7041 = vmatmul.mubr.bf16.gmra.mxu0 %v6844
  %v7042 = vpop.f32.mrf.mxu0
  %v7043 = vadd.f32 0.0, %v7042
  %v7044 = vpop.f32.mrf.mxu0
  %v7045 = vpop.f32.mrf.mxu0
  %v7046 = vadd.f32 0.0, %v7045
  %v7047 = vpop.f32.mrf.mxu0
  %7048 = vmatprep.mubr.bf16.mxu0 0
  %7049 = vmatmul.mubr.bf16.gmra.mxu0 %v6847
  %v7050 = vpop.f32.mrf.mxu0
  %v7051 = vadd.f32 0.0, %v7050
  %v7052 = vpop.f32.mrf.mxu0
  %v7053 = vpop.f32.mrf.mxu0
  %v7054 = vadd.f32 0.0, %v7053
  %v7055 = vpop.f32.mrf.mxu0
  %7056 = vmatprep.mubr.bf16.mxu0 0
  %7057 = vmatmul.mubr.bf16.gmra.mxu0 %v6850
  %v7058 = vpop.f32.mrf.mxu0
  %v7059 = vadd.f32 0.0, %v7058
  %v7060 = vpop.f32.mrf.mxu0
  %v7061 = vpop.f32.mrf.mxu0
  %v7062 = vadd.f32 0.0, %v7061
  %v7063 = vpop.f32.mrf.mxu0
  %7064 = vmatprep.mubr.bf16.mxu0 0
  %7065 = vmatmul.mubr.bf16.gmra.mxu0 %v6853
  %v7066 = vpop.f32.mrf.mxu0
  %v7067 = vadd.f32 0.0, %v7066
  %v7068 = vpop.f32.mrf.mxu0
  %v7069 = vpop.f32.mrf.mxu0
  %v7070 = vadd.f32 0.0, %v7069
  %v7071 = vpop.f32.mrf.mxu0
  %7072 = vmatprep.mubr.bf16.mxu0 0
  %7073 = vmatmul.mubr.bf16.gmra.mxu0 %v6856
  %v7074 = vpop.f32.mrf.mxu0
  %v7075 = vadd.f32 0.0, %v7074
  %v7076 = vpop.f32.mrf.mxu0
  %v7077 = vpop.f32.mrf.mxu0
  %v7078 = vadd.f32 0.0, %v7077
  %v7079 = vpop.f32.mrf.mxu0
  %7080 = vmatprep.mubr.bf16.mxu0 0
  %7081 = vmatmul.mubr.bf16.gmra.mxu0 %v6859
  %v7082 = vpop.f32.mrf.mxu0
  %v7083 = vadd.f32 0.0, %v7082
  %v7084 = vpop.f32.mrf.mxu0
  %v7085 = vpop.f32.mrf.mxu0
  %v7086 = vadd.f32 0.0, %v7085
  %v7087 = vpop.f32.mrf.mxu0
  %7088 = vmatprep.mubr.bf16.mxu0 0
  %7089 = vmatmul.mubr.bf16.gmra.mxu0 %v6862
  %v7090 = vpop.f32.mrf.mxu0
  %v7091 = vadd.f32 0.0, %v7090
  %v7092 = vpop.f32.mrf.mxu0
  %v7093 = vpop.f32.mrf.mxu0
  %v7094 = vadd.f32 0.0, %v7093
  %v7095 = vpop.f32.mrf.mxu0
  %7096 = vmatprep.mubr.bf16.mxu0 0
  %7097 = vmatmul.mubr.bf16.gmra.mxu0 %v6865
  %v7098 = vpop.f32.mrf.mxu0
  %v7099 = vadd.f32 0.0, %v7098
  %v7100 = vpop.f32.mrf.mxu0
  %v7101 = vpop.f32.mrf.mxu0
  %v7102 = vadd.f32 0.0, %v7101
  %v7103 = vpop.f32.mrf.mxu0
  %7104 = vmatprep.mubr.bf16.mxu0 0
  %7105 = vmatmul.mubr.bf16.gmra.mxu0 %v6868
  %v7106 = vpop.f32.mrf.mxu0
  %v7107 = vadd.f32 0.0, %v7106
  %v7108 = vpop.f32.mrf.mxu0
  %v7109 = vpop.f32.mrf.mxu0
  %v7110 = vadd.f32 0.0, %v7109
  %v7111 = vpop.f32.mrf.mxu0
  %7112 = vmatprep.mubr.bf16.mxu0 0
  %7113 = vmatmul.mubr.bf16.gmra.mxu0 %v6871
  %v7114 = vpop.f32.mrf.mxu0
  %v7115 = vadd.f32 0.0, %v7114
  %v7116 = vpop.f32.mrf.mxu0
  %v7117 = vpop.f32.mrf.mxu0
  %v7118 = vadd.f32 0.0, %v7117
  %v7119 = vpop.f32.mrf.mxu0
  %7120 = vmatprep.mubr.bf16.mxu0 0
  %7121 = vmatmul.mubr.bf16.gmra.mxu0 %v6874
  %v7122 = vpop.f32.mrf.mxu0
  %v7123 = vadd.f32 0.0, %v7122
  %v7124 = vpop.f32.mrf.mxu0
  %v7125 = vpop.f32.mrf.mxu0
  %v7126 = vadd.f32 0.0, %v7125
  %v7127 = vpop.f32.mrf.mxu0
  %7128 = vmatprep.mubr.bf16.mxu0 0
  %7129 = vmatmul.mubr.bf16.gmra.mxu0 %v6877
  %v7130 = vpop.f32.mrf.mxu0
  %v7131 = vadd.f32 0.0, %v7130
  %v7132 = vpop.f32.mrf.mxu0
  %v7133 = vpop.f32.mrf.mxu0
  %v7134 = vadd.f32 0.0, %v7133
  %v7135 = vpop.f32.mrf.mxu0
  %7136 = vmatprep.mubr.bf16.mxu0 0
  %7137 = vmatmul.mubr.bf16.gmra.mxu0 %v6880
  %v7138 = vpop.f32.mrf.mxu0
  %v7139 = vadd.f32 0.0, %v7138
  %v7140 = vpop.f32.mrf.mxu0
  %v7141 = vpop.f32.mrf.mxu0
  %v7142 = vadd.f32 0.0, %v7141
  %v7143 = vpop.f32.mrf.mxu0
  %7144 = vmatprep.mubr.bf16.mxu0 0
  %7145 = vmatmul.mubr.bf16.gmra.mxu0 %v6883
  %v7146 = vpop.f32.mrf.mxu0
  %v7147 = vadd.f32 0.0, %v7146
  %v7148 = vpop.f32.mrf.mxu0
  %v7149 = vpop.f32.mrf.mxu0
  %v7150 = vadd.f32 0.0, %v7149
  %v7151 = vpop.f32.mrf.mxu0
  %7152 = vmatprep.mubr.bf16.mxu0 0
  %7153 = vmatmul.mubr.bf16.gmra.mxu0 %v6886
  %v7154 = vpop.f32.mrf.mxu0
  %v7155 = vadd.f32 0.0, %v7154
  %v7156 = vpop.f32.mrf.mxu0
  %v7157 = vpop.f32.mrf.mxu0
  %v7158 = vadd.f32 0.0, %v7157
  %v7159 = vpop.f32.mrf.mxu0
  %7160 = vmatprep.mubr.bf16.mxu0 0
  %7161 = vmatmul.mubr.bf16.gmra.mxu0 %v6889
  %v7162 = vpop.f32.mrf.mxu0
  %v7163 = vadd.f32 0.0, %v7162
  %v7164 = vpop.f32.mrf.mxu0
  %v7165 = vpop.f32.mrf.mxu0
  %v7166 = vadd.f32 0.0, %v7165
  %v7167 = vpop.f32.mrf.mxu0
  %7168 = vmatprep.mubr.bf16.mxu0 0
  %7169 = vmatmul.mubr.bf16.gmra.mxu0 %v6892
  %v7170 = vpop.f32.mrf.mxu0
  %v7171 = vadd.f32 0.0, %v7170
  %v7172 = vpop.f32.mrf.mxu0
  %v7173 = vpop.f32.mrf.mxu0
  %v7174 = vadd.f32 0.0, %v7173
  %v7175 = vpop.f32.mrf.mxu0
  %7176 = vmatprep.mubr.bf16.mxu0 0
  %7177 = vmatmul.mubr.bf16.gmra.mxu0 %v6895
  %v7178 = vpop.f32.mrf.mxu0
  %v7179 = vadd.f32 0.0, %v7178
  %v7180 = vpop.f32.mrf.mxu0
  %v7181 = vpop.f32.mrf.mxu0
  %v7182 = vadd.f32 0.0, %v7181
  %v7183 = vpop.f32.mrf.mxu0
  %7184 = vmatprep.mubr.bf16.mxu0 0
  %7185 = vmatmul.mubr.bf16.gmra.mxu0 %v6898
  %v7186 = vpop.f32.mrf.mxu0
  %v7187 = vadd.f32 0.0, %v7186
  %v7188 = vpop.f32.mrf.mxu0
  %v7189 = vpop.f32.mrf.mxu0
  %v7190 = vadd.f32 0.0, %v7189
  %v7191 = vpop.f32.mrf.mxu0
  %7192 = vdwg.mxu0
  %v7193 = vsel %vm6294, %v6939, 0.0
  %v7194 = vsel %vm6294, %v6942, 0.0
  %v7195 = vadd.f32 %v7193, %v7194
  %v7196 = vsel %vm6294, %v6947, 0.0
  %v7197 = vadd.f32 %v7195, %v7196
  %v7198 = vsel %vm6294, %v6950, 0.0
  %v7199 = vadd.f32 %v7197, %v7198
  %v7200 = vsel %vm6294, %v6955, 0.0
  %v7201 = vadd.f32 %v7199, %v7200
  %v7202 = vsel %vm6294, %v6958, 0.0
  %v7203 = vadd.f32 %v7201, %v7202
  %v7204 = vsel %vm6294, %v6963, 0.0
  %v7205 = vadd.f32 %v7203, %v7204
  %v7206 = vsel %vm6294, %v6966, 0.0
  %v7207 = vadd.f32 %v7205, %v7206
  %v7208 = vsel %vm6294, %v6971, 0.0
  %v7209 = vadd.f32 %v7207, %v7208
  %v7210 = vsel %vm6294, %v6974, 0.0
  %v7211 = vadd.f32 %v7209, %v7210
  %v7212 = vsel %vm6294, %v6979, 0.0
  %v7213 = vadd.f32 %v7211, %v7212
  %v7214 = vsel %vm6294, %v6982, 0.0
  %v7215 = vadd.f32 %v7213, %v7214
  %v7216 = vsel %vm6294, %v6987, 0.0
  %v7217 = vadd.f32 %v7215, %v7216
  %v7218 = vsel %vm6294, %v6990, 0.0
  %v7219 = vadd.f32 %v7217, %v7218
  %v7220 = vsel %vm6294, %v6995, 0.0
  %v7221 = vadd.f32 %v7219, %v7220
  %v7222 = vsel %vm6294, %v6998, 0.0
  %v7223 = vadd.f32 %v7221, %v7222
  %v7224 = vsel %vm6294, %v7003, 0.0
  %v7225 = vadd.f32 %v7223, %v7224
  %v7226 = vsel %vm6294, %v7006, 0.0
  %v7227 = vadd.f32 %v7225, %v7226
  %v7228 = vsel %vm6294, %v7011, 0.0
  %v7229 = vadd.f32 %v7227, %v7228
  %v7230 = vsel %vm6294, %v7014, 0.0
  %v7231 = vadd.f32 %v7229, %v7230
  %v7232 = vsel %vm6294, %v7019, 0.0
  %v7233 = vadd.f32 %v7231, %v7232
  %v7234 = vsel %vm6294, %v7022, 0.0
  %v7235 = vadd.f32 %v7233, %v7234
  %v7236 = vsel %vm6294, %v7027, 0.0
  %v7237 = vadd.f32 %v7235, %v7236
  %v7238 = vsel %vm6294, %v7030, 0.0
  %v7239 = vadd.f32 %v7237, %v7238
  %v7240 = vsel %vm6294, %v7035, 0.0
  %v7241 = vadd.f32 %v7239, %v7240
  %v7242 = vsel %vm6294, %v7038, 0.0
  %v7243 = vadd.f32 %v7241, %v7242
  %v7244 = vsel %vm6294, %v7043, 0.0
  %v7245 = vadd.f32 %v7243, %v7244
  %v7246 = vsel %vm6294, %v7046, 0.0
  %v7247 = vadd.f32 %v7245, %v7246
  %v7248 = vsel %vm6294, %v7051, 0.0
  %v7249 = vadd.f32 %v7247, %v7248
  %v7250 = vsel %vm6294, %v7054, 0.0
  %v7251 = vadd.f32 %v7249, %v7250
  %v7252 = vsel %vm6294, %v7059, 0.0
  %v7253 = vadd.f32 %v7251, %v7252
  %v7254 = vsel %vm6294, %v7062, 0.0
  %v7255 = vadd.f32 %v7253, %v7254
  %v7256 = vsel %vm6294, %v7067, 0.0
  %v7257 = vadd.f32 %v7255, %v7256
  %v7258 = vsel %vm6294, %v7070, 0.0
  %v7259 = vadd.f32 %v7257, %v7258
  %v7260 = vsel %vm6294, %v7075, 0.0
  %v7261 = vadd.f32 %v7259, %v7260
  %v7262 = vsel %vm6294, %v7078, 0.0
  %v7263 = vadd.f32 %v7261, %v7262
  %v7264 = vsel %vm6294, %v7083, 0.0
  %v7265 = vadd.f32 %v7263, %v7264
  %v7266 = vsel %vm6294, %v7086, 0.0
  %v7267 = vadd.f32 %v7265, %v7266
  %v7268 = vsel %vm6294, %v7091, 0.0
  %v7269 = vadd.f32 %v7267, %v7268
  %v7270 = vsel %vm6294, %v7094, 0.0
  %v7271 = vadd.f32 %v7269, %v7270
  %v7272 = vsel %vm6294, %v7099, 0.0
  %v7273 = vadd.f32 %v7271, %v7272
  %v7274 = vsel %vm6294, %v7102, 0.0
  %v7275 = vadd.f32 %v7273, %v7274
  %v7276 = vsel %vm6294, %v7107, 0.0
  %v7277 = vadd.f32 %v7275, %v7276
  %v7278 = vsel %vm6294, %v7110, 0.0
  %v7279 = vadd.f32 %v7277, %v7278
  %v7280 = vsel %vm6294, %v7115, 0.0
  %v7281 = vadd.f32 %v7279, %v7280
  %v7282 = vsel %vm6294, %v7118, 0.0
  %v7283 = vadd.f32 %v7281, %v7282
  %v7284 = vsel %vm6294, %v7123, 0.0
  %v7285 = vadd.f32 %v7283, %v7284
  %v7286 = vsel %vm6294, %v7126, 0.0
  %v7287 = vadd.f32 %v7285, %v7286
  %v7288 = vsel %vm6294, %v7131, 0.0
  %v7289 = vadd.f32 %v7287, %v7288
  %v7290 = vsel %vm6294, %v7134, 0.0
  %v7291 = vadd.f32 %v7289, %v7290
  %v7292 = vsel %vm6294, %v7139, 0.0
  %v7293 = vadd.f32 %v7291, %v7292
  %v7294 = vsel %vm6294, %v7142, 0.0
  %v7295 = vadd.f32 %v7293, %v7294
  %v7296 = vsel %vm6294, %v7147, 0.0
  %v7297 = vadd.f32 %v7295, %v7296
  %v7298 = vsel %vm6294, %v7150, 0.0
  %v7299 = vadd.f32 %v7297, %v7298
  %v7300 = vsel %vm6294, %v7155, 0.0
  %v7301 = vadd.f32 %v7299, %v7300
  %v7302 = vsel %vm6294, %v7158, 0.0
  %v7303 = vadd.f32 %v7301, %v7302
  %v7304 = vsel %vm6294, %v7163, 0.0
  %v7305 = vadd.f32 %v7303, %v7304
  %v7306 = vsel %vm6294, %v7166, 0.0
  %v7307 = vadd.f32 %v7305, %v7306
  %v7308 = vsel %vm6294, %v7171, 0.0
  %v7309 = vadd.f32 %v7307, %v7308
  %v7310 = vsel %vm6294, %v7174, 0.0
  %v7311 = vadd.f32 %v7309, %v7310
  %v7312 = vsel %vm6294, %v7179, 0.0
  %v7313 = vadd.f32 %v7311, %v7312
  %v7314 = vsel %vm6294, %v7182, 0.0
  %v7315 = vadd.f32 %v7313, %v7314
  %v7316 = vsel %vm6294, %v7187, 0.0
  %v7317 = vadd.f32 %v7315, %v7316
  %v7318 = vsel %vm6294, %v7190, 0.0
  %v7319 = vadd.f32 %v7317, %v7318
  %v7320 = vrot.slane %v7319, 4
  %v7321 = vadd.f32 %v7319, %v7320
  %v7322 = vrot.slane %v7321, 2
  %v7323 = vadd.f32 %v7321, %v7322
  %v7324 = vrot.slane %v7323, 1
  %v7325 = vadd.f32 %v7323, %v7324
  %v7326 = vmul.f32 %v6939, %v6939
  %v7327 = vmul.f32 %v6942, %v6942
  %v7328 = vmul.f32 %v6947, %v6947
  %v7329 = vmul.f32 %v6950, %v6950
  %v7330 = vmul.f32 %v6955, %v6955
  %v7331 = vmul.f32 %v6958, %v6958
  %v7332 = vmul.f32 %v6963, %v6963
  %v7333 = vmul.f32 %v6966, %v6966
  %v7334 = vmul.f32 %v6971, %v6971
  %v7335 = vmul.f32 %v6974, %v6974
  %v7336 = vmul.f32 %v6979, %v6979
  %v7337 = vmul.f32 %v6982, %v6982
  %v7338 = vmul.f32 %v6987, %v6987
  %v7339 = vmul.f32 %v6990, %v6990
  %v7340 = vmul.f32 %v6995, %v6995
  %v7341 = vmul.f32 %v6998, %v6998
  %v7342 = vmul.f32 %v7003, %v7003
  %v7343 = vmul.f32 %v7006, %v7006
  %v7344 = vmul.f32 %v7011, %v7011
  %v7345 = vmul.f32 %v7014, %v7014
  %v7346 = vmul.f32 %v7019, %v7019
  %v7347 = vmul.f32 %v7022, %v7022
  %v7348 = vmul.f32 %v7027, %v7027
  %v7349 = vmul.f32 %v7030, %v7030
  %v7350 = vmul.f32 %v7035, %v7035
  %v7351 = vmul.f32 %v7038, %v7038
  %v7352 = vmul.f32 %v7043, %v7043
  %v7353 = vmul.f32 %v7046, %v7046
  %v7354 = vmul.f32 %v7051, %v7051
  %v7355 = vmul.f32 %v7054, %v7054
  %v7356 = vmul.f32 %v7059, %v7059
  %v7357 = vmul.f32 %v7062, %v7062
  %v7358 = vmul.f32 %v7067, %v7067
  %v7359 = vmul.f32 %v7070, %v7070
  %v7360 = vmul.f32 %v7075, %v7075
  %v7361 = vmul.f32 %v7078, %v7078
  %v7362 = vmul.f32 %v7083, %v7083
  %v7363 = vmul.f32 %v7086, %v7086
  %v7364 = vmul.f32 %v7091, %v7091
  %v7365 = vmul.f32 %v7094, %v7094
  %v7366 = vmul.f32 %v7099, %v7099
  %v7367 = vmul.f32 %v7102, %v7102
  %v7368 = vmul.f32 %v7107, %v7107
  %v7369 = vmul.f32 %v7110, %v7110
  %v7370 = vmul.f32 %v7115, %v7115
  %v7371 = vmul.f32 %v7118, %v7118
  %v7372 = vmul.f32 %v7123, %v7123
  %v7373 = vmul.f32 %v7126, %v7126
  %v7374 = vmul.f32 %v7131, %v7131
  %v7375 = vmul.f32 %v7134, %v7134
  %v7376 = vmul.f32 %v7139, %v7139
  %v7377 = vmul.f32 %v7142, %v7142
  %v7378 = vmul.f32 %v7147, %v7147
  %v7379 = vmul.f32 %v7150, %v7150
  %v7380 = vmul.f32 %v7155, %v7155
  %v7381 = vmul.f32 %v7158, %v7158
  %v7382 = vmul.f32 %v7163, %v7163
  %v7383 = vmul.f32 %v7166, %v7166
  %v7384 = vmul.f32 %v7171, %v7171
  %v7385 = vmul.f32 %v7174, %v7174
  %v7386 = vmul.f32 %v7179, %v7179
  %v7387 = vmul.f32 %v7182, %v7182
  %v7388 = vmul.f32 %v7187, %v7187
  %v7389 = vmul.f32 %v7190, %v7190
  %v7390 = vsel %vm6294, %v7326, 0.0
  %v7391 = vsel %vm6294, %v7327, 0.0
  %v7392 = vadd.f32 %v7390, %v7391
  %v7393 = vsel %vm6294, %v7328, 0.0
  %v7394 = vadd.f32 %v7392, %v7393
  %v7395 = vsel %vm6294, %v7329, 0.0
  %v7396 = vadd.f32 %v7394, %v7395
  %v7397 = vsel %vm6294, %v7330, 0.0
  %v7398 = vadd.f32 %v7396, %v7397
  %v7399 = vsel %vm6294, %v7331, 0.0
  %v7400 = vadd.f32 %v7398, %v7399
  %v7401 = vsel %vm6294, %v7332, 0.0
  %v7402 = vadd.f32 %v7400, %v7401
  %v7403 = vsel %vm6294, %v7333, 0.0
  %v7404 = vadd.f32 %v7402, %v7403
  %v7405 = vsel %vm6294, %v7334, 0.0
  %v7406 = vadd.f32 %v7404, %v7405
  %v7407 = vsel %vm6294, %v7335, 0.0
  %v7408 = vadd.f32 %v7406, %v7407
  %v7409 = vsel %vm6294, %v7336, 0.0
  %v7410 = vadd.f32 %v7408, %v7409
  %v7411 = vsel %vm6294, %v7337, 0.0
  %v7412 = vadd.f32 %v7410, %v7411
  %v7413 = vsel %vm6294, %v7338, 0.0
  %v7414 = vadd.f32 %v7412, %v7413
  %v7415 = vsel %vm6294, %v7339, 0.0
  %v7416 = vadd.f32 %v7414, %v7415
  %v7417 = vsel %vm6294, %v7340, 0.0
  %v7418 = vadd.f32 %v7416, %v7417
  %v7419 = vsel %vm6294, %v7341, 0.0
  %v7420 = vadd.f32 %v7418, %v7419
  %v7421 = vsel %vm6294, %v7342, 0.0
  %v7422 = vadd.f32 %v7420, %v7421
  %v7423 = vsel %vm6294, %v7343, 0.0
  %v7424 = vadd.f32 %v7422, %v7423
  %v7425 = vsel %vm6294, %v7344, 0.0
  %v7426 = vadd.f32 %v7424, %v7425
  %v7427 = vsel %vm6294, %v7345, 0.0
  %v7428 = vadd.f32 %v7426, %v7427
  %v7429 = vsel %vm6294, %v7346, 0.0
  %v7430 = vadd.f32 %v7428, %v7429
  %v7431 = vsel %vm6294, %v7347, 0.0
  %v7432 = vadd.f32 %v7430, %v7431
  %v7433 = vsel %vm6294, %v7348, 0.0
  %v7434 = vadd.f32 %v7432, %v7433
  %v7435 = vsel %vm6294, %v7349, 0.0
  %v7436 = vadd.f32 %v7434, %v7435
  %v7437 = vsel %vm6294, %v7350, 0.0
  %v7438 = vadd.f32 %v7436, %v7437
  %v7439 = vsel %vm6294, %v7351, 0.0
  %v7440 = vadd.f32 %v7438, %v7439
  %v7441 = vsel %vm6294, %v7352, 0.0
  %v7442 = vadd.f32 %v7440, %v7441
  %v7443 = vsel %vm6294, %v7353, 0.0
  %v7444 = vadd.f32 %v7442, %v7443
  %v7445 = vsel %vm6294, %v7354, 0.0
  %v7446 = vadd.f32 %v7444, %v7445
  %v7447 = vsel %vm6294, %v7355, 0.0
  %v7448 = vadd.f32 %v7446, %v7447
  %v7449 = vsel %vm6294, %v7356, 0.0
  %v7450 = vadd.f32 %v7448, %v7449
  %v7451 = vsel %vm6294, %v7357, 0.0
  %v7452 = vadd.f32 %v7450, %v7451
  %v7453 = vsel %vm6294, %v7358, 0.0
  %v7454 = vadd.f32 %v7452, %v7453
  %v7455 = vsel %vm6294, %v7359, 0.0
  %v7456 = vadd.f32 %v7454, %v7455
  %v7457 = vsel %vm6294, %v7360, 0.0
  %v7458 = vadd.f32 %v7456, %v7457
  %v7459 = vsel %vm6294, %v7361, 0.0
  %v7460 = vadd.f32 %v7458, %v7459
  %v7461 = vsel %vm6294, %v7362, 0.0
  %v7462 = vadd.f32 %v7460, %v7461
  %v7463 = vsel %vm6294, %v7363, 0.0
  %v7464 = vadd.f32 %v7462, %v7463
  %v7465 = vsel %vm6294, %v7364, 0.0
  %v7466 = vadd.f32 %v7464, %v7465
  %v7467 = vsel %vm6294, %v7365, 0.0
  %v7468 = vadd.f32 %v7466, %v7467
  %v7469 = vsel %vm6294, %v7366, 0.0
  %v7470 = vadd.f32 %v7468, %v7469
  %v7471 = vsel %vm6294, %v7367, 0.0
  %v7472 = vadd.f32 %v7470, %v7471
  %v7473 = vsel %vm6294, %v7368, 0.0
  %v7474 = vadd.f32 %v7472, %v7473
  %v7475 = vsel %vm6294, %v7369, 0.0
  %v7476 = vadd.f32 %v7474, %v7475
  %v7477 = vsel %vm6294, %v7370, 0.0
  %v7478 = vadd.f32 %v7476, %v7477
  %v7479 = vsel %vm6294, %v7371, 0.0
  %v7480 = vadd.f32 %v7478, %v7479
  %v7481 = vsel %vm6294, %v7372, 0.0
  %v7482 = vadd.f32 %v7480, %v7481
  %v7483 = vsel %vm6294, %v7373, 0.0
  %v7484 = vadd.f32 %v7482, %v7483
  %v7485 = vsel %vm6294, %v7374, 0.0
  %v7486 = vadd.f32 %v7484, %v7485
  %v7487 = vsel %vm6294, %v7375, 0.0
  %v7488 = vadd.f32 %v7486, %v7487
  %v7489 = vsel %vm6294, %v7376, 0.0
  %v7490 = vadd.f32 %v7488, %v7489
  %v7491 = vsel %vm6294, %v7377, 0.0
  %v7492 = vadd.f32 %v7490, %v7491
  %v7493 = vsel %vm6294, %v7378, 0.0
  %v7494 = vadd.f32 %v7492, %v7493
  %v7495 = vsel %vm6294, %v7379, 0.0
  %v7496 = vadd.f32 %v7494, %v7495
  %v7497 = vsel %vm6294, %v7380, 0.0
  %v7498 = vadd.f32 %v7496, %v7497
  %v7499 = vsel %vm6294, %v7381, 0.0
  %v7500 = vadd.f32 %v7498, %v7499
  %v7501 = vsel %vm6294, %v7382, 0.0
  %v7502 = vadd.f32 %v7500, %v7501
  %v7503 = vsel %vm6294, %v7383, 0.0
  %v7504 = vadd.f32 %v7502, %v7503
  %v7505 = vsel %vm6294, %v7384, 0.0
  %v7506 = vadd.f32 %v7504, %v7505
  %v7507 = vsel %vm6294, %v7385, 0.0
  %v7508 = vadd.f32 %v7506, %v7507
  %v7509 = vsel %vm6294, %v7386, 0.0
  %v7510 = vadd.f32 %v7508, %v7509
  %v7511 = vsel %vm6294, %v7387, 0.0
  %v7512 = vadd.f32 %v7510, %v7511
  %v7513 = vsel %vm6294, %v7388, 0.0
  %v7514 = vadd.f32 %v7512, %v7513
  %v7515 = vsel %vm6294, %v7389, 0.0
  %v7516 = vadd.f32 %v7514, %v7515
  %v7517 = vrot.slane %v7516, 4
  %v7518 = vadd.f32 %v7516, %v7517
  %v7519 = vrot.slane %v7518, 2
  %v7520 = vadd.f32 %v7518, %v7519
  %v7521 = vrot.slane %v7520, 1
  %v7522 = vadd.f32 %v7520, %v7521
  %v7523 = vmul.f32 %v7325, %v3702
  %v7524 = vmul.f32 %v7522, %v3702
  %v7525 = vmul.f32 %v7523, %v7523
  %v7526 = vsub.f32 %v7524, %v7525
  %v7527 = vmax.f32 %v7526, 0.0
  %v7528 = vadd.f32 %v7527, 1e-05
  %v7529 = vrsqrt.pop %v7528
  %v7530 = vmul.f32 %v3926, %v7529
  %v7531 = vmul.f32 %v7523, %v7530
  %v7532 = vsub.f32 %v3927, %v7531
  %v7534 = vlaneseq
  %v7535 = vshrl.u32 %v7534, 7
  %v7536 = vsub.s32 0, %v7535
  %v7537 = vrot.slane %v7530, %v7536
  %v7539 = vmul.f32 %v6939, %v7537
  %v7540 = vmul.f32 %v6942, %v7537
  %v7541 = vmul.f32 %v6947, %v7537
  %v7542 = vmul.f32 %v6950, %v7537
  %v7543 = vmul.f32 %v6955, %v7537
  %v7544 = vmul.f32 %v6958, %v7537
  %v7545 = vmul.f32 %v6963, %v7537
  %v7546 = vmul.f32 %v6966, %v7537
  %v7547 = vmul.f32 %v6971, %v7537
  %v7548 = vmul.f32 %v6974, %v7537
  %v7549 = vmul.f32 %v6979, %v7537
  %v7550 = vmul.f32 %v6982, %v7537
  %v7551 = vmul.f32 %v6987, %v7537
  %v7552 = vmul.f32 %v6990, %v7537
  %v7553 = vmul.f32 %v6995, %v7537
  %v7554 = vmul.f32 %v6998, %v7537
  %v7555 = vmul.f32 %v7003, %v7537
  %v7556 = vmul.f32 %v7006, %v7537
  %v7557 = vmul.f32 %v7011, %v7537
  %v7558 = vmul.f32 %v7014, %v7537
  %v7559 = vmul.f32 %v7019, %v7537
  %v7560 = vmul.f32 %v7022, %v7537
  %v7561 = vmul.f32 %v7027, %v7537
  %v7562 = vmul.f32 %v7030, %v7537
  %v7563 = vmul.f32 %v7035, %v7537
  %v7564 = vmul.f32 %v7038, %v7537
  %v7565 = vmul.f32 %v7043, %v7537
  %v7566 = vmul.f32 %v7046, %v7537
  %v7567 = vmul.f32 %v7051, %v7537
  %v7568 = vmul.f32 %v7054, %v7537
  %v7569 = vmul.f32 %v7059, %v7537
  %v7570 = vmul.f32 %v7062, %v7537
  %v7571 = vmul.f32 %v7067, %v7537
  %v7572 = vmul.f32 %v7070, %v7537
  %v7573 = vmul.f32 %v7075, %v7537
  %v7574 = vmul.f32 %v7078, %v7537
  %v7575 = vmul.f32 %v7083, %v7537
  %v7576 = vmul.f32 %v7086, %v7537
  %v7577 = vmul.f32 %v7091, %v7537
  %v7578 = vmul.f32 %v7094, %v7537
  %v7579 = vmul.f32 %v7099, %v7537
  %v7580 = vmul.f32 %v7102, %v7537
  %v7581 = vmul.f32 %v7107, %v7537
  %v7582 = vmul.f32 %v7110, %v7537
  %v7583 = vmul.f32 %v7115, %v7537
  %v7584 = vmul.f32 %v7118, %v7537
  %v7585 = vmul.f32 %v7123, %v7537
  %v7586 = vmul.f32 %v7126, %v7537
  %v7587 = vmul.f32 %v7131, %v7537
  %v7588 = vmul.f32 %v7134, %v7537
  %v7589 = vmul.f32 %v7139, %v7537
  %v7590 = vmul.f32 %v7142, %v7537
  %v7591 = vmul.f32 %v7147, %v7537
  %v7592 = vmul.f32 %v7150, %v7537
  %v7593 = vmul.f32 %v7155, %v7537
  %v7594 = vmul.f32 %v7158, %v7537
  %v7595 = vmul.f32 %v7163, %v7537
  %v7596 = vmul.f32 %v7166, %v7537
  %v7597 = vmul.f32 %v7171, %v7537
  %v7598 = vmul.f32 %v7174, %v7537
  %v7599 = vmul.f32 %v7179, %v7537
  %v7600 = vmul.f32 %v7182, %v7537
  %v7601 = vmul.f32 %v7187, %v7537
  %v7602 = vmul.f32 %v7190, %v7537
  %v7604 = vlaneseq
  %v7605 = vshrl.u32 %v7604, 7
  %v7606 = vsub.s32 0, %v7605
  %v7607 = vrot.slane %v7532, %v7606
  %v7609 = vadd.f32 %v7539, %v7607
  %v7610 = vadd.f32 %v7540, %v7607
  %v7611 = vadd.f32 %v7541, %v7607
  %v7612 = vadd.f32 %v7542, %v7607
  %v7613 = vadd.f32 %v7543, %v7607
  %v7614 = vadd.f32 %v7544, %v7607
  %v7615 = vadd.f32 %v7545, %v7607
  %v7616 = vadd.f32 %v7546, %v7607
  %v7617 = vadd.f32 %v7547, %v7607
  %v7618 = vadd.f32 %v7548, %v7607
  %v7619 = vadd.f32 %v7549, %v7607
  %v7620 = vadd.f32 %v7550, %v7607
  %v7621 = vadd.f32 %v7551, %v7607
  %v7622 = vadd.f32 %v7552, %v7607
  %v7623 = vadd.f32 %v7553, %v7607
  %v7624 = vadd.f32 %v7554, %v7607
  %v7625 = vadd.f32 %v7555, %v7607
  %v7626 = vadd.f32 %v7556, %v7607
  %v7627 = vadd.f32 %v7557, %v7607
  %v7628 = vadd.f32 %v7558, %v7607
  %v7629 = vadd.f32 %v7559, %v7607
  %v7630 = vadd.f32 %v7560, %v7607
  %v7631 = vadd.f32 %v7561, %v7607
  %v7632 = vadd.f32 %v7562, %v7607
  %v7633 = vadd.f32 %v7563, %v7607
  %v7634 = vadd.f32 %v7564, %v7607
  %v7635 = vadd.f32 %v7565, %v7607
  %v7636 = vadd.f32 %v7566, %v7607
  %v7637 = vadd.f32 %v7567, %v7607
  %v7638 = vadd.f32 %v7568, %v7607
  %v7639 = vadd.f32 %v7569, %v7607
  %v7640 = vadd.f32 %v7570, %v7607
  %v7641 = vadd.f32 %v7571, %v7607
  %v7642 = vadd.f32 %v7572, %v7607
  %v7643 = vadd.f32 %v7573, %v7607
  %v7644 = vadd.f32 %v7574, %v7607
  %v7645 = vadd.f32 %v7575, %v7607
  %v7646 = vadd.f32 %v7576, %v7607
  %v7647 = vadd.f32 %v7577, %v7607
  %v7648 = vadd.f32 %v7578, %v7607
  %v7649 = vadd.f32 %v7579, %v7607
  %v7650 = vadd.f32 %v7580, %v7607
  %v7651 = vadd.f32 %v7581, %v7607
  %v7652 = vadd.f32 %v7582, %v7607
  %v7653 = vadd.f32 %v7583, %v7607
  %v7654 = vadd.f32 %v7584, %v7607
  %v7655 = vadd.f32 %v7585, %v7607
  %v7656 = vadd.f32 %v7586, %v7607
  %v7657 = vadd.f32 %v7587, %v7607
  %v7658 = vadd.f32 %v7588, %v7607
  %v7659 = vadd.f32 %v7589, %v7607
  %v7660 = vadd.f32 %v7590, %v7607
  %v7661 = vadd.f32 %v7591, %v7607
  %v7662 = vadd.f32 %v7592, %v7607
  %v7663 = vadd.f32 %v7593, %v7607
  %v7664 = vadd.f32 %v7594, %v7607
  %v7665 = vadd.f32 %v7595, %v7607
  %v7666 = vadd.f32 %v7596, %v7607
  %v7667 = vadd.f32 %v7597, %v7607
  %v7668 = vadd.f32 %v7598, %v7607
  %v7669 = vadd.f32 %v7599, %v7607
  %v7670 = vadd.f32 %v7600, %v7607
  %v7671 = vadd.f32 %v7601, %v7607
  %v7672 = vadd.f32 %v7602, %v7607
  %v7673 = vmax.f32 %v7609, 0.0
  %v7674 = vmax.f32 %v7610, 0.0
  %v7675 = vmax.f32 %v7611, 0.0
  %v7676 = vmax.f32 %v7612, 0.0
  %v7677 = vmax.f32 %v7613, 0.0
  %v7678 = vmax.f32 %v7614, 0.0
  %v7679 = vmax.f32 %v7615, 0.0
  %v7680 = vmax.f32 %v7616, 0.0
  %v7681 = vmax.f32 %v7617, 0.0
  %v7682 = vmax.f32 %v7618, 0.0
  %v7683 = vmax.f32 %v7619, 0.0
  %v7684 = vmax.f32 %v7620, 0.0
  %v7685 = vmax.f32 %v7621, 0.0
  %v7686 = vmax.f32 %v7622, 0.0
  %v7687 = vmax.f32 %v7623, 0.0
  %v7688 = vmax.f32 %v7624, 0.0
  %v7689 = vmax.f32 %v7625, 0.0
  %v7690 = vmax.f32 %v7626, 0.0
  %v7691 = vmax.f32 %v7627, 0.0
  %v7692 = vmax.f32 %v7628, 0.0
  %v7693 = vmax.f32 %v7629, 0.0
  %v7694 = vmax.f32 %v7630, 0.0
  %v7695 = vmax.f32 %v7631, 0.0
  %v7696 = vmax.f32 %v7632, 0.0
  %v7697 = vmax.f32 %v7633, 0.0
  %v7698 = vmax.f32 %v7634, 0.0
  %v7699 = vmax.f32 %v7635, 0.0
  %v7700 = vmax.f32 %v7636, 0.0
  %v7701 = vmax.f32 %v7637, 0.0
  %v7702 = vmax.f32 %v7638, 0.0
  %v7703 = vmax.f32 %v7639, 0.0
  %v7704 = vmax.f32 %v7640, 0.0
  %v7705 = vmax.f32 %v7641, 0.0
  %v7706 = vmax.f32 %v7642, 0.0
  %v7707 = vmax.f32 %v7643, 0.0
  %v7708 = vmax.f32 %v7644, 0.0
  %v7709 = vmax.f32 %v7645, 0.0
  %v7710 = vmax.f32 %v7646, 0.0
  %v7711 = vmax.f32 %v7647, 0.0
  %v7712 = vmax.f32 %v7648, 0.0
  %v7713 = vmax.f32 %v7649, 0.0
  %v7714 = vmax.f32 %v7650, 0.0
  %v7715 = vmax.f32 %v7651, 0.0
  %v7716 = vmax.f32 %v7652, 0.0
  %v7717 = vmax.f32 %v7653, 0.0
  %v7718 = vmax.f32 %v7654, 0.0
  %v7719 = vmax.f32 %v7655, 0.0
  %v7720 = vmax.f32 %v7656, 0.0
  %v7721 = vmax.f32 %v7657, 0.0
  %v7722 = vmax.f32 %v7658, 0.0
  %v7723 = vmax.f32 %v7659, 0.0
  %v7724 = vmax.f32 %v7660, 0.0
  %v7725 = vmax.f32 %v7661, 0.0
  %v7726 = vmax.f32 %v7662, 0.0
  %v7727 = vmax.f32 %v7663, 0.0
  %v7728 = vmax.f32 %v7664, 0.0
  %v7729 = vmax.f32 %v7665, 0.0
  %v7730 = vmax.f32 %v7666, 0.0
  %v7731 = vmax.f32 %v7667, 0.0
  %v7732 = vmax.f32 %v7668, 0.0
  %v7733 = vmax.f32 %v7669, 0.0
  %v7734 = vmax.f32 %v7670, 0.0
  %v7735 = vmax.f32 %v7671, 0.0
  %v7736 = vmax.f32 %v7672, 0.0
  %v7737 = vld [vmem:[%s7] sm:$0xf]
  %v7738 = vld [vmem:[%s7 + $0x4] sm:$0xf]
  %v7739 = vld [vmem:[%s7 + $0x8] sm:$0xf]
  %v7740 = vld [vmem:[%s7 + $0xc] sm:$0xf]
  %v7741 = vld [vmem:[%s7 + $0x10] sm:$0xf]
  %v7742 = vld [vmem:[%s7 + $0x14] sm:$0xf]
  %v7743 = vld [vmem:[%s7 + $0x18] sm:$0xf]
  %v7744 = vld [vmem:[%s7 + $0x1c] sm:$0xf]
  %v7745 = vld [vmem:[%s7 + $0x20] sm:$0xf]
  %v7746 = vld [vmem:[%s7 + $0x24] sm:$0xf]
  %v7747 = vld [vmem:[%s7 + $0x28] sm:$0xf]
  %v7748 = vld [vmem:[%s7 + $0x2c] sm:$0xf]
  %v7749 = vld [vmem:[%s7 + $0x30] sm:$0xf]
  %v7750 = vld [vmem:[%s7 + $0x34] sm:$0xf]
  %v7751 = vld [vmem:[%s7 + $0x38] sm:$0xf]
  %v7752 = vld [vmem:[%s7 + $0x3c] sm:$0xf]
  %v7753 = vld [vmem:[%s7 + $0x40] sm:$0xf]
  %v7754 = vld [vmem:[%s7 + $0x44] sm:$0xf]
  %v7755 = vld [vmem:[%s8] sm:$0x1]
  %v7756 = vld [vmem:[%s9] sm:$0x1]
  %v7789 = vrot.slane %v7675, 1
  %v7790 = vrot.slane %v7673, 1
  %v7791 = vrot.slane %v7677, 1
  %v7792 = vrot.slane %v7679, 1
  %v7793 = vrot.slane %v7681, 1
  %v7794 = vrot.slane %v7683, 1
  %v7795 = vrot.slane %v7685, 1
  %v7796 = vrot.slane %v7687, 1
  %v7797 = vrot.slane %v7689, 1
  %v7798 = vrot.slane %v7691, 1
  %v7799 = vrot.slane %v7693, 1
  %v7800 = vrot.slane %v7695, 1
  %v7801 = vrot.slane %v7697, 1
  %v7802 = vrot.slane %v7699, 1
  %v7803 = vrot.slane %v7701, 1
  %v7804 = vrot.slane %v7703, 1
  %v7805 = vrot.slane %v7707, 1
  %v7806 = vrot.slane %v7705, 1
  %v7807 = vrot.slane %v7709, 1
  %v7808 = vrot.slane %v7711, 1
  %v7809 = vrot.slane %v7713, 1
  %v7810 = vrot.slane %v7715, 1
  %v7811 = vrot.slane %v7717, 1
  %v7812 = vrot.slane %v7719, 1
  %v7813 = vrot.slane %v7721, 1
  %v7814 = vrot.slane %v7723, 1
  %v7815 = vrot.slane %v7725, 1
  %v7816 = vrot.slane %v7727, 1
  %v7817 = vrot.slane %v7729, 1
  %v7818 = vrot.slane %v7731, 1
  %v7819 = vrot.slane %v7733, 1
  %v7820 = vrot.slane %v7735, 1
  %v7885 = vrot.slane %v7675, 7
  %v7886 = vrot.slane %v7676, 7
  %v7887 = vsel %vm243, %v7885, %v7886
  %v7888 = vrot.slane %v7673, 7
  %v7889 = vrot.slane %v7674, 7
  %v7890 = vsel %vm243, %v7888, %v7889
  %v7891 = vrot.slane %v7677, 7
  %v7892 = vrot.slane %v7678, 7
  %v7893 = vsel %vm243, %v7891, %v7892
  %v7894 = vrot.slane %v7679, 7
  %v7895 = vrot.slane %v7680, 7
  %v7896 = vsel %vm243, %v7894, %v7895
  %v7897 = vrot.slane %v7681, 7
  %v7898 = vrot.slane %v7682, 7
  %v7899 = vsel %vm243, %v7897, %v7898
  %v7900 = vrot.slane %v7683, 7
  %v7901 = vrot.slane %v7684, 7
  %v7902 = vsel %vm243, %v7900, %v7901
  %v7903 = vrot.slane %v7685, 7
  %v7904 = vrot.slane %v7686, 7
  %v7905 = vsel %vm243, %v7903, %v7904
  %v7906 = vrot.slane %v7687, 7
  %v7907 = vrot.slane %v7688, 7
  %v7908 = vsel %vm243, %v7906, %v7907
  %v7909 = vrot.slane %v7689, 7
  %v7910 = vrot.slane %v7690, 7
  %v7911 = vsel %vm243, %v7909, %v7910
  %v7912 = vrot.slane %v7691, 7
  %v7913 = vrot.slane %v7692, 7
  %v7914 = vsel %vm243, %v7912, %v7913
  %v7915 = vrot.slane %v7693, 7
  %v7916 = vrot.slane %v7694, 7
  %v7917 = vsel %vm243, %v7915, %v7916
  %v7918 = vrot.slane %v7695, 7
  %v7919 = vrot.slane %v7696, 7
  %v7920 = vsel %vm243, %v7918, %v7919
  %v7921 = vrot.slane %v7697, 7
  %v7922 = vrot.slane %v7698, 7
  %v7923 = vsel %vm243, %v7921, %v7922
  %v7924 = vrot.slane %v7699, 7
  %v7925 = vrot.slane %v7700, 7
  %v7926 = vsel %vm243, %v7924, %v7925
  %v7927 = vrot.slane %v7701, 7
  %v7928 = vrot.slane %v7702, 7
  %v7929 = vsel %vm243, %v7927, %v7928
  %v7930 = vrot.slane %v7703, 7
  %v7931 = vrot.slane %v7704, 7
  %v7932 = vsel %vm243, %v7930, %v7931
  %v7933 = vrot.slane %v7707, 7
  %v7934 = vrot.slane %v7708, 7
  %v7935 = vsel %vm243, %v7933, %v7934
  %v7936 = vrot.slane %v7705, 7
  %v7937 = vrot.slane %v7706, 7
  %v7938 = vsel %vm243, %v7936, %v7937
  %v7939 = vrot.slane %v7709, 7
  %v7940 = vrot.slane %v7710, 7
  %v7941 = vsel %vm243, %v7939, %v7940
  %v7942 = vrot.slane %v7711, 7
  %v7943 = vrot.slane %v7712, 7
  %v7944 = vsel %vm243, %v7942, %v7943
  %v7945 = vrot.slane %v7713, 7
  %v7946 = vrot.slane %v7714, 7
  %v7947 = vsel %vm243, %v7945, %v7946
  %v7948 = vrot.slane %v7715, 7
  %v7949 = vrot.slane %v7716, 7
  %v7950 = vsel %vm243, %v7948, %v7949
  %v7951 = vrot.slane %v7717, 7
  %v7952 = vrot.slane %v7718, 7
  %v7953 = vsel %vm243, %v7951, %v7952
  %v7954 = vrot.slane %v7719, 7
  %v7955 = vrot.slane %v7720, 7
  %v7956 = vsel %vm243, %v7954, %v7955
  %v7957 = vrot.slane %v7721, 7
  %v7958 = vrot.slane %v7722, 7
  %v7959 = vsel %vm243, %v7957, %v7958
  %v7960 = vrot.slane %v7723, 7
  %v7961 = vrot.slane %v7724, 7
  %v7962 = vsel %vm243, %v7960, %v7961
  %v7963 = vrot.slane %v7725, 7
  %v7964 = vrot.slane %v7726, 7
  %v7965 = vsel %vm243, %v7963, %v7964
  %v7966 = vrot.slane %v7727, 7
  %v7967 = vrot.slane %v7728, 7
  %v7968 = vsel %vm243, %v7966, %v7967
  %v7969 = vrot.slane %v7729, 7
  %v7970 = vrot.slane %v7730, 7
  %v7971 = vsel %vm243, %v7969, %v7970
  %v7972 = vrot.slane %v7731, 7
  %v7973 = vrot.slane %v7732, 7
  %v7974 = vsel %vm243, %v7972, %v7973
  %v7975 = vrot.slane %v7733, 7
  %v7976 = vrot.slane %v7734, 7
  %v7977 = vsel %vm243, %v7975, %v7976
  %v7978 = vrot.slane %v7735, 7
  %v7979 = vrot.slane %v7736, 7
  %v7980 = vsel %vm243, %v7978, %v7979
  %v8075 = vrot.slane %v7676, 5
  %v8076 = vrot.slane %v7674, 5
  %v8077 = vrot.slane %v7678, 5
  %v8078 = vrot.slane %v7680, 5
  %v8079 = vrot.slane %v7682, 5
  %v8080 = vrot.slane %v7684, 5
  %v8081 = vrot.slane %v7686, 5
  %v8082 = vrot.slane %v7688, 5
  %v8083 = vrot.slane %v7690, 5
  %v8084 = vrot.slane %v7692, 5
  %v8085 = vrot.slane %v7694, 5
  %v8086 = vrot.slane %v7696, 5
  %v8087 = vrot.slane %v7698, 5
  %v8088 = vrot.slane %v7700, 5
  %v8089 = vrot.slane %v7702, 5
  %v8090 = vrot.slane %v7704, 5
  %v8091 = vrot.slane %v7708, 5
  %v8092 = vrot.slane %v7706, 5
  %v8093 = vrot.slane %v7710, 5
  %v8094 = vrot.slane %v7712, 5
  %v8095 = vrot.slane %v7714, 5
  %v8096 = vrot.slane %v7716, 5
  %v8097 = vrot.slane %v7718, 5
  %v8098 = vrot.slane %v7720, 5
  %v8099 = vrot.slane %v7722, 5
  %v8100 = vrot.slane %v7724, 5
  %v8101 = vrot.slane %v7726, 5
  %v8102 = vrot.slane %v7728, 5
  %v8103 = vrot.slane %v7730, 5
  %v8104 = vrot.slane %v7732, 5
  %v8105 = vrot.slane %v7734, 5
  %v8106 = vrot.slane %v7736, 5
  %v8139 = vsel %vm243, %v7789, %v7885
  %v8140 = vsel %vm243, %v7790, %v7888
  %v8141 = vsel %vm243, %v7791, %v7891
  %v8142 = vsel %vm243, %v7792, %v7894
  %v8143 = vsel %vm243, %v7793, %v7897
  %v8144 = vsel %vm243, %v7794, %v7900
  %v8145 = vsel %vm243, %v7795, %v7903
  %v8146 = vsel %vm243, %v7796, %v7906
  %v8147 = vsel %vm243, %v7797, %v7909
  %v8148 = vsel %vm243, %v7798, %v7912
  %v8149 = vsel %vm243, %v7799, %v7915
  %v8150 = vsel %vm243, %v7800, %v7918
  %v8151 = vsel %vm243, %v7801, %v7921
  %v8152 = vsel %vm243, %v7802, %v7924
  %v8153 = vsel %vm243, %v7803, %v7927
  %v8154 = vsel %vm243, %v7804, %v7930
  %v8155 = vsel %vm243, %v7805, %v7933
  %v8156 = vsel %vm243, %v7806, %v7936
  %v8157 = vsel %vm243, %v7807, %v7939
  %v8158 = vsel %vm243, %v7808, %v7942
  %v8159 = vsel %vm243, %v7809, %v7945
  %v8160 = vsel %vm243, %v7810, %v7948
  %v8161 = vsel %vm243, %v7811, %v7951
  %v8162 = vsel %vm243, %v7812, %v7954
  %v8163 = vsel %vm243, %v7813, %v7957
  %v8164 = vsel %vm243, %v7814, %v7960
  %v8165 = vsel %vm243, %v7815, %v7963
  %v8166 = vsel %vm243, %v7816, %v7966
  %v8167 = vsel %vm243, %v7817, %v7969
  %v8168 = vsel %vm243, %v7818, %v7972
  %v8169 = vsel %vm243, %v7819, %v7975
  %v8170 = vsel %vm243, %v7820, %v7978
  %v8171 = vsel %vm243, %v7886, %v8075
  %v8172 = vsel %vm243, %v7889, %v8076
  %v8173 = vsel %vm243, %v7892, %v8077
  %v8174 = vsel %vm243, %v7895, %v8078
  %v8175 = vsel %vm243, %v7898, %v8079
  %v8176 = vsel %vm243, %v7901, %v8080
  %v8177 = vsel %vm243, %v7904, %v8081
  %v8178 = vsel %vm243, %v7907, %v8082
  %v8179 = vsel %vm243, %v7910, %v8083
  %v8180 = vsel %vm243, %v7913, %v8084
  %v8181 = vsel %vm243, %v7916, %v8085
  %v8182 = vsel %vm243, %v7919, %v8086
  %v8183 = vsel %vm243, %v7922, %v8087
  %v8184 = vsel %vm243, %v7925, %v8088
  %v8185 = vsel %vm243, %v7928, %v8089
  %v8186 = vsel %vm243, %v7931, %v8090
  %v8187 = vsel %vm243, %v7934, %v8091
  %v8188 = vsel %vm243, %v7937, %v8092
  %v8189 = vsel %vm243, %v7940, %v8093
  %v8190 = vsel %vm243, %v7943, %v8094
  %v8191 = vsel %vm243, %v7946, %v8095
  %v8192 = vsel %vm243, %v7949, %v8096
  %v8193 = vsel %vm243, %v7952, %v8097
  %v8194 = vsel %vm243, %v7955, %v8098
  %v8195 = vsel %vm243, %v7958, %v8099
  %v8196 = vsel %vm243, %v7961, %v8100
  %v8197 = vsel %vm243, %v7964, %v8101
  %v8198 = vsel %vm243, %v7967, %v8102
  %v8199 = vsel %vm243, %v7970, %v8103
  %v8200 = vsel %vm243, %v7973, %v8104
  %v8201 = vsel %vm243, %v7976, %v8105
  %v8202 = vsel %vm243, %v7979, %v8106
  %v8263 = vrot.slane %v8139, 1
  %v8264 = vrot.slane %v7887, 1
  %v8265 = vsel %vm622, %v8263, %v8264
  %v8266 = vrot.slane %v8171, 1
  %v8267 = vsel %vm622, %v8264, %v8266
  %v8268 = vrot.slane %v8140, 1
  %v8269 = vrot.slane %v7890, 1
  %v8270 = vsel %vm622, %v8268, %v8269
  %v8271 = vrot.slane %v8172, 1
  %v8272 = vsel %vm622, %v8269, %v8271
  %v8273 = vrot.slane %v8141, 1
  %v8274 = vrot.slane %v7893, 1
  %v8275 = vsel %vm622, %v8273, %v8274
  %v8276 = vrot.slane %v8173, 1
  %v8277 = vsel %vm622, %v8274, %v8276
  %v8278 = vrot.slane %v8142, 1
  %v8279 = vrot.slane %v7896, 1
  %v8280 = vsel %vm622, %v8278, %v8279
  %v8281 = vrot.slane %v8174, 1
  %v8282 = vsel %vm622, %v8279, %v8281
  %v8283 = vrot.slane %v8143, 1
  %v8284 = vrot.slane %v7899, 1
  %v8285 = vsel %vm622, %v8283, %v8284
  %v8286 = vrot.slane %v8175, 1
  %v8287 = vsel %vm622, %v8284, %v8286
  %v8288 = vrot.slane %v8144, 1
  %v8289 = vrot.slane %v7902, 1
  %v8290 = vsel %vm622, %v8288, %v8289
  %v8291 = vrot.slane %v8176, 1
  %v8292 = vsel %vm622, %v8289, %v8291
  %v8293 = vrot.slane %v8145, 1
  %v8294 = vrot.slane %v7905, 1
  %v8295 = vsel %vm622, %v8293, %v8294
  %v8296 = vrot.slane %v8177, 1
  %v8297 = vsel %vm622, %v8294, %v8296
  %v8298 = vrot.slane %v8146, 1
  %v8299 = vrot.slane %v7908, 1
  %v8300 = vsel %vm622, %v8298, %v8299
  %v8301 = vrot.slane %v8178, 1
  %v8302 = vsel %vm622, %v8299, %v8301
  %v8303 = vrot.slane %v8147, 1
  %v8304 = vrot.slane %v7911, 1
  %v8305 = vsel %vm622, %v8303, %v8304
  %v8306 = vrot.slane %v8179, 1
  %v8307 = vsel %vm622, %v8304, %v8306
  %v8308 = vrot.slane %v8148, 1
  %v8309 = vrot.slane %v7914, 1
  %v8310 = vsel %vm622, %v8308, %v8309
  %v8311 = vrot.slane %v8180, 1
  %v8312 = vsel %vm622, %v8309, %v8311
  %v8313 = vrot.slane %v8149, 1
  %v8314 = vrot.slane %v7917, 1
  %v8315 = vsel %vm622, %v8313, %v8314
  %v8316 = vrot.slane %v8181, 1
  %v8317 = vsel %vm622, %v8314, %v8316
  %v8318 = vrot.slane %v8150, 1
  %v8319 = vrot.slane %v7920, 1
  %v8320 = vsel %vm622, %v8318, %v8319
  %v8321 = vrot.slane %v8182, 1
  %v8322 = vsel %vm622, %v8319, %v8321
  %v8323 = vrot.slane %v8151, 1
  %v8324 = vrot.slane %v7923, 1
  %v8325 = vsel %vm622, %v8323, %v8324
  %v8326 = vrot.slane %v8183, 1
  %v8327 = vsel %vm622, %v8324, %v8326
  %v8328 = vrot.slane %v8152, 1
  %v8329 = vrot.slane %v7926, 1
  %v8330 = vsel %vm622, %v8328, %v8329
  %v8331 = vrot.slane %v8184, 1
  %v8332 = vsel %vm622, %v8329, %v8331
  %v8333 = vrot.slane %v8153, 1
  %v8334 = vrot.slane %v7929, 1
  %v8335 = vsel %vm622, %v8333, %v8334
  %v8336 = vrot.slane %v8185, 1
  %v8337 = vsel %vm622, %v8334, %v8336
  %v8338 = vrot.slane %v8155, 1
  %v8339 = vrot.slane %v7935, 1
  %v8340 = vsel %vm622, %v8338, %v8339
  %v8341 = vrot.slane %v8187, 1
  %v8342 = vsel %vm622, %v8339, %v8341
  %v8343 = vrot.slane %v8156, 1
  %v8344 = vrot.slane %v7938, 1
  %v8345 = vsel %vm622, %v8343, %v8344
  %v8346 = vrot.slane %v8188, 1
  %v8347 = vsel %vm622, %v8344, %v8346
  %v8348 = vrot.slane %v8157, 1
  %v8349 = vrot.slane %v7941, 1
  %v8350 = vsel %vm622, %v8348, %v8349
  %v8351 = vrot.slane %v8189, 1
  %v8352 = vsel %vm622, %v8349, %v8351
  %v8353 = vrot.slane %v8158, 1
  %v8354 = vrot.slane %v7944, 1
  %v8355 = vsel %vm622, %v8353, %v8354
  %v8356 = vrot.slane %v8190, 1
  %v8357 = vsel %vm622, %v8354, %v8356
  %v8358 = vrot.slane %v8159, 1
  %v8359 = vrot.slane %v7947, 1
  %v8360 = vsel %vm622, %v8358, %v8359
  %v8361 = vrot.slane %v8191, 1
  %v8362 = vsel %vm622, %v8359, %v8361
  %v8363 = vrot.slane %v8160, 1
  %v8364 = vrot.slane %v7950, 1
  %v8365 = vsel %vm622, %v8363, %v8364
  %v8366 = vrot.slane %v8192, 1
  %v8367 = vsel %vm622, %v8364, %v8366
  %v8368 = vrot.slane %v8161, 1
  %v8369 = vrot.slane %v7953, 1
  %v8370 = vsel %vm622, %v8368, %v8369
  %v8371 = vrot.slane %v8193, 1
  %v8372 = vsel %vm622, %v8369, %v8371
  %v8373 = vrot.slane %v8162, 1
  %v8374 = vrot.slane %v7956, 1
  %v8375 = vsel %vm622, %v8373, %v8374
  %v8376 = vrot.slane %v8194, 1
  %v8377 = vsel %vm622, %v8374, %v8376
  %v8378 = vrot.slane %v8163, 1
  %v8379 = vrot.slane %v7959, 1
  %v8380 = vsel %vm622, %v8378, %v8379
  %v8381 = vrot.slane %v8195, 1
  %v8382 = vsel %vm622, %v8379, %v8381
  %v8383 = vrot.slane %v8164, 1
  %v8384 = vrot.slane %v7962, 1
  %v8385 = vsel %vm622, %v8383, %v8384
  %v8386 = vrot.slane %v8196, 1
  %v8387 = vsel %vm622, %v8384, %v8386
  %v8388 = vrot.slane %v8165, 1
  %v8389 = vrot.slane %v7965, 1
  %v8390 = vsel %vm622, %v8388, %v8389
  %v8391 = vrot.slane %v8197, 1
  %v8392 = vsel %vm622, %v8389, %v8391
  %v8393 = vrot.slane %v8166, 1
  %v8394 = vrot.slane %v7968, 1
  %v8395 = vsel %vm622, %v8393, %v8394
  %v8396 = vrot.slane %v8198, 1
  %v8397 = vsel %vm622, %v8394, %v8396
  %v8398 = vrot.slane %v8167, 1
  %v8399 = vrot.slane %v7971, 1
  %v8400 = vsel %vm622, %v8398, %v8399
  %v8401 = vrot.slane %v8199, 1
  %v8402 = vsel %vm622, %v8399, %v8401
  %v8403 = vrot.slane %v8168, 1
  %v8404 = vrot.slane %v7974, 1
  %v8405 = vsel %vm622, %v8403, %v8404
  %v8406 = vrot.slane %v8200, 1
  %v8407 = vsel %vm622, %v8404, %v8406
  %v8408 = vrot.slane %v8169, 1
  %v8409 = vrot.slane %v7977, 1
  %v8410 = vsel %vm622, %v8408, %v8409
  %v8411 = vrot.slane %v8201, 1
  %v8412 = vsel %vm622, %v8409, %v8411
  %8413 = vrot.lane.b32.xlu0 %v8265, 16
  %v8414 = vpop.permute.xlu0 %8413
  %8415 = vrot.lane.b32.xlu0 %v8267, 16
  %v8416 = vpop.permute.xlu0 %8415
  %8417 = vrot.lane.b32.xlu0 %v8270, 16
  %v8418 = vpop.permute.xlu0 %8417
  %8419 = vrot.lane.b32.xlu0 %v8272, 16
  %v8420 = vpop.permute.xlu0 %8419
  %8421 = vrot.lane.b32.xlu0 %v8275, 16
  %v8422 = vpop.permute.xlu0 %8421
  %8423 = vrot.lane.b32.xlu0 %v8277, 16
  %v8424 = vpop.permute.xlu0 %8423
  %8425 = vrot.lane.b32.xlu0 %v8280, 16
  %v8426 = vpop.permute.xlu0 %8425
  %8427 = vrot.lane.b32.xlu0 %v8282, 16
  %v8428 = vpop.permute.xlu0 %8427
  %8429 = vrot.lane.b32.xlu0 %v8285, 16
  %v8430 = vpop.permute.xlu0 %8429
  %8431 = vrot.lane.b32.xlu0 %v8287, 16
  %v8432 = vpop.permute.xlu0 %8431
  %8433 = vrot.lane.b32.xlu0 %v8290, 16
  %v8434 = vpop.permute.xlu0 %8433
  %8435 = vrot.lane.b32.xlu0 %v8292, 16
  %v8436 = vpop.permute.xlu0 %8435
  %8437 = vrot.lane.b32.xlu0 %v8295, 16
  %v8438 = vpop.permute.xlu0 %8437
  %8439 = vrot.lane.b32.xlu0 %v8297, 16
  %v8440 = vpop.permute.xlu0 %8439
  %8441 = vrot.lane.b32.xlu0 %v8300, 16
  %v8442 = vpop.permute.xlu0 %8441
  %8443 = vrot.lane.b32.xlu0 %v8302, 16
  %v8444 = vpop.permute.xlu0 %8443
  %8445 = vrot.lane.b32.xlu0 %v8305, 16
  %v8446 = vpop.permute.xlu0 %8445
  %8447 = vrot.lane.b32.xlu0 %v8307, 16
  %v8448 = vpop.permute.xlu0 %8447
  %8449 = vrot.lane.b32.xlu0 %v8310, 16
  %v8450 = vpop.permute.xlu0 %8449
  %8451 = vrot.lane.b32.xlu0 %v8312, 16
  %v8452 = vpop.permute.xlu0 %8451
  %8453 = vrot.lane.b32.xlu0 %v8315, 16
  %v8454 = vpop.permute.xlu0 %8453
  %8455 = vrot.lane.b32.xlu0 %v8317, 16
  %v8456 = vpop.permute.xlu0 %8455
  %8457 = vrot.lane.b32.xlu0 %v8320, 16
  %v8458 = vpop.permute.xlu0 %8457
  %8459 = vrot.lane.b32.xlu0 %v8322, 16
  %v8460 = vpop.permute.xlu0 %8459
  %8461 = vrot.lane.b32.xlu0 %v8325, 16
  %v8462 = vpop.permute.xlu0 %8461
  %8463 = vrot.lane.b32.xlu0 %v8327, 16
  %v8464 = vpop.permute.xlu0 %8463
  %8465 = vrot.lane.b32.xlu0 %v8330, 16
  %v8466 = vpop.permute.xlu0 %8465
  %8467 = vrot.lane.b32.xlu0 %v8332, 16
  %v8468 = vpop.permute.xlu0 %8467
  %8469 = vrot.lane.b32.xlu0 %v8335, 16
  %v8470 = vpop.permute.xlu0 %8469
  %8471 = vrot.lane.b32.xlu0 %v8337, 16
  %v8472 = vpop.permute.xlu0 %8471
  %8473 = vrot.lane.b32.xlu0 %v8340, 16
  %v8474 = vpop.permute.xlu0 %8473
  %8475 = vrot.lane.b32.xlu0 %v8342, 16
  %v8476 = vpop.permute.xlu0 %8475
  %8477 = vrot.lane.b32.xlu0 %v8345, 16
  %v8478 = vpop.permute.xlu0 %8477
  %8479 = vrot.lane.b32.xlu0 %v8347, 16
  %v8480 = vpop.permute.xlu0 %8479
  %8481 = vrot.lane.b32.xlu0 %v8350, 16
  %v8482 = vpop.permute.xlu0 %8481
  %8483 = vrot.lane.b32.xlu0 %v8352, 16
  %v8484 = vpop.permute.xlu0 %8483
  %8485 = vrot.lane.b32.xlu0 %v8355, 16
  %v8486 = vpop.permute.xlu0 %8485
  %8487 = vrot.lane.b32.xlu0 %v8357, 16
  %v8488 = vpop.permute.xlu0 %8487
  %8489 = vrot.lane.b32.xlu0 %v8360, 16
  %v8490 = vpop.permute.xlu0 %8489
  %8491 = vrot.lane.b32.xlu0 %v8362, 16
  %v8492 = vpop.permute.xlu0 %8491
  %8493 = vrot.lane.b32.xlu0 %v8365, 16
  %v8494 = vpop.permute.xlu0 %8493
  %8495 = vrot.lane.b32.xlu0 %v8367, 16
  %v8496 = vpop.permute.xlu0 %8495
  %8497 = vrot.lane.b32.xlu0 %v8370, 16
  %v8498 = vpop.permute.xlu0 %8497
  %8499 = vrot.lane.b32.xlu0 %v8372, 16
  %v8500 = vpop.permute.xlu0 %8499
  %8501 = vrot.lane.b32.xlu0 %v8375, 16
  %v8502 = vpop.permute.xlu0 %8501
  %8503 = vrot.lane.b32.xlu0 %v8377, 16
  %v8504 = vpop.permute.xlu0 %8503
  %8505 = vrot.lane.b32.xlu0 %v8380, 16
  %v8506 = vpop.permute.xlu0 %8505
  %8507 = vrot.lane.b32.xlu0 %v8382, 16
  %v8508 = vpop.permute.xlu0 %8507
  %8509 = vrot.lane.b32.xlu0 %v8385, 16
  %v8510 = vpop.permute.xlu0 %8509
  %8511 = vrot.lane.b32.xlu0 %v8387, 16
  %v8512 = vpop.permute.xlu0 %8511
  %8513 = vrot.lane.b32.xlu0 %v8390, 16
  %v8514 = vpop.permute.xlu0 %8513
  %8515 = vrot.lane.b32.xlu0 %v8392, 16
  %v8516 = vpop.permute.xlu0 %8515
  %8517 = vrot.lane.b32.xlu0 %v8395, 16
  %v8518 = vpop.permute.xlu0 %8517
  %8519 = vrot.lane.b32.xlu0 %v8397, 16
  %v8520 = vpop.permute.xlu0 %8519
  %8521 = vrot.lane.b32.xlu0 %v8400, 16
  %v8522 = vpop.permute.xlu0 %8521
  %8523 = vrot.lane.b32.xlu0 %v8402, 16
  %v8524 = vpop.permute.xlu0 %8523
  %8525 = vrot.lane.b32.xlu0 %v8405, 16
  %v8526 = vpop.permute.xlu0 %8525
  %8527 = vrot.lane.b32.xlu0 %v8407, 16
  %v8528 = vpop.permute.xlu0 %8527
  %8529 = vrot.lane.b32.xlu0 %v8410, 16
  %v8530 = vpop.permute.xlu0 %8529
  %8531 = vrot.lane.b32.xlu0 %v8412, 16
  %v8532 = vpop.permute.xlu0 %8531
  %v8593 = vrot.slane %v8139, 2
  %v8594 = vrot.slane %v7887, 2
  %v8595 = vsel %vm953, %v8593, %v8594
  %v8596 = vrot.slane %v8171, 2
  %v8597 = vsel %vm953, %v8594, %v8596
  %v8598 = vrot.slane %v8140, 2
  %v8599 = vrot.slane %v7890, 2
  %v8600 = vsel %vm953, %v8598, %v8599
  %v8601 = vrot.slane %v8172, 2
  %v8602 = vsel %vm953, %v8599, %v8601
  %v8603 = vrot.slane %v8141, 2
  %v8604 = vrot.slane %v7893, 2
  %v8605 = vsel %vm953, %v8603, %v8604
  %v8606 = vrot.slane %v8173, 2
  %v8607 = vsel %vm953, %v8604, %v8606
  %v8608 = vrot.slane %v8142, 2
  %v8609 = vrot.slane %v7896, 2
  %v8610 = vsel %vm953, %v8608, %v8609
  %v8611 = vrot.slane %v8174, 2
  %v8612 = vsel %vm953, %v8609, %v8611
  %v8613 = vrot.slane %v8143, 2
  %v8614 = vrot.slane %v7899, 2
  %v8615 = vsel %vm953, %v8613, %v8614
  %v8616 = vrot.slane %v8175, 2
  %v8617 = vsel %vm953, %v8614, %v8616
  %v8618 = vrot.slane %v8144, 2
  %v8619 = vrot.slane %v7902, 2
  %v8620 = vsel %vm953, %v8618, %v8619
  %v8621 = vrot.slane %v8176, 2
  %v8622 = vsel %vm953, %v8619, %v8621
  %v8623 = vrot.slane %v8145, 2
  %v8624 = vrot.slane %v7905, 2
  %v8625 = vsel %vm953, %v8623, %v8624
  %v8626 = vrot.slane %v8177, 2
  %v8627 = vsel %vm953, %v8624, %v8626
  %v8628 = vrot.slane %v8146, 2
  %v8629 = vrot.slane %v7908, 2
  %v8630 = vsel %vm953, %v8628, %v8629
  %v8631 = vrot.slane %v8178, 2
  %v8632 = vsel %vm953, %v8629, %v8631
  %v8633 = vrot.slane %v8147, 2
  %v8634 = vrot.slane %v7911, 2
  %v8635 = vsel %vm953, %v8633, %v8634
  %v8636 = vrot.slane %v8179, 2
  %v8637 = vsel %vm953, %v8634, %v8636
  %v8638 = vrot.slane %v8148, 2
  %v8639 = vrot.slane %v7914, 2
  %v8640 = vsel %vm953, %v8638, %v8639
  %v8641 = vrot.slane %v8180, 2
  %v8642 = vsel %vm953, %v8639, %v8641
  %v8643 = vrot.slane %v8149, 2
  %v8644 = vrot.slane %v7917, 2
  %v8645 = vsel %vm953, %v8643, %v8644
  %v8646 = vrot.slane %v8181, 2
  %v8647 = vsel %vm953, %v8644, %v8646
  %v8648 = vrot.slane %v8150, 2
  %v8649 = vrot.slane %v7920, 2
  %v8650 = vsel %vm953, %v8648, %v8649
  %v8651 = vrot.slane %v8182, 2
  %v8652 = vsel %vm953, %v8649, %v8651
  %v8653 = vrot.slane %v8151, 2
  %v8654 = vrot.slane %v7923, 2
  %v8655 = vsel %vm953, %v8653, %v8654
  %v8656 = vrot.slane %v8183, 2
  %v8657 = vsel %vm953, %v8654, %v8656
  %v8658 = vrot.slane %v8152, 2
  %v8659 = vrot.slane %v7926, 2
  %v8660 = vsel %vm953, %v8658, %v8659
  %v8661 = vrot.slane %v8184, 2
  %v8662 = vsel %vm953, %v8659, %v8661
  %v8663 = vrot.slane %v8153, 2
  %v8664 = vrot.slane %v7929, 2
  %v8665 = vsel %vm953, %v8663, %v8664
  %v8666 = vrot.slane %v8185, 2
  %v8667 = vsel %vm953, %v8664, %v8666
  %v8668 = vrot.slane %v8155, 2
  %v8669 = vrot.slane %v7935, 2
  %v8670 = vsel %vm953, %v8668, %v8669
  %v8671 = vrot.slane %v8187, 2
  %v8672 = vsel %vm953, %v8669, %v8671
  %v8673 = vrot.slane %v8156, 2
  %v8674 = vrot.slane %v7938, 2
  %v8675 = vsel %vm953, %v8673, %v8674
  %v8676 = vrot.slane %v8188, 2
  %v8677 = vsel %vm953, %v8674, %v8676
  %v8678 = vrot.slane %v8157, 2
  %v8679 = vrot.slane %v7941, 2
  %v8680 = vsel %vm953, %v8678, %v8679
  %v8681 = vrot.slane %v8189, 2
  %v8682 = vsel %vm953, %v8679, %v8681
  %v8683 = vrot.slane %v8158, 2
  %v8684 = vrot.slane %v7944, 2
  %v8685 = vsel %vm953, %v8683, %v8684
  %v8686 = vrot.slane %v8190, 2
  %v8687 = vsel %vm953, %v8684, %v8686
  %v8688 = vrot.slane %v8159, 2
  %v8689 = vrot.slane %v7947, 2
  %v8690 = vsel %vm953, %v8688, %v8689
  %v8691 = vrot.slane %v8191, 2
  %v8692 = vsel %vm953, %v8689, %v8691
  %v8693 = vrot.slane %v8160, 2
  %v8694 = vrot.slane %v7950, 2
  %v8695 = vsel %vm953, %v8693, %v8694
  %v8696 = vrot.slane %v8192, 2
  %v8697 = vsel %vm953, %v8694, %v8696
  %v8698 = vrot.slane %v8161, 2
  %v8699 = vrot.slane %v7953, 2
  %v8700 = vsel %vm953, %v8698, %v8699
  %v8701 = vrot.slane %v8193, 2
  %v8702 = vsel %vm953, %v8699, %v8701
  %v8703 = vrot.slane %v8162, 2
  %v8704 = vrot.slane %v7956, 2
  %v8705 = vsel %vm953, %v8703, %v8704
  %v8706 = vrot.slane %v8194, 2
  %v8707 = vsel %vm953, %v8704, %v8706
  %v8708 = vrot.slane %v8163, 2
  %v8709 = vrot.slane %v7959, 2
  %v8710 = vsel %vm953, %v8708, %v8709
  %v8711 = vrot.slane %v8195, 2
  %v8712 = vsel %vm953, %v8709, %v8711
  %v8713 = vrot.slane %v8164, 2
  %v8714 = vrot.slane %v7962, 2
  %v8715 = vsel %vm953, %v8713, %v8714
  %v8716 = vrot.slane %v8196, 2
  %v8717 = vsel %vm953, %v8714, %v8716
  %v8718 = vrot.slane %v8165, 2
  %v8719 = vrot.slane %v7965, 2
  %v8720 = vsel %vm953, %v8718, %v8719
  %v8721 = vrot.slane %v8197, 2
  %v8722 = vsel %vm953, %v8719, %v8721
  %v8723 = vrot.slane %v8166, 2
  %v8724 = vrot.slane %v7968, 2
  %v8725 = vsel %vm953, %v8723, %v8724
  %v8726 = vrot.slane %v8198, 2
  %v8727 = vsel %vm953, %v8724, %v8726
  %v8728 = vrot.slane %v8167, 2
  %v8729 = vrot.slane %v7971, 2
  %v8730 = vsel %vm953, %v8728, %v8729
  %v8731 = vrot.slane %v8199, 2
  %v8732 = vsel %vm953, %v8729, %v8731
  %v8733 = vrot.slane %v8168, 2
  %v8734 = vrot.slane %v7974, 2
  %v8735 = vsel %vm953, %v8733, %v8734
  %v8736 = vrot.slane %v8200, 2
  %v8737 = vsel %vm953, %v8734, %v8736
  %v8738 = vrot.slane %v8169, 2
  %v8739 = vrot.slane %v7977, 2
  %v8740 = vsel %vm953, %v8738, %v8739
  %v8741 = vrot.slane %v8201, 2
  %v8742 = vsel %vm953, %v8739, %v8741
  %8743 = vrot.lane.b32.xlu0 %v8595, 32
  %v8744 = vpop.permute.xlu0 %8743
  %8745 = vrot.lane.b32.xlu0 %v8597, 32
  %v8746 = vpop.permute.xlu0 %8745
  %8747 = vrot.lane.b32.xlu0 %v8600, 32
  %v8748 = vpop.permute.xlu0 %8747
  %8749 = vrot.lane.b32.xlu0 %v8602, 32
  %v8750 = vpop.permute.xlu0 %8749
  %8751 = vrot.lane.b32.xlu0 %v8605, 32
  %v8752 = vpop.permute.xlu0 %8751
  %8753 = vrot.lane.b32.xlu0 %v8607, 32
  %v8754 = vpop.permute.xlu0 %8753
  %8755 = vrot.lane.b32.xlu0 %v8610, 32
  %v8756 = vpop.permute.xlu0 %8755
  %8757 = vrot.lane.b32.xlu0 %v8612, 32
  %v8758 = vpop.permute.xlu0 %8757
  %8759 = vrot.lane.b32.xlu0 %v8615, 32
  %v8760 = vpop.permute.xlu0 %8759
  %8761 = vrot.lane.b32.xlu0 %v8617, 32
  %v8762 = vpop.permute.xlu0 %8761
  %8763 = vrot.lane.b32.xlu0 %v8620, 32
  %v8764 = vpop.permute.xlu0 %8763
  %8765 = vrot.lane.b32.xlu0 %v8622, 32
  %v8766 = vpop.permute.xlu0 %8765
  %8767 = vrot.lane.b32.xlu0 %v8625, 32
  %v8768 = vpop.permute.xlu0 %8767
  %8769 = vrot.lane.b32.xlu0 %v8627, 32
  %v8770 = vpop.permute.xlu0 %8769
  %8771 = vrot.lane.b32.xlu0 %v8630, 32
  %v8772 = vpop.permute.xlu0 %8771
  %8773 = vrot.lane.b32.xlu0 %v8632, 32
  %v8774 = vpop.permute.xlu0 %8773
  %8775 = vrot.lane.b32.xlu0 %v8635, 32
  %v8776 = vpop.permute.xlu0 %8775
  %8777 = vrot.lane.b32.xlu0 %v8637, 32
  %v8778 = vpop.permute.xlu0 %8777
  %8779 = vrot.lane.b32.xlu0 %v8640, 32
  %v8780 = vpop.permute.xlu0 %8779
  %8781 = vrot.lane.b32.xlu0 %v8642, 32
  %v8782 = vpop.permute.xlu0 %8781
  %8783 = vrot.lane.b32.xlu0 %v8645, 32
  %v8784 = vpop.permute.xlu0 %8783
  %8785 = vrot.lane.b32.xlu0 %v8647, 32
  %v8786 = vpop.permute.xlu0 %8785
  %8787 = vrot.lane.b32.xlu0 %v8650, 32
  %v8788 = vpop.permute.xlu0 %8787
  %8789 = vrot.lane.b32.xlu0 %v8652, 32
  %v8790 = vpop.permute.xlu0 %8789
  %8791 = vrot.lane.b32.xlu0 %v8655, 32
  %v8792 = vpop.permute.xlu0 %8791
  %8793 = vrot.lane.b32.xlu0 %v8657, 32
  %v8794 = vpop.permute.xlu0 %8793
  %8795 = vrot.lane.b32.xlu0 %v8660, 32
  %v8796 = vpop.permute.xlu0 %8795
  %8797 = vrot.lane.b32.xlu0 %v8662, 32
  %v8798 = vpop.permute.xlu0 %8797
  %8799 = vrot.lane.b32.xlu0 %v8665, 32
  %v8800 = vpop.permute.xlu0 %8799
  %8801 = vrot.lane.b32.xlu0 %v8667, 32
  %v8802 = vpop.permute.xlu0 %8801
  %8803 = vrot.lane.b32.xlu0 %v8670, 32
  %v8804 = vpop.permute.xlu0 %8803
  %8805 = vrot.lane.b32.xlu0 %v8672, 32
  %v8806 = vpop.permute.xlu0 %8805
  %8807 = vrot.lane.b32.xlu0 %v8675, 32
  %v8808 = vpop.permute.xlu0 %8807
  %8809 = vrot.lane.b32.xlu0 %v8677, 32
  %v8810 = vpop.permute.xlu0 %8809
  %8811 = vrot.lane.b32.xlu0 %v8680, 32
  %v8812 = vpop.permute.xlu0 %8811
  %8813 = vrot.lane.b32.xlu0 %v8682, 32
  %v8814 = vpop.permute.xlu0 %8813
  %8815 = vrot.lane.b32.xlu0 %v8685, 32
  %v8816 = vpop.permute.xlu0 %8815
  %8817 = vrot.lane.b32.xlu0 %v8687, 32
  %v8818 = vpop.permute.xlu0 %8817
  %8819 = vrot.lane.b32.xlu0 %v8690, 32
  %v8820 = vpop.permute.xlu0 %8819
  %8821 = vrot.lane.b32.xlu0 %v8692, 32
  %v8822 = vpop.permute.xlu0 %8821
  %8823 = vrot.lane.b32.xlu0 %v8695, 32
  %v8824 = vpop.permute.xlu0 %8823
  %8825 = vrot.lane.b32.xlu0 %v8697, 32
  %v8826 = vpop.permute.xlu0 %8825
  %8827 = vrot.lane.b32.xlu0 %v8700, 32
  %v8828 = vpop.permute.xlu0 %8827
  %8829 = vrot.lane.b32.xlu0 %v8702, 32
  %v8830 = vpop.permute.xlu0 %8829
  %8831 = vrot.lane.b32.xlu0 %v8705, 32
  %v8832 = vpop.permute.xlu0 %8831
  %8833 = vrot.lane.b32.xlu0 %v8707, 32
  %v8834 = vpop.permute.xlu0 %8833
  %8835 = vrot.lane.b32.xlu0 %v8710, 32
  %v8836 = vpop.permute.xlu0 %8835
  %8837 = vrot.lane.b32.xlu0 %v8712, 32
  %v8838 = vpop.permute.xlu0 %8837
  %8839 = vrot.lane.b32.xlu0 %v8715, 32
  %v8840 = vpop.permute.xlu0 %8839
  %8841 = vrot.lane.b32.xlu0 %v8717, 32
  %v8842 = vpop.permute.xlu0 %8841
  %8843 = vrot.lane.b32.xlu0 %v8720, 32
  %v8844 = vpop.permute.xlu0 %8843
  %8845 = vrot.lane.b32.xlu0 %v8722, 32
  %v8846 = vpop.permute.xlu0 %8845
  %8847 = vrot.lane.b32.xlu0 %v8725, 32
  %v8848 = vpop.permute.xlu0 %8847
  %8849 = vrot.lane.b32.xlu0 %v8727, 32
  %v8850 = vpop.permute.xlu0 %8849
  %8851 = vrot.lane.b32.xlu0 %v8730, 32
  %v8852 = vpop.permute.xlu0 %8851
  %8853 = vrot.lane.b32.xlu0 %v8732, 32
  %v8854 = vpop.permute.xlu0 %8853
  %8855 = vrot.lane.b32.xlu0 %v8735, 32
  %v8856 = vpop.permute.xlu0 %8855
  %8857 = vrot.lane.b32.xlu0 %v8737, 32
  %v8858 = vpop.permute.xlu0 %8857
  %8859 = vrot.lane.b32.xlu0 %v8740, 32
  %v8860 = vpop.permute.xlu0 %8859
  %8861 = vrot.lane.b32.xlu0 %v8742, 32
  %v8862 = vpop.permute.xlu0 %8861
  %8925 = vrot.lane.b32.xlu0 %v8140, 48
  %v8926 = vpop.permute.xlu0 %8925
  %8927 = vrot.lane.b32.xlu0 %v7890, 48
  %v8928 = vpop.permute.xlu0 %8927
  %8929 = vrot.lane.b32.xlu0 %v8139, 48
  %v8930 = vpop.permute.xlu0 %8929
  %8931 = vrot.lane.b32.xlu0 %v7887, 48
  %v8932 = vpop.permute.xlu0 %8931
  %8933 = vrot.lane.b32.xlu0 %v8141, 48
  %v8934 = vpop.permute.xlu0 %8933
  %8935 = vrot.lane.b32.xlu0 %v7893, 48
  %v8936 = vpop.permute.xlu0 %8935
  %8937 = vrot.lane.b32.xlu0 %v8142, 48
  %v8938 = vpop.permute.xlu0 %8937
  %8939 = vrot.lane.b32.xlu0 %v7896, 48
  %v8940 = vpop.permute.xlu0 %8939
  %8941 = vrot.lane.b32.xlu0 %v8143, 48
  %v8942 = vpop.permute.xlu0 %8941
  %8943 = vrot.lane.b32.xlu0 %v7899, 48
  %v8944 = vpop.permute.xlu0 %8943
  %8945 = vrot.lane.b32.xlu0 %v8144, 48
  %v8946 = vpop.permute.xlu0 %8945
  %8947 = vrot.lane.b32.xlu0 %v7902, 48
  %v8948 = vpop.permute.xlu0 %8947
  %8949 = vrot.lane.b32.xlu0 %v8145, 48
  %v8950 = vpop.permute.xlu0 %8949
  %8951 = vrot.lane.b32.xlu0 %v7905, 48
  %v8952 = vpop.permute.xlu0 %8951
  %8953 = vrot.lane.b32.xlu0 %v8146, 48
  %v8954 = vpop.permute.xlu0 %8953
  %8955 = vrot.lane.b32.xlu0 %v7908, 48
  %v8956 = vpop.permute.xlu0 %8955
  %8957 = vrot.lane.b32.xlu0 %v8147, 48
  %v8958 = vpop.permute.xlu0 %8957
  %8959 = vrot.lane.b32.xlu0 %v7911, 48
  %v8960 = vpop.permute.xlu0 %8959
  %8961 = vrot.lane.b32.xlu0 %v8148, 48
  %v8962 = vpop.permute.xlu0 %8961
  %8963 = vrot.lane.b32.xlu0 %v7914, 48
  %v8964 = vpop.permute.xlu0 %8963
  %8965 = vrot.lane.b32.xlu0 %v8149, 48
  %v8966 = vpop.permute.xlu0 %8965
  %8967 = vrot.lane.b32.xlu0 %v7917, 48
  %v8968 = vpop.permute.xlu0 %8967
  %8969 = vrot.lane.b32.xlu0 %v8150, 48
  %v8970 = vpop.permute.xlu0 %8969
  %8971 = vrot.lane.b32.xlu0 %v7920, 48
  %v8972 = vpop.permute.xlu0 %8971
  %8973 = vrot.lane.b32.xlu0 %v8151, 48
  %v8974 = vpop.permute.xlu0 %8973
  %8975 = vrot.lane.b32.xlu0 %v7923, 48
  %v8976 = vpop.permute.xlu0 %8975
  %8977 = vrot.lane.b32.xlu0 %v8152, 48
  %v8978 = vpop.permute.xlu0 %8977
  %8979 = vrot.lane.b32.xlu0 %v7926, 48
  %v8980 = vpop.permute.xlu0 %8979
  %8981 = vrot.lane.b32.xlu0 %v8153, 48
  %v8982 = vpop.permute.xlu0 %8981
  %8983 = vrot.lane.b32.xlu0 %v7929, 48
  %v8984 = vpop.permute.xlu0 %8983
  %8985 = vrot.lane.b32.xlu0 %v8154, 48
  %v8986 = vpop.permute.xlu0 %8985
  %8987 = vrot.lane.b32.xlu0 %v7932, 48
  %v8988 = vpop.permute.xlu0 %8987
  %8989 = vrot.lane.b32.xlu0 %v8156, 48
  %v8990 = vpop.permute.xlu0 %8989
  %8991 = vrot.lane.b32.xlu0 %v7938, 48
  %v8992 = vpop.permute.xlu0 %8991
  %8993 = vrot.lane.b32.xlu0 %v8155, 48
  %v8994 = vpop.permute.xlu0 %8993
  %8995 = vrot.lane.b32.xlu0 %v7935, 48
  %v8996 = vpop.permute.xlu0 %8995
  %8997 = vrot.lane.b32.xlu0 %v8157, 48
  %v8998 = vpop.permute.xlu0 %8997
  %8999 = vrot.lane.b32.xlu0 %v7941, 48
  %v9000 = vpop.permute.xlu0 %8999
  %9001 = vrot.lane.b32.xlu0 %v8158, 48
  %v9002 = vpop.permute.xlu0 %9001
  %9003 = vrot.lane.b32.xlu0 %v7944, 48
  %v9004 = vpop.permute.xlu0 %9003
  %9005 = vrot.lane.b32.xlu0 %v8159, 48
  %v9006 = vpop.permute.xlu0 %9005
  %9007 = vrot.lane.b32.xlu0 %v7947, 48
  %v9008 = vpop.permute.xlu0 %9007
  %9009 = vrot.lane.b32.xlu0 %v8160, 48
  %v9010 = vpop.permute.xlu0 %9009
  %9011 = vrot.lane.b32.xlu0 %v7950, 48
  %v9012 = vpop.permute.xlu0 %9011
  %9013 = vrot.lane.b32.xlu0 %v8161, 48
  %v9014 = vpop.permute.xlu0 %9013
  %9015 = vrot.lane.b32.xlu0 %v7953, 48
  %v9016 = vpop.permute.xlu0 %9015
  %9017 = vrot.lane.b32.xlu0 %v8162, 48
  %v9018 = vpop.permute.xlu0 %9017
  %9019 = vrot.lane.b32.xlu0 %v7956, 48
  %v9020 = vpop.permute.xlu0 %9019
  %9021 = vrot.lane.b32.xlu0 %v8163, 48
  %v9022 = vpop.permute.xlu0 %9021
  %9023 = vrot.lane.b32.xlu0 %v7959, 48
  %v9024 = vpop.permute.xlu0 %9023
  %9025 = vrot.lane.b32.xlu0 %v8164, 48
  %v9026 = vpop.permute.xlu0 %9025
  %9027 = vrot.lane.b32.xlu0 %v7962, 48
  %v9028 = vpop.permute.xlu0 %9027
  %9029 = vrot.lane.b32.xlu0 %v8165, 48
  %v9030 = vpop.permute.xlu0 %9029
  %9031 = vrot.lane.b32.xlu0 %v7965, 48
  %v9032 = vpop.permute.xlu0 %9031
  %9033 = vrot.lane.b32.xlu0 %v8166, 48
  %v9034 = vpop.permute.xlu0 %9033
  %9035 = vrot.lane.b32.xlu0 %v7968, 48
  %v9036 = vpop.permute.xlu0 %9035
  %9037 = vrot.lane.b32.xlu0 %v8167, 48
  %v9038 = vpop.permute.xlu0 %9037
  %9039 = vrot.lane.b32.xlu0 %v7971, 48
  %v9040 = vpop.permute.xlu0 %9039
  %9041 = vrot.lane.b32.xlu0 %v8168, 48
  %v9042 = vpop.permute.xlu0 %9041
  %9043 = vrot.lane.b32.xlu0 %v7974, 48
  %v9044 = vpop.permute.xlu0 %9043
  %9045 = vrot.lane.b32.xlu0 %v8169, 48
  %v9046 = vpop.permute.xlu0 %9045
  %9047 = vrot.lane.b32.xlu0 %v7977, 48
  %v9048 = vpop.permute.xlu0 %9047
  %9049 = vrot.lane.b32.xlu0 %v8170, 48
  %v9050 = vpop.permute.xlu0 %9049
  %9051 = vrot.lane.b32.xlu0 %v7980, 48
  %v9052 = vpop.permute.xlu0 %9051
  %v9119 = vrot.slane %v8154, 1
  %v9120 = vrot.slane %v7932, 1
  %v9121 = vsel %vm622, %v9119, %v9120
  %v9122 = vrot.slane %v8186, 1
  %v9123 = vsel %vm622, %v9120, %v9122
  %v9124 = vrot.slane %v8170, 1
  %v9125 = vrot.slane %v7980, 1
  %v9126 = vsel %vm622, %v9124, %v9125
  %v9127 = vrot.slane %v8202, 1
  %v9128 = vsel %vm622, %v9125, %v9127
  %9129 = vrot.lane.b32.xlu0 %v8270, 64
  %v9130 = vpop.permute.xlu0 %9129
  %9131 = vrot.lane.b32.xlu0 %v8272, 64
  %v9132 = vpop.permute.xlu0 %9131
  %9133 = vrot.lane.b32.xlu0 %v8265, 64
  %v9134 = vpop.permute.xlu0 %9133
  %9135 = vrot.lane.b32.xlu0 %v8267, 64
  %v9136 = vpop.permute.xlu0 %9135
  %9137 = vrot.lane.b32.xlu0 %v8275, 64
  %v9138 = vpop.permute.xlu0 %9137
  %9139 = vrot.lane.b32.xlu0 %v8277, 64
  %v9140 = vpop.permute.xlu0 %9139
  %9141 = vrot.lane.b32.xlu0 %v8280, 64
  %v9142 = vpop.permute.xlu0 %9141
  %9143 = vrot.lane.b32.xlu0 %v8282, 64
  %v9144 = vpop.permute.xlu0 %9143
  %9145 = vrot.lane.b32.xlu0 %v8285, 64
  %v9146 = vpop.permute.xlu0 %9145
  %9147 = vrot.lane.b32.xlu0 %v8287, 64
  %v9148 = vpop.permute.xlu0 %9147
  %9149 = vrot.lane.b32.xlu0 %v8290, 64
  %v9150 = vpop.permute.xlu0 %9149
  %9151 = vrot.lane.b32.xlu0 %v8292, 64
  %v9152 = vpop.permute.xlu0 %9151
  %9153 = vrot.lane.b32.xlu0 %v8295, 64
  %v9154 = vpop.permute.xlu0 %9153
  %9155 = vrot.lane.b32.xlu0 %v8297, 64
  %v9156 = vpop.permute.xlu0 %9155
  %9157 = vrot.lane.b32.xlu0 %v8300, 64
  %v9158 = vpop.permute.xlu0 %9157
  %9159 = vrot.lane.b32.xlu0 %v8302, 64
  %v9160 = vpop.permute.xlu0 %9159
  %9161 = vrot.lane.b32.xlu0 %v8305, 64
  %v9162 = vpop.permute.xlu0 %9161
  %9163 = vrot.lane.b32.xlu0 %v8307, 64
  %v9164 = vpop.permute.xlu0 %9163
  %9165 = vrot.lane.b32.xlu0 %v8310, 64
  %v9166 = vpop.permute.xlu0 %9165
  %9167 = vrot.lane.b32.xlu0 %v8312, 64
  %v9168 = vpop.permute.xlu0 %9167
  %9169 = vrot.lane.b32.xlu0 %v8315, 64
  %v9170 = vpop.permute.xlu0 %9169
  %9171 = vrot.lane.b32.xlu0 %v8317, 64
  %v9172 = vpop.permute.xlu0 %9171
  %9173 = vrot.lane.b32.xlu0 %v8320, 64
  %v9174 = vpop.permute.xlu0 %9173
  %9175 = vrot.lane.b32.xlu0 %v8322, 64
  %v9176 = vpop.permute.xlu0 %9175
  %9177 = vrot.lane.b32.xlu0 %v8325, 64
  %v9178 = vpop.permute.xlu0 %9177
  %9179 = vrot.lane.b32.xlu0 %v8327, 64
  %v9180 = vpop.permute.xlu0 %9179
  %9181 = vrot.lane.b32.xlu0 %v8330, 64
  %v9182 = vpop.permute.xlu0 %9181
  %9183 = vrot.lane.b32.xlu0 %v8332, 64
  %v9184 = vpop.permute.xlu0 %9183
  %9185 = vrot.lane.b32.xlu0 %v8335, 64
  %v9186 = vpop.permute.xlu0 %9185
  %9187 = vrot.lane.b32.xlu0 %v8337, 64
  %v9188 = vpop.permute.xlu0 %9187
  %9189 = vrot.lane.b32.xlu0 %v9121, 64
  %v9190 = vpop.permute.xlu0 %9189
  %9191 = vrot.lane.b32.xlu0 %v9123, 64
  %v9192 = vpop.permute.xlu0 %9191
  %9193 = vrot.lane.b32.xlu0 %v8345, 64
  %v9194 = vpop.permute.xlu0 %9193
  %9195 = vrot.lane.b32.xlu0 %v8347, 64
  %v9196 = vpop.permute.xlu0 %9195
  %9197 = vrot.lane.b32.xlu0 %v8340, 64
  %v9198 = vpop.permute.xlu0 %9197
  %9199 = vrot.lane.b32.xlu0 %v8342, 64
  %v9200 = vpop.permute.xlu0 %9199
  %9201 = vrot.lane.b32.xlu0 %v8350, 64
  %v9202 = vpop.permute.xlu0 %9201
  %9203 = vrot.lane.b32.xlu0 %v8352, 64
  %v9204 = vpop.permute.xlu0 %9203
  %9205 = vrot.lane.b32.xlu0 %v8355, 64
  %v9206 = vpop.permute.xlu0 %9205
  %9207 = vrot.lane.b32.xlu0 %v8357, 64
  %v9208 = vpop.permute.xlu0 %9207
  %9209 = vrot.lane.b32.xlu0 %v8360, 64
  %v9210 = vpop.permute.xlu0 %9209
  %9211 = vrot.lane.b32.xlu0 %v8362, 64
  %v9212 = vpop.permute.xlu0 %9211
  %9213 = vrot.lane.b32.xlu0 %v8365, 64
  %v9214 = vpop.permute.xlu0 %9213
  %9215 = vrot.lane.b32.xlu0 %v8367, 64
  %v9216 = vpop.permute.xlu0 %9215
  %9217 = vrot.lane.b32.xlu0 %v8370, 64
  %v9218 = vpop.permute.xlu0 %9217
  %9219 = vrot.lane.b32.xlu0 %v8372, 64
  %v9220 = vpop.permute.xlu0 %9219
  %9221 = vrot.lane.b32.xlu0 %v8375, 64
  %v9222 = vpop.permute.xlu0 %9221
  %9223 = vrot.lane.b32.xlu0 %v8377, 64
  %v9224 = vpop.permute.xlu0 %9223
  %9225 = vrot.lane.b32.xlu0 %v8380, 64
  %v9226 = vpop.permute.xlu0 %9225
  %9227 = vrot.lane.b32.xlu0 %v8382, 64
  %v9228 = vpop.permute.xlu0 %9227
  %9229 = vrot.lane.b32.xlu0 %v8385, 64
  %v9230 = vpop.permute.xlu0 %9229
  %9231 = vrot.lane.b32.xlu0 %v8387, 64
  %v9232 = vpop.permute.xlu0 %9231
  %9233 = vrot.lane.b32.xlu0 %v8390, 64
  %v9234 = vpop.permute.xlu0 %9233
  %9235 = vrot.lane.b32.xlu0 %v8392, 64
  %v9236 = vpop.permute.xlu0 %9235
  %9237 = vrot.lane.b32.xlu0 %v8395, 64
  %v9238 = vpop.permute.xlu0 %9237
  %9239 = vrot.lane.b32.xlu0 %v8397, 64
  %v9240 = vpop.permute.xlu0 %9239
  %9241 = vrot.lane.b32.xlu0 %v8400, 64
  %v9242 = vpop.permute.xlu0 %9241
  %9243 = vrot.lane.b32.xlu0 %v8402, 64
  %v9244 = vpop.permute.xlu0 %9243
  %9245 = vrot.lane.b32.xlu0 %v8405, 64
  %v9246 = vpop.permute.xlu0 %9245
  %9247 = vrot.lane.b32.xlu0 %v8407, 64
  %v9248 = vpop.permute.xlu0 %9247
  %9249 = vrot.lane.b32.xlu0 %v8410, 64
  %v9250 = vpop.permute.xlu0 %9249
  %9251 = vrot.lane.b32.xlu0 %v8412, 64
  %v9252 = vpop.permute.xlu0 %9251
  %9253 = vrot.lane.b32.xlu0 %v9126, 64
  %v9254 = vpop.permute.xlu0 %9253
  %9255 = vrot.lane.b32.xlu0 %v9128, 64
  %v9256 = vpop.permute.xlu0 %9255
  %v9321 = vrot.slane %v8154, 2
  %v9322 = vrot.slane %v7932, 2
  %v9323 = vsel %vm953, %v9321, %v9322
  %v9324 = vrot.slane %v8186, 2
  %v9325 = vsel %vm953, %v9322, %v9324
  %v9326 = vrot.slane %v8170, 2
  %v9327 = vrot.slane %v7980, 2
  %v9328 = vsel %vm953, %v9326, %v9327
  %v9329 = vrot.slane %v8202, 2
  %v9330 = vsel %vm953, %v9327, %v9329
  %9331 = vrot.lane.b32.xlu0 %v8600, 80
  %v9332 = vpop.permute.xlu0 %9331
  %9333 = vrot.lane.b32.xlu0 %v8602, 80
  %v9334 = vpop.permute.xlu0 %9333
  %9335 = vrot.lane.b32.xlu0 %v8595, 80
  %v9336 = vpop.permute.xlu0 %9335
  %9337 = vrot.lane.b32.xlu0 %v8597, 80
  %v9338 = vpop.permute.xlu0 %9337
  %9339 = vrot.lane.b32.xlu0 %v8605, 80
  %v9340 = vpop.permute.xlu0 %9339
  %9341 = vrot.lane.b32.xlu0 %v8607, 80
  %v9342 = vpop.permute.xlu0 %9341
  %9343 = vrot.lane.b32.xlu0 %v8610, 80
  %v9344 = vpop.permute.xlu0 %9343
  %9345 = vrot.lane.b32.xlu0 %v8612, 80
  %v9346 = vpop.permute.xlu0 %9345
  %9347 = vrot.lane.b32.xlu0 %v8615, 80
  %v9348 = vpop.permute.xlu0 %9347
  %9349 = vrot.lane.b32.xlu0 %v8617, 80
  %v9350 = vpop.permute.xlu0 %9349
  %9351 = vrot.lane.b32.xlu0 %v8620, 80
  %v9352 = vpop.permute.xlu0 %9351
  %9353 = vrot.lane.b32.xlu0 %v8622, 80
  %v9354 = vpop.permute.xlu0 %9353
  %9355 = vrot.lane.b32.xlu0 %v8625, 80
  %v9356 = vpop.permute.xlu0 %9355
  %9357 = vrot.lane.b32.xlu0 %v8627, 80
  %v9358 = vpop.permute.xlu0 %9357
  %9359 = vrot.lane.b32.xlu0 %v8630, 80
  %v9360 = vpop.permute.xlu0 %9359
  %9361 = vrot.lane.b32.xlu0 %v8632, 80
  %v9362 = vpop.permute.xlu0 %9361
  %9363 = vrot.lane.b32.xlu0 %v8635, 80
  %v9364 = vpop.permute.xlu0 %9363
  %9365 = vrot.lane.b32.xlu0 %v8637, 80
  %v9366 = vpop.permute.xlu0 %9365
  %9367 = vrot.lane.b32.xlu0 %v8640, 80
  %v9368 = vpop.permute.xlu0 %9367
  %9369 = vrot.lane.b32.xlu0 %v8642, 80
  %v9370 = vpop.permute.xlu0 %9369
  %9371 = vrot.lane.b32.xlu0 %v8645, 80
  %v9372 = vpop.permute.xlu0 %9371
  %9373 = vrot.lane.b32.xlu0 %v8647, 80
  %v9374 = vpop.permute.xlu0 %9373
  %9375 = vrot.lane.b32.xlu0 %v8650, 80
  %v9376 = vpop.permute.xlu0 %9375
  %9377 = vrot.lane.b32.xlu0 %v8652, 80
  %v9378 = vpop.permute.xlu0 %9377
  %9379 = vrot.lane.b32.xlu0 %v8655, 80
  %v9380 = vpop.permute.xlu0 %9379
  %9381 = vrot.lane.b32.xlu0 %v8657, 80
  %v9382 = vpop.permute.xlu0 %9381
  %9383 = vrot.lane.b32.xlu0 %v8660, 80
  %v9384 = vpop.permute.xlu0 %9383
  %9385 = vrot.lane.b32.xlu0 %v8662, 80
  %v9386 = vpop.permute.xlu0 %9385
  %9387 = vrot.lane.b32.xlu0 %v8665, 80
  %v9388 = vpop.permute.xlu0 %9387
  %9389 = vrot.lane.b32.xlu0 %v8667, 80
  %v9390 = vpop.permute.xlu0 %9389
  %9391 = vrot.lane.b32.xlu0 %v9323, 80
  %v9392 = vpop.permute.xlu0 %9391
  %9393 = vrot.lane.b32.xlu0 %v9325, 80
  %v9394 = vpop.permute.xlu0 %9393
  %9395 = vrot.lane.b32.xlu0 %v8675, 80
  %v9396 = vpop.permute.xlu0 %9395
  %9397 = vrot.lane.b32.xlu0 %v8677, 80
  %v9398 = vpop.permute.xlu0 %9397
  %9399 = vrot.lane.b32.xlu0 %v8670, 80
  %v9400 = vpop.permute.xlu0 %9399
  %9401 = vrot.lane.b32.xlu0 %v8672, 80
  %v9402 = vpop.permute.xlu0 %9401
  %9403 = vrot.lane.b32.xlu0 %v8680, 80
  %v9404 = vpop.permute.xlu0 %9403
  %9405 = vrot.lane.b32.xlu0 %v8682, 80
  %v9406 = vpop.permute.xlu0 %9405
  %9407 = vrot.lane.b32.xlu0 %v8685, 80
  %v9408 = vpop.permute.xlu0 %9407
  %9409 = vrot.lane.b32.xlu0 %v8687, 80
  %v9410 = vpop.permute.xlu0 %9409
  %9411 = vrot.lane.b32.xlu0 %v8690, 80
  %v9412 = vpop.permute.xlu0 %9411
  %9413 = vrot.lane.b32.xlu0 %v8692, 80
  %v9414 = vpop.permute.xlu0 %9413
  %9415 = vrot.lane.b32.xlu0 %v8695, 80
  %v9416 = vpop.permute.xlu0 %9415
  %9417 = vrot.lane.b32.xlu0 %v8697, 80
  %v9418 = vpop.permute.xlu0 %9417
  %9419 = vrot.lane.b32.xlu0 %v8700, 80
  %v9420 = vpop.permute.xlu0 %9419
  %9421 = vrot.lane.b32.xlu0 %v8702, 80
  %v9422 = vpop.permute.xlu0 %9421
  %9423 = vrot.lane.b32.xlu0 %v8705, 80
  %v9424 = vpop.permute.xlu0 %9423
  %9425 = vrot.lane.b32.xlu0 %v8707, 80
  %v9426 = vpop.permute.xlu0 %9425
  %9427 = vrot.lane.b32.xlu0 %v8710, 80
  %v9428 = vpop.permute.xlu0 %9427
  %9429 = vrot.lane.b32.xlu0 %v8712, 80
  %v9430 = vpop.permute.xlu0 %9429
  %9431 = vrot.lane.b32.xlu0 %v8715, 80
  %v9432 = vpop.permute.xlu0 %9431
  %9433 = vrot.lane.b32.xlu0 %v8717, 80
  %v9434 = vpop.permute.xlu0 %9433
  %9435 = vrot.lane.b32.xlu0 %v8720, 80
  %v9436 = vpop.permute.xlu0 %9435
  %9437 = vrot.lane.b32.xlu0 %v8722, 80
  %v9438 = vpop.permute.xlu0 %9437
  %9439 = vrot.lane.b32.xlu0 %v8725, 80
  %v9440 = vpop.permute.xlu0 %9439
  %9441 = vrot.lane.b32.xlu0 %v8727, 80
  %v9442 = vpop.permute.xlu0 %9441
  %9443 = vrot.lane.b32.xlu0 %v8730, 80
  %v9444 = vpop.permute.xlu0 %9443
  %9445 = vrot.lane.b32.xlu0 %v8732, 80
  %v9446 = vpop.permute.xlu0 %9445
  %9447 = vrot.lane.b32.xlu0 %v8735, 80
  %v9448 = vpop.permute.xlu0 %9447
  %9449 = vrot.lane.b32.xlu0 %v8737, 80
  %v9450 = vpop.permute.xlu0 %9449
  %9451 = vrot.lane.b32.xlu0 %v8740, 80
  %v9452 = vpop.permute.xlu0 %9451
  %9453 = vrot.lane.b32.xlu0 %v8742, 80
  %v9454 = vpop.permute.xlu0 %9453
  %9455 = vrot.lane.b32.xlu0 %v9328, 80
  %v9456 = vpop.permute.xlu0 %9455
  %9457 = vrot.lane.b32.xlu0 %v9330, 80
  %v9458 = vpop.permute.xlu0 %9457
  %9523 = vrot.lane.b32.xlu0 %v8139, 96
  %v9524 = vpop.permute.xlu0 %9523
  %9525 = vrot.lane.b32.xlu0 %v7887, 96
  %v9526 = vpop.permute.xlu0 %9525
  %9527 = vrot.lane.b32.xlu0 %v8141, 96
  %v9528 = vpop.permute.xlu0 %9527
  %9529 = vrot.lane.b32.xlu0 %v7893, 96
  %v9530 = vpop.permute.xlu0 %9529
  %9531 = vrot.lane.b32.xlu0 %v8142, 96
  %v9532 = vpop.permute.xlu0 %9531
  %9533 = vrot.lane.b32.xlu0 %v7896, 96
  %v9534 = vpop.permute.xlu0 %9533
  %9535 = vrot.lane.b32.xlu0 %v8143, 96
  %v9536 = vpop.permute.xlu0 %9535
  %9537 = vrot.lane.b32.xlu0 %v7899, 96
  %v9538 = vpop.permute.xlu0 %9537
  %9539 = vrot.lane.b32.xlu0 %v8144, 96
  %v9540 = vpop.permute.xlu0 %9539
  %9541 = vrot.lane.b32.xlu0 %v7902, 96
  %v9542 = vpop.permute.xlu0 %9541
  %9543 = vrot.lane.b32.xlu0 %v8145, 96
  %v9544 = vpop.permute.xlu0 %9543
  %9545 = vrot.lane.b32.xlu0 %v7905, 96
  %v9546 = vpop.permute.xlu0 %9545
  %9547 = vrot.lane.b32.xlu0 %v8146, 96
  %v9548 = vpop.permute.xlu0 %9547
  %9549 = vrot.lane.b32.xlu0 %v7908, 96
  %v9550 = vpop.permute.xlu0 %9549
  %9551 = vrot.lane.b32.xlu0 %v8147, 96
  %v9552 = vpop.permute.xlu0 %9551
  %9553 = vrot.lane.b32.xlu0 %v7911, 96
  %v9554 = vpop.permute.xlu0 %9553
  %9555 = vrot.lane.b32.xlu0 %v8148, 96
  %v9556 = vpop.permute.xlu0 %9555
  %9557 = vrot.lane.b32.xlu0 %v7914, 96
  %v9558 = vpop.permute.xlu0 %9557
  %9559 = vrot.lane.b32.xlu0 %v8149, 96
  %v9560 = vpop.permute.xlu0 %9559
  %9561 = vrot.lane.b32.xlu0 %v7917, 96
  %v9562 = vpop.permute.xlu0 %9561
  %9563 = vrot.lane.b32.xlu0 %v8150, 96
  %v9564 = vpop.permute.xlu0 %9563
  %9565 = vrot.lane.b32.xlu0 %v7920, 96
  %v9566 = vpop.permute.xlu0 %9565
  %9567 = vrot.lane.b32.xlu0 %v8151, 96
  %v9568 = vpop.permute.xlu0 %9567
  %9569 = vrot.lane.b32.xlu0 %v7923, 96
  %v9570 = vpop.permute.xlu0 %9569
  %9571 = vrot.lane.b32.xlu0 %v8152, 96
  %v9572 = vpop.permute.xlu0 %9571
  %9573 = vrot.lane.b32.xlu0 %v7926, 96
  %v9574 = vpop.permute.xlu0 %9573
  %9575 = vrot.lane.b32.xlu0 %v8153, 96
  %v9576 = vpop.permute.xlu0 %9575
  %9577 = vrot.lane.b32.xlu0 %v7929, 96
  %v9578 = vpop.permute.xlu0 %9577
  %9579 = vrot.lane.b32.xlu0 %v8154, 96
  %v9580 = vpop.permute.xlu0 %9579
  %9581 = vrot.lane.b32.xlu0 %v7932, 96
  %v9582 = vpop.permute.xlu0 %9581
  %9583 = vrot.lane.b32.xlu0 %v8155, 96
  %v9584 = vpop.permute.xlu0 %9583
  %9585 = vrot.lane.b32.xlu0 %v7935, 96
  %v9586 = vpop.permute.xlu0 %9585
  %9587 = vrot.lane.b32.xlu0 %v8157, 96
  %v9588 = vpop.permute.xlu0 %9587
  %9589 = vrot.lane.b32.xlu0 %v7941, 96
  %v9590 = vpop.permute.xlu0 %9589
  %9591 = vrot.lane.b32.xlu0 %v8158, 96
  %v9592 = vpop.permute.xlu0 %9591
  %9593 = vrot.lane.b32.xlu0 %v7944, 96
  %v9594 = vpop.permute.xlu0 %9593
  %9595 = vrot.lane.b32.xlu0 %v8159, 96
  %v9596 = vpop.permute.xlu0 %9595
  %9597 = vrot.lane.b32.xlu0 %v7947, 96
  %v9598 = vpop.permute.xlu0 %9597
  %9599 = vrot.lane.b32.xlu0 %v8160, 96
  %v9600 = vpop.permute.xlu0 %9599
  %9601 = vrot.lane.b32.xlu0 %v7950, 96
  %v9602 = vpop.permute.xlu0 %9601
  %9603 = vrot.lane.b32.xlu0 %v8161, 96
  %v9604 = vpop.permute.xlu0 %9603
  %9605 = vrot.lane.b32.xlu0 %v7953, 96
  %v9606 = vpop.permute.xlu0 %9605
  %9607 = vrot.lane.b32.xlu0 %v8162, 96
  %v9608 = vpop.permute.xlu0 %9607
  %9609 = vrot.lane.b32.xlu0 %v7956, 96
  %v9610 = vpop.permute.xlu0 %9609
  %9611 = vrot.lane.b32.xlu0 %v8163, 96
  %v9612 = vpop.permute.xlu0 %9611
  %9613 = vrot.lane.b32.xlu0 %v7959, 96
  %v9614 = vpop.permute.xlu0 %9613
  %9615 = vrot.lane.b32.xlu0 %v8164, 96
  %v9616 = vpop.permute.xlu0 %9615
  %9617 = vrot.lane.b32.xlu0 %v7962, 96
  %v9618 = vpop.permute.xlu0 %9617
  %9619 = vrot.lane.b32.xlu0 %v8165, 96
  %v9620 = vpop.permute.xlu0 %9619
  %9621 = vrot.lane.b32.xlu0 %v7965, 96
  %v9622 = vpop.permute.xlu0 %9621
  %9623 = vrot.lane.b32.xlu0 %v8166, 96
  %v9624 = vpop.permute.xlu0 %9623
  %9625 = vrot.lane.b32.xlu0 %v7968, 96
  %v9626 = vpop.permute.xlu0 %9625
  %9627 = vrot.lane.b32.xlu0 %v8167, 96
  %v9628 = vpop.permute.xlu0 %9627
  %9629 = vrot.lane.b32.xlu0 %v7971, 96
  %v9630 = vpop.permute.xlu0 %9629
  %9631 = vrot.lane.b32.xlu0 %v8168, 96
  %v9632 = vpop.permute.xlu0 %9631
  %9633 = vrot.lane.b32.xlu0 %v7974, 96
  %v9634 = vpop.permute.xlu0 %9633
  %9635 = vrot.lane.b32.xlu0 %v8169, 96
  %v9636 = vpop.permute.xlu0 %9635
  %9637 = vrot.lane.b32.xlu0 %v7977, 96
  %v9638 = vpop.permute.xlu0 %9637
  %9639 = vrot.lane.b32.xlu0 %v8170, 96
  %v9640 = vpop.permute.xlu0 %9639
  %9641 = vrot.lane.b32.xlu0 %v7980, 96
  %v9642 = vpop.permute.xlu0 %9641
  %9703 = vrot.lane.b32.xlu0 %v8265, 112
  %v9704 = vpop.permute.xlu0 %9703
  %9705 = vrot.lane.b32.xlu0 %v8267, 112
  %v9706 = vpop.permute.xlu0 %9705
  %9707 = vrot.lane.b32.xlu0 %v8275, 112
  %v9708 = vpop.permute.xlu0 %9707
  %9709 = vrot.lane.b32.xlu0 %v8277, 112
  %v9710 = vpop.permute.xlu0 %9709
  %9711 = vrot.lane.b32.xlu0 %v8280, 112
  %v9712 = vpop.permute.xlu0 %9711
  %9713 = vrot.lane.b32.xlu0 %v8282, 112
  %v9714 = vpop.permute.xlu0 %9713
  %9715 = vrot.lane.b32.xlu0 %v8285, 112
  %v9716 = vpop.permute.xlu0 %9715
  %9717 = vrot.lane.b32.xlu0 %v8287, 112
  %v9718 = vpop.permute.xlu0 %9717
  %9719 = vrot.lane.b32.xlu0 %v8290, 112
  %v9720 = vpop.permute.xlu0 %9719
  %9721 = vrot.lane.b32.xlu0 %v8292, 112
  %v9722 = vpop.permute.xlu0 %9721
  %9723 = vrot.lane.b32.xlu0 %v8295, 112
  %v9724 = vpop.permute.xlu0 %9723
  %9725 = vrot.lane.b32.xlu0 %v8297, 112
  %v9726 = vpop.permute.xlu0 %9725
  %9727 = vrot.lane.b32.xlu0 %v8300, 112
  %v9728 = vpop.permute.xlu0 %9727
  %9729 = vrot.lane.b32.xlu0 %v8302, 112
  %v9730 = vpop.permute.xlu0 %9729
  %9731 = vrot.lane.b32.xlu0 %v8305, 112
  %v9732 = vpop.permute.xlu0 %9731
  %9733 = vrot.lane.b32.xlu0 %v8307, 112
  %v9734 = vpop.permute.xlu0 %9733
  %9735 = vrot.lane.b32.xlu0 %v8310, 112
  %v9736 = vpop.permute.xlu0 %9735
  %9737 = vrot.lane.b32.xlu0 %v8312, 112
  %v9738 = vpop.permute.xlu0 %9737
  %9739 = vrot.lane.b32.xlu0 %v8315, 112
  %v9740 = vpop.permute.xlu0 %9739
  %9741 = vrot.lane.b32.xlu0 %v8317, 112
  %v9742 = vpop.permute.xlu0 %9741
  %9743 = vrot.lane.b32.xlu0 %v8320, 112
  %v9744 = vpop.permute.xlu0 %9743
  %9745 = vrot.lane.b32.xlu0 %v8322, 112
  %v9746 = vpop.permute.xlu0 %9745
  %9747 = vrot.lane.b32.xlu0 %v8325, 112
  %v9748 = vpop.permute.xlu0 %9747
  %9749 = vrot.lane.b32.xlu0 %v8327, 112
  %v9750 = vpop.permute.xlu0 %9749
  %9751 = vrot.lane.b32.xlu0 %v8330, 112
  %v9752 = vpop.permute.xlu0 %9751
  %9753 = vrot.lane.b32.xlu0 %v8332, 112
  %v9754 = vpop.permute.xlu0 %9753
  %9755 = vrot.lane.b32.xlu0 %v8335, 112
  %v9756 = vpop.permute.xlu0 %9755
  %9757 = vrot.lane.b32.xlu0 %v8337, 112
  %v9758 = vpop.permute.xlu0 %9757
  %9759 = vrot.lane.b32.xlu0 %v9121, 112
  %v9760 = vpop.permute.xlu0 %9759
  %9761 = vrot.lane.b32.xlu0 %v9123, 112
  %v9762 = vpop.permute.xlu0 %9761
  %9763 = vrot.lane.b32.xlu0 %v8340, 112
  %v9764 = vpop.permute.xlu0 %9763
  %9765 = vrot.lane.b32.xlu0 %v8342, 112
  %v9766 = vpop.permute.xlu0 %9765
  %9767 = vrot.lane.b32.xlu0 %v8350, 112
  %v9768 = vpop.permute.xlu0 %9767
  %9769 = vrot.lane.b32.xlu0 %v8352, 112
  %v9770 = vpop.permute.xlu0 %9769
  %9771 = vrot.lane.b32.xlu0 %v8355, 112
  %v9772 = vpop.permute.xlu0 %9771
  %9773 = vrot.lane.b32.xlu0 %v8357, 112
  %v9774 = vpop.permute.xlu0 %9773
  %9775 = vrot.lane.b32.xlu0 %v8360, 112
  %v9776 = vpop.permute.xlu0 %9775
  %9777 = vrot.lane.b32.xlu0 %v8362, 112
  %v9778 = vpop.permute.xlu0 %9777
  %9779 = vrot.lane.b32.xlu0 %v8365, 112
  %v9780 = vpop.permute.xlu0 %9779
  %9781 = vrot.lane.b32.xlu0 %v8367, 112
  %v9782 = vpop.permute.xlu0 %9781
  %9783 = vrot.lane.b32.xlu0 %v8370, 112
  %v9784 = vpop.permute.xlu0 %9783
  %9785 = vrot.lane.b32.xlu0 %v8372, 112
  %v9786 = vpop.permute.xlu0 %9785
  %9787 = vrot.lane.b32.xlu0 %v8375, 112
  %v9788 = vpop.permute.xlu0 %9787
  %9789 = vrot.lane.b32.xlu0 %v8377, 112
  %v9790 = vpop.permute.xlu0 %9789
  %9791 = vrot.lane.b32.xlu0 %v8380, 112
  %v9792 = vpop.permute.xlu0 %9791
  %9793 = vrot.lane.b32.xlu0 %v8382, 112
  %v9794 = vpop.permute.xlu0 %9793
  %9795 = vrot.lane.b32.xlu0 %v8385, 112
  %v9796 = vpop.permute.xlu0 %9795
  %9797 = vrot.lane.b32.xlu0 %v8387, 112
  %v9798 = vpop.permute.xlu0 %9797
  %9799 = vrot.lane.b32.xlu0 %v8390, 112
  %v9800 = vpop.permute.xlu0 %9799
  %9801 = vrot.lane.b32.xlu0 %v8392, 112
  %v9802 = vpop.permute.xlu0 %9801
  %9803 = vrot.lane.b32.xlu0 %v8395, 112
  %v9804 = vpop.permute.xlu0 %9803
  %9805 = vrot.lane.b32.xlu0 %v8397, 112
  %v9806 = vpop.permute.xlu0 %9805
  %9807 = vrot.lane.b32.xlu0 %v8400, 112
  %v9808 = vpop.permute.xlu0 %9807
  %9809 = vrot.lane.b32.xlu0 %v8402, 112
  %v9810 = vpop.permute.xlu0 %9809
  %9811 = vrot.lane.b32.xlu0 %v8405, 112
  %v9812 = vpop.permute.xlu0 %9811
  %9813 = vrot.lane.b32.xlu0 %v8407, 112
  %v9814 = vpop.permute.xlu0 %9813
  %9815 = vrot.lane.b32.xlu0 %v8410, 112
  %v9816 = vpop.permute.xlu0 %9815
  %9817 = vrot.lane.b32.xlu0 %v8412, 112
  %v9818 = vpop.permute.xlu0 %9817
  %9819 = vrot.lane.b32.xlu0 %v9126, 112
  %v9820 = vpop.permute.xlu0 %9819
  %9821 = vrot.lane.b32.xlu0 %v9128, 112
  %v9822 = vpop.permute.xlu0 %9821
  %v9943 = vsel %vm6294, %v8139, %v8414
  %v9944 = vsel %vm6294, %v7887, %v8416
  %v9945 = vsel %vm6294, %v8140, %v8418
  %v9946 = vsel %vm6294, %v7890, %v8420
  %v9947 = vsel %vm6294, %v8141, %v8422
  %v9948 = vsel %vm6294, %v7893, %v8424
  %v9949 = vsel %vm6294, %v8142, %v8426
  %v9950 = vsel %vm6294, %v7896, %v8428
  %v9951 = vsel %vm6294, %v8143, %v8430
  %v9952 = vsel %vm6294, %v7899, %v8432
  %v9953 = vsel %vm6294, %v8144, %v8434
  %v9954 = vsel %vm6294, %v7902, %v8436
  %v9955 = vsel %vm6294, %v8145, %v8438
  %v9956 = vsel %vm6294, %v7905, %v8440
  %v9957 = vsel %vm6294, %v8146, %v8442
  %v9958 = vsel %vm6294, %v7908, %v8444
  %v9959 = vsel %vm6294, %v8147, %v8446
  %v9960 = vsel %vm6294, %v7911, %v8448
  %v9961 = vsel %vm6294, %v8148, %v8450
  %v9962 = vsel %vm6294, %v7914, %v8452
  %v9963 = vsel %vm6294, %v8149, %v8454
  %v9964 = vsel %vm6294, %v7917, %v8456
  %v9965 = vsel %vm6294, %v8150, %v8458
  %v9966 = vsel %vm6294, %v7920, %v8460
  %v9967 = vsel %vm6294, %v8151, %v8462
  %v9968 = vsel %vm6294, %v7923, %v8464
  %v9969 = vsel %vm6294, %v8152, %v8466
  %v9970 = vsel %vm6294, %v7926, %v8468
  %v9971 = vsel %vm6294, %v8153, %v8470
  %v9972 = vsel %vm6294, %v7929, %v8472
  %v9973 = vsel %vm6294, %v8155, %v8474
  %v9974 = vsel %vm6294, %v7935, %v8476
  %v9975 = vsel %vm6294, %v8156, %v8478
  %v9976 = vsel %vm6294, %v7938, %v8480
  %v9977 = vsel %vm6294, %v8157, %v8482
  %v9978 = vsel %vm6294, %v7941, %v8484
  %v9979 = vsel %vm6294, %v8158, %v8486
  %v9980 = vsel %vm6294, %v7944, %v8488
  %v9981 = vsel %vm6294, %v8159, %v8490
  %v9982 = vsel %vm6294, %v7947, %v8492
  %v9983 = vsel %vm6294, %v8160, %v8494
  %v9984 = vsel %vm6294, %v7950, %v8496
  %v9985 = vsel %vm6294, %v8161, %v8498
  %v9986 = vsel %vm6294, %v7953, %v8500
  %v9987 = vsel %vm6294, %v8162, %v8502
  %v9988 = vsel %vm6294, %v7956, %v8504
  %v9989 = vsel %vm6294, %v8163, %v8506
  %v9990 = vsel %vm6294, %v7959, %v8508
  %v9991 = vsel %vm6294, %v8164, %v8510
  %v9992 = vsel %vm6294, %v7962, %v8512
  %v9993 = vsel %vm6294, %v8165, %v8514
  %v9994 = vsel %vm6294, %v7965, %v8516
  %v9995 = vsel %vm6294, %v8166, %v8518
  %v9996 = vsel %vm6294, %v7968, %v8520
  %v9997 = vsel %vm6294, %v8167, %v8522
  %v9998 = vsel %vm6294, %v7971, %v8524
  %v9999 = vsel %vm6294, %v8168, %v8526
  %v10000 = vsel %vm6294, %v7974, %v8528
  %v10001 = vsel %vm6294, %v8169, %v8530
  %v10002 = vsel %vm6294, %v7977, %v8532
  %v10003 = vsel %vm6419, %v9943, %v8744
  %v10004 = vsel %vm6419, %v9944, %v8746
  %v10005 = vsel %vm6419, %v9945, %v8748
  %v10006 = vsel %vm6419, %v9946, %v8750
  %v10007 = vsel %vm6419, %v9947, %v8752
  %v10008 = vsel %vm6419, %v9948, %v8754
  %v10009 = vsel %vm6419, %v9949, %v8756
  %v10010 = vsel %vm6419, %v9950, %v8758
  %v10011 = vsel %vm6419, %v9951, %v8760
  %v10012 = vsel %vm6419, %v9952, %v8762
  %v10013 = vsel %vm6419, %v9953, %v8764
  %v10014 = vsel %vm6419, %v9954, %v8766
  %v10015 = vsel %vm6419, %v9955, %v8768
  %v10016 = vsel %vm6419, %v9956, %v8770
  %v10017 = vsel %vm6419, %v9957, %v8772
  %v10018 = vsel %vm6419, %v9958, %v8774
  %v10019 = vsel %vm6419, %v9959, %v8776
  %v10020 = vsel %vm6419, %v9960, %v8778
  %v10021 = vsel %vm6419, %v9961, %v8780
  %v10022 = vsel %vm6419, %v9962, %v8782
  %v10023 = vsel %vm6419, %v9963, %v8784
  %v10024 = vsel %vm6419, %v9964, %v8786
  %v10025 = vsel %vm6419, %v9965, %v8788
  %v10026 = vsel %vm6419, %v9966, %v8790
  %v10027 = vsel %vm6419, %v9967, %v8792
  %v10028 = vsel %vm6419, %v9968, %v8794
  %v10029 = vsel %vm6419, %v9969, %v8796
  %v10030 = vsel %vm6419, %v9970, %v8798
  %v10031 = vsel %vm6419, %v9971, %v8800
  %v10032 = vsel %vm6419, %v9972, %v8802
  %v10033 = vsel %vm6419, %v9973, %v8804
  %v10034 = vsel %vm6419, %v9974, %v8806
  %v10035 = vsel %vm6419, %v9975, %v8808
  %v10036 = vsel %vm6419, %v9976, %v8810
  %v10037 = vsel %vm6419, %v9977, %v8812
  %v10038 = vsel %vm6419, %v9978, %v8814
  %v10039 = vsel %vm6419, %v9979, %v8816
  %v10040 = vsel %vm6419, %v9980, %v8818
  %v10041 = vsel %vm6419, %v9981, %v8820
  %v10042 = vsel %vm6419, %v9982, %v8822
  %v10043 = vsel %vm6419, %v9983, %v8824
  %v10044 = vsel %vm6419, %v9984, %v8826
  %v10045 = vsel %vm6419, %v9985, %v8828
  %v10046 = vsel %vm6419, %v9986, %v8830
  %v10047 = vsel %vm6419, %v9987, %v8832
  %v10048 = vsel %vm6419, %v9988, %v8834
  %v10049 = vsel %vm6419, %v9989, %v8836
  %v10050 = vsel %vm6419, %v9990, %v8838
  %v10051 = vsel %vm6419, %v9991, %v8840
  %v10052 = vsel %vm6419, %v9992, %v8842
  %v10053 = vsel %vm6419, %v9993, %v8844
  %v10054 = vsel %vm6419, %v9994, %v8846
  %v10055 = vsel %vm6419, %v9995, %v8848
  %v10056 = vsel %vm6419, %v9996, %v8850
  %v10057 = vsel %vm6419, %v9997, %v8852
  %v10058 = vsel %vm6419, %v9998, %v8854
  %v10059 = vsel %vm6419, %v9999, %v8856
  %v10060 = vsel %vm6419, %v10000, %v8858
  %v10061 = vsel %vm6419, %v10001, %v8860
  %v10062 = vsel %vm6419, %v10002, %v8862
  %v10063 = vsel %vm6549, %v10003, %v8926
  %v10064 = vsel %vm6549, %v10004, %v8928
  %v10065 = vsel %vm6549, %v10005, %v8930
  %v10066 = vsel %vm6549, %v10006, %v8932
  %v10067 = vsel %vm6549, %v10003, %v8934
  %v10068 = vsel %vm6549, %v10004, %v8936
  %v10069 = vsel %vm6549, %v10007, %v8938
  %v10070 = vsel %vm6549, %v10008, %v8940
  %v10071 = vsel %vm6549, %v10009, %v8942
  %v10072 = vsel %vm6549, %v10010, %v8944
  %v10073 = vsel %vm6549, %v10011, %v8946
  %v10074 = vsel %vm6549, %v10012, %v8948
  %v10075 = vsel %vm6549, %v10013, %v8950
  %v10076 = vsel %vm6549, %v10014, %v8952
  %v10077 = vsel %vm6549, %v10015, %v8954
  %v10078 = vsel %vm6549, %v10016, %v8956
  %v10079 = vsel %vm6549, %v10017, %v8958
  %v10080 = vsel %vm6549, %v10018, %v8960
  %v10081 = vsel %vm6549, %v10019, %v8962
  %v10082 = vsel %vm6549, %v10020, %v8964
  %v10083 = vsel %vm6549, %v10021, %v8966
  %v10084 = vsel %vm6549, %v10022, %v8968
  %v10085 = vsel %vm6549, %v10023, %v8970
  %v10086 = vsel %vm6549, %v10024, %v8972
  %v10087 = vsel %vm6549, %v10025, %v8974
  %v10088 = vsel %vm6549, %v10026, %v8976
  %v10089 = vsel %vm6549, %v10027, %v8978
  %v10090 = vsel %vm6549, %v10028, %v8980
  %v10091 = vsel %vm6549, %v10029, %v8982
  %v10092 = vsel %vm6549, %v10030, %v8984
  %v10093 = vsel %vm6549, %v10031, %v8986
  %v10094 = vsel %vm6549, %v10032, %v8988
  %v10095 = vsel %vm6549, %v10033, %v8990
  %v10096 = vsel %vm6549, %v10034, %v8992
  %v10097 = vsel %vm6549, %v10035, %v8994
  %v10098 = vsel %vm6549, %v10036, %v8996
  %v10099 = vsel %vm6549, %v10033, %v8998
  %v10100 = vsel %vm6549, %v10034, %v9000
  %v10101 = vsel %vm6549, %v10037, %v9002
  %v10102 = vsel %vm6549, %v10038, %v9004
  %v10103 = vsel %vm6549, %v10039, %v9006
  %v10104 = vsel %vm6549, %v10040, %v9008
  %v10105 = vsel %vm6549, %v10041, %v9010
  %v10106 = vsel %vm6549, %v10042, %v9012
  %v10107 = vsel %vm6549, %v10043, %v9014
  %v10108 = vsel %vm6549, %v10044, %v9016
  %v10109 = vsel %vm6549, %v10045, %v9018
  %v10110 = vsel %vm6549, %v10046, %v9020
  %v10111 = vsel %vm6549, %v10047, %v9022
  %v10112 = vsel %vm6549, %v10048, %v9024
  %v10113 = vsel %vm6549, %v10049, %v9026
  %v10114 = vsel %vm6549, %v10050, %v9028
  %v10115 = vsel %vm6549, %v10051, %v9030
  %v10116 = vsel %vm6549, %v10052, %v9032
  %v10117 = vsel %vm6549, %v10053, %v9034
  %v10118 = vsel %vm6549, %v10054, %v9036
  %v10119 = vsel %vm6549, %v10055, %v9038
  %v10120 = vsel %vm6549, %v10056, %v9040
  %v10121 = vsel %vm6549, %v10057, %v9042
  %v10122 = vsel %vm6549, %v10058, %v9044
  %v10123 = vsel %vm6549, %v10059, %v9046
  %v10124 = vsel %vm6549, %v10060, %v9048
  %v10125 = vsel %vm6549, %v10061, %v9050
  %v10126 = vsel %vm6549, %v10062, %v9052
  %v10127 = vsel %vm6679, %v10063, %v9130
  %v10128 = vsel %vm6679, %v10064, %v9132
  %v10129 = vsel %vm6679, %v10065, %v9134
  %v10130 = vsel %vm6679, %v10066, %v9136
  %v10131 = vsel %vm6679, %v10067, %v9138
  %v10132 = vsel %vm6679, %v10068, %v9140
  %v10133 = vsel %vm6679, %v10069, %v9142
  %v10134 = vsel %vm6679, %v10070, %v9144
  %v10135 = vsel %vm6679, %v10071, %v9146
  %v10136 = vsel %vm6679, %v10072, %v9148
  %v10137 = vsel %vm6679, %v10073, %v9150
  %v10138 = vsel %vm6679, %v10074, %v9152
  %v10139 = vsel %vm6679, %v10075, %v9154
  %v10140 = vsel %vm6679, %v10076, %v9156
  %v10141 = vsel %vm6679, %v10077, %v9158
  %v10142 = vsel %vm6679, %v10078, %v9160
  %v10143 = vsel %vm6679, %v10079, %v9162
  %v10144 = vsel %vm6679, %v10080, %v9164
  %v10145 = vsel %vm6679, %v10081, %v9166
  %v10146 = vsel %vm6679, %v10082, %v9168
  %v10147 = vsel %vm6679, %v10083, %v9170
  %v10148 = vsel %vm6679, %v10084, %v9172
  %v10149 = vsel %vm6679, %v10085, %v9174
  %v10150 = vsel %vm6679, %v10086, %v9176
  %v10151 = vsel %vm6679, %v10087, %v9178
  %v10152 = vsel %vm6679, %v10088, %v9180
  %v10153 = vsel %vm6679, %v10089, %v9182
  %v10154 = vsel %vm6679, %v10090, %v9184
  %v10155 = vsel %vm6679, %v10091, %v9186
  %v10156 = vsel %vm6679, %v10092, %v9188
  %v10157 = vsel %vm6679, %v10093, %v9190
  %v10158 = vsel %vm6679, %v10094, %v9192
  %v10159 = vsel %vm6679, %v10095, %v9194
  %v10160 = vsel %vm6679, %v10096, %v9196
  %v10161 = vsel %vm6679, %v10097, %v9198
  %v10162 = vsel %vm6679, %v10098, %v9200
  %v10163 = vsel %vm6679, %v10099, %v9202
  %v10164 = vsel %vm6679, %v10100, %v9204
  %v10165 = vsel %vm6679, %v10101, %v9206
  %v10166 = vsel %vm6679, %v10102, %v9208
  %v10167 = vsel %vm6679, %v10103, %v9210
  %v10168 = vsel %vm6679, %v10104, %v9212
  %v10169 = vsel %vm6679, %v10105, %v9214
  %v10170 = vsel %vm6679, %v10106, %v9216
  %v10171 = vsel %vm6679, %v10107, %v9218
  %v10172 = vsel %vm6679, %v10108, %v9220
  %v10173 = vsel %vm6679, %v10109, %v9222
  %v10174 = vsel %vm6679, %v10110, %v9224
  %v10175 = vsel %vm6679, %v10111, %v9226
  %v10176 = vsel %vm6679, %v10112, %v9228
  %v10177 = vsel %vm6679, %v10113, %v9230
  %v10178 = vsel %vm6679, %v10114, %v9232
  %v10179 = vsel %vm6679, %v10115, %v9234
  %v10180 = vsel %vm6679, %v10116, %v9236
  %v10181 = vsel %vm6679, %v10117, %v9238
  %v10182 = vsel %vm6679, %v10118, %v9240
  %v10183 = vsel %vm6679, %v10119, %v9242
  %v10184 = vsel %vm6679, %v10120, %v9244
  %v10185 = vsel %vm6679, %v10121, %v9246
  %v10186 = vsel %vm6679, %v10122, %v9248
  %v10187 = vsel %vm6679, %v10123, %v9250
  %v10188 = vsel %vm6679, %v10124, %v9252
  %v10189 = vsel %vm6679, %v10125, %v9254
  %v10190 = vsel %vm6679, %v10126, %v9256
  %vm10191 = vcmask 654336
  %v10192 = vsel %vm10191, %v10127, %v9332
  %v10193 = vsel %vm10191, %v10128, %v9334
  %v10194 = vsel %vm10191, %v10129, %v9336
  %v10195 = vsel %vm10191, %v10130, %v9338
  %v10196 = vsel %vm10191, %v10131, %v9340
  %v10197 = vsel %vm10191, %v10132, %v9342
  %v10198 = vsel %vm10191, %v10133, %v9344
  %v10199 = vsel %vm10191, %v10134, %v9346
  %v10200 = vsel %vm10191, %v10135, %v9348
  %v10201 = vsel %vm10191, %v10136, %v9350
  %v10202 = vsel %vm10191, %v10137, %v9352
  %v10203 = vsel %vm10191, %v10138, %v9354
  %v10204 = vsel %vm10191, %v10139, %v9356
  %v10205 = vsel %vm10191, %v10140, %v9358
  %v10206 = vsel %vm10191, %v10141, %v9360
  %v10207 = vsel %vm10191, %v10142, %v9362
  %v10208 = vsel %vm10191, %v10143, %v9364
  %v10209 = vsel %vm10191, %v10144, %v9366
  %v10210 = vsel %vm10191, %v10145, %v9368
  %v10211 = vsel %vm10191, %v10146, %v9370
  %v10212 = vsel %vm10191, %v10147, %v9372
  %v10213 = vsel %vm10191, %v10148, %v9374
  %v10214 = vsel %vm10191, %v10149, %v9376
  %v10215 = vsel %vm10191, %v10150, %v9378
  %v10216 = vsel %vm10191, %v10151, %v9380
  %v10217 = vsel %vm10191, %v10152, %v9382
  %v10218 = vsel %vm10191, %v10153, %v9384
  %v10219 = vsel %vm10191, %v10154, %v9386
  %v10220 = vsel %vm10191, %v10155, %v9388
  %v10221 = vsel %vm10191, %v10156, %v9390
  %v10222 = vsel %vm10191, %v10157, %v9392
  %v10223 = vsel %vm10191, %v10158, %v9394
  %v10224 = vsel %vm10191, %v10159, %v9396
  %v10225 = vsel %vm10191, %v10160, %v9398
  %v10226 = vsel %vm10191, %v10161, %v9400
  %v10227 = vsel %vm10191, %v10162, %v9402
  %v10228 = vsel %vm10191, %v10163, %v9404
  %v10229 = vsel %vm10191, %v10164, %v9406
  %v10230 = vsel %vm10191, %v10165, %v9408
  %v10231 = vsel %vm10191, %v10166, %v9410
  %v10232 = vsel %vm10191, %v10167, %v9412
  %v10233 = vsel %vm10191, %v10168, %v9414
  %v10234 = vsel %vm10191, %v10169, %v9416
  %v10235 = vsel %vm10191, %v10170, %v9418
  %v10236 = vsel %vm10191, %v10171, %v9420
  %v10237 = vsel %vm10191, %v10172, %v9422
  %v10238 = vsel %vm10191, %v10173, %v9424
  %v10239 = vsel %vm10191, %v10174, %v9426
  %v10240 = vsel %vm10191, %v10175, %v9428
  %v10241 = vsel %vm10191, %v10176, %v9430
  %v10242 = vsel %vm10191, %v10177, %v9432
  %v10243 = vsel %vm10191, %v10178, %v9434
  %v10244 = vsel %vm10191, %v10179, %v9436
  %v10245 = vsel %vm10191, %v10180, %v9438
  %v10246 = vsel %vm10191, %v10181, %v9440
  %v10247 = vsel %vm10191, %v10182, %v9442
  %v10248 = vsel %vm10191, %v10183, %v9444
  %v10249 = vsel %vm10191, %v10184, %v9446
  %v10250 = vsel %vm10191, %v10185, %v9448
  %v10251 = vsel %vm10191, %v10186, %v9450
  %v10252 = vsel %vm10191, %v10187, %v9452
  %v10253 = vsel %vm10191, %v10188, %v9454
  %v10254 = vsel %vm10191, %v10189, %v9456
  %v10255 = vsel %vm10191, %v10190, %v9458
  %vm10256 = vcmask 785408
  %v10257 = vsel %vm10256, %v10192, %v9524
  %v10258 = vsel %vm10256, %v10193, %v9526
  %v10259 = vsel %vm10256, %v10194, %v9528
  %v10260 = vsel %vm10256, %v10195, %v9530
  %v10261 = vsel %vm10256, %v10196, %v9532
  %v10262 = vsel %vm10256, %v10197, %v9534
  %v10263 = vsel %vm10256, %v10198, %v9536
  %v10264 = vsel %vm10256, %v10199, %v9538
  %v10265 = vsel %vm10256, %v10200, %v9540
  %v10266 = vsel %vm10256, %v10201, %v9542
  %v10267 = vsel %vm10256, %v10202, %v9544
  %v10268 = vsel %vm10256, %v10203, %v9546
  %v10269 = vsel %vm10256, %v10204, %v9548
  %v10270 = vsel %vm10256, %v10205, %v9550
  %v10271 = vsel %vm10256, %v10206, %v9552
  %v10272 = vsel %vm10256, %v10207, %v9554
  %v10273 = vsel %vm10256, %v10208, %v9556
  %v10274 = vsel %vm10256, %v10209, %v9558
  %v10275 = vsel %vm10256, %v10210, %v9560
  %v10276 = vsel %vm10256, %v10211, %v9562
  %v10277 = vsel %vm10256, %v10212, %v9564
  %v10278 = vsel %vm10256, %v10213, %v9566
  %v10279 = vsel %vm10256, %v10214, %v9568
  %v10280 = vsel %vm10256, %v10215, %v9570
  %v10281 = vsel %vm10256, %v10216, %v9572
  %v10282 = vsel %vm10256, %v10217, %v9574
  %v10283 = vsel %vm10256, %v10218, %v9576
  %v10284 = vsel %vm10256, %v10219, %v9578
  %v10285 = vsel %vm10256, %v10220, %v9580
  %v10286 = vsel %vm10256, %v10221, %v9582
  %v10287 = vsel %vm10256, %v10222, %v9576
  %v10288 = vsel %vm10256, %v10223, %v9578
  %v10289 = vsel %vm10256, %v10224, %v9584
  %v10290 = vsel %vm10256, %v10225, %v9586
  %v10291 = vsel %vm10256, %v10226, %v9588
  %v10292 = vsel %vm10256, %v10227, %v9590
  %v10293 = vsel %vm10256, %v10228, %v9592
  %v10294 = vsel %vm10256, %v10229, %v9594
  %v10295 = vsel %vm10256, %v10230, %v9596
  %v10296 = vsel %vm10256, %v10231, %v9598
  %v10297 = vsel %vm10256, %v10232, %v9600
  %v10298 = vsel %vm10256, %v10233, %v9602
  %v10299 = vsel %vm10256, %v10234, %v9604
  %v10300 = vsel %vm10256, %v10235, %v9606
  %v10301 = vsel %vm10256, %v10236, %v9608
  %v10302 = vsel %vm10256, %v10237, %v9610
  %v10303 = vsel %vm10256, %v10238, %v9612
  %v10304 = vsel %vm10256, %v10239, %v9614
  %v10305 = vsel %vm10256, %v10240, %v9616
  %v10306 = vsel %vm10256, %v10241, %v9618
  %v10307 = vsel %vm10256, %v10242, %v9620
  %v10308 = vsel %vm10256, %v10243, %v9622
  %v10309 = vsel %vm10256, %v10244, %v9624
  %v10310 = vsel %vm10256, %v10245, %v9626
  %v10311 = vsel %vm10256, %v10246, %v9628
  %v10312 = vsel %vm10256, %v10247, %v9630
  %v10313 = vsel %vm10256, %v10248, %v9632
  %v10314 = vsel %vm10256, %v10249, %v9634
  %v10315 = vsel %vm10256, %v10250, %v9636
  %v10316 = vsel %vm10256, %v10251, %v9638
  %v10317 = vsel %vm10256, %v10252, %v9640
  %v10318 = vsel %vm10256, %v10253, %v9642
  %v10319 = vsel %vm10256, %v10254, %v9636
  %v10320 = vsel %vm10256, %v10255, %v9638
  %vm10321 = vcmask 916480
  %v10322 = vsel %vm10321, %v10257, %v9704
  %v10323 = vsel %vm10321, %v10258, %v9706
  %v10324 = vsel %vm10321, %v10259, %v9708
  %v10325 = vsel %vm10321, %v10260, %v9710
  %v10326 = vsel %vm10321, %v10261, %v9712
  %v10327 = vsel %vm10321, %v10262, %v9714
  %v10328 = vsel %vm10321, %v10263, %v9716
  %v10329 = vsel %vm10321, %v10264, %v9718
  %v10330 = vsel %vm10321, %v10265, %v9720
  %v10331 = vsel %vm10321, %v10266, %v9722
  %v10332 = vsel %vm10321, %v10267, %v9724
  %v10333 = vsel %vm10321, %v10268, %v9726
  %v10334 = vsel %vm10321, %v10269, %v9728
  %v10335 = vsel %vm10321, %v10270, %v9730
  %v10336 = vsel %vm10321, %v10271, %v9732
  %v10337 = vsel %vm10321, %v10272, %v9734
  %v10338 = vsel %vm10321, %v10273, %v9736
  %v10339 = vsel %vm10321, %v10274, %v9738
  %v10340 = vsel %vm10321, %v10275, %v9740
  %v10341 = vsel %vm10321, %v10276, %v9742
  %v10342 = vsel %vm10321, %v10277, %v9744
  %v10343 = vsel %vm10321, %v10278, %v9746
  %v10344 = vsel %vm10321, %v10279, %v9748
  %v10345 = vsel %vm10321, %v10280, %v9750
  %v10346 = vsel %vm10321, %v10281, %v9752
  %v10347 = vsel %vm10321, %v10282, %v9754
  %v10348 = vsel %vm10321, %v10283, %v9756
  %v10349 = vsel %vm10321, %v10284, %v9758
  %v10350 = vsel %vm10321, %v10285, %v9760
  %v10351 = vsel %vm10321, %v10286, %v9762
  %v10352 = vsel %vm10321, %v10287, %v9756
  %v10353 = vsel %vm10321, %v10288, %v9758
  %v10354 = vsel %vm10321, %v10289, %v9764
  %v10355 = vsel %vm10321, %v10290, %v9766
  %v10356 = vsel %vm10321, %v10291, %v9768
  %v10357 = vsel %vm10321, %v10292, %v9770
  %v10358 = vsel %vm10321, %v10293, %v9772
  %v10359 = vsel %vm10321, %v10294, %v9774
  %v10360 = vsel %vm10321, %v10295, %v9776
  %v10361 = vsel %vm10321, %v10296, %v9778
  %v10362 = vsel %vm10321, %v10297, %v9780
  %v10363 = vsel %vm10321, %v10298, %v9782
  %v10364 = vsel %vm10321, %v10299, %v9784
  %v10365 = vsel %vm10321, %v10300, %v9786
  %v10366 = vsel %vm10321, %v10301, %v9788
  %v10367 = vsel %vm10321, %v10302, %v9790
  %v10368 = vsel %vm10321, %v10303, %v9792
  %v10369 = vsel %vm10321, %v10304, %v9794
  %v10370 = vsel %vm10321, %v10305, %v9796
  %v10371 = vsel %vm10321, %v10306, %v9798
  %v10372 = vsel %vm10321, %v10307, %v9800
  %v10373 = vsel %vm10321, %v10308, %v9802
  %v10374 = vsel %vm10321, %v10309, %v9804
  %v10375 = vsel %vm10321, %v10310, %v9806
  %v10376 = vsel %vm10321, %v10311, %v9808
  %v10377 = vsel %vm10321, %v10312, %v9810
  %v10378 = vsel %vm10321, %v10313, %v9812
  %v10379 = vsel %vm10321, %v10314, %v9814
  %v10380 = vsel %vm10321, %v10315, %v9816
  %v10381 = vsel %vm10321, %v10316, %v9818
  %v10382 = vsel %vm10321, %v10317, %v9820
  %v10383 = vsel %vm10321, %v10318, %v9822
  %v10384 = vsel %vm10321, %v10319, %v9816
  %v10385 = vsel %vm10321, %v10320, %v9818
  %v10386 = vpack.c.bf16 %v10323, %v10322
  %v10387 = vpack.c.bf16 %v8597, %v8595
  %v10388 = vpack.c.bf16 %v10325, %v10324
  %v10389 = vpack.c.bf16 %v8607, %v8605
  %v10390 = vpack.c.bf16 %v10327, %v10326
  %v10391 = vpack.c.bf16 %v8612, %v8610
  %v10392 = vpack.c.bf16 %v10329, %v10328
  %v10393 = vpack.c.bf16 %v8617, %v8615
  %v10394 = vpack.c.bf16 %v10331, %v10330
  %v10395 = vpack.c.bf16 %v8622, %v8620
  %v10396 = vpack.c.bf16 %v10333, %v10332
  %v10397 = vpack.c.bf16 %v8627, %v8625
  %v10398 = vpack.c.bf16 %v10335, %v10334
  %v10399 = vpack.c.bf16 %v8632, %v8630
  %v10400 = vpack.c.bf16 %v10337, %v10336
  %v10401 = vpack.c.bf16 %v8637, %v8635
  %v10402 = vpack.c.bf16 %v10339, %v10338
  %v10403 = vpack.c.bf16 %v8642, %v8640
  %v10404 = vpack.c.bf16 %v10341, %v10340
  %v10405 = vpack.c.bf16 %v8647, %v8645
  %v10406 = vpack.c.bf16 %v10343, %v10342
  %v10407 = vpack.c.bf16 %v8652, %v8650
  %v10408 = vpack.c.bf16 %v10345, %v10344
  %v10409 = vpack.c.bf16 %v8657, %v8655
  %v10410 = vpack.c.bf16 %v10347, %v10346
  %v10411 = vpack.c.bf16 %v8662, %v8660
  %v10412 = vpack.c.bf16 %v10349, %v10348
  %v10413 = vpack.c.bf16 %v8667, %v8665
  %v10414 = vpack.c.bf16 %v10351, %v10350
  %v10415 = vpack.c.bf16 %v9325, %v9323
  %v10416 = vpack.c.bf16 %v10353, %v10352
  %v10417 = vpack.c.bf16 %v10355, %v10354
  %v10418 = vpack.c.bf16 %v8672, %v8670
  %v10419 = vpack.c.bf16 %v10357, %v10356
  %v10420 = vpack.c.bf16 %v8682, %v8680
  %v10421 = vpack.c.bf16 %v10359, %v10358
  %v10422 = vpack.c.bf16 %v8687, %v8685
  %v10423 = vpack.c.bf16 %v10361, %v10360
  %v10424 = vpack.c.bf16 %v8692, %v8690
  %v10425 = vpack.c.bf16 %v10363, %v10362
  %v10426 = vpack.c.bf16 %v8697, %v8695
  %v10427 = vpack.c.bf16 %v10365, %v10364
  %v10428 = vpack.c.bf16 %v8702, %v8700
  %v10429 = vpack.c.bf16 %v10367, %v10366
  %v10430 = vpack.c.bf16 %v8707, %v8705
  %v10431 = vpack.c.bf16 %v10369, %v10368
  %v10432 = vpack.c.bf16 %v8712, %v8710
  %v10433 = vpack.c.bf16 %v10371, %v10370
  %v10434 = vpack.c.bf16 %v8717, %v8715
  %v10435 = vpack.c.bf16 %v10373, %v10372
  %v10436 = vpack.c.bf16 %v8722, %v8720
  %v10437 = vpack.c.bf16 %v10375, %v10374
  %v10438 = vpack.c.bf16 %v8727, %v8725
  %v10439 = vpack.c.bf16 %v10377, %v10376
  %v10440 = vpack.c.bf16 %v8732, %v8730
  %v10441 = vpack.c.bf16 %v10379, %v10378
  %v10442 = vpack.c.bf16 %v8737, %v8735
  %v10443 = vpack.c.bf16 %v10381, %v10380
  %v10444 = vpack.c.bf16 %v8742, %v8740
  %v10445 = vpack.c.bf16 %v10383, %v10382
  %v10446 = vpack.c.bf16 %v9330, %v9328
  %v10447 = vpack.c.bf16 %v10385, %v10384
  %v10466 = vunpack.c.l.b16 %v7737
  %v10467 = vunpack.c.l.b16 %v7738
  %v10468 = vunpack.c.l.b16 %v7739
  %v10469 = vunpack.c.l.b16 %v7740
  %v10470 = vunpack.c.l.b16 %v7741
  %v10471 = vunpack.c.l.b16 %v7742
  %v10472 = vunpack.c.l.b16 %v7743
  %v10473 = vunpack.c.l.b16 %v7744
  %v10474 = vunpack.c.l.b16 %v7745
  %v10475 = vunpack.c.l.b16 %v7746
  %v10476 = vunpack.c.l.b16 %v7747
  %v10477 = vunpack.c.l.b16 %v7748
  %v10478 = vunpack.c.l.b16 %v7749
  %v10479 = vunpack.c.l.b16 %v7750
  %v10480 = vunpack.c.l.b16 %v7751
  %v10481 = vunpack.c.l.b16 %v7752
  %v10482 = vunpack.c.l.b16 %v7753
  %v10483 = vunpack.c.l.b16 %v7754
  %v10484 = vpack.c.b16 %v10467, %v10466
  %v10485 = vpack.c.b16 %v10469, %v10468
  %v10486 = vpack.c.b16 %v10471, %v10470
  %v10487 = vpack.c.b16 %v10473, %v10472
  %v10488 = vpack.c.b16 %v10475, %v10474
  %v10489 = vpack.c.b16 %v10477, %v10476
  %v10490 = vpack.c.b16 %v10479, %v10478
  %v10491 = vpack.c.b16 %v10481, %v10480
  %v10492 = vpack.c.b16 %v10483, %v10482
  %v10503 = vsel %vm6294, %v10387, 0
  %v10506 = vsel %vm6294, %v10389, 0
  %v10509 = vsel %vm6294, %v10391, 0
  %v10512 = vsel %vm6294, %v10393, 0
  %v10515 = vsel %vm6294, %v10395, 0
  %v10518 = vsel %vm6294, %v10397, 0
  %v10521 = vsel %vm6294, %v10399, 0
  %v10524 = vsel %vm6294, %v10401, 0
  %v10527 = vsel %vm6294, %v10403, 0
  %v10530 = vsel %vm6294, %v10405, 0
  %v10533 = vsel %vm6294, %v10407, 0
  %v10536 = vsel %vm6294, %v10409, 0
  %v10539 = vsel %vm6294, %v10411, 0
  %v10542 = vsel %vm6294, %v10413, 0
  %v10545 = vsel %vm6294, %v10415, 0
  %v10548 = vsel %vm6294, %v10418, 0
  %v10551 = vsel %vm6294, %v10420, 0
  %v10554 = vsel %vm6294, %v10422, 0
  %v10557 = vsel %vm6294, %v10424, 0
  %v10560 = vsel %vm6294, %v10426, 0
  %v10563 = vsel %vm6294, %v10428, 0
  %v10566 = vsel %vm6294, %v10430, 0
  %v10569 = vsel %vm6294, %v10432, 0
  %v10572 = vsel %vm6294, %v10434, 0
  %v10575 = vsel %vm6294, %v10436, 0
  %v10578 = vsel %vm6294, %v10438, 0
  %v10581 = vsel %vm6294, %v10440, 0
  %v10584 = vsel %vm6294, %v10442, 0
  %v10587 = vsel %vm6294, %v10444, 0
  %v10590 = vsel %vm6294, %v10446, 0
  %10592 = vmatprep.subr.bf16.mxu0 0
  %10593 = vmatpush1.bf16.msra.mxu0 %v10491
  %10594 = vmatprep.subr.bf16.mxu0 0
  %10595 = vmatpush1.bf16.msra.mxu0 %v10490
  %10596 = vmatprep.subr.bf16.mxu0 0
  %10597 = vmatpush1.bf16.msra.mxu0 %v10489
  %10598 = vmatprep.subr.bf16.mxu0 0
  %10599 = vmatpush1.bf16.msra.mxu0 %v10488
  %10600 = vmatprep.subr.bf16.mxu0 0
  %10601 = vmatpush1.bf16.msra.mxu0 %v10487
  %10602 = vmatprep.subr.bf16.mxu0 0
  %10603 = vmatpush1.bf16.msra.mxu0 %v10486
  %10604 = vmatprep.subr.bf16.mxu0 0
  %10605 = vmatpush1.bf16.msra.mxu0 %v10485
  %10606 = vmatprep.subr.bf16.mxu0 0
  %10607 = vmatpush1.bf16.msra.mxu0 %v10484
  %10608 = vmatprep.subr.bf16.mxu0 0
  %10609 = vmatpush2.bf16.msra.mxu0 0
  %10610 = vmatprep.subr.bf16.mxu0 0
  %10611 = vmatpush2.bf16.msra.mxu0 0
  %10612 = vmatprep.subr.bf16.mxu0 0
  %10613 = vmatpush2.bf16.msra.mxu0 0
  %10614 = vmatprep.subr.bf16.mxu0 0
  %10615 = vmatpush2.bf16.msra.mxu0 0
  %10616 = vmatprep.subr.bf16.mxu0 0
  %10617 = vmatpush2.bf16.msra.mxu0 0
  %10618 = vmatprep.subr.bf16.mxu0 0
  %10619 = vmatpush2.bf16.msra.mxu0 0
  %10620 = vmatprep.subr.bf16.mxu0 0
  %10621 = vmatpush2.bf16.msra.mxu0 0
  %10622 = vmatprep.subr.bf16.mxu0 0
  %10623 = vmatpush2.bf16.msra.mxu0 %v10492
  %10624 = vmatprep.mubr.bf16.mxu0 %v10503
  %10625 = vmatmul.mubr.bf16.gmra.mxu0 %v10386
  %v10626 = vpop.f32.mrf.mxu0
  %v10627 = vadd.f32 0.0, %v10626
  %v10628 = vpop.f32.mrf.mxu0
  %v10629 = vpop.f32.mrf.mxu0
  %v10630 = vadd.f32 0.0, %v10629
  %v10631 = vpop.f32.mrf.mxu0
  %10632 = vmatprep.mubr.bf16.mxu0 %v10506
  %10633 = vmatmul.mubr.bf16.gmra.mxu0 %v10388
  %v10634 = vpop.f32.mrf.mxu0
  %v10635 = vadd.f32 0.0, %v10634
  %v10636 = vpop.f32.mrf.mxu0
  %v10637 = vpop.f32.mrf.mxu0
  %v10638 = vadd.f32 0.0, %v10637
  %v10639 = vpop.f32.mrf.mxu0
  %10640 = vmatprep.mubr.bf16.mxu0 %v10509
  %10641 = vmatmul.mubr.bf16.gmra.mxu0 %v10390
  %v10642 = vpop.f32.mrf.mxu0
  %v10643 = vadd.f32 0.0, %v10642
  %v10644 = vpop.f32.mrf.mxu0
  %v10645 = vpop.f32.mrf.mxu0
  %v10646 = vadd.f32 0.0, %v10645
  %v10647 = vpop.f32.mrf.mxu0
  %10648 = vmatprep.mubr.bf16.mxu0 %v10512
  %10649 = vmatmul.mubr.bf16.gmra.mxu0 %v10392
  %v10650 = vpop.f32.mrf.mxu0
  %v10651 = vadd.f32 0.0, %v10650
  %v10652 = vpop.f32.mrf.mxu0
  %v10653 = vpop.f32.mrf.mxu0
  %v10654 = vadd.f32 0.0, %v10653
  %v10655 = vpop.f32.mrf.mxu0
  %10656 = vmatprep.mubr.bf16.mxu0 %v10515
  %10657 = vmatmul.mubr.bf16.gmra.mxu0 %v10394
  %v10658 = vpop.f32.mrf.mxu0
  %v10659 = vadd.f32 0.0, %v10658
  %v10660 = vpop.f32.mrf.mxu0
  %v10661 = vpop.f32.mrf.mxu0
  %v10662 = vadd.f32 0.0, %v10661
  %v10663 = vpop.f32.mrf.mxu0
  %10664 = vmatprep.mubr.bf16.mxu0 %v10518
  %10665 = vmatmul.mubr.bf16.gmra.mxu0 %v10396
  %v10666 = vpop.f32.mrf.mxu0
  %v10667 = vadd.f32 0.0, %v10666
  %v10668 = vpop.f32.mrf.mxu0
  %v10669 = vpop.f32.mrf.mxu0
  %v10670 = vadd.f32 0.0, %v10669
  %v10671 = vpop.f32.mrf.mxu0
  %10672 = vmatprep.mubr.bf16.mxu0 %v10521
  %10673 = vmatmul.mubr.bf16.gmra.mxu0 %v10398
  %v10674 = vpop.f32.mrf.mxu0
  %v10675 = vadd.f32 0.0, %v10674
  %v10676 = vpop.f32.mrf.mxu0
  %v10677 = vpop.f32.mrf.mxu0
  %v10678 = vadd.f32 0.0, %v10677
  %v10679 = vpop.f32.mrf.mxu0
  %10680 = vmatprep.mubr.bf16.mxu0 %v10524
  %10681 = vmatmul.mubr.bf16.gmra.mxu0 %v10400
  %v10682 = vpop.f32.mrf.mxu0
  %v10683 = vadd.f32 0.0, %v10682
  %v10684 = vpop.f32.mrf.mxu0
  %v10685 = vpop.f32.mrf.mxu0
  %v10686 = vadd.f32 0.0, %v10685
  %v10687 = vpop.f32.mrf.mxu0
  %10688 = vmatprep.mubr.bf16.mxu0 %v10527
  %10689 = vmatmul.mubr.bf16.gmra.mxu0 %v10402
  %v10690 = vpop.f32.mrf.mxu0
  %v10691 = vadd.f32 0.0, %v10690
  %v10692 = vpop.f32.mrf.mxu0
  %v10693 = vpop.f32.mrf.mxu0
  %v10694 = vadd.f32 0.0, %v10693
  %v10695 = vpop.f32.mrf.mxu0
  %10696 = vmatprep.mubr.bf16.mxu0 %v10530
  %10697 = vmatmul.mubr.bf16.gmra.mxu0 %v10404
  %v10698 = vpop.f32.mrf.mxu0
  %v10699 = vadd.f32 0.0, %v10698
  %v10700 = vpop.f32.mrf.mxu0
  %v10701 = vpop.f32.mrf.mxu0
  %v10702 = vadd.f32 0.0, %v10701
  %v10703 = vpop.f32.mrf.mxu0
  %10704 = vmatprep.mubr.bf16.mxu0 %v10533
  %10705 = vmatmul.mubr.bf16.gmra.mxu0 %v10406
  %v10706 = vpop.f32.mrf.mxu0
  %v10707 = vadd.f32 0.0, %v10706
  %v10708 = vpop.f32.mrf.mxu0
  %v10709 = vpop.f32.mrf.mxu0
  %v10710 = vadd.f32 0.0, %v10709
  %v10711 = vpop.f32.mrf.mxu0
  %10712 = vmatprep.mubr.bf16.mxu0 %v10536
  %10713 = vmatmul.mubr.bf16.gmra.mxu0 %v10408
  %v10714 = vpop.f32.mrf.mxu0
  %v10715 = vadd.f32 0.0, %v10714
  %v10716 = vpop.f32.mrf.mxu0
  %v10717 = vpop.f32.mrf.mxu0
  %v10718 = vadd.f32 0.0, %v10717
  %v10719 = vpop.f32.mrf.mxu0
  %10720 = vmatprep.mubr.bf16.mxu0 %v10539
  %10721 = vmatmul.mubr.bf16.gmra.mxu0 %v10410
  %v10722 = vpop.f32.mrf.mxu0
  %v10723 = vadd.f32 0.0, %v10722
  %v10724 = vpop.f32.mrf.mxu0
  %v10725 = vpop.f32.mrf.mxu0
  %v10726 = vadd.f32 0.0, %v10725
  %v10727 = vpop.f32.mrf.mxu0
  %10728 = vmatprep.mubr.bf16.mxu0 %v10542
  %10729 = vmatmul.mubr.bf16.gmra.mxu0 %v10412
  %v10730 = vpop.f32.mrf.mxu0
  %v10731 = vadd.f32 0.0, %v10730
  %v10732 = vpop.f32.mrf.mxu0
  %v10733 = vpop.f32.mrf.mxu0
  %v10734 = vadd.f32 0.0, %v10733
  %v10735 = vpop.f32.mrf.mxu0
  %10736 = vmatprep.mubr.bf16.mxu0 %v10545
  %10737 = vmatmul.mubr.bf16.gmra.mxu0 %v10414
  %v10738 = vpop.f32.mrf.mxu0
  %v10739 = vadd.f32 0.0, %v10738
  %v10740 = vpop.f32.mrf.mxu0
  %v10741 = vpop.f32.mrf.mxu0
  %v10742 = vadd.f32 0.0, %v10741
  %v10743 = vpop.f32.mrf.mxu0
  %10744 = vmatprep.mubr.bf16.mxu0 %v10542
  %10745 = vmatmul.mubr.bf16.gmra.mxu0 %v10416
  %v10746 = vpop.f32.mrf.mxu0
  %v10747 = vadd.f32 0.0, %v10746
  %v10748 = vpop.f32.mrf.mxu0
  %v10749 = vpop.f32.mrf.mxu0
  %v10750 = vadd.f32 0.0, %v10749
  %v10751 = vpop.f32.mrf.mxu0
  %10752 = vmatprep.mubr.bf16.mxu0 %v10548
  %10753 = vmatmul.mubr.bf16.gmra.mxu0 %v10417
  %v10754 = vpop.f32.mrf.mxu0
  %v10755 = vadd.f32 0.0, %v10754
  %v10756 = vpop.f32.mrf.mxu0
  %v10757 = vpop.f32.mrf.mxu0
  %v10758 = vadd.f32 0.0, %v10757
  %v10759 = vpop.f32.mrf.mxu0
  %10760 = vmatprep.mubr.bf16.mxu0 %v10551
  %10761 = vmatmul.mubr.bf16.gmra.mxu0 %v10419
  %v10762 = vpop.f32.mrf.mxu0
  %v10763 = vadd.f32 0.0, %v10762
  %v10764 = vpop.f32.mrf.mxu0
  %v10765 = vpop.f32.mrf.mxu0
  %v10766 = vadd.f32 0.0, %v10765
  %v10767 = vpop.f32.mrf.mxu0
  %10768 = vmatprep.mubr.bf16.mxu0 %v10554
  %10769 = vmatmul.mubr.bf16.gmra.mxu0 %v10421
  %v10770 = vpop.f32.mrf.mxu0
  %v10771 = vadd.f32 0.0, %v10770
  %v10772 = vpop.f32.mrf.mxu0
  %v10773 = vpop.f32.mrf.mxu0
  %v10774 = vadd.f32 0.0, %v10773
  %v10775 = vpop.f32.mrf.mxu0
  %10776 = vmatprep.mubr.bf16.mxu0 %v10557
  %10777 = vmatmul.mubr.bf16.gmra.mxu0 %v10423
  %v10778 = vpop.f32.mrf.mxu0
  %v10779 = vadd.f32 0.0, %v10778
  %v10780 = vpop.f32.mrf.mxu0
  %v10781 = vpop.f32.mrf.mxu0
  %v10782 = vadd.f32 0.0, %v10781
  %v10783 = vpop.f32.mrf.mxu0
  %10784 = vmatprep.mubr.bf16.mxu0 %v10560
  %10785 = vmatmul.mubr.bf16.gmra.mxu0 %v10425
  %v10786 = vpop.f32.mrf.mxu0
  %v10787 = vadd.f32 0.0, %v10786
  %v10788 = vpop.f32.mrf.mxu0
  %v10789 = vpop.f32.mrf.mxu0
  %v10790 = vadd.f32 0.0, %v10789
  %v10791 = vpop.f32.mrf.mxu0
  %10792 = vmatprep.mubr.bf16.mxu0 %v10563
  %10793 = vmatmul.mubr.bf16.gmra.mxu0 %v10427
  %v10794 = vpop.f32.mrf.mxu0
  %v10795 = vadd.f32 0.0, %v10794
  %v10796 = vpop.f32.mrf.mxu0
  %v10797 = vpop.f32.mrf.mxu0
  %v10798 = vadd.f32 0.0, %v10797
  %v10799 = vpop.f32.mrf.mxu0
  %10800 = vmatprep.mubr.bf16.mxu0 %v10566
  %10801 = vmatmul.mubr.bf16.gmra.mxu0 %v10429
  %v10802 = vpop.f32.mrf.mxu0
  %v10803 = vadd.f32 0.0, %v10802
  %v10804 = vpop.f32.mrf.mxu0
  %v10805 = vpop.f32.mrf.mxu0
  %v10806 = vadd.f32 0.0, %v10805
  %v10807 = vpop.f32.mrf.mxu0
  %10808 = vmatprep.mubr.bf16.mxu0 %v10569
  %10809 = vmatmul.mubr.bf16.gmra.mxu0 %v10431
  %v10810 = vpop.f32.mrf.mxu0
  %v10811 = vadd.f32 0.0, %v10810
  %v10812 = vpop.f32.mrf.mxu0
  %v10813 = vpop.f32.mrf.mxu0
  %v10814 = vadd.f32 0.0, %v10813
  %v10815 = vpop.f32.mrf.mxu0
  %10816 = vmatprep.mubr.bf16.mxu0 %v10572
  %10817 = vmatmul.mubr.bf16.gmra.mxu0 %v10433
  %v10818 = vpop.f32.mrf.mxu0
  %v10819 = vadd.f32 0.0, %v10818
  %v10820 = vpop.f32.mrf.mxu0
  %v10821 = vpop.f32.mrf.mxu0
  %v10822 = vadd.f32 0.0, %v10821
  %v10823 = vpop.f32.mrf.mxu0
  %10824 = vmatprep.mubr.bf16.mxu0 %v10575
  %10825 = vmatmul.mubr.bf16.gmra.mxu0 %v10435
  %v10826 = vpop.f32.mrf.mxu0
  %v10827 = vadd.f32 0.0, %v10826
  %v10828 = vpop.f32.mrf.mxu0
  %v10829 = vpop.f32.mrf.mxu0
  %v10830 = vadd.f32 0.0, %v10829
  %v10831 = vpop.f32.mrf.mxu0
  %10832 = vmatprep.mubr.bf16.mxu0 %v10578
  %10833 = vmatmul.mubr.bf16.gmra.mxu0 %v10437
  %v10834 = vpop.f32.mrf.mxu0
  %v10835 = vadd.f32 0.0, %v10834
  %v10836 = vpop.f32.mrf.mxu0
  %v10837 = vpop.f32.mrf.mxu0
  %v10838 = vadd.f32 0.0, %v10837
  %v10839 = vpop.f32.mrf.mxu0
  %10840 = vmatprep.mubr.bf16.mxu0 %v10581
  %10841 = vmatmul.mubr.bf16.gmra.mxu0 %v10439
  %v10842 = vpop.f32.mrf.mxu0
  %v10843 = vadd.f32 0.0, %v10842
  %v10844 = vpop.f32.mrf.mxu0
  %v10845 = vpop.f32.mrf.mxu0
  %v10846 = vadd.f32 0.0, %v10845
  %v10847 = vpop.f32.mrf.mxu0
  %10848 = vmatprep.mubr.bf16.mxu0 %v10584
  %10849 = vmatmul.mubr.bf16.gmra.mxu0 %v10441
  %v10850 = vpop.f32.mrf.mxu0
  %v10851 = vadd.f32 0.0, %v10850
  %v10852 = vpop.f32.mrf.mxu0
  %v10853 = vpop.f32.mrf.mxu0
  %v10854 = vadd.f32 0.0, %v10853
  %v10855 = vpop.f32.mrf.mxu0
  %10856 = vmatprep.mubr.bf16.mxu0 %v10587
  %10857 = vmatmul.mubr.bf16.gmra.mxu0 %v10443
  %v10858 = vpop.f32.mrf.mxu0
  %v10859 = vadd.f32 0.0, %v10858
  %v10860 = vpop.f32.mrf.mxu0
  %v10861 = vpop.f32.mrf.mxu0
  %v10862 = vadd.f32 0.0, %v10861
  %v10863 = vpop.f32.mrf.mxu0
  %10864 = vmatprep.mubr.bf16.mxu0 %v10590
  %10865 = vmatmul.mubr.bf16.gmra.mxu0 %v10445
  %v10866 = vpop.f32.mrf.mxu0
  %v10867 = vadd.f32 0.0, %v10866
  %v10868 = vpop.f32.mrf.mxu0
  %v10869 = vpop.f32.mrf.mxu0
  %v10870 = vadd.f32 0.0, %v10869
  %v10871 = vpop.f32.mrf.mxu0
  %10872 = vmatprep.mubr.bf16.mxu0 %v10587
  %10873 = vmatmul.mubr.bf16.gmra.mxu0 %v10447
  %v10874 = vpop.f32.mrf.mxu0
  %v10875 = vadd.f32 0.0, %v10874
  %v10876 = vpop.f32.mrf.mxu0
  %v10877 = vpop.f32.mrf.mxu0
  %v10878 = vadd.f32 0.0, %v10877
  %v10879 = vpop.f32.mrf.mxu0
  %10880 = vdwg.mxu0
  %v10881 = vsel %vm6419, %v10627, 0.0
  %v10882 = vsel %vm6419, %v10630, 0.0
  %v10883 = vadd.f32 %v10881, %v10882
  %v10884 = vsel %vm6419, %v10635, 0.0
  %v10885 = vadd.f32 %v10883, %v10884
  %v10886 = vsel %vm6419, %v10638, 0.0
  %v10887 = vadd.f32 %v10885, %v10886
  %v10888 = vsel %vm6419, %v10643, 0.0
  %v10889 = vadd.f32 %v10887, %v10888
  %v10890 = vsel %vm6419, %v10646, 0.0
  %v10891 = vadd.f32 %v10889, %v10890
  %v10892 = vsel %vm6419, %v10651, 0.0
  %v10893 = vadd.f32 %v10891, %v10892
  %v10894 = vsel %vm6419, %v10654, 0.0
  %v10895 = vadd.f32 %v10893, %v10894
  %v10896 = vsel %vm6419, %v10659, 0.0
  %v10897 = vadd.f32 %v10895, %v10896
  %v10898 = vsel %vm6419, %v10662, 0.0
  %v10899 = vadd.f32 %v10897, %v10898
  %v10900 = vsel %vm6419, %v10667, 0.0
  %v10901 = vadd.f32 %v10899, %v10900
  %v10902 = vsel %vm6419, %v10670, 0.0
  %v10903 = vadd.f32 %v10901, %v10902
  %v10904 = vsel %vm6419, %v10675, 0.0
  %v10905 = vadd.f32 %v10903, %v10904
  %v10906 = vsel %vm6419, %v10678, 0.0
  %v10907 = vadd.f32 %v10905, %v10906
  %v10908 = vsel %vm6419, %v10683, 0.0
  %v10909 = vadd.f32 %v10907, %v10908
  %v10910 = vsel %vm6419, %v10686, 0.0
  %v10911 = vadd.f32 %v10909, %v10910
  %v10912 = vsel %vm6419, %v10691, 0.0
  %v10913 = vadd.f32 %v10911, %v10912
  %v10914 = vsel %vm6419, %v10694, 0.0
  %v10915 = vadd.f32 %v10913, %v10914
  %v10916 = vsel %vm6419, %v10699, 0.0
  %v10917 = vadd.f32 %v10915, %v10916
  %v10918 = vsel %vm6419, %v10702, 0.0
  %v10919 = vadd.f32 %v10917, %v10918
  %v10920 = vsel %vm6419, %v10707, 0.0
  %v10921 = vadd.f32 %v10919, %v10920
  %v10922 = vsel %vm6419, %v10710, 0.0
  %v10923 = vadd.f32 %v10921, %v10922
  %v10924 = vsel %vm6419, %v10715, 0.0
  %v10925 = vadd.f32 %v10923, %v10924
  %v10926 = vsel %vm6419, %v10718, 0.0
  %v10927 = vadd.f32 %v10925, %v10926
  %v10928 = vsel %vm6419, %v10723, 0.0
  %v10929 = vadd.f32 %v10927, %v10928
  %v10930 = vsel %vm6419, %v10726, 0.0
  %v10931 = vadd.f32 %v10929, %v10930
  %v10932 = vsel %vm6419, %v10731, 0.0
  %v10933 = vadd.f32 %v10931, %v10932
  %v10934 = vsel %vm6419, %v10734, 0.0
  %v10935 = vadd.f32 %v10933, %v10934
  %v10936 = vsel %vm6419, %v10739, 0.0
  %v10937 = vadd.f32 %v10935, %v10936
  %v10938 = vsel %vm6419, %v10742, 0.0
  %v10939 = vadd.f32 %v10937, %v10938
  %v10940 = vsel %vm6419, %v10747, 0.0
  %v10941 = vadd.f32 %v10939, %v10940
  %v10942 = vsel %vm6419, %v10750, 0.0
  %v10943 = vadd.f32 %v10941, %v10942
  %v10944 = vsel %vm6419, %v10755, 0.0
  %v10945 = vadd.f32 %v10943, %v10944
  %v10946 = vsel %vm6419, %v10758, 0.0
  %v10947 = vadd.f32 %v10945, %v10946
  %v10948 = vsel %vm6419, %v10763, 0.0
  %v10949 = vadd.f32 %v10947, %v10948
  %v10950 = vsel %vm6419, %v10766, 0.0
  %v10951 = vadd.f32 %v10949, %v10950
  %v10952 = vsel %vm6419, %v10771, 0.0
  %v10953 = vadd.f32 %v10951, %v10952
  %v10954 = vsel %vm6419, %v10774, 0.0
  %v10955 = vadd.f32 %v10953, %v10954
  %v10956 = vsel %vm6419, %v10779, 0.0
  %v10957 = vadd.f32 %v10955, %v10956
  %v10958 = vsel %vm6419, %v10782, 0.0
  %v10959 = vadd.f32 %v10957, %v10958
  %v10960 = vsel %vm6419, %v10787, 0.0
  %v10961 = vadd.f32 %v10959, %v10960
  %v10962 = vsel %vm6419, %v10790, 0.0
  %v10963 = vadd.f32 %v10961, %v10962
  %v10964 = vsel %vm6419, %v10795, 0.0
  %v10965 = vadd.f32 %v10963, %v10964
  %v10966 = vsel %vm6419, %v10798, 0.0
  %v10967 = vadd.f32 %v10965, %v10966
  %v10968 = vsel %vm6419, %v10803, 0.0
  %v10969 = vadd.f32 %v10967, %v10968
  %v10970 = vsel %vm6419, %v10806, 0.0
  %v10971 = vadd.f32 %v10969, %v10970
  %v10972 = vsel %vm6419, %v10811, 0.0
  %v10973 = vadd.f32 %v10971, %v10972
  %v10974 = vsel %vm6419, %v10814, 0.0
  %v10975 = vadd.f32 %v10973, %v10974
  %v10976 = vsel %vm6419, %v10819, 0.0
  %v10977 = vadd.f32 %v10975, %v10976
  %v10978 = vsel %vm6419, %v10822, 0.0
  %v10979 = vadd.f32 %v10977, %v10978
  %v10980 = vsel %vm6419, %v10827, 0.0
  %v10981 = vadd.f32 %v10979, %v10980
  %v10982 = vsel %vm6419, %v10830, 0.0
  %v10983 = vadd.f32 %v10981, %v10982
  %v10984 = vsel %vm6419, %v10835, 0.0
  %v10985 = vadd.f32 %v10983, %v10984
  %v10986 = vsel %vm6419, %v10838, 0.0
  %v10987 = vadd.f32 %v10985, %v10986
  %v10988 = vsel %vm6419, %v10843, 0.0
  %v10989 = vadd.f32 %v10987, %v10988
  %v10990 = vsel %vm6419, %v10846, 0.0
  %v10991 = vadd.f32 %v10989, %v10990
  %v10992 = vsel %vm6419, %v10851, 0.0
  %v10993 = vadd.f32 %v10991, %v10992
  %v10994 = vsel %vm6419, %v10854, 0.0
  %v10995 = vadd.f32 %v10993, %v10994
  %v10996 = vsel %vm6419, %v10859, 0.0
  %v10997 = vadd.f32 %v10995, %v10996
  %v10998 = vsel %vm6419, %v10862, 0.0
  %v10999 = vadd.f32 %v10997, %v10998
  %v11000 = vsel %vm6419, %v10867, 0.0
  %v11001 = vadd.f32 %v10999, %v11000
  %v11002 = vsel %vm6419, %v10870, 0.0
  %v11003 = vadd.f32 %v11001, %v11002
  %v11004 = vsel %vm6419, %v10875, 0.0
  %v11005 = vadd.f32 %v11003, %v11004
  %v11006 = vsel %vm6419, %v10878, 0.0
  %v11007 = vadd.f32 %v11005, %v11006
  %v11008 = vrot.slane %v11007, 4
  %v11009 = vadd.f32 %v11007, %v11008
  %v11010 = vrot.slane %v11009, 2
  %v11011 = vadd.f32 %v11009, %v11010
  %v11012 = vrot.slane %v11011, 1
  %v11013 = vadd.f32 %v11011, %v11012
  %v11014 = vmul.f32 %v10627, %v10627
  %v11015 = vmul.f32 %v10630, %v10630
  %v11016 = vmul.f32 %v10635, %v10635
  %v11017 = vmul.f32 %v10638, %v10638
  %v11018 = vmul.f32 %v10643, %v10643
  %v11019 = vmul.f32 %v10646, %v10646
  %v11020 = vmul.f32 %v10651, %v10651
  %v11021 = vmul.f32 %v10654, %v10654
  %v11022 = vmul.f32 %v10659, %v10659
  %v11023 = vmul.f32 %v10662, %v10662
  %v11024 = vmul.f32 %v10667, %v10667
  %v11025 = vmul.f32 %v10670, %v10670
  %v11026 = vmul.f32 %v10675, %v10675
  %v11027 = vmul.f32 %v10678, %v10678
  %v11028 = vmul.f32 %v10683, %v10683
  %v11029 = vmul.f32 %v10686, %v10686
  %v11030 = vmul.f32 %v10691, %v10691
  %v11031 = vmul.f32 %v10694, %v10694
  %v11032 = vmul.f32 %v10699, %v10699
  %v11033 = vmul.f32 %v10702, %v10702
  %v11034 = vmul.f32 %v10707, %v10707
  %v11035 = vmul.f32 %v10710, %v10710
  %v11036 = vmul.f32 %v10715, %v10715
  %v11037 = vmul.f32 %v10718, %v10718
  %v11038 = vmul.f32 %v10723, %v10723
  %v11039 = vmul.f32 %v10726, %v10726
  %v11040 = vmul.f32 %v10731, %v10731
  %v11041 = vmul.f32 %v10734, %v10734
  %v11042 = vmul.f32 %v10739, %v10739
  %v11043 = vmul.f32 %v10742, %v10742
  %v11044 = vmul.f32 %v10747, %v10747
  %v11045 = vmul.f32 %v10750, %v10750
  %v11046 = vmul.f32 %v10755, %v10755
  %v11047 = vmul.f32 %v10758, %v10758
  %v11048 = vmul.f32 %v10763, %v10763
  %v11049 = vmul.f32 %v10766, %v10766
  %v11050 = vmul.f32 %v10771, %v10771
  %v11051 = vmul.f32 %v10774, %v10774
  %v11052 = vmul.f32 %v10779, %v10779
  %v11053 = vmul.f32 %v10782, %v10782
  %v11054 = vmul.f32 %v10787, %v10787
  %v11055 = vmul.f32 %v10790, %v10790
  %v11056 = vmul.f32 %v10795, %v10795
  %v11057 = vmul.f32 %v10798, %v10798
  %v11058 = vmul.f32 %v10803, %v10803
  %v11059 = vmul.f32 %v10806, %v10806
  %v11060 = vmul.f32 %v10811, %v10811
  %v11061 = vmul.f32 %v10814, %v10814
  %v11062 = vmul.f32 %v10819, %v10819
  %v11063 = vmul.f32 %v10822, %v10822
  %v11064 = vmul.f32 %v10827, %v10827
  %v11065 = vmul.f32 %v10830, %v10830
  %v11066 = vmul.f32 %v10835, %v10835
  %v11067 = vmul.f32 %v10838, %v10838
  %v11068 = vmul.f32 %v10843, %v10843
  %v11069 = vmul.f32 %v10846, %v10846
  %v11070 = vmul.f32 %v10851, %v10851
  %v11071 = vmul.f32 %v10854, %v10854
  %v11072 = vmul.f32 %v10859, %v10859
  %v11073 = vmul.f32 %v10862, %v10862
  %v11074 = vmul.f32 %v10867, %v10867
  %v11075 = vmul.f32 %v10870, %v10870
  %v11076 = vmul.f32 %v10875, %v10875
  %v11077 = vmul.f32 %v10878, %v10878
  %v11078 = vsel %vm6419, %v11014, 0.0
  %v11079 = vsel %vm6419, %v11015, 0.0
  %v11080 = vadd.f32 %v11078, %v11079
  %v11081 = vsel %vm6419, %v11016, 0.0
  %v11082 = vadd.f32 %v11080, %v11081
  %v11083 = vsel %vm6419, %v11017, 0.0
  %v11084 = vadd.f32 %v11082, %v11083
  %v11085 = vsel %vm6419, %v11018, 0.0
  %v11086 = vadd.f32 %v11084, %v11085
  %v11087 = vsel %vm6419, %v11019, 0.0
  %v11088 = vadd.f32 %v11086, %v11087
  %v11089 = vsel %vm6419, %v11020, 0.0
  %v11090 = vadd.f32 %v11088, %v11089
  %v11091 = vsel %vm6419, %v11021, 0.0
  %v11092 = vadd.f32 %v11090, %v11091
  %v11093 = vsel %vm6419, %v11022, 0.0
  %v11094 = vadd.f32 %v11092, %v11093
  %v11095 = vsel %vm6419, %v11023, 0.0
  %v11096 = vadd.f32 %v11094, %v11095
  %v11097 = vsel %vm6419, %v11024, 0.0
  %v11098 = vadd.f32 %v11096, %v11097
  %v11099 = vsel %vm6419, %v11025, 0.0
  %v11100 = vadd.f32 %v11098, %v11099
  %v11101 = vsel %vm6419, %v11026, 0.0
  %v11102 = vadd.f32 %v11100, %v11101
  %v11103 = vsel %vm6419, %v11027, 0.0
  %v11104 = vadd.f32 %v11102, %v11103
  %v11105 = vsel %vm6419, %v11028, 0.0
  %v11106 = vadd.f32 %v11104, %v11105
  %v11107 = vsel %vm6419, %v11029, 0.0
  %v11108 = vadd.f32 %v11106, %v11107
  %v11109 = vsel %vm6419, %v11030, 0.0
  %v11110 = vadd.f32 %v11108, %v11109
  %v11111 = vsel %vm6419, %v11031, 0.0
  %v11112 = vadd.f32 %v11110, %v11111
  %v11113 = vsel %vm6419, %v11032, 0.0
  %v11114 = vadd.f32 %v11112, %v11113
  %v11115 = vsel %vm6419, %v11033, 0.0
  %v11116 = vadd.f32 %v11114, %v11115
  %v11117 = vsel %vm6419, %v11034, 0.0
  %v11118 = vadd.f32 %v11116, %v11117
  %v11119 = vsel %vm6419, %v11035, 0.0
  %v11120 = vadd.f32 %v11118, %v11119
  %v11121 = vsel %vm6419, %v11036, 0.0
  %v11122 = vadd.f32 %v11120, %v11121
  %v11123 = vsel %vm6419, %v11037, 0.0
  %v11124 = vadd.f32 %v11122, %v11123
  %v11125 = vsel %vm6419, %v11038, 0.0
  %v11126 = vadd.f32 %v11124, %v11125
  %v11127 = vsel %vm6419, %v11039, 0.0
  %v11128 = vadd.f32 %v11126, %v11127
  %v11129 = vsel %vm6419, %v11040, 0.0
  %v11130 = vadd.f32 %v11128, %v11129
  %v11131 = vsel %vm6419, %v11041, 0.0
  %v11132 = vadd.f32 %v11130, %v11131
  %v11133 = vsel %vm6419, %v11042, 0.0
  %v11134 = vadd.f32 %v11132, %v11133
  %v11135 = vsel %vm6419, %v11043, 0.0
  %v11136 = vadd.f32 %v11134, %v11135
  %v11137 = vsel %vm6419, %v11044, 0.0
  %v11138 = vadd.f32 %v11136, %v11137
  %v11139 = vsel %vm6419, %v11045, 0.0
  %v11140 = vadd.f32 %v11138, %v11139
  %v11141 = vsel %vm6419, %v11046, 0.0
  %v11142 = vadd.f32 %v11140, %v11141
  %v11143 = vsel %vm6419, %v11047, 0.0
  %v11144 = vadd.f32 %v11142, %v11143
  %v11145 = vsel %vm6419, %v11048, 0.0
  %v11146 = vadd.f32 %v11144, %v11145
  %v11147 = vsel %vm6419, %v11049, 0.0
  %v11148 = vadd.f32 %v11146, %v11147
  %v11149 = vsel %vm6419, %v11050, 0.0
  %v11150 = vadd.f32 %v11148, %v11149
  %v11151 = vsel %vm6419, %v11051, 0.0
  %v11152 = vadd.f32 %v11150, %v11151
  %v11153 = vsel %vm6419, %v11052, 0.0
  %v11154 = vadd.f32 %v11152, %v11153
  %v11155 = vsel %vm6419, %v11053, 0.0
  %v11156 = vadd.f32 %v11154, %v11155
  %v11157 = vsel %vm6419, %v11054, 0.0
  %v11158 = vadd.f32 %v11156, %v11157
  %v11159 = vsel %vm6419, %v11055, 0.0
  %v11160 = vadd.f32 %v11158, %v11159
  %v11161 = vsel %vm6419, %v11056, 0.0
  %v11162 = vadd.f32 %v11160, %v11161
  %v11163 = vsel %vm6419, %v11057, 0.0
  %v11164 = vadd.f32 %v11162, %v11163
  %v11165 = vsel %vm6419, %v11058, 0.0
  %v11166 = vadd.f32 %v11164, %v11165
  %v11167 = vsel %vm6419, %v11059, 0.0
  %v11168 = vadd.f32 %v11166, %v11167
  %v11169 = vsel %vm6419, %v11060, 0.0
  %v11170 = vadd.f32 %v11168, %v11169
  %v11171 = vsel %vm6419, %v11061, 0.0
  %v11172 = vadd.f32 %v11170, %v11171
  %v11173 = vsel %vm6419, %v11062, 0.0
  %v11174 = vadd.f32 %v11172, %v11173
  %v11175 = vsel %vm6419, %v11063, 0.0
  %v11176 = vadd.f32 %v11174, %v11175
  %v11177 = vsel %vm6419, %v11064, 0.0
  %v11178 = vadd.f32 %v11176, %v11177
  %v11179 = vsel %vm6419, %v11065, 0.0
  %v11180 = vadd.f32 %v11178, %v11179
  %v11181 = vsel %vm6419, %v11066, 0.0
  %v11182 = vadd.f32 %v11180, %v11181
  %v11183 = vsel %vm6419, %v11067, 0.0
  %v11184 = vadd.f32 %v11182, %v11183
  %v11185 = vsel %vm6419, %v11068, 0.0
  %v11186 = vadd.f32 %v11184, %v11185
  %v11187 = vsel %vm6419, %v11069, 0.0
  %v11188 = vadd.f32 %v11186, %v11187
  %v11189 = vsel %vm6419, %v11070, 0.0
  %v11190 = vadd.f32 %v11188, %v11189
  %v11191 = vsel %vm6419, %v11071, 0.0
  %v11192 = vadd.f32 %v11190, %v11191
  %v11193 = vsel %vm6419, %v11072, 0.0
  %v11194 = vadd.f32 %v11192, %v11193
  %v11195 = vsel %vm6419, %v11073, 0.0
  %v11196 = vadd.f32 %v11194, %v11195
  %v11197 = vsel %vm6419, %v11074, 0.0
  %v11198 = vadd.f32 %v11196, %v11197
  %v11199 = vsel %vm6419, %v11075, 0.0
  %v11200 = vadd.f32 %v11198, %v11199
  %v11201 = vsel %vm6419, %v11076, 0.0
  %v11202 = vadd.f32 %v11200, %v11201
  %v11203 = vsel %vm6419, %v11077, 0.0
  %v11204 = vadd.f32 %v11202, %v11203
  %v11205 = vrot.slane %v11204, 4
  %v11206 = vadd.f32 %v11204, %v11205
  %v11207 = vrot.slane %v11206, 2
  %v11208 = vadd.f32 %v11206, %v11207
  %v11209 = vrot.slane %v11208, 1
  %v11210 = vadd.f32 %v11208, %v11209
  %v11211 = vmul.f32 %v11013, %v3702
  %v11212 = vmul.f32 %v11210, %v3702
  %v11213 = vmul.f32 %v11211, %v11211
  %v11214 = vsub.f32 %v11212, %v11213
  %v11215 = vmax.f32 %v11214, 0.0
  %v11216 = vadd.f32 %v11215, 1e-05
  %v11217 = vrsqrt.pop %v11216
  %v11218 = vmul.f32 %v7755, %v11217
  %v11219 = vmul.f32 %v11211, %v11218
  %v11220 = vsub.f32 %v7756, %v11219
  %v11222 = vlaneseq
  %v11223 = vshrl.u32 %v11222, 7
  %v11224 = vsub.s32 0, %v11223
  %v11225 = vrot.slane %v11218, %v11224
  %v11227 = vmul.f32 %v10627, %v11225
  %v11228 = vmul.f32 %v10630, %v11225
  %v11229 = vmul.f32 %v10635, %v11225
  %v11230 = vmul.f32 %v10638, %v11225
  %v11231 = vmul.f32 %v10643, %v11225
  %v11232 = vmul.f32 %v10646, %v11225
  %v11233 = vmul.f32 %v10651, %v11225
  %v11234 = vmul.f32 %v10654, %v11225
  %v11235 = vmul.f32 %v10659, %v11225
  %v11236 = vmul.f32 %v10662, %v11225
  %v11237 = vmul.f32 %v10667, %v11225
  %v11238 = vmul.f32 %v10670, %v11225
  %v11239 = vmul.f32 %v10675, %v11225
  %v11240 = vmul.f32 %v10678, %v11225
  %v11241 = vmul.f32 %v10683, %v11225
  %v11242 = vmul.f32 %v10686, %v11225
  %v11243 = vmul.f32 %v10691, %v11225
  %v11244 = vmul.f32 %v10694, %v11225
  %v11245 = vmul.f32 %v10699, %v11225
  %v11246 = vmul.f32 %v10702, %v11225
  %v11247 = vmul.f32 %v10707, %v11225
  %v11248 = vmul.f32 %v10710, %v11225
  %v11249 = vmul.f32 %v10715, %v11225
  %v11250 = vmul.f32 %v10718, %v11225
  %v11251 = vmul.f32 %v10723, %v11225
  %v11252 = vmul.f32 %v10726, %v11225
  %v11253 = vmul.f32 %v10731, %v11225
  %v11254 = vmul.f32 %v10734, %v11225
  %v11255 = vmul.f32 %v10739, %v11225
  %v11256 = vmul.f32 %v10742, %v11225
  %v11257 = vmul.f32 %v10747, %v11225
  %v11258 = vmul.f32 %v10750, %v11225
  %v11259 = vmul.f32 %v10755, %v11225
  %v11260 = vmul.f32 %v10758, %v11225
  %v11261 = vmul.f32 %v10763, %v11225
  %v11262 = vmul.f32 %v10766, %v11225
  %v11263 = vmul.f32 %v10771, %v11225
  %v11264 = vmul.f32 %v10774, %v11225
  %v11265 = vmul.f32 %v10779, %v11225
  %v11266 = vmul.f32 %v10782, %v11225
  %v11267 = vmul.f32 %v10787, %v11225
  %v11268 = vmul.f32 %v10790, %v11225
  %v11269 = vmul.f32 %v10795, %v11225
  %v11270 = vmul.f32 %v10798, %v11225
  %v11271 = vmul.f32 %v10803, %v11225
  %v11272 = vmul.f32 %v10806, %v11225
  %v11273 = vmul.f32 %v10811, %v11225
  %v11274 = vmul.f32 %v10814, %v11225
  %v11275 = vmul.f32 %v10819, %v11225
  %v11276 = vmul.f32 %v10822, %v11225
  %v11277 = vmul.f32 %v10827, %v11225
  %v11278 = vmul.f32 %v10830, %v11225
  %v11279 = vmul.f32 %v10835, %v11225
  %v11280 = vmul.f32 %v10838, %v11225
  %v11281 = vmul.f32 %v10843, %v11225
  %v11282 = vmul.f32 %v10846, %v11225
  %v11283 = vmul.f32 %v10851, %v11225
  %v11284 = vmul.f32 %v10854, %v11225
  %v11285 = vmul.f32 %v10859, %v11225
  %v11286 = vmul.f32 %v10862, %v11225
  %v11287 = vmul.f32 %v10867, %v11225
  %v11288 = vmul.f32 %v10870, %v11225
  %v11289 = vmul.f32 %v10875, %v11225
  %v11290 = vmul.f32 %v10878, %v11225
  %v11292 = vlaneseq
  %v11293 = vshrl.u32 %v11292, 7
  %v11294 = vsub.s32 0, %v11293
  %v11295 = vrot.slane %v11220, %v11294
  %v11297 = vadd.f32 %v11227, %v11295
  %v11298 = vadd.f32 %v11228, %v11295
  %v11299 = vadd.f32 %v11229, %v11295
  %v11300 = vadd.f32 %v11230, %v11295
  %v11301 = vadd.f32 %v11231, %v11295
  %v11302 = vadd.f32 %v11232, %v11295
  %v11303 = vadd.f32 %v11233, %v11295
  %v11304 = vadd.f32 %v11234, %v11295
  %v11305 = vadd.f32 %v11235, %v11295
  %v11306 = vadd.f32 %v11236, %v11295
  %v11307 = vadd.f32 %v11237, %v11295
  %v11308 = vadd.f32 %v11238, %v11295
  %v11309 = vadd.f32 %v11239, %v11295
  %v11310 = vadd.f32 %v11240, %v11295
  %v11311 = vadd.f32 %v11241, %v11295
  %v11312 = vadd.f32 %v11242, %v11295
  %v11313 = vadd.f32 %v11243, %v11295
  %v11314 = vadd.f32 %v11244, %v11295
  %v11315 = vadd.f32 %v11245, %v11295
  %v11316 = vadd.f32 %v11246, %v11295
  %v11317 = vadd.f32 %v11247, %v11295
  %v11318 = vadd.f32 %v11248, %v11295
  %v11319 = vadd.f32 %v11249, %v11295
  %v11320 = vadd.f32 %v11250, %v11295
  %v11321 = vadd.f32 %v11251, %v11295
  %v11322 = vadd.f32 %v11252, %v11295
  %v11323 = vadd.f32 %v11253, %v11295
  %v11324 = vadd.f32 %v11254, %v11295
  %v11325 = vadd.f32 %v11255, %v11295
  %v11326 = vadd.f32 %v11256, %v11295
  %v11327 = vadd.f32 %v11257, %v11295
  %v11328 = vadd.f32 %v11258, %v11295
  %v11329 = vadd.f32 %v11259, %v11295
  %v11330 = vadd.f32 %v11260, %v11295
  %v11331 = vadd.f32 %v11261, %v11295
  %v11332 = vadd.f32 %v11262, %v11295
  %v11333 = vadd.f32 %v11263, %v11295
  %v11334 = vadd.f32 %v11264, %v11295
  %v11335 = vadd.f32 %v11265, %v11295
  %v11336 = vadd.f32 %v11266, %v11295
  %v11337 = vadd.f32 %v11267, %v11295
  %v11338 = vadd.f32 %v11268, %v11295
  %v11339 = vadd.f32 %v11269, %v11295
  %v11340 = vadd.f32 %v11270, %v11295
  %v11341 = vadd.f32 %v11271, %v11295
  %v11342 = vadd.f32 %v11272, %v11295
  %v11343 = vadd.f32 %v11273, %v11295
  %v11344 = vadd.f32 %v11274, %v11295
  %v11345 = vadd.f32 %v11275, %v11295
  %v11346 = vadd.f32 %v11276, %v11295
  %v11347 = vadd.f32 %v11277, %v11295
  %v11348 = vadd.f32 %v11278, %v11295
  %v11349 = vadd.f32 %v11279, %v11295
  %v11350 = vadd.f32 %v11280, %v11295
  %v11351 = vadd.f32 %v11281, %v11295
  %v11352 = vadd.f32 %v11282, %v11295
  %v11353 = vadd.f32 %v11283, %v11295
  %v11354 = vadd.f32 %v11284, %v11295
  %v11355 = vadd.f32 %v11285, %v11295
  %v11356 = vadd.f32 %v11286, %v11295
  %v11357 = vadd.f32 %v11287, %v11295
  %v11358 = vadd.f32 %v11288, %v11295
  %v11359 = vadd.f32 %v11289, %v11295
  %v11360 = vadd.f32 %v11290, %v11295
  %v11361 = vmax.f32 %v11297, 0.0
  %v11362 = vmax.f32 %v11298, 0.0
  %v11363 = vmax.f32 %v11299, 0.0
  %v11364 = vmax.f32 %v11300, 0.0
  %v11365 = vmax.f32 %v11301, 0.0
  %v11366 = vmax.f32 %v11302, 0.0
  %v11367 = vmax.f32 %v11303, 0.0
  %v11368 = vmax.f32 %v11304, 0.0
  %v11369 = vmax.f32 %v11305, 0.0
  %v11370 = vmax.f32 %v11306, 0.0
  %v11371 = vmax.f32 %v11307, 0.0
  %v11372 = vmax.f32 %v11308, 0.0
  %v11373 = vmax.f32 %v11309, 0.0
  %v11374 = vmax.f32 %v11310, 0.0
  %v11375 = vmax.f32 %v11311, 0.0
  %v11376 = vmax.f32 %v11312, 0.0
  %v11377 = vmax.f32 %v11313, 0.0
  %v11378 = vmax.f32 %v11314, 0.0
  %v11379 = vmax.f32 %v11315, 0.0
  %v11380 = vmax.f32 %v11316, 0.0
  %v11381 = vmax.f32 %v11317, 0.0
  %v11382 = vmax.f32 %v11318, 0.0
  %v11383 = vmax.f32 %v11319, 0.0
  %v11384 = vmax.f32 %v11320, 0.0
  %v11385 = vmax.f32 %v11321, 0.0
  %v11386 = vmax.f32 %v11322, 0.0
  %v11387 = vmax.f32 %v11323, 0.0
  %v11388 = vmax.f32 %v11324, 0.0
  %v11389 = vmax.f32 %v11325, 0.0
  %v11390 = vmax.f32 %v11326, 0.0
  %v11391 = vmax.f32 %v11327, 0.0
  %v11392 = vmax.f32 %v11328, 0.0
  %v11393 = vmax.f32 %v11329, 0.0
  %v11394 = vmax.f32 %v11330, 0.0
  %v11395 = vmax.f32 %v11331, 0.0
  %v11396 = vmax.f32 %v11332, 0.0
  %v11397 = vmax.f32 %v11333, 0.0
  %v11398 = vmax.f32 %v11334, 0.0
  %v11399 = vmax.f32 %v11335, 0.0
  %v11400 = vmax.f32 %v11336, 0.0
  %v11401 = vmax.f32 %v11337, 0.0
  %v11402 = vmax.f32 %v11338, 0.0
  %v11403 = vmax.f32 %v11339, 0.0
  %v11404 = vmax.f32 %v11340, 0.0
  %v11405 = vmax.f32 %v11341, 0.0
  %v11406 = vmax.f32 %v11342, 0.0
  %v11407 = vmax.f32 %v11343, 0.0
  %v11408 = vmax.f32 %v11344, 0.0
  %v11409 = vmax.f32 %v11345, 0.0
  %v11410 = vmax.f32 %v11346, 0.0
  %v11411 = vmax.f32 %v11347, 0.0
  %v11412 = vmax.f32 %v11348, 0.0
  %v11413 = vmax.f32 %v11349, 0.0
  %v11414 = vmax.f32 %v11350, 0.0
  %v11415 = vmax.f32 %v11351, 0.0
  %v11416 = vmax.f32 %v11352, 0.0
  %v11417 = vmax.f32 %v11353, 0.0
  %v11418 = vmax.f32 %v11354, 0.0
  %v11419 = vmax.f32 %v11355, 0.0
  %v11420 = vmax.f32 %v11356, 0.0
  %v11421 = vmax.f32 %v11357, 0.0
  %v11422 = vmax.f32 %v11358, 0.0
  %v11423 = vmax.f32 %v11359, 0.0
  %v11424 = vmax.f32 %v11360, 0.0
  %v11425 = vld [vmem:[%s10] sm:$0xf]
  %v11426 = vld [vmem:[%s10 + $0x4] sm:$0xf]
  %v11427 = vld [vmem:[%s10 + $0x8] sm:$0xf]
  %v11428 = vld [vmem:[%s10 + $0xc] sm:$0xf]
  %v11429 = vld [vmem:[%s10 + $0x10] sm:$0xf]
  %v11430 = vld [vmem:[%s10 + $0x14] sm:$0xf]
  %v11431 = vld [vmem:[%s10 + $0x18] sm:$0xf]
  %v11432 = vld [vmem:[%s10 + $0x1c] sm:$0xf]
  %v11433 = vld [vmem:[%s10 + $0x20] sm:$0xf]
  %v11434 = vld [vmem:[%s10 + $0x24] sm:$0xf]
  %v11435 = vld [vmem:[%s10 + $0x28] sm:$0xf]
  %v11436 = vld [vmem:[%s10 + $0x2c] sm:$0xf]
  %v11437 = vld [vmem:[%s10 + $0x30] sm:$0xf]
  %v11438 = vld [vmem:[%s10 + $0x34] sm:$0xf]
  %v11439 = vld [vmem:[%s10 + $0x38] sm:$0xf]
  %v11440 = vld [vmem:[%s10 + $0x3c] sm:$0xf]
  %v11441 = vld [vmem:[%s10 + $0x40] sm:$0xf]
  %v11442 = vld [vmem:[%s10 + $0x44] sm:$0xf]
  %v11443 = vld [vmem:[%s10 + $0x48] sm:$0xf]
  %v11444 = vld [vmem:[%s10 + $0x4c] sm:$0xf]
  %v11445 = vld [vmem:[%s10 + $0x50] sm:$0xf]
  %v11446 = vld [vmem:[%s10 + $0x54] sm:$0xf]
  %v11447 = vld [vmem:[%s10 + $0x58] sm:$0xf]
  %v11448 = vld [vmem:[%s10 + $0x5c] sm:$0xf]
  %v11449 = vld [vmem:[%s10 + $0x60] sm:$0xf]
  %v11450 = vld [vmem:[%s10 + $0x64] sm:$0xf]
  %v11451 = vld [vmem:[%s10 + $0x68] sm:$0xf]
  %v11452 = vld [vmem:[%s10 + $0x6c] sm:$0xf]
  %v11453 = vld [vmem:[%s10 + $0x70] sm:$0xf]
  %v11454 = vld [vmem:[%s10 + $0x74] sm:$0xf]
  %v11455 = vld [vmem:[%s10 + $0x78] sm:$0xf]
  %v11456 = vld [vmem:[%s10 + $0x7c] sm:$0xf]
  %v11457 = vld [vmem:[%s10 + $0x80] sm:$0xf]
  %v11458 = vld [vmem:[%s10 + $0x84] sm:$0xf]
  %v11459 = vld [vmem:[%s10 + $0x88] sm:$0xf]
  %v11460 = vld [vmem:[%s10 + $0x8c] sm:$0xf]
  %v11461 = vld [vmem:[%s11] sm:$0x1]
  %v11462 = vld [vmem:[%s12] sm:$0x1]
  %v11495 = vrot.slane %v11363, 1
  %v11496 = vrot.slane %v11361, 1
  %v11497 = vrot.slane %v11365, 1
  %v11498 = vrot.slane %v11367, 1
  %v11499 = vrot.slane %v11369, 1
  %v11500 = vrot.slane %v11371, 1
  %v11501 = vrot.slane %v11373, 1
  %v11502 = vrot.slane %v11375, 1
  %v11503 = vrot.slane %v11377, 1
  %v11504 = vrot.slane %v11379, 1
  %v11505 = vrot.slane %v11381, 1
  %v11506 = vrot.slane %v11383, 1
  %v11507 = vrot.slane %v11385, 1
  %v11508 = vrot.slane %v11387, 1
  %v11509 = vrot.slane %v11389, 1
  %v11510 = vrot.slane %v11391, 1
  %v11511 = vrot.slane %v11395, 1
  %v11512 = vrot.slane %v11393, 1
  %v11513 = vrot.slane %v11397, 1
  %v11514 = vrot.slane %v11399, 1
  %v11515 = vrot.slane %v11401, 1
  %v11516 = vrot.slane %v11403, 1
  %v11517 = vrot.slane %v11405, 1
  %v11518 = vrot.slane %v11407, 1
  %v11519 = vrot.slane %v11409, 1
  %v11520 = vrot.slane %v11411, 1
  %v11521 = vrot.slane %v11413, 1
  %v11522 = vrot.slane %v11415, 1
  %v11523 = vrot.slane %v11417, 1
  %v11524 = vrot.slane %v11419, 1
  %v11525 = vrot.slane %v11421, 1
  %v11526 = vrot.slane %v11423, 1
  %v11591 = vrot.slane %v11363, 7
  %v11592 = vrot.slane %v11364, 7
  %v11593 = vsel %vm243, %v11591, %v11592
  %v11594 = vrot.slane %v11361, 7
  %v11595 = vrot.slane %v11362, 7
  %v11596 = vsel %vm243, %v11594, %v11595
  %v11597 = vrot.slane %v11365, 7
  %v11598 = vrot.slane %v11366, 7
  %v11599 = vsel %vm243, %v11597, %v11598
  %v11600 = vrot.slane %v11367, 7
  %v11601 = vrot.slane %v11368, 7
  %v11602 = vsel %vm243, %v11600, %v11601
  %v11603 = vrot.slane %v11369, 7
  %v11604 = vrot.slane %v11370, 7
  %v11605 = vsel %vm243, %v11603, %v11604
  %v11606 = vrot.slane %v11371, 7
  %v11607 = vrot.slane %v11372, 7
  %v11608 = vsel %vm243, %v11606, %v11607
  %v11609 = vrot.slane %v11373, 7
  %v11610 = vrot.slane %v11374, 7
  %v11611 = vsel %vm243, %v11609, %v11610
  %v11612 = vrot.slane %v11375, 7
  %v11613 = vrot.slane %v11376, 7
  %v11614 = vsel %vm243, %v11612, %v11613
  %v11615 = vrot.slane %v11377, 7
  %v11616 = vrot.slane %v11378, 7
  %v11617 = vsel %vm243, %v11615, %v11616
  %v11618 = vrot.slane %v11379, 7
  %v11619 = vrot.slane %v11380, 7
  %v11620 = vsel %vm243, %v11618, %v11619
  %v11621 = vrot.slane %v11381, 7
  %v11622 = vrot.slane %v11382, 7
  %v11623 = vsel %vm243, %v11621, %v11622
  %v11624 = vrot.slane %v11383, 7
  %v11625 = vrot.slane %v11384, 7
  %v11626 = vsel %vm243, %v11624, %v11625
  %v11627 = vrot.slane %v11385, 7
  %v11628 = vrot.slane %v11386, 7
  %v11629 = vsel %vm243, %v11627, %v11628
  %v11630 = vrot.slane %v11387, 7
  %v11631 = vrot.slane %v11388, 7
  %v11632 = vsel %vm243, %v11630, %v11631
  %v11633 = vrot.slane %v11389, 7
  %v11634 = vrot.slane %v11390, 7
  %v11635 = vsel %vm243, %v11633, %v11634
  %v11636 = vrot.slane %v11391, 7
  %v11637 = vrot.slane %v11392, 7
  %v11638 = vsel %vm243, %v11636, %v11637
  %v11639 = vrot.slane %v11395, 7
  %v11640 = vrot.slane %v11396, 7
  %v11641 = vsel %vm243, %v11639, %v11640
  %v11642 = vrot.slane %v11393, 7
  %v11643 = vrot.slane %v11394, 7
  %v11644 = vsel %vm243, %v11642, %v11643
  %v11645 = vrot.slane %v11397, 7
  %v11646 = vrot.slane %v11398, 7
  %v11647 = vsel %vm243, %v11645, %v11646
  %v11648 = vrot.slane %v11399, 7
  %v11649 = vrot.slane %v11400, 7
  %v11650 = vsel %vm243, %v11648, %v11649
  %v11651 = vrot.slane %v11401, 7
  %v11652 = vrot.slane %v11402, 7
  %v11653 = vsel %vm243, %v11651, %v11652
  %v11654 = vrot.slane %v11403, 7
  %v11655 = vrot.slane %v11404, 7
  %v11656 = vsel %vm243, %v11654, %v11655
  %v11657 = vrot.slane %v11405, 7
  %v11658 = vrot.slane %v11406, 7
  %v11659 = vsel %vm243, %v11657, %v11658
  %v11660 = vrot.slane %v11407, 7
  %v11661 = vrot.slane %v11408, 7
  %v11662 = vsel %vm243, %v11660, %v11661
  %v11663 = vrot.slane %v11409, 7
  %v11664 = vrot.slane %v11410, 7
  %v11665 = vsel %vm243, %v11663, %v11664
  %v11666 = vrot.slane %v11411, 7
  %v11667 = vrot.slane %v11412, 7
  %v11668 = vsel %vm243, %v11666, %v11667
  %v11669 = vrot.slane %v11413, 7
  %v11670 = vrot.slane %v11414, 7
  %v11671 = vsel %vm243, %v11669, %v11670
  %v11672 = vrot.slane %v11415, 7
  %v11673 = vrot.slane %v11416, 7
  %v11674 = vsel %vm243, %v11672, %v11673
  %v11675 = vrot.slane %v11417, 7
  %v11676 = vrot.slane %v11418, 7
  %v11677 = vsel %vm243, %v11675, %v11676
  %v11678 = vrot.slane %v11419, 7
  %v11679 = vrot.slane %v11420, 7
  %v11680 = vsel %vm243, %v11678, %v11679
  %v11681 = vrot.slane %v11421, 7
  %v11682 = vrot.slane %v11422, 7
  %v11683 = vsel %vm243, %v11681, %v11682
  %v11684 = vrot.slane %v11423, 7
  %v11685 = vrot.slane %v11424, 7
  %v11686 = vsel %vm243, %v11684, %v11685
  %v11781 = vrot.slane %v11364, 5
  %v11782 = vrot.slane %v11362, 5
  %v11783 = vrot.slane %v11366, 5
  %v11784 = vrot.slane %v11368, 5
  %v11785 = vrot.slane %v11370, 5
  %v11786 = vrot.slane %v11372, 5
  %v11787 = vrot.slane %v11374, 5
  %v11788 = vrot.slane %v11376, 5
  %v11789 = vrot.slane %v11378, 5
  %v11790 = vrot.slane %v11380, 5
  %v11791 = vrot.slane %v11382, 5
  %v11792 = vrot.slane %v11384, 5
  %v11793 = vrot.slane %v11386, 5
  %v11794 = vrot.slane %v11388, 5
  %v11795 = vrot.slane %v11390, 5
  %v11796 = vrot.slane %v11392, 5
  %v11797 = vrot.slane %v11396, 5
  %v11798 = vrot.slane %v11394, 5
  %v11799 = vrot.slane %v11398, 5
  %v11800 = vrot.slane %v11400, 5
  %v11801 = vrot.slane %v11402, 5
  %v11802 = vrot.slane %v11404, 5
  %v11803 = vrot.slane %v11406, 5
  %v11804 = vrot.slane %v11408, 5
  %v11805 = vrot.slane %v11410, 5
  %v11806 = vrot.slane %v11412, 5
  %v11807 = vrot.slane %v11414, 5
  %v11808 = vrot.slane %v11416, 5
  %v11809 = vrot.slane %v11418, 5
  %v11810 = vrot.slane %v11420, 5
  %v11811 = vrot.slane %v11422, 5
  %v11812 = vrot.slane %v11424, 5
  %v11845 = vsel %vm243, %v11495, %v11591
  %v11846 = vsel %vm243, %v11496, %v11594
  %v11847 = vsel %vm243, %v11497, %v11597
  %v11848 = vsel %vm243, %v11498, %v11600
  %v11849 = vsel %vm243, %v11499, %v11603
  %v11850 = vsel %vm243, %v11500, %v11606
  %v11851 = vsel %vm243, %v11501, %v11609
  %v11852 = vsel %vm243, %v11502, %v11612
  %v11853 = vsel %vm243, %v11503, %v11615
  %v11854 = vsel %vm243, %v11504, %v11618
  %v11855 = vsel %vm243, %v11505, %v11621
  %v11856 = vsel %vm243, %v11506, %v11624
  %v11857 = vsel %vm243, %v11507, %v11627
  %v11858 = vsel %vm243, %v11508, %v11630
  %v11859 = vsel %vm243, %v11509, %v11633
  %v11860 = vsel %vm243, %v11510, %v11636
  %v11861 = vsel %vm243, %v11511, %v11639
  %v11862 = vsel %vm243, %v11512, %v11642
  %v11863 = vsel %vm243, %v11513, %v11645
  %v11864 = vsel %vm243, %v11514, %v11648
  %v11865 = vsel %vm243, %v11515, %v11651
  %v11866 = vsel %vm243, %v11516, %v11654
  %v11867 = vsel %vm243, %v11517, %v11657
  %v11868 = vsel %vm243, %v11518, %v11660
  %v11869 = vsel %vm243, %v11519, %v11663
  %v11870 = vsel %vm243, %v11520, %v11666
  %v11871 = vsel %vm243, %v11521, %v11669
  %v11872 = vsel %vm243, %v11522, %v11672
  %v11873 = vsel %vm243, %v11523, %v11675
  %v11874 = vsel %vm243, %v11524, %v11678
  %v11875 = vsel %vm243, %v11525, %v11681
  %v11876 = vsel %vm243, %v11526, %v11684
  %v11877 = vsel %vm243, %v11592, %v11781
  %v11878 = vsel %vm243, %v11595, %v11782
  %v11879 = vsel %vm243, %v11598, %v11783
  %v11880 = vsel %vm243, %v11601, %v11784
  %v11881 = vsel %vm243, %v11604, %v11785
  %v11882 = vsel %vm243, %v11607, %v11786
  %v11883 = vsel %vm243, %v11610, %v11787
  %v11884 = vsel %vm243, %v11613, %v11788
  %v11885 = vsel %vm243, %v11616, %v11789
  %v11886 = vsel %vm243, %v11619, %v11790
  %v11887 = vsel %vm243, %v11622, %v11791
  %v11888 = vsel %vm243, %v11625, %v11792
  %v11889 = vsel %vm243, %v11628, %v11793
  %v11890 = vsel %vm243, %v11631, %v11794
  %v11891 = vsel %vm243, %v11634, %v11795
  %v11892 = vsel %vm243, %v11637, %v11796
  %v11893 = vsel %vm243, %v11640, %v11797
  %v11894 = vsel %vm243, %v11643, %v11798
  %v11895 = vsel %vm243, %v11646, %v11799
  %v11896 = vsel %vm243, %v11649, %v11800
  %v11897 = vsel %vm243, %v11652, %v11801
  %v11898 = vsel %vm243, %v11655, %v11802
  %v11899 = vsel %vm243, %v11658, %v11803
  %v11900 = vsel %vm243, %v11661, %v11804
  %v11901 = vsel %vm243, %v11664, %v11805
  %v11902 = vsel %vm243, %v11667, %v11806
  %v11903 = vsel %vm243, %v11670, %v11807
  %v11904 = vsel %vm243, %v11673, %v11808
  %v11905 = vsel %vm243, %v11676, %v11809
  %v11906 = vsel %vm243, %v11679, %v11810
  %v11907 = vsel %vm243, %v11682, %v11811
  %v11908 = vsel %vm243, %v11685, %v11812
  %v11969 = vrot.slane %v11845, 1
  %v11970 = vrot.slane %v11593, 1
  %v11971 = vsel %vm622, %v11969, %v11970
  %v11972 = vrot.slane %v11877, 1
  %v11973 = vsel %vm622, %v11970, %v11972
  %v11974 = vrot.slane %v11846, 1
  %v11975 = vrot.slane %v11596, 1
  %v11976 = vsel %vm622, %v11974, %v11975
  %v11977 = vrot.slane %v11878, 1
  %v11978 = vsel %vm622, %v11975, %v11977
  %v11979 = vrot.slane %v11847, 1
  %v11980 = vrot.slane %v11599, 1
  %v11981 = vsel %vm622, %v11979, %v11980
  %v11982 = vrot.slane %v11879, 1
  %v11983 = vsel %vm622, %v11980, %v11982
  %v11984 = vrot.slane %v11848, 1
  %v11985 = vrot.slane %v11602, 1
  %v11986 = vsel %vm622, %v11984, %v11985
  %v11987 = vrot.slane %v11880, 1
  %v11988 = vsel %vm622, %v11985, %v11987
  %v11989 = vrot.slane %v11849, 1
  %v11990 = vrot.slane %v11605, 1
  %v11991 = vsel %vm622, %v11989, %v11990
  %v11992 = vrot.slane %v11881, 1
  %v11993 = vsel %vm622, %v11990, %v11992
  %v11994 = vrot.slane %v11850, 1
  %v11995 = vrot.slane %v11608, 1
  %v11996 = vsel %vm622, %v11994, %v11995
  %v11997 = vrot.slane %v11882, 1
  %v11998 = vsel %vm622, %v11995, %v11997
  %v11999 = vrot.slane %v11851, 1
  %v12000 = vrot.slane %v11611, 1
  %v12001 = vsel %vm622, %v11999, %v12000
  %v12002 = vrot.slane %v11883, 1
  %v12003 = vsel %vm622, %v12000, %v12002
  %v12004 = vrot.slane %v11852, 1
  %v12005 = vrot.slane %v11614, 1
  %v12006 = vsel %vm622, %v12004, %v12005
  %v12007 = vrot.slane %v11884, 1
  %v12008 = vsel %vm622, %v12005, %v12007
  %v12009 = vrot.slane %v11853, 1
  %v12010 = vrot.slane %v11617, 1
  %v12011 = vsel %vm622, %v12009, %v12010
  %v12012 = vrot.slane %v11885, 1
  %v12013 = vsel %vm622, %v12010, %v12012
  %v12014 = vrot.slane %v11854, 1
  %v12015 = vrot.slane %v11620, 1
  %v12016 = vsel %vm622, %v12014, %v12015
  %v12017 = vrot.slane %v11886, 1
  %v12018 = vsel %vm622, %v12015, %v12017
  %v12019 = vrot.slane %v11855, 1
  %v12020 = vrot.slane %v11623, 1
  %v12021 = vsel %vm622, %v12019, %v12020
  %v12022 = vrot.slane %v11887, 1
  %v12023 = vsel %vm622, %v12020, %v12022
  %v12024 = vrot.slane %v11856, 1
  %v12025 = vrot.slane %v11626, 1
  %v12026 = vsel %vm622, %v12024, %v12025
  %v12027 = vrot.slane %v11888, 1
  %v12028 = vsel %vm622, %v12025, %v12027
  %v12029 = vrot.slane %v11857, 1
  %v12030 = vrot.slane %v11629, 1
  %v12031 = vsel %vm622, %v12029, %v12030
  %v12032 = vrot.slane %v11889, 1
  %v12033 = vsel %vm622, %v12030, %v12032
  %v12034 = vrot.slane %v11858, 1
  %v12035 = vrot.slane %v11632, 1
  %v12036 = vsel %vm622, %v12034, %v12035
  %v12037 = vrot.slane %v11890, 1
  %v12038 = vsel %vm622, %v12035, %v12037
  %v12039 = vrot.slane %v11859, 1
  %v12040 = vrot.slane %v11635, 1
  %v12041 = vsel %vm622, %v12039, %v12040
  %v12042 = vrot.slane %v11891, 1
  %v12043 = vsel %vm622, %v12040, %v12042
  %v12044 = vrot.slane %v11861, 1
  %v12045 = vrot.slane %v11641, 1
  %v12046 = vsel %vm622, %v12044, %v12045
  %v12047 = vrot.slane %v11893, 1
  %v12048 = vsel %vm622, %v12045, %v12047
  %v12049 = vrot.slane %v11862, 1
  %v12050 = vrot.slane %v11644, 1
  %v12051 = vsel %vm622, %v12049, %v12050
  %v12052 = vrot.slane %v11894, 1
  %v12053 = vsel %vm622, %v12050, %v12052
  %v12054 = vrot.slane %v11863, 1
  %v12055 = vrot.slane %v11647, 1
  %v12056 = vsel %vm622, %v12054, %v12055
  %v12057 = vrot.slane %v11895, 1
  %v12058 = vsel %vm622, %v12055, %v12057
  %v12059 = vrot.slane %v11864, 1
  %v12060 = vrot.slane %v11650, 1
  %v12061 = vsel %vm622, %v12059, %v12060
  %v12062 = vrot.slane %v11896, 1
  %v12063 = vsel %vm622, %v12060, %v12062
  %v12064 = vrot.slane %v11865, 1
  %v12065 = vrot.slane %v11653, 1
  %v12066 = vsel %vm622, %v12064, %v12065
  %v12067 = vrot.slane %v11897, 1
  %v12068 = vsel %vm622, %v12065, %v12067
  %v12069 = vrot.slane %v11866, 1
  %v12070 = vrot.slane %v11656, 1
  %v12071 = vsel %vm622, %v12069, %v12070
  %v12072 = vrot.slane %v11898, 1
  %v12073 = vsel %vm622, %v12070, %v12072
  %v12074 = vrot.slane %v11867, 1
  %v12075 = vrot.slane %v11659, 1
  %v12076 = vsel %vm622, %v12074, %v12075
  %v12077 = vrot.slane %v11899, 1
  %v12078 = vsel %vm622, %v12075, %v12077
  %v12079 = vrot.slane %v11868, 1
  %v12080 = vrot.slane %v11662, 1
  %v12081 = vsel %vm622, %v12079, %v12080
  %v12082 = vrot.slane %v11900, 1
  %v12083 = vsel %vm622, %v12080, %v12082
  %v12084 = vrot.slane %v11869, 1
  %v12085 = vrot.slane %v11665, 1
  %v12086 = vsel %vm622, %v12084, %v12085
  %v12087 = vrot.slane %v11901, 1
  %v12088 = vsel %vm622, %v12085, %v12087
  %v12089 = vrot.slane %v11870, 1
  %v12090 = vrot.slane %v11668, 1
  %v12091 = vsel %vm622, %v12089, %v12090
  %v12092 = vrot.slane %v11902, 1
  %v12093 = vsel %vm622, %v12090, %v12092
  %v12094 = vrot.slane %v11871, 1
  %v12095 = vrot.slane %v11671, 1
  %v12096 = vsel %vm622, %v12094, %v12095
  %v12097 = vrot.slane %v11903, 1
  %v12098 = vsel %vm622, %v12095, %v12097
  %v12099 = vrot.slane %v11872, 1
  %v12100 = vrot.slane %v11674, 1
  %v12101 = vsel %vm622, %v12099, %v12100
  %v12102 = vrot.slane %v11904, 1
  %v12103 = vsel %vm622, %v12100, %v12102
  %v12104 = vrot.slane %v11873, 1
  %v12105 = vrot.slane %v11677, 1
  %v12106 = vsel %vm622, %v12104, %v12105
  %v12107 = vrot.slane %v11905, 1
  %v12108 = vsel %vm622, %v12105, %v12107
  %v12109 = vrot.slane %v11874, 1
  %v12110 = vrot.slane %v11680, 1
  %v12111 = vsel %vm622, %v12109, %v12110
  %v12112 = vrot.slane %v11906, 1
  %v12113 = vsel %vm622, %v12110, %v12112
  %v12114 = vrot.slane %v11875, 1
  %v12115 = vrot.slane %v11683, 1
  %v12116 = vsel %vm622, %v12114, %v12115
  %v12117 = vrot.slane %v11907, 1
  %v12118 = vsel %vm622, %v12115, %v12117
  %12119 = vrot.lane.b32.xlu0 %v11971, 32
  %v12120 = vpop.permute.xlu0 %12119
  %12121 = vrot.lane.b32.xlu0 %v11973, 32
  %v12122 = vpop.permute.xlu0 %12121
  %12123 = vrot.lane.b32.xlu0 %v11976, 32
  %v12124 = vpop.permute.xlu0 %12123
  %12125 = vrot.lane.b32.xlu0 %v11978, 32
  %v12126 = vpop.permute.xlu0 %12125
  %12127 = vrot.lane.b32.xlu0 %v11981, 32
  %v12128 = vpop.permute.xlu0 %12127
  %12129 = vrot.lane.b32.xlu0 %v11983, 32
  %v12130 = vpop.permute.xlu0 %12129
  %12131 = vrot.lane.b32.xlu0 %v11986, 32
  %v12132 = vpop.permute.xlu0 %12131
  %12133 = vrot.lane.b32.xlu0 %v11988, 32
  %v12134 = vpop.permute.xlu0 %12133
  %12135 = vrot.lane.b32.xlu0 %v11991, 32
  %v12136 = vpop.permute.xlu0 %12135
  %12137 = vrot.lane.b32.xlu0 %v11993, 32
  %v12138 = vpop.permute.xlu0 %12137
  %12139 = vrot.lane.b32.xlu0 %v11996, 32
  %v12140 = vpop.permute.xlu0 %12139
  %12141 = vrot.lane.b32.xlu0 %v11998, 32
  %v12142 = vpop.permute.xlu0 %12141
  %12143 = vrot.lane.b32.xlu0 %v12001, 32
  %v12144 = vpop.permute.xlu0 %12143
  %12145 = vrot.lane.b32.xlu0 %v12003, 32
  %v12146 = vpop.permute.xlu0 %12145
  %12147 = vrot.lane.b32.xlu0 %v12006, 32
  %v12148 = vpop.permute.xlu0 %12147
  %12149 = vrot.lane.b32.xlu0 %v12008, 32
  %v12150 = vpop.permute.xlu0 %12149
  %12151 = vrot.lane.b32.xlu0 %v12011, 32
  %v12152 = vpop.permute.xlu0 %12151
  %12153 = vrot.lane.b32.xlu0 %v12013, 32
  %v12154 = vpop.permute.xlu0 %12153
  %12155 = vrot.lane.b32.xlu0 %v12016, 32
  %v12156 = vpop.permute.xlu0 %12155
  %12157 = vrot.lane.b32.xlu0 %v12018, 32
  %v12158 = vpop.permute.xlu0 %12157
  %12159 = vrot.lane.b32.xlu0 %v12021, 32
  %v12160 = vpop.permute.xlu0 %12159
  %12161 = vrot.lane.b32.xlu0 %v12023, 32
  %v12162 = vpop.permute.xlu0 %12161
  %12163 = vrot.lane.b32.xlu0 %v12026, 32
  %v12164 = vpop.permute.xlu0 %12163
  %12165 = vrot.lane.b32.xlu0 %v12028, 32
  %v12166 = vpop.permute.xlu0 %12165
  %12167 = vrot.lane.b32.xlu0 %v12031, 32
  %v12168 = vpop.permute.xlu0 %12167
  %12169 = vrot.lane.b32.xlu0 %v12033, 32
  %v12170 = vpop.permute.xlu0 %12169
  %12171 = vrot.lane.b32.xlu0 %v12036, 32
  %v12172 = vpop.permute.xlu0 %12171
  %12173 = vrot.lane.b32.xlu0 %v12038, 32
  %v12174 = vpop.permute.xlu0 %12173
  %12175 = vrot.lane.b32.xlu0 %v12041, 32
  %v12176 = vpop.permute.xlu0 %12175
  %12177 = vrot.lane.b32.xlu0 %v12043, 32
  %v12178 = vpop.permute.xlu0 %12177
  %12179 = vrot.lane.b32.xlu0 %v12046, 32
  %v12180 = vpop.permute.xlu0 %12179
  %12181 = vrot.lane.b32.xlu0 %v12048, 32
  %v12182 = vpop.permute.xlu0 %12181
  %12183 = vrot.lane.b32.xlu0 %v12051, 32
  %v12184 = vpop.permute.xlu0 %12183
  %12185 = vrot.lane.b32.xlu0 %v12053, 32
  %v12186 = vpop.permute.xlu0 %12185
  %12187 = vrot.lane.b32.xlu0 %v12056, 32
  %v12188 = vpop.permute.xlu0 %12187
  %12189 = vrot.lane.b32.xlu0 %v12058, 32
  %v12190 = vpop.permute.xlu0 %12189
  %12191 = vrot.lane.b32.xlu0 %v12061, 32
  %v12192 = vpop.permute.xlu0 %12191
  %12193 = vrot.lane.b32.xlu0 %v12063, 32
  %v12194 = vpop.permute.xlu0 %12193
  %12195 = vrot.lane.b32.xlu0 %v12066, 32
  %v12196 = vpop.permute.xlu0 %12195
  %12197 = vrot.lane.b32.xlu0 %v12068, 32
  %v12198 = vpop.permute.xlu0 %12197
  %12199 = vrot.lane.b32.xlu0 %v12071, 32
  %v12200 = vpop.permute.xlu0 %12199
  %12201 = vrot.lane.b32.xlu0 %v12073, 32
  %v12202 = vpop.permute.xlu0 %12201
  %12203 = vrot.lane.b32.xlu0 %v12076, 32
  %v12204 = vpop.permute.xlu0 %12203
  %12205 = vrot.lane.b32.xlu0 %v12078, 32
  %v12206 = vpop.permute.xlu0 %12205
  %12207 = vrot.lane.b32.xlu0 %v12081, 32
  %v12208 = vpop.permute.xlu0 %12207
  %12209 = vrot.lane.b32.xlu0 %v12083, 32
  %v12210 = vpop.permute.xlu0 %12209
  %12211 = vrot.lane.b32.xlu0 %v12086, 32
  %v12212 = vpop.permute.xlu0 %12211
  %12213 = vrot.lane.b32.xlu0 %v12088, 32
  %v12214 = vpop.permute.xlu0 %12213
  %12215 = vrot.lane.b32.xlu0 %v12091, 32
  %v12216 = vpop.permute.xlu0 %12215
  %12217 = vrot.lane.b32.xlu0 %v12093, 32
  %v12218 = vpop.permute.xlu0 %12217
  %12219 = vrot.lane.b32.xlu0 %v12096, 32
  %v12220 = vpop.permute.xlu0 %12219
  %12221 = vrot.lane.b32.xlu0 %v12098, 32
  %v12222 = vpop.permute.xlu0 %12221
  %12223 = vrot.lane.b32.xlu0 %v12101, 32
  %v12224 = vpop.permute.xlu0 %12223
  %12225 = vrot.lane.b32.xlu0 %v12103, 32
  %v12226 = vpop.permute.xlu0 %12225
  %12227 = vrot.lane.b32.xlu0 %v12106, 32
  %v12228 = vpop.permute.xlu0 %12227
  %12229 = vrot.lane.b32.xlu0 %v12108, 32
  %v12230 = vpop.permute.xlu0 %12229
  %12231 = vrot.lane.b32.xlu0 %v12111, 32
  %v12232 = vpop.permute.xlu0 %12231
  %12233 = vrot.lane.b32.xlu0 %v12113, 32
  %v12234 = vpop.permute.xlu0 %12233
  %12235 = vrot.lane.b32.xlu0 %v12116, 32
  %v12236 = vpop.permute.xlu0 %12235
  %12237 = vrot.lane.b32.xlu0 %v12118, 32
  %v12238 = vpop.permute.xlu0 %12237
  %v12299 = vrot.slane %v11845, 2
  %v12300 = vrot.slane %v11593, 2
  %v12301 = vsel %vm953, %v12299, %v12300
  %v12302 = vrot.slane %v11877, 2
  %v12303 = vsel %vm953, %v12300, %v12302
  %v12304 = vrot.slane %v11846, 2
  %v12305 = vrot.slane %v11596, 2
  %v12306 = vsel %vm953, %v12304, %v12305
  %v12307 = vrot.slane %v11878, 2
  %v12308 = vsel %vm953, %v12305, %v12307
  %v12309 = vrot.slane %v11847, 2
  %v12310 = vrot.slane %v11599, 2
  %v12311 = vsel %vm953, %v12309, %v12310
  %v12312 = vrot.slane %v11879, 2
  %v12313 = vsel %vm953, %v12310, %v12312
  %v12314 = vrot.slane %v11848, 2
  %v12315 = vrot.slane %v11602, 2
  %v12316 = vsel %vm953, %v12314, %v12315
  %v12317 = vrot.slane %v11880, 2
  %v12318 = vsel %vm953, %v12315, %v12317
  %v12319 = vrot.slane %v11849, 2
  %v12320 = vrot.slane %v11605, 2
  %v12321 = vsel %vm953, %v12319, %v12320
  %v12322 = vrot.slane %v11881, 2
  %v12323 = vsel %vm953, %v12320, %v12322
  %v12324 = vrot.slane %v11850, 2
  %v12325 = vrot.slane %v11608, 2
  %v12326 = vsel %vm953, %v12324, %v12325
  %v12327 = vrot.slane %v11882, 2
  %v12328 = vsel %vm953, %v12325, %v12327
  %v12329 = vrot.slane %v11851, 2
  %v12330 = vrot.slane %v11611, 2
  %v12331 = vsel %vm953, %v12329, %v12330
  %v12332 = vrot.slane %v11883, 2
  %v12333 = vsel %vm953, %v12330, %v12332
  %v12334 = vrot.slane %v11852, 2
  %v12335 = vrot.slane %v11614, 2
  %v12336 = vsel %vm953, %v12334, %v12335
  %v12337 = vrot.slane %v11884, 2
  %v12338 = vsel %vm953, %v12335, %v12337
  %v12339 = vrot.slane %v11853, 2
  %v12340 = vrot.slane %v11617, 2
  %v12341 = vsel %vm953, %v12339, %v12340
  %v12342 = vrot.slane %v11885, 2
  %v12343 = vsel %vm953, %v12340, %v12342
  %v12344 = vrot.slane %v11854, 2
  %v12345 = vrot.slane %v11620, 2
  %v12346 = vsel %vm953, %v12344, %v12345
  %v12347 = vrot.slane %v11886, 2
  %v12348 = vsel %vm953, %v12345, %v12347
  %v12349 = vrot.slane %v11855, 2
  %v12350 = vrot.slane %v11623, 2
  %v12351 = vsel %vm953, %v12349, %v12350
  %v12352 = vrot.slane %v11887, 2
  %v12353 = vsel %vm953, %v12350, %v12352
  %v12354 = vrot.slane %v11856, 2
  %v12355 = vrot.slane %v11626, 2
  %v12356 = vsel %vm953, %v12354, %v12355
  %v12357 = vrot.slane %v11888, 2
  %v12358 = vsel %vm953, %v12355, %v12357
  %v12359 = vrot.slane %v11857, 2
  %v12360 = vrot.slane %v11629, 2
  %v12361 = vsel %vm953, %v12359, %v12360
  %v12362 = vrot.slane %v11889, 2
  %v12363 = vsel %vm953, %v12360, %v12362
  %v12364 = vrot.slane %v11858, 2
  %v12365 = vrot.slane %v11632, 2
  %v12366 = vsel %vm953, %v12364, %v12365
  %v12367 = vrot.slane %v11890, 2
  %v12368 = vsel %vm953, %v12365, %v12367
  %v12369 = vrot.slane %v11859, 2
  %v12370 = vrot.slane %v11635, 2
  %v12371 = vsel %vm953, %v12369, %v12370
  %v12372 = vrot.slane %v11891, 2
  %v12373 = vsel %vm953, %v12370, %v12372
  %v12374 = vrot.slane %v11861, 2
  %v12375 = vrot.slane %v11641, 2
  %v12376 = vsel %vm953, %v12374, %v12375
  %v12377 = vrot.slane %v11893, 2
  %v12378 = vsel %vm953, %v12375, %v12377
  %v12379 = vrot.slane %v11862, 2
  %v12380 = vrot.slane %v11644, 2
  %v12381 = vsel %vm953, %v12379, %v12380
  %v12382 = vrot.slane %v11894, 2
  %v12383 = vsel %vm953, %v12380, %v12382
  %v12384 = vrot.slane %v11863, 2
  %v12385 = vrot.slane %v11647, 2
  %v12386 = vsel %vm953, %v12384, %v12385
  %v12387 = vrot.slane %v11895, 2
  %v12388 = vsel %vm953, %v12385, %v12387
  %v12389 = vrot.slane %v11864, 2
  %v12390 = vrot.slane %v11650, 2
  %v12391 = vsel %vm953, %v12389, %v12390
  %v12392 = vrot.slane %v11896, 2
  %v12393 = vsel %vm953, %v12390, %v12392
  %v12394 = vrot.slane %v11865, 2
  %v12395 = vrot.slane %v11653, 2
  %v12396 = vsel %vm953, %v12394, %v12395
  %v12397 = vrot.slane %v11897, 2
  %v12398 = vsel %vm953, %v12395, %v12397
  %v12399 = vrot.slane %v11866, 2
  %v12400 = vrot.slane %v11656, 2
  %v12401 = vsel %vm953, %v12399, %v12400
  %v12402 = vrot.slane %v11898, 2
  %v12403 = vsel %vm953, %v12400, %v12402
  %v12404 = vrot.slane %v11867, 2
  %v12405 = vrot.slane %v11659, 2
  %v12406 = vsel %vm953, %v12404, %v12405
  %v12407 = vrot.slane %v11899, 2
  %v12408 = vsel %vm953, %v12405, %v12407
  %v12409 = vrot.slane %v11868, 2
  %v12410 = vrot.slane %v11662, 2
  %v12411 = vsel %vm953, %v12409, %v12410
  %v12412 = vrot.slane %v11900, 2
  %v12413 = vsel %vm953, %v12410, %v12412
  %v12414 = vrot.slane %v11869, 2
  %v12415 = vrot.slane %v11665, 2
  %v12416 = vsel %vm953, %v12414, %v12415
  %v12417 = vrot.slane %v11901, 2
  %v12418 = vsel %vm953, %v12415, %v12417
  %v12419 = vrot.slane %v11870, 2
  %v12420 = vrot.slane %v11668, 2
  %v12421 = vsel %vm953, %v12419, %v12420
  %v12422 = vrot.slane %v11902, 2
  %v12423 = vsel %vm953, %v12420, %v12422
  %v12424 = vrot.slane %v11871, 2
  %v12425 = vrot.slane %v11671, 2
  %v12426 = vsel %vm953, %v12424, %v12425
  %v12427 = vrot.slane %v11903, 2
  %v12428 = vsel %vm953, %v12425, %v12427
  %v12429 = vrot.slane %v11872, 2
  %v12430 = vrot.slane %v11674, 2
  %v12431 = vsel %vm953, %v12429, %v12430
  %v12432 = vrot.slane %v11904, 2
  %v12433 = vsel %vm953, %v12430, %v12432
  %v12434 = vrot.slane %v11873, 2
  %v12435 = vrot.slane %v11677, 2
  %v12436 = vsel %vm953, %v12434, %v12435
  %v12437 = vrot.slane %v11905, 2
  %v12438 = vsel %vm953, %v12435, %v12437
  %v12439 = vrot.slane %v11874, 2
  %v12440 = vrot.slane %v11680, 2
  %v12441 = vsel %vm953, %v12439, %v12440
  %v12442 = vrot.slane %v11906, 2
  %v12443 = vsel %vm953, %v12440, %v12442
  %v12444 = vrot.slane %v11875, 2
  %v12445 = vrot.slane %v11683, 2
  %v12446 = vsel %vm953, %v12444, %v12445
  %v12447 = vrot.slane %v11907, 2
  %v12448 = vsel %vm953, %v12445, %v12447
  %12449 = vrot.lane.b32.xlu0 %v12301, 64
  %v12450 = vpop.permute.xlu0 %12449
  %12451 = vrot.lane.b32.xlu0 %v12303, 64
  %v12452 = vpop.permute.xlu0 %12451
  %12453 = vrot.lane.b32.xlu0 %v12306, 64
  %v12454 = vpop.permute.xlu0 %12453
  %12455 = vrot.lane.b32.xlu0 %v12308, 64
  %v12456 = vpop.permute.xlu0 %12455
  %12457 = vrot.lane.b32.xlu0 %v12311, 64
  %v12458 = vpop.permute.xlu0 %12457
  %12459 = vrot.lane.b32.xlu0 %v12313, 64
  %v12460 = vpop.permute.xlu0 %12459
  %12461 = vrot.lane.b32.xlu0 %v12316, 64
  %v12462 = vpop.permute.xlu0 %12461
  %12463 = vrot.lane.b32.xlu0 %v12318, 64
  %v12464 = vpop.permute.xlu0 %12463
  %12465 = vrot.lane.b32.xlu0 %v12321, 64
  %v12466 = vpop.permute.xlu0 %12465
  %12467 = vrot.lane.b32.xlu0 %v12323, 64
  %v12468 = vpop.permute.xlu0 %12467
  %12469 = vrot.lane.b32.xlu0 %v12326, 64
  %v12470 = vpop.permute.xlu0 %12469
  %12471 = vrot.lane.b32.xlu0 %v12328, 64
  %v12472 = vpop.permute.xlu0 %12471
  %12473 = vrot.lane.b32.xlu0 %v12331, 64
  %v12474 = vpop.permute.xlu0 %12473
  %12475 = vrot.lane.b32.xlu0 %v12333, 64
  %v12476 = vpop.permute.xlu0 %12475
  %12477 = vrot.lane.b32.xlu0 %v12336, 64
  %v12478 = vpop.permute.xlu0 %12477
  %12479 = vrot.lane.b32.xlu0 %v12338, 64
  %v12480 = vpop.permute.xlu0 %12479
  %12481 = vrot.lane.b32.xlu0 %v12341, 64
  %v12482 = vpop.permute.xlu0 %12481
  %12483 = vrot.lane.b32.xlu0 %v12343, 64
  %v12484 = vpop.permute.xlu0 %12483
  %12485 = vrot.lane.b32.xlu0 %v12346, 64
  %v12486 = vpop.permute.xlu0 %12485
  %12487 = vrot.lane.b32.xlu0 %v12348, 64
  %v12488 = vpop.permute.xlu0 %12487
  %12489 = vrot.lane.b32.xlu0 %v12351, 64
  %v12490 = vpop.permute.xlu0 %12489
  %12491 = vrot.lane.b32.xlu0 %v12353, 64
  %v12492 = vpop.permute.xlu0 %12491
  %12493 = vrot.lane.b32.xlu0 %v12356, 64
  %v12494 = vpop.permute.xlu0 %12493
  %12495 = vrot.lane.b32.xlu0 %v12358, 64
  %v12496 = vpop.permute.xlu0 %12495
  %12497 = vrot.lane.b32.xlu0 %v12361, 64
  %v12498 = vpop.permute.xlu0 %12497
  %12499 = vrot.lane.b32.xlu0 %v12363, 64
  %v12500 = vpop.permute.xlu0 %12499
  %12501 = vrot.lane.b32.xlu0 %v12366, 64
  %v12502 = vpop.permute.xlu0 %12501
  %12503 = vrot.lane.b32.xlu0 %v12368, 64
  %v12504 = vpop.permute.xlu0 %12503
  %12505 = vrot.lane.b32.xlu0 %v12371, 64
  %v12506 = vpop.permute.xlu0 %12505
  %12507 = vrot.lane.b32.xlu0 %v12373, 64
  %v12508 = vpop.permute.xlu0 %12507
  %12509 = vrot.lane.b32.xlu0 %v12376, 64
  %v12510 = vpop.permute.xlu0 %12509
  %12511 = vrot.lane.b32.xlu0 %v12378, 64
  %v12512 = vpop.permute.xlu0 %12511
  %12513 = vrot.lane.b32.xlu0 %v12381, 64
  %v12514 = vpop.permute.xlu0 %12513
  %12515 = vrot.lane.b32.xlu0 %v12383, 64
  %v12516 = vpop.permute.xlu0 %12515
  %12517 = vrot.lane.b32.xlu0 %v12386, 64
  %v12518 = vpop.permute.xlu0 %12517
  %12519 = vrot.lane.b32.xlu0 %v12388, 64
  %v12520 = vpop.permute.xlu0 %12519
  %12521 = vrot.lane.b32.xlu0 %v12391, 64
  %v12522 = vpop.permute.xlu0 %12521
  %12523 = vrot.lane.b32.xlu0 %v12393, 64
  %v12524 = vpop.permute.xlu0 %12523
  %12525 = vrot.lane.b32.xlu0 %v12396, 64
  %v12526 = vpop.permute.xlu0 %12525
  %12527 = vrot.lane.b32.xlu0 %v12398, 64
  %v12528 = vpop.permute.xlu0 %12527
  %12529 = vrot.lane.b32.xlu0 %v12401, 64
  %v12530 = vpop.permute.xlu0 %12529
  %12531 = vrot.lane.b32.xlu0 %v12403, 64
  %v12532 = vpop.permute.xlu0 %12531
  %12533 = vrot.lane.b32.xlu0 %v12406, 64
  %v12534 = vpop.permute.xlu0 %12533
  %12535 = vrot.lane.b32.xlu0 %v12408, 64
  %v12536 = vpop.permute.xlu0 %12535
  %12537 = vrot.lane.b32.xlu0 %v12411, 64
  %v12538 = vpop.permute.xlu0 %12537
  %12539 = vrot.lane.b32.xlu0 %v12413, 64
  %v12540 = vpop.permute.xlu0 %12539
  %12541 = vrot.lane.b32.xlu0 %v12416, 64
  %v12542 = vpop.permute.xlu0 %12541
  %12543 = vrot.lane.b32.xlu0 %v12418, 64
  %v12544 = vpop.permute.xlu0 %12543
  %12545 = vrot.lane.b32.xlu0 %v12421, 64
  %v12546 = vpop.permute.xlu0 %12545
  %12547 = vrot.lane.b32.xlu0 %v12423, 64
  %v12548 = vpop.permute.xlu0 %12547
  %12549 = vrot.lane.b32.xlu0 %v12426, 64
  %v12550 = vpop.permute.xlu0 %12549
  %12551 = vrot.lane.b32.xlu0 %v12428, 64
  %v12552 = vpop.permute.xlu0 %12551
  %12553 = vrot.lane.b32.xlu0 %v12431, 64
  %v12554 = vpop.permute.xlu0 %12553
  %12555 = vrot.lane.b32.xlu0 %v12433, 64
  %v12556 = vpop.permute.xlu0 %12555
  %12557 = vrot.lane.b32.xlu0 %v12436, 64
  %v12558 = vpop.permute.xlu0 %12557
  %12559 = vrot.lane.b32.xlu0 %v12438, 64
  %v12560 = vpop.permute.xlu0 %12559
  %12561 = vrot.lane.b32.xlu0 %v12441, 64
  %v12562 = vpop.permute.xlu0 %12561
  %12563 = vrot.lane.b32.xlu0 %v12443, 64
  %v12564 = vpop.permute.xlu0 %12563
  %12565 = vrot.lane.b32.xlu0 %v12446, 64
  %v12566 = vpop.permute.xlu0 %12565
  %12567 = vrot.lane.b32.xlu0 %v12448, 64
  %v12568 = vpop.permute.xlu0 %12567
  %12631 = vrot.lane.b32.xlu0 %v11846, 96
  %v12632 = vpop.permute.xlu0 %12631
  %12633 = vrot.lane.b32.xlu0 %v11596, 96
  %v12634 = vpop.permute.xlu0 %12633
  %12635 = vrot.lane.b32.xlu0 %v11845, 96
  %v12636 = vpop.permute.xlu0 %12635
  %12637 = vrot.lane.b32.xlu0 %v11593, 96
  %v12638 = vpop.permute.xlu0 %12637
  %12639 = vrot.lane.b32.xlu0 %v11847, 96
  %v12640 = vpop.permute.xlu0 %12639
  %12641 = vrot.lane.b32.xlu0 %v11599, 96
  %v12642 = vpop.permute.xlu0 %12641
  %12643 = vrot.lane.b32.xlu0 %v11848, 96
  %v12644 = vpop.permute.xlu0 %12643
  %12645 = vrot.lane.b32.xlu0 %v11602, 96
  %v12646 = vpop.permute.xlu0 %12645
  %12647 = vrot.lane.b32.xlu0 %v11849, 96
  %v12648 = vpop.permute.xlu0 %12647
  %12649 = vrot.lane.b32.xlu0 %v11605, 96
  %v12650 = vpop.permute.xlu0 %12649
  %12651 = vrot.lane.b32.xlu0 %v11850, 96
  %v12652 = vpop.permute.xlu0 %12651
  %12653 = vrot.lane.b32.xlu0 %v11608, 96
  %v12654 = vpop.permute.xlu0 %12653
  %12655 = vrot.lane.b32.xlu0 %v11851, 96
  %v12656 = vpop.permute.xlu0 %12655
  %12657 = vrot.lane.b32.xlu0 %v11611, 96
  %v12658 = vpop.permute.xlu0 %12657
  %12659 = vrot.lane.b32.xlu0 %v11852, 96
  %v12660 = vpop.permute.xlu0 %12659
  %12661 = vrot.lane.b32.xlu0 %v11614, 96
  %v12662 = vpop.permute.xlu0 %12661
  %12663 = vrot.lane.b32.xlu0 %v11853, 96
  %v12664 = vpop.permute.xlu0 %12663
  %12665 = vrot.lane.b32.xlu0 %v11617, 96
  %v12666 = vpop.permute.xlu0 %12665
  %12667 = vrot.lane.b32.xlu0 %v11854, 96
  %v12668 = vpop.permute.xlu0 %12667
  %12669 = vrot.lane.b32.xlu0 %v11620, 96
  %v12670 = vpop.permute.xlu0 %12669
  %12671 = vrot.lane.b32.xlu0 %v11855, 96
  %v12672 = vpop.permute.xlu0 %12671
  %12673 = vrot.lane.b32.xlu0 %v11623, 96
  %v12674 = vpop.permute.xlu0 %12673
  %12675 = vrot.lane.b32.xlu0 %v11856, 96
  %v12676 = vpop.permute.xlu0 %12675
  %12677 = vrot.lane.b32.xlu0 %v11626, 96
  %v12678 = vpop.permute.xlu0 %12677
  %12679 = vrot.lane.b32.xlu0 %v11857, 96
  %v12680 = vpop.permute.xlu0 %12679
  %12681 = vrot.lane.b32.xlu0 %v11629, 96
  %v12682 = vpop.permute.xlu0 %12681
  %12683 = vrot.lane.b32.xlu0 %v11858, 96
  %v12684 = vpop.permute.xlu0 %12683
  %12685 = vrot.lane.b32.xlu0 %v11632, 96
  %v12686 = vpop.permute.xlu0 %12685
  %12687 = vrot.lane.b32.xlu0 %v11859, 96
  %v12688 = vpop.permute.xlu0 %12687
  %12689 = vrot.lane.b32.xlu0 %v11635, 96
  %v12690 = vpop.permute.xlu0 %12689
  %12691 = vrot.lane.b32.xlu0 %v11860, 96
  %v12692 = vpop.permute.xlu0 %12691
  %12693 = vrot.lane.b32.xlu0 %v11638, 96
  %v12694 = vpop.permute.xlu0 %12693
  %12695 = vrot.lane.b32.xlu0 %v11862, 96
  %v12696 = vpop.permute.xlu0 %12695
  %12697 = vrot.lane.b32.xlu0 %v11644, 96
  %v12698 = vpop.permute.xlu0 %12697
  %12699 = vrot.lane.b32.xlu0 %v11861, 96
  %v12700 = vpop.permute.xlu0 %12699
  %12701 = vrot.lane.b32.xlu0 %v11641, 96
  %v12702 = vpop.permute.xlu0 %12701
  %12703 = vrot.lane.b32.xlu0 %v11863, 96
  %v12704 = vpop.permute.xlu0 %12703
  %12705 = vrot.lane.b32.xlu0 %v11647, 96
  %v12706 = vpop.permute.xlu0 %12705
  %12707 = vrot.lane.b32.xlu0 %v11864, 96
  %v12708 = vpop.permute.xlu0 %12707
  %12709 = vrot.lane.b32.xlu0 %v11650, 96
  %v12710 = vpop.permute.xlu0 %12709
  %12711 = vrot.lane.b32.xlu0 %v11865, 96
  %v12712 = vpop.permute.xlu0 %12711
  %12713 = vrot.lane.b32.xlu0 %v11653, 96
  %v12714 = vpop.permute.xlu0 %12713
  %12715 = vrot.lane.b32.xlu0 %v11866, 96
  %v12716 = vpop.permute.xlu0 %12715
  %12717 = vrot.lane.b32.xlu0 %v11656, 96
  %v12718 = vpop.permute.xlu0 %12717
  %12719 = vrot.lane.b32.xlu0 %v11867, 96
  %v12720 = vpop.permute.xlu0 %12719
  %12721 = vrot.lane.b32.xlu0 %v11659, 96
  %v12722 = vpop.permute.xlu0 %12721
  %12723 = vrot.lane.b32.xlu0 %v11868, 96
  %v12724 = vpop.permute.xlu0 %12723
  %12725 = vrot.lane.b32.xlu0 %v11662, 96
  %v12726 = vpop.permute.xlu0 %12725
  %12727 = vrot.lane.b32.xlu0 %v11869, 96
  %v12728 = vpop.permute.xlu0 %12727
  %12729 = vrot.lane.b32.xlu0 %v11665, 96
  %v12730 = vpop.permute.xlu0 %12729
  %12731 = vrot.lane.b32.xlu0 %v11870, 96
  %v12732 = vpop.permute.xlu0 %12731
  %12733 = vrot.lane.b32.xlu0 %v11668, 96
  %v12734 = vpop.permute.xlu0 %12733
  %12735 = vrot.lane.b32.xlu0 %v11871, 96
  %v12736 = vpop.permute.xlu0 %12735
  %12737 = vrot.lane.b32.xlu0 %v11671, 96
  %v12738 = vpop.permute.xlu0 %12737
  %12739 = vrot.lane.b32.xlu0 %v11872, 96
  %v12740 = vpop.permute.xlu0 %12739
  %12741 = vrot.lane.b32.xlu0 %v11674, 96
  %v12742 = vpop.permute.xlu0 %12741
  %12743 = vrot.lane.b32.xlu0 %v11873, 96
  %v12744 = vpop.permute.xlu0 %12743
  %12745 = vrot.lane.b32.xlu0 %v11677, 96
  %v12746 = vpop.permute.xlu0 %12745
  %12747 = vrot.lane.b32.xlu0 %v11874, 96
  %v12748 = vpop.permute.xlu0 %12747
  %12749 = vrot.lane.b32.xlu0 %v11680, 96
  %v12750 = vpop.permute.xlu0 %12749
  %12751 = vrot.lane.b32.xlu0 %v11875, 96
  %v12752 = vpop.permute.xlu0 %12751
  %12753 = vrot.lane.b32.xlu0 %v11683, 96
  %v12754 = vpop.permute.xlu0 %12753
  %12755 = vrot.lane.b32.xlu0 %v11876, 96
  %v12756 = vpop.permute.xlu0 %12755
  %12757 = vrot.lane.b32.xlu0 %v11686, 96
  %v12758 = vpop.permute.xlu0 %12757
  %v12825 = vrot.slane %v11860, 1
  %v12826 = vrot.slane %v11638, 1
  %v12827 = vsel %vm622, %v12825, %v12826
  %v12828 = vrot.slane %v11892, 1
  %v12829 = vsel %vm622, %v12826, %v12828
  %v12830 = vrot.slane %v11876, 1
  %v12831 = vrot.slane %v11686, 1
  %v12832 = vsel %vm622, %v12830, %v12831
  %v12833 = vrot.slane %v11908, 1
  %v12834 = vsel %vm622, %v12831, %v12833
  %v12899 = vrot.slane %v11860, 2
  %v12900 = vrot.slane %v11638, 2
  %v12901 = vsel %vm953, %v12899, %v12900
  %v12902 = vrot.slane %v11892, 2
  %v12903 = vsel %vm953, %v12900, %v12902
  %v12904 = vrot.slane %v11876, 2
  %v12905 = vrot.slane %v11686, 2
  %v12906 = vsel %vm953, %v12904, %v12905
  %v12907 = vrot.slane %v11908, 2
  %v12908 = vsel %vm953, %v12905, %v12907
  %12909 = vrot.lane.b32.xlu0 %v12306, 32
  %v12910 = vpop.permute.xlu0 %12909
  %12911 = vrot.lane.b32.xlu0 %v12308, 32
  %v12912 = vpop.permute.xlu0 %12911
  %12913 = vrot.lane.b32.xlu0 %v12301, 32
  %v12914 = vpop.permute.xlu0 %12913
  %12915 = vrot.lane.b32.xlu0 %v12303, 32
  %v12916 = vpop.permute.xlu0 %12915
  %12917 = vrot.lane.b32.xlu0 %v12311, 32
  %v12918 = vpop.permute.xlu0 %12917
  %12919 = vrot.lane.b32.xlu0 %v12313, 32
  %v12920 = vpop.permute.xlu0 %12919
  %12921 = vrot.lane.b32.xlu0 %v12316, 32
  %v12922 = vpop.permute.xlu0 %12921
  %12923 = vrot.lane.b32.xlu0 %v12318, 32
  %v12924 = vpop.permute.xlu0 %12923
  %12925 = vrot.lane.b32.xlu0 %v12321, 32
  %v12926 = vpop.permute.xlu0 %12925
  %12927 = vrot.lane.b32.xlu0 %v12323, 32
  %v12928 = vpop.permute.xlu0 %12927
  %12929 = vrot.lane.b32.xlu0 %v12326, 32
  %v12930 = vpop.permute.xlu0 %12929
  %12931 = vrot.lane.b32.xlu0 %v12328, 32
  %v12932 = vpop.permute.xlu0 %12931
  %12933 = vrot.lane.b32.xlu0 %v12331, 32
  %v12934 = vpop.permute.xlu0 %12933
  %12935 = vrot.lane.b32.xlu0 %v12333, 32
  %v12936 = vpop.permute.xlu0 %12935
  %12937 = vrot.lane.b32.xlu0 %v12336, 32
  %v12938 = vpop.permute.xlu0 %12937
  %12939 = vrot.lane.b32.xlu0 %v12338, 32
  %v12940 = vpop.permute.xlu0 %12939
  %12941 = vrot.lane.b32.xlu0 %v12341, 32
  %v12942 = vpop.permute.xlu0 %12941
  %12943 = vrot.lane.b32.xlu0 %v12343, 32
  %v12944 = vpop.permute.xlu0 %12943
  %12945 = vrot.lane.b32.xlu0 %v12346, 32
  %v12946 = vpop.permute.xlu0 %12945
  %12947 = vrot.lane.b32.xlu0 %v12348, 32
  %v12948 = vpop.permute.xlu0 %12947
  %12949 = vrot.lane.b32.xlu0 %v12351, 32
  %v12950 = vpop.permute.xlu0 %12949
  %12951 = vrot.lane.b32.xlu0 %v12353, 32
  %v12952 = vpop.permute.xlu0 %12951
  %12953 = vrot.lane.b32.xlu0 %v12356, 32
  %v12954 = vpop.permute.xlu0 %12953
  %12955 = vrot.lane.b32.xlu0 %v12358, 32
  %v12956 = vpop.permute.xlu0 %12955
  %12957 = vrot.lane.b32.xlu0 %v12361, 32
  %v12958 = vpop.permute.xlu0 %12957
  %12959 = vrot.lane.b32.xlu0 %v12363, 32
  %v12960 = vpop.permute.xlu0 %12959
  %12961 = vrot.lane.b32.xlu0 %v12366, 32
  %v12962 = vpop.permute.xlu0 %12961
  %12963 = vrot.lane.b32.xlu0 %v12368, 32
  %v12964 = vpop.permute.xlu0 %12963
  %12965 = vrot.lane.b32.xlu0 %v12371, 32
  %v12966 = vpop.permute.xlu0 %12965
  %12967 = vrot.lane.b32.xlu0 %v12373, 32
  %v12968 = vpop.permute.xlu0 %12967
  %12969 = vrot.lane.b32.xlu0 %v12901, 32
  %v12970 = vpop.permute.xlu0 %12969
  %12971 = vrot.lane.b32.xlu0 %v12903, 32
  %v12972 = vpop.permute.xlu0 %12971
  %12973 = vrot.lane.b32.xlu0 %v12381, 32
  %v12974 = vpop.permute.xlu0 %12973
  %12975 = vrot.lane.b32.xlu0 %v12383, 32
  %v12976 = vpop.permute.xlu0 %12975
  %12977 = vrot.lane.b32.xlu0 %v12376, 32
  %v12978 = vpop.permute.xlu0 %12977
  %12979 = vrot.lane.b32.xlu0 %v12378, 32
  %v12980 = vpop.permute.xlu0 %12979
  %12981 = vrot.lane.b32.xlu0 %v12386, 32
  %v12982 = vpop.permute.xlu0 %12981
  %12983 = vrot.lane.b32.xlu0 %v12388, 32
  %v12984 = vpop.permute.xlu0 %12983
  %12985 = vrot.lane.b32.xlu0 %v12391, 32
  %v12986 = vpop.permute.xlu0 %12985
  %12987 = vrot.lane.b32.xlu0 %v12393, 32
  %v12988 = vpop.permute.xlu0 %12987
  %12989 = vrot.lane.b32.xlu0 %v12396, 32
  %v12990 = vpop.permute.xlu0 %12989
  %12991 = vrot.lane.b32.xlu0 %v12398, 32
  %v12992 = vpop.permute.xlu0 %12991
  %12993 = vrot.lane.b32.xlu0 %v12401, 32
  %v12994 = vpop.permute.xlu0 %12993
  %12995 = vrot.lane.b32.xlu0 %v12403, 32
  %v12996 = vpop.permute.xlu0 %12995
  %12997 = vrot.lane.b32.xlu0 %v12406, 32
  %v12998 = vpop.permute.xlu0 %12997
  %12999 = vrot.lane.b32.xlu0 %v12408, 32
  %v13000 = vpop.permute.xlu0 %12999
  %13001 = vrot.lane.b32.xlu0 %v12411, 32
  %v13002 = vpop.permute.xlu0 %13001
  %13003 = vrot.lane.b32.xlu0 %v12413, 32
  %v13004 = vpop.permute.xlu0 %13003
  %13005 = vrot.lane.b32.xlu0 %v12416, 32
  %v13006 = vpop.permute.xlu0 %13005
  %13007 = vrot.lane.b32.xlu0 %v12418, 32
  %v13008 = vpop.permute.xlu0 %13007
  %13009 = vrot.lane.b32.xlu0 %v12421, 32
  %v13010 = vpop.permute.xlu0 %13009
  %13011 = vrot.lane.b32.xlu0 %v12423, 32
  %v13012 = vpop.permute.xlu0 %13011
  %13013 = vrot.lane.b32.xlu0 %v12426, 32
  %v13014 = vpop.permute.xlu0 %13013
  %13015 = vrot.lane.b32.xlu0 %v12428, 32
  %v13016 = vpop.permute.xlu0 %13015
  %13017 = vrot.lane.b32.xlu0 %v12431, 32
  %v13018 = vpop.permute.xlu0 %13017
  %13019 = vrot.lane.b32.xlu0 %v12433, 32
  %v13020 = vpop.permute.xlu0 %13019
  %13021 = vrot.lane.b32.xlu0 %v12436, 32
  %v13022 = vpop.permute.xlu0 %13021
  %13023 = vrot.lane.b32.xlu0 %v12438, 32
  %v13024 = vpop.permute.xlu0 %13023
  %13025 = vrot.lane.b32.xlu0 %v12441, 32
  %v13026 = vpop.permute.xlu0 %13025
  %13027 = vrot.lane.b32.xlu0 %v12443, 32
  %v13028 = vpop.permute.xlu0 %13027
  %13029 = vrot.lane.b32.xlu0 %v12446, 32
  %v13030 = vpop.permute.xlu0 %13029
  %13031 = vrot.lane.b32.xlu0 %v12448, 32
  %v13032 = vpop.permute.xlu0 %13031
  %13033 = vrot.lane.b32.xlu0 %v12906, 32
  %v13034 = vpop.permute.xlu0 %13033
  %13035 = vrot.lane.b32.xlu0 %v12908, 32
  %v13036 = vpop.permute.xlu0 %13035
  %13101 = vrot.lane.b32.xlu0 %v11845, 64
  %v13102 = vpop.permute.xlu0 %13101
  %13103 = vrot.lane.b32.xlu0 %v11593, 64
  %v13104 = vpop.permute.xlu0 %13103
  %13105 = vrot.lane.b32.xlu0 %v11847, 64
  %v13106 = vpop.permute.xlu0 %13105
  %13107 = vrot.lane.b32.xlu0 %v11599, 64
  %v13108 = vpop.permute.xlu0 %13107
  %13109 = vrot.lane.b32.xlu0 %v11848, 64
  %v13110 = vpop.permute.xlu0 %13109
  %13111 = vrot.lane.b32.xlu0 %v11602, 64
  %v13112 = vpop.permute.xlu0 %13111
  %13113 = vrot.lane.b32.xlu0 %v11849, 64
  %v13114 = vpop.permute.xlu0 %13113
  %13115 = vrot.lane.b32.xlu0 %v11605, 64
  %v13116 = vpop.permute.xlu0 %13115
  %13117 = vrot.lane.b32.xlu0 %v11850, 64
  %v13118 = vpop.permute.xlu0 %13117
  %13119 = vrot.lane.b32.xlu0 %v11608, 64
  %v13120 = vpop.permute.xlu0 %13119
  %13121 = vrot.lane.b32.xlu0 %v11851, 64
  %v13122 = vpop.permute.xlu0 %13121
  %13123 = vrot.lane.b32.xlu0 %v11611, 64
  %v13124 = vpop.permute.xlu0 %13123
  %13125 = vrot.lane.b32.xlu0 %v11852, 64
  %v13126 = vpop.permute.xlu0 %13125
  %13127 = vrot.lane.b32.xlu0 %v11614, 64
  %v13128 = vpop.permute.xlu0 %13127
  %13129 = vrot.lane.b32.xlu0 %v11853, 64
  %v13130 = vpop.permute.xlu0 %13129
  %13131 = vrot.lane.b32.xlu0 %v11617, 64
  %v13132 = vpop.permute.xlu0 %13131
  %13133 = vrot.lane.b32.xlu0 %v11854, 64
  %v13134 = vpop.permute.xlu0 %13133
  %13135 = vrot.lane.b32.xlu0 %v11620, 64
  %v13136 = vpop.permute.xlu0 %13135
  %13137 = vrot.lane.b32.xlu0 %v11855, 64
  %v13138 = vpop.permute.xlu0 %13137
  %13139 = vrot.lane.b32.xlu0 %v11623, 64
  %v13140 = vpop.permute.xlu0 %13139
  %13141 = vrot.lane.b32.xlu0 %v11856, 64
  %v13142 = vpop.permute.xlu0 %13141
  %13143 = vrot.lane.b32.xlu0 %v11626, 64
  %v13144 = vpop.permute.xlu0 %13143
  %13145 = vrot.lane.b32.xlu0 %v11857, 64
  %v13146 = vpop.permute.xlu0 %13145
  %13147 = vrot.lane.b32.xlu0 %v11629, 64
  %v13148 = vpop.permute.xlu0 %13147
  %13149 = vrot.lane.b32.xlu0 %v11858, 64
  %v13150 = vpop.permute.xlu0 %13149
  %13151 = vrot.lane.b32.xlu0 %v11632, 64
  %v13152 = vpop.permute.xlu0 %13151
  %13153 = vrot.lane.b32.xlu0 %v11859, 64
  %v13154 = vpop.permute.xlu0 %13153
  %13155 = vrot.lane.b32.xlu0 %v11635, 64
  %v13156 = vpop.permute.xlu0 %13155
  %13157 = vrot.lane.b32.xlu0 %v11860, 64
  %v13158 = vpop.permute.xlu0 %13157
  %13159 = vrot.lane.b32.xlu0 %v11638, 64
  %v13160 = vpop.permute.xlu0 %13159
  %13161 = vrot.lane.b32.xlu0 %v11861, 64
  %v13162 = vpop.permute.xlu0 %13161
  %13163 = vrot.lane.b32.xlu0 %v11641, 64
  %v13164 = vpop.permute.xlu0 %13163
  %13165 = vrot.lane.b32.xlu0 %v11863, 64
  %v13166 = vpop.permute.xlu0 %13165
  %13167 = vrot.lane.b32.xlu0 %v11647, 64
  %v13168 = vpop.permute.xlu0 %13167
  %13169 = vrot.lane.b32.xlu0 %v11864, 64
  %v13170 = vpop.permute.xlu0 %13169
  %13171 = vrot.lane.b32.xlu0 %v11650, 64
  %v13172 = vpop.permute.xlu0 %13171
  %13173 = vrot.lane.b32.xlu0 %v11865, 64
  %v13174 = vpop.permute.xlu0 %13173
  %13175 = vrot.lane.b32.xlu0 %v11653, 64
  %v13176 = vpop.permute.xlu0 %13175
  %13177 = vrot.lane.b32.xlu0 %v11866, 64
  %v13178 = vpop.permute.xlu0 %13177
  %13179 = vrot.lane.b32.xlu0 %v11656, 64
  %v13180 = vpop.permute.xlu0 %13179
  %13181 = vrot.lane.b32.xlu0 %v11867, 64
  %v13182 = vpop.permute.xlu0 %13181
  %13183 = vrot.lane.b32.xlu0 %v11659, 64
  %v13184 = vpop.permute.xlu0 %13183
  %13185 = vrot.lane.b32.xlu0 %v11868, 64
  %v13186 = vpop.permute.xlu0 %13185
  %13187 = vrot.lane.b32.xlu0 %v11662, 64
  %v13188 = vpop.permute.xlu0 %13187
  %13189 = vrot.lane.b32.xlu0 %v11869, 64
  %v13190 = vpop.permute.xlu0 %13189
  %13191 = vrot.lane.b32.xlu0 %v11665, 64
  %v13192 = vpop.permute.xlu0 %13191
  %13193 = vrot.lane.b32.xlu0 %v11870, 64
  %v13194 = vpop.permute.xlu0 %13193
  %13195 = vrot.lane.b32.xlu0 %v11668, 64
  %v13196 = vpop.permute.xlu0 %13195
  %13197 = vrot.lane.b32.xlu0 %v11871, 64
  %v13198 = vpop.permute.xlu0 %13197
  %13199 = vrot.lane.b32.xlu0 %v11671, 64
  %v13200 = vpop.permute.xlu0 %13199
  %13201 = vrot.lane.b32.xlu0 %v11872, 64
  %v13202 = vpop.permute.xlu0 %13201
  %13203 = vrot.lane.b32.xlu0 %v11674, 64
  %v13204 = vpop.permute.xlu0 %13203
  %13205 = vrot.lane.b32.xlu0 %v11873, 64
  %v13206 = vpop.permute.xlu0 %13205
  %13207 = vrot.lane.b32.xlu0 %v11677, 64
  %v13208 = vpop.permute.xlu0 %13207
  %13209 = vrot.lane.b32.xlu0 %v11874, 64
  %v13210 = vpop.permute.xlu0 %13209
  %13211 = vrot.lane.b32.xlu0 %v11680, 64
  %v13212 = vpop.permute.xlu0 %13211
  %13213 = vrot.lane.b32.xlu0 %v11875, 64
  %v13214 = vpop.permute.xlu0 %13213
  %13215 = vrot.lane.b32.xlu0 %v11683, 64
  %v13216 = vpop.permute.xlu0 %13215
  %13217 = vrot.lane.b32.xlu0 %v11876, 64
  %v13218 = vpop.permute.xlu0 %13217
  %13219 = vrot.lane.b32.xlu0 %v11686, 64
  %v13220 = vpop.permute.xlu0 %13219
  %13281 = vrot.lane.b32.xlu0 %v11971, 96
  %v13282 = vpop.permute.xlu0 %13281
  %13283 = vrot.lane.b32.xlu0 %v11973, 96
  %v13284 = vpop.permute.xlu0 %13283
  %13285 = vrot.lane.b32.xlu0 %v11981, 96
  %v13286 = vpop.permute.xlu0 %13285
  %13287 = vrot.lane.b32.xlu0 %v11983, 96
  %v13288 = vpop.permute.xlu0 %13287
  %13289 = vrot.lane.b32.xlu0 %v11986, 96
  %v13290 = vpop.permute.xlu0 %13289
  %13291 = vrot.lane.b32.xlu0 %v11988, 96
  %v13292 = vpop.permute.xlu0 %13291
  %13293 = vrot.lane.b32.xlu0 %v11991, 96
  %v13294 = vpop.permute.xlu0 %13293
  %13295 = vrot.lane.b32.xlu0 %v11993, 96
  %v13296 = vpop.permute.xlu0 %13295
  %13297 = vrot.lane.b32.xlu0 %v11996, 96
  %v13298 = vpop.permute.xlu0 %13297
  %13299 = vrot.lane.b32.xlu0 %v11998, 96
  %v13300 = vpop.permute.xlu0 %13299
  %13301 = vrot.lane.b32.xlu0 %v12001, 96
  %v13302 = vpop.permute.xlu0 %13301
  %13303 = vrot.lane.b32.xlu0 %v12003, 96
  %v13304 = vpop.permute.xlu0 %13303
  %13305 = vrot.lane.b32.xlu0 %v12006, 96
  %v13306 = vpop.permute.xlu0 %13305
  %13307 = vrot.lane.b32.xlu0 %v12008, 96
  %v13308 = vpop.permute.xlu0 %13307
  %13309 = vrot.lane.b32.xlu0 %v12011, 96
  %v13310 = vpop.permute.xlu0 %13309
  %13311 = vrot.lane.b32.xlu0 %v12013, 96
  %v13312 = vpop.permute.xlu0 %13311
  %13313 = vrot.lane.b32.xlu0 %v12016, 96
  %v13314 = vpop.permute.xlu0 %13313
  %13315 = vrot.lane.b32.xlu0 %v12018, 96
  %v13316 = vpop.permute.xlu0 %13315
  %13317 = vrot.lane.b32.xlu0 %v12021, 96
  %v13318 = vpop.permute.xlu0 %13317
  %13319 = vrot.lane.b32.xlu0 %v12023, 96
  %v13320 = vpop.permute.xlu0 %13319
  %13321 = vrot.lane.b32.xlu0 %v12026, 96
  %v13322 = vpop.permute.xlu0 %13321
  %13323 = vrot.lane.b32.xlu0 %v12028, 96
  %v13324 = vpop.permute.xlu0 %13323
  %13325 = vrot.lane.b32.xlu0 %v12031, 96
  %v13326 = vpop.permute.xlu0 %13325
  %13327 = vrot.lane.b32.xlu0 %v12033, 96
  %v13328 = vpop.permute.xlu0 %13327
  %13329 = vrot.lane.b32.xlu0 %v12036, 96
  %v13330 = vpop.permute.xlu0 %13329
  %13331 = vrot.lane.b32.xlu0 %v12038, 96
  %v13332 = vpop.permute.xlu0 %13331
  %13333 = vrot.lane.b32.xlu0 %v12041, 96
  %v13334 = vpop.permute.xlu0 %13333
  %13335 = vrot.lane.b32.xlu0 %v12043, 96
  %v13336 = vpop.permute.xlu0 %13335
  %13337 = vrot.lane.b32.xlu0 %v12827, 96
  %v13338 = vpop.permute.xlu0 %13337
  %13339 = vrot.lane.b32.xlu0 %v12829, 96
  %v13340 = vpop.permute.xlu0 %13339
  %13341 = vrot.lane.b32.xlu0 %v12046, 96
  %v13342 = vpop.permute.xlu0 %13341
  %13343 = vrot.lane.b32.xlu0 %v12048, 96
  %v13344 = vpop.permute.xlu0 %13343
  %13345 = vrot.lane.b32.xlu0 %v12056, 96
  %v13346 = vpop.permute.xlu0 %13345
  %13347 = vrot.lane.b32.xlu0 %v12058, 96
  %v13348 = vpop.permute.xlu0 %13347
  %13349 = vrot.lane.b32.xlu0 %v12061, 96
  %v13350 = vpop.permute.xlu0 %13349
  %13351 = vrot.lane.b32.xlu0 %v12063, 96
  %v13352 = vpop.permute.xlu0 %13351
  %13353 = vrot.lane.b32.xlu0 %v12066, 96
  %v13354 = vpop.permute.xlu0 %13353
  %13355 = vrot.lane.b32.xlu0 %v12068, 96
  %v13356 = vpop.permute.xlu0 %13355
  %13357 = vrot.lane.b32.xlu0 %v12071, 96
  %v13358 = vpop.permute.xlu0 %13357
  %13359 = vrot.lane.b32.xlu0 %v12073, 96
  %v13360 = vpop.permute.xlu0 %13359
  %13361 = vrot.lane.b32.xlu0 %v12076, 96
  %v13362 = vpop.permute.xlu0 %13361
  %13363 = vrot.lane.b32.xlu0 %v12078, 96
  %v13364 = vpop.permute.xlu0 %13363
  %13365 = vrot.lane.b32.xlu0 %v12081, 96
  %v13366 = vpop.permute.xlu0 %13365
  %13367 = vrot.lane.b32.xlu0 %v12083, 96
  %v13368 = vpop.permute.xlu0 %13367
  %13369 = vrot.lane.b32.xlu0 %v12086, 96
  %v13370 = vpop.permute.xlu0 %13369
  %13371 = vrot.lane.b32.xlu0 %v12088, 96
  %v13372 = vpop.permute.xlu0 %13371
  %13373 = vrot.lane.b32.xlu0 %v12091, 96
  %v13374 = vpop.permute.xlu0 %13373
  %13375 = vrot.lane.b32.xlu0 %v12093, 96
  %v13376 = vpop.permute.xlu0 %13375
  %13377 = vrot.lane.b32.xlu0 %v12096, 96
  %v13378 = vpop.permute.xlu0 %13377
  %13379 = vrot.lane.b32.xlu0 %v12098, 96
  %v13380 = vpop.permute.xlu0 %13379
  %13381 = vrot.lane.b32.xlu0 %v12101, 96
  %v13382 = vpop.permute.xlu0 %13381
  %13383 = vrot.lane.b32.xlu0 %v12103, 96
  %v13384 = vpop.permute.xlu0 %13383
  %13385 = vrot.lane.b32.xlu0 %v12106, 96
  %v13386 = vpop.permute.xlu0 %13385
  %13387 = vrot.lane.b32.xlu0 %v12108, 96
  %v13388 = vpop.permute.xlu0 %13387
  %13389 = vrot.lane.b32.xlu0 %v12111, 96
  %v13390 = vpop.permute.xlu0 %13389
  %13391 = vrot.lane.b32.xlu0 %v12113, 96
  %v13392 = vpop.permute.xlu0 %13391
  %13393 = vrot.lane.b32.xlu0 %v12116, 96
  %v13394 = vpop.permute.xlu0 %13393
  %13395 = vrot.lane.b32.xlu0 %v12118, 96
  %v13396 = vpop.permute.xlu0 %13395
  %13397 = vrot.lane.b32.xlu0 %v12832, 96
  %v13398 = vpop.permute.xlu0 %13397
  %13399 = vrot.lane.b32.xlu0 %v12834, 96
  %v13400 = vpop.permute.xlu0 %13399
  %v13521 = vsel %vm6419, %v11845, %v12120
  %v13522 = vsel %vm6419, %v11593, %v12122
  %v13523 = vsel %vm6419, %v11846, %v12124
  %v13524 = vsel %vm6419, %v11596, %v12126
  %v13525 = vsel %vm6419, %v11847, %v12128
  %v13526 = vsel %vm6419, %v11599, %v12130
  %v13527 = vsel %vm6419, %v11848, %v12132
  %v13528 = vsel %vm6419, %v11602, %v12134
  %v13529 = vsel %vm6419, %v11849, %v12136
  %v13530 = vsel %vm6419, %v11605, %v12138
  %v13531 = vsel %vm6419, %v11850, %v12140
  %v13532 = vsel %vm6419, %v11608, %v12142
  %v13533 = vsel %vm6419, %v11851, %v12144
  %v13534 = vsel %vm6419, %v11611, %v12146
  %v13535 = vsel %vm6419, %v11852, %v12148
  %v13536 = vsel %vm6419, %v11614, %v12150
  %v13537 = vsel %vm6419, %v11853, %v12152
  %v13538 = vsel %vm6419, %v11617, %v12154
  %v13539 = vsel %vm6419, %v11854, %v12156
  %v13540 = vsel %vm6419, %v11620, %v12158
  %v13541 = vsel %vm6419, %v11855, %v12160
  %v13542 = vsel %vm6419, %v11623, %v12162
  %v13543 = vsel %vm6419, %v11856, %v12164
  %v13544 = vsel %vm6419, %v11626, %v12166
  %v13545 = vsel %vm6419, %v11857, %v12168
  %v13546 = vsel %vm6419, %v11629, %v12170
  %v13547 = vsel %vm6419, %v11858, %v12172
  %v13548 = vsel %vm6419, %v11632, %v12174
  %v13549 = vsel %vm6419, %v11859, %v12176
  %v13550 = vsel %vm6419, %v11635, %v12178
  %v13551 = vsel %vm6419, %v11861, %v12180
  %v13552 = vsel %vm6419, %v11641, %v12182
  %v13553 = vsel %vm6419, %v11862, %v12184
  %v13554 = vsel %vm6419, %v11644, %v12186
  %v13555 = vsel %vm6419, %v11863, %v12188
  %v13556 = vsel %vm6419, %v11647, %v12190
  %v13557 = vsel %vm6419, %v11864, %v12192
  %v13558 = vsel %vm6419, %v11650, %v12194
  %v13559 = vsel %vm6419, %v11865, %v12196
  %v13560 = vsel %vm6419, %v11653, %v12198
  %v13561 = vsel %vm6419, %v11866, %v12200
  %v13562 = vsel %vm6419, %v11656, %v12202
  %v13563 = vsel %vm6419, %v11867, %v12204
  %v13564 = vsel %vm6419, %v11659, %v12206
  %v13565 = vsel %vm6419, %v11868, %v12208
  %v13566 = vsel %vm6419, %v11662, %v12210
  %v13567 = vsel %vm6419, %v11869, %v12212
  %v13568 = vsel %vm6419, %v11665, %v12214
  %v13569 = vsel %vm6419, %v11870, %v12216
  %v13570 = vsel %vm6419, %v11668, %v12218
  %v13571 = vsel %vm6419, %v11871, %v12220
  %v13572 = vsel %vm6419, %v11671, %v12222
  %v13573 = vsel %vm6419, %v11872, %v12224
  %v13574 = vsel %vm6419, %v11674, %v12226
  %v13575 = vsel %vm6419, %v11873, %v12228
  %v13576 = vsel %vm6419, %v11677, %v12230
  %v13577 = vsel %vm6419, %v11874, %v12232
  %v13578 = vsel %vm6419, %v11680, %v12234
  %v13579 = vsel %vm6419, %v11875, %v12236
  %v13580 = vsel %vm6419, %v11683, %v12238
  %v13581 = vsel %vm6679, %v13521, %v12450
  %v13582 = vsel %vm6679, %v13522, %v12452
  %v13583 = vsel %vm6679, %v13523, %v12454
  %v13584 = vsel %vm6679, %v13524, %v12456
  %v13585 = vsel %vm6679, %v13525, %v12458
  %v13586 = vsel %vm6679, %v13526, %v12460
  %v13587 = vsel %vm6679, %v13527, %v12462
  %v13588 = vsel %vm6679, %v13528, %v12464
  %v13589 = vsel %vm6679, %v13529, %v12466
  %v13590 = vsel %vm6679, %v13530, %v12468
  %v13591 = vsel %vm6679, %v13531, %v12470
  %v13592 = vsel %vm6679, %v13532, %v12472
  %v13593 = vsel %vm6679, %v13533, %v12474
  %v13594 = vsel %vm6679, %v13534, %v12476
  %v13595 = vsel %vm6679, %v13535, %v12478
  %v13596 = vsel %vm6679, %v13536, %v12480
  %v13597 = vsel %vm6679, %v13537, %v12482
  %v13598 = vsel %vm6679, %v13538, %v12484
  %v13599 = vsel %vm6679, %v13539, %v12486
  %v13600 = vsel %vm6679, %v13540, %v12488
  %v13601 = vsel %vm6679, %v13541, %v12490
  %v13602 = vsel %vm6679, %v13542, %v12492
  %v13603 = vsel %vm6679, %v13543, %v12494
  %v13604 = vsel %vm6679, %v13544, %v12496
  %v13605 = vsel %vm6679, %v13545, %v12498
  %v13606 = vsel %vm6679, %v13546, %v12500
  %v13607 = vsel %vm6679, %v13547, %v12502
  %v13608 = vsel %vm6679, %v13548, %v12504
  %v13609 = vsel %vm6679, %v13549, %v12506
  %v13610 = vsel %vm6679, %v13550, %v12508
  %v13611 = vsel %vm6679, %v13551, %v12510
  %v13612 = vsel %vm6679, %v13552, %v12512
  %v13613 = vsel %vm6679, %v13553, %v12514
  %v13614 = vsel %vm6679, %v13554, %v12516
  %v13615 = vsel %vm6679, %v13555, %v12518
  %v13616 = vsel %vm6679, %v13556, %v12520
  %v13617 = vsel %vm6679, %v13557, %v12522
  %v13618 = vsel %vm6679, %v13558, %v12524
  %v13619 = vsel %vm6679, %v13559, %v12526
  %v13620 = vsel %vm6679, %v13560, %v12528
  %v13621 = vsel %vm6679, %v13561, %v12530
  %v13622 = vsel %vm6679, %v13562, %v12532
  %v13623 = vsel %vm6679, %v13563, %v12534
  %v13624 = vsel %vm6679, %v13564, %v12536
  %v13625 = vsel %vm6679, %v13565, %v12538
  %v13626 = vsel %vm6679, %v13566, %v12540
  %v13627 = vsel %vm6679, %v13567, %v12542
  %v13628 = vsel %vm6679, %v13568, %v12544
  %v13629 = vsel %vm6679, %v13569, %v12546
  %v13630 = vsel %vm6679, %v13570, %v12548
  %v13631 = vsel %vm6679, %v13571, %v12550
  %v13632 = vsel %vm6679, %v13572, %v12552
  %v13633 = vsel %vm6679, %v13573, %v12554
  %v13634 = vsel %vm6679, %v13574, %v12556
  %v13635 = vsel %vm6679, %v13575, %v12558
  %v13636 = vsel %vm6679, %v13576, %v12560
  %v13637 = vsel %vm6679, %v13577, %v12562
  %v13638 = vsel %vm6679, %v13578, %v12564
  %v13639 = vsel %vm6679, %v13579, %v12566
  %v13640 = vsel %vm6679, %v13580, %v12568
  %v13641 = vsel %vm10256, %v13581, %v12632
  %v13642 = vsel %vm10256, %v13582, %v12634
  %v13643 = vsel %vm10256, %v13583, %v12636
  %v13644 = vsel %vm10256, %v13584, %v12638
  %v13645 = vsel %vm10256, %v13581, %v12640
  %v13646 = vsel %vm10256, %v13582, %v12642
  %v13647 = vsel %vm10256, %v13585, %v12644
  %v13648 = vsel %vm10256, %v13586, %v12646
  %v13649 = vsel %vm10256, %v13587, %v12648
  %v13650 = vsel %vm10256, %v13588, %v12650
  %v13651 = vsel %vm10256, %v13589, %v12652
  %v13652 = vsel %vm10256, %v13590, %v12654
  %v13653 = vsel %vm10256, %v13591, %v12656
  %v13654 = vsel %vm10256, %v13592, %v12658
  %v13655 = vsel %vm10256, %v13593, %v12660
  %v13656 = vsel %vm10256, %v13594, %v12662
  %v13657 = vsel %vm10256, %v13595, %v12664
  %v13658 = vsel %vm10256, %v13596, %v12666
  %v13659 = vsel %vm10256, %v13597, %v12668
  %v13660 = vsel %vm10256, %v13598, %v12670
  %v13661 = vsel %vm10256, %v13599, %v12672
  %v13662 = vsel %vm10256, %v13600, %v12674
  %v13663 = vsel %vm10256, %v13601, %v12676
  %v13664 = vsel %vm10256, %v13602, %v12678
  %v13665 = vsel %vm10256, %v13603, %v12680
  %v13666 = vsel %vm10256, %v13604, %v12682
  %v13667 = vsel %vm10256, %v13605, %v12684
  %v13668 = vsel %vm10256, %v13606, %v12686
  %v13669 = vsel %vm10256, %v13607, %v12688
  %v13670 = vsel %vm10256, %v13608, %v12690
  %v13671 = vsel %vm10256, %v13609, %v12692
  %v13672 = vsel %vm10256, %v13610, %v12694
  %v13673 = vsel %vm10256, %v13611, %v12696
  %v13674 = vsel %vm10256, %v13612, %v12698
  %v13675 = vsel %vm10256, %v13613, %v12700
  %v13676 = vsel %vm10256, %v13614, %v12702
  %v13677 = vsel %vm10256, %v13611, %v12704
  %v13678 = vsel %vm10256, %v13612, %v12706
  %v13679 = vsel %vm10256, %v13615, %v12708
  %v13680 = vsel %vm10256, %v13616, %v12710
  %v13681 = vsel %vm10256, %v13617, %v12712
  %v13682 = vsel %vm10256, %v13618, %v12714
  %v13683 = vsel %vm10256, %v13619, %v12716
  %v13684 = vsel %vm10256, %v13620, %v12718
  %v13685 = vsel %vm10256, %v13621, %v12720
  %v13686 = vsel %vm10256, %v13622, %v12722
  %v13687 = vsel %vm10256, %v13623, %v12724
  %v13688 = vsel %vm10256, %v13624, %v12726
  %v13689 = vsel %vm10256, %v13625, %v12728
  %v13690 = vsel %vm10256, %v13626, %v12730
  %v13691 = vsel %vm10256, %v13627, %v12732
  %v13692 = vsel %vm10256, %v13628, %v12734
  %v13693 = vsel %vm10256, %v13629, %v12736
  %v13694 = vsel %vm10256, %v13630, %v12738
  %v13695 = vsel %vm10256, %v13631, %v12740
  %v13696 = vsel %vm10256, %v13632, %v12742
  %v13697 = vsel %vm10256, %v13633, %v12744
  %v13698 = vsel %vm10256, %v13634, %v12746
  %v13699 = vsel %vm10256, %v13635, %v12748
  %v13700 = vsel %vm10256, %v13636, %v12750
  %v13701 = vsel %vm10256, %v13637, %v12752
  %v13702 = vsel %vm10256, %v13638, %v12754
  %v13703 = vsel %vm10256, %v13639, %v12756
  %v13704 = vsel %vm10256, %v13640, %v12758
  %v13705 = vsel %vm6419, %v11976, %v12910
  %v13706 = vsel %vm6419, %v11978, %v12912
  %v13707 = vsel %vm6419, %v11971, %v12914
  %v13708 = vsel %vm6419, %v11973, %v12916
  %v13709 = vsel %vm6419, %v11981, %v12918
  %v13710 = vsel %vm6419, %v11983, %v12920
  %v13711 = vsel %vm6419, %v11986, %v12922
  %v13712 = vsel %vm6419, %v11988, %v12924
  %v13713 = vsel %vm6419, %v11991, %v12926
  %v13714 = vsel %vm6419, %v11993, %v12928
  %v13715 = vsel %vm6419, %v11996, %v12930
  %v13716 = vsel %vm6419, %v11998, %v12932
  %v13717 = vsel %vm6419, %v12001, %v12934
  %v13718 = vsel %vm6419, %v12003, %v12936
  %v13719 = vsel %vm6419, %v12006, %v12938
  %v13720 = vsel %vm6419, %v12008, %v12940
  %v13721 = vsel %vm6419, %v12011, %v12942
  %v13722 = vsel %vm6419, %v12013, %v12944
  %v13723 = vsel %vm6419, %v12016, %v12946
  %v13724 = vsel %vm6419, %v12018, %v12948
  %v13725 = vsel %vm6419, %v12021, %v12950
  %v13726 = vsel %vm6419, %v12023, %v12952
  %v13727 = vsel %vm6419, %v12026, %v12954
  %v13728 = vsel %vm6419, %v12028, %v12956
  %v13729 = vsel %vm6419, %v12031, %v12958
  %v13730 = vsel %vm6419, %v12033, %v12960
  %v13731 = vsel %vm6419, %v12036, %v12962
  %v13732 = vsel %vm6419, %v12038, %v12964
  %v13733 = vsel %vm6419, %v12041, %v12966
  %v13734 = vsel %vm6419, %v12043, %v12968
  %v13735 = vsel %vm6419, %v12827, %v12970
  %v13736 = vsel %vm6419, %v12829, %v12972
  %v13737 = vsel %vm6419, %v12051, %v12974
  %v13738 = vsel %vm6419, %v12053, %v12976
  %v13739 = vsel %vm6419, %v12046, %v12978
  %v13740 = vsel %vm6419, %v12048, %v12980
  %v13741 = vsel %vm6419, %v12056, %v12982
  %v13742 = vsel %vm6419, %v12058, %v12984
  %v13743 = vsel %vm6419, %v12061, %v12986
  %v13744 = vsel %vm6419, %v12063, %v12988
  %v13745 = vsel %vm6419, %v12066, %v12990
  %v13746 = vsel %vm6419, %v12068, %v12992
  %v13747 = vsel %vm6419, %v12071, %v12994
  %v13748 = vsel %vm6419, %v12073, %v12996
  %v13749 = vsel %vm6419, %v12076, %v12998
  %v13750 = vsel %vm6419, %v12078, %v13000
  %v13751 = vsel %vm6419, %v12081, %v13002
  %v13752 = vsel %vm6419, %v12083, %v13004
  %v13753 = vsel %vm6419, %v12086, %v13006
  %v13754 = vsel %vm6419, %v12088, %v13008
  %v13755 = vsel %vm6419, %v12091, %v13010
  %v13756 = vsel %vm6419, %v12093, %v13012
  %v13757 = vsel %vm6419, %v12096, %v13014
  %v13758 = vsel %vm6419, %v12098, %v13016
  %v13759 = vsel %vm6419, %v12101, %v13018
  %v13760 = vsel %vm6419, %v12103, %v13020
  %v13761 = vsel %vm6419, %v12106, %v13022
  %v13762 = vsel %vm6419, %v12108, %v13024
  %v13763 = vsel %vm6419, %v12111, %v13026
  %v13764 = vsel %vm6419, %v12113, %v13028
  %v13765 = vsel %vm6419, %v12116, %v13030
  %v13766 = vsel %vm6419, %v12118, %v13032
  %v13767 = vsel %vm6419, %v12832, %v13034
  %v13768 = vsel %vm6419, %v12834, %v13036
  %v13769 = vsel %vm6679, %v13705, %v13102
  %v13770 = vsel %vm6679, %v13706, %v13104
  %v13771 = vsel %vm6679, %v13707, %v13106
  %v13772 = vsel %vm6679, %v13708, %v13108
  %v13773 = vsel %vm6679, %v13709, %v13110
  %v13774 = vsel %vm6679, %v13710, %v13112
  %v13775 = vsel %vm6679, %v13711, %v13114
  %v13776 = vsel %vm6679, %v13712, %v13116
  %v13777 = vsel %vm6679, %v13713, %v13118
  %v13778 = vsel %vm6679, %v13714, %v13120
  %v13779 = vsel %vm6679, %v13715, %v13122
  %v13780 = vsel %vm6679, %v13716, %v13124
  %v13781 = vsel %vm6679, %v13717, %v13126
  %v13782 = vsel %vm6679, %v13718, %v13128
  %v13783 = vsel %vm6679, %v13719, %v13130
  %v13784 = vsel %vm6679, %v13720, %v13132
  %v13785 = vsel %vm6679, %v13721, %v13134
  %v13786 = vsel %vm6679, %v13722, %v13136
  %v13787 = vsel %vm6679, %v13723, %v13138
  %v13788 = vsel %vm6679, %v13724, %v13140
  %v13789 = vsel %vm6679, %v13725, %v13142
  %v13790 = vsel %vm6679, %v13726, %v13144
  %v13791 = vsel %vm6679, %v13727, %v13146
  %v13792 = vsel %vm6679, %v13728, %v13148
  %v13793 = vsel %vm6679, %v13729, %v13150
  %v13794 = vsel %vm6679, %v13730, %v13152
  %v13795 = vsel %vm6679, %v13731, %v13154
  %v13796 = vsel %vm6679, %v13732, %v13156
  %v13797 = vsel %vm6679, %v13733, %v13158
  %v13798 = vsel %vm6679, %v13734, %v13160
  %v13799 = vsel %vm6679, %v13735, %v13154
  %v13800 = vsel %vm6679, %v13736, %v13156
  %v13801 = vsel %vm6679, %v13737, %v13162
  %v13802 = vsel %vm6679, %v13738, %v13164
  %v13803 = vsel %vm6679, %v13739, %v13166
  %v13804 = vsel %vm6679, %v13740, %v13168
  %v13805 = vsel %vm6679, %v13741, %v13170
  %v13806 = vsel %vm6679, %v13742, %v13172
  %v13807 = vsel %vm6679, %v13743, %v13174
  %v13808 = vsel %vm6679, %v13744, %v13176
  %v13809 = vsel %vm6679, %v13745, %v13178
  %v13810 = vsel %vm6679, %v13746, %v13180
  %v13811 = vsel %vm6679, %v13747, %v13182
  %v13812 = vsel %vm6679, %v13748, %v13184
  %v13813 = vsel %vm6679, %v13749, %v13186
  %v13814 = vsel %vm6679, %v13750, %v13188
  %v13815 = vsel %vm6679, %v13751, %v13190
  %v13816 = vsel %vm6679, %v13752, %v13192
  %v13817 = vsel %vm6679, %v13753, %v13194
  %v13818 = vsel %vm6679, %v13754, %v13196
  %v13819 = vsel %vm6679, %v13755, %v13198
  %v13820 = vsel %vm6679, %v13756, %v13200
  %v13821 = vsel %vm6679, %v13757, %v13202
  %v13822 = vsel %vm6679, %v13758, %v13204
  %v13823 = vsel %vm6679, %v13759, %v13206
  %v13824 = vsel %vm6679, %v13760, %v13208
  %v13825 = vsel %vm6679, %v13761, %v13210
  %v13826 = vsel %vm6679, %v13762, %v13212
  %v13827 = vsel %vm6679, %v13763, %v13214
  %v13828 = vsel %vm6679, %v13764, %v13216
  %v13829 = vsel %vm6679, %v13765, %v13218
  %v13830 = vsel %vm6679, %v13766, %v13220
  %v13831 = vsel %vm6679, %v13767, %v13214
  %v13832 = vsel %vm6679, %v13768, %v13216
  %v13833 = vsel %vm10256, %v13769, %v13282
  %v13834 = vsel %vm10256, %v13770, %v13284
  %v13835 = vsel %vm10256, %v13771, %v13286
  %v13836 = vsel %vm10256, %v13772, %v13288
  %v13837 = vsel %vm10256, %v13773, %v13290
  %v13838 = vsel %vm10256, %v13774, %v13292
  %v13839 = vsel %vm10256, %v13775, %v13294
  %v13840 = vsel %vm10256, %v13776, %v13296
  %v13841 = vsel %vm10256, %v13777, %v13298
  %v13842 = vsel %vm10256, %v13778, %v13300
  %v13843 = vsel %vm10256, %v13779, %v13302
  %v13844 = vsel %vm10256, %v13780, %v13304
  %v13845 = vsel %vm10256, %v13781, %v13306
  %v13846 = vsel %vm10256, %v13782, %v13308
  %v13847 = vsel %vm10256, %v13783, %v13310
  %v13848 = vsel %vm10256, %v13784, %v13312
  %v13849 = vsel %vm10256, %v13785, %v13314
  %v13850 = vsel %vm10256, %v13786, %v13316
  %v13851 = vsel %vm10256, %v13787, %v13318
  %v13852 = vsel %vm10256, %v13788, %v13320
  %v13853 = vsel %vm10256, %v13789, %v13322
  %v13854 = vsel %vm10256, %v13790, %v13324
  %v13855 = vsel %vm10256, %v13791, %v13326
  %v13856 = vsel %vm10256, %v13792, %v13328
  %v13857 = vsel %vm10256, %v13793, %v13330
  %v13858 = vsel %vm10256, %v13794, %v13332
  %v13859 = vsel %vm10256, %v13795, %v13334
  %v13860 = vsel %vm10256, %v13796, %v13336
  %v13861 = vsel %vm10256, %v13797, %v13338
  %v13862 = vsel %vm10256, %v13798, %v13340
  %v13863 = vsel %vm10256, %v13799, %v13334
  %v13864 = vsel %vm10256, %v13800, %v13336
  %v13865 = vsel %vm10256, %v13801, %v13342
  %v13866 = vsel %vm10256, %v13802, %v13344
  %v13867 = vsel %vm10256, %v13803, %v13346
  %v13868 = vsel %vm10256, %v13804, %v13348
  %v13869 = vsel %vm10256, %v13805, %v13350
  %v13870 = vsel %vm10256, %v13806, %v13352
  %v13871 = vsel %vm10256, %v13807, %v13354
  %v13872 = vsel %vm10256, %v13808, %v13356
  %v13873 = vsel %vm10256, %v13809, %v13358
  %v13874 = vsel %vm10256, %v13810, %v13360
  %v13875 = vsel %vm10256, %v13811, %v13362
  %v13876 = vsel %vm10256, %v13812, %v13364
  %v13877 = vsel %vm10256, %v13813, %v13366
  %v13878 = vsel %vm10256, %v13814, %v13368
  %v13879 = vsel %vm10256, %v13815, %v13370
  %v13880 = vsel %vm10256, %v13816, %v13372
  %v13881 = vsel %vm10256, %v13817, %v13374
  %v13882 = vsel %vm10256, %v13818, %v13376
  %v13883 = vsel %vm10256, %v13819, %v13378
  %v13884 = vsel %vm10256, %v13820, %v13380
  %v13885 = vsel %vm10256, %v13821, %v13382
  %v13886 = vsel %vm10256, %v13822, %v13384
  %v13887 = vsel %vm10256, %v13823, %v13386
  %v13888 = vsel %vm10256, %v13824, %v13388
  %v13889 = vsel %vm10256, %v13825, %v13390
  %v13890 = vsel %vm10256, %v13826, %v13392
  %v13891 = vsel %vm10256, %v13827, %v13394
  %v13892 = vsel %vm10256, %v13828, %v13396
  %v13893 = vsel %vm10256, %v13829, %v13398
  %v13894 = vsel %vm10256, %v13830, %v13400
  %v13895 = vsel %vm10256, %v13831, %v13394
  %v13896 = vsel %vm10256, %v13832, %v13396
  %v13897 = vpack.c.bf16 %v13642, %v13641
  %v13898 = vpack.c.bf16 %v13834, %v13833
  %v13899 = vpack.c.bf16 %v12303, %v12301
  %v13900 = vpack.c.bf16 %v13644, %v13643
  %v13901 = vpack.c.bf16 %v13836, %v13835
  %v13902 = vpack.c.bf16 %v12313, %v12311
  %v13903 = vpack.c.bf16 %v13646, %v13645
  %v13904 = vpack.c.bf16 %v13838, %v13837
  %v13905 = vpack.c.bf16 %v12318, %v12316
  %v13906 = vpack.c.bf16 %v13648, %v13647
  %v13907 = vpack.c.bf16 %v13840, %v13839
  %v13908 = vpack.c.bf16 %v12323, %v12321
  %v13909 = vpack.c.bf16 %v13650, %v13649
  %v13910 = vpack.c.bf16 %v13842, %v13841
  %v13911 = vpack.c.bf16 %v12328, %v12326
  %v13912 = vpack.c.bf16 %v13652, %v13651
  %v13913 = vpack.c.bf16 %v13844, %v13843
  %v13914 = vpack.c.bf16 %v12333, %v12331
  %v13915 = vpack.c.bf16 %v13654, %v13653
  %v13916 = vpack.c.bf16 %v13846, %v13845
  %v13917 = vpack.c.bf16 %v12338, %v12336
  %v13918 = vpack.c.bf16 %v13656, %v13655
  %v13919 = vpack.c.bf16 %v13848, %v13847
  %v13920 = vpack.c.bf16 %v12343, %v12341
  %v13921 = vpack.c.bf16 %v13658, %v13657
  %v13922 = vpack.c.bf16 %v13850, %v13849
  %v13923 = vpack.c.bf16 %v12348, %v12346
  %v13924 = vpack.c.bf16 %v13660, %v13659
  %v13925 = vpack.c.bf16 %v13852, %v13851
  %v13926 = vpack.c.bf16 %v12353, %v12351
  %v13927 = vpack.c.bf16 %v13662, %v13661
  %v13928 = vpack.c.bf16 %v13854, %v13853
  %v13929 = vpack.c.bf16 %v12358, %v12356
  %v13930 = vpack.c.bf16 %v13664, %v13663
  %v13931 = vpack.c.bf16 %v13856, %v13855
  %v13932 = vpack.c.bf16 %v12363, %v12361
  %v13933 = vpack.c.bf16 %v13666, %v13665
  %v13934 = vpack.c.bf16 %v13858, %v13857
  %v13935 = vpack.c.bf16 %v12368, %v12366
  %v13936 = vpack.c.bf16 %v13668, %v13667
  %v13937 = vpack.c.bf16 %v13860, %v13859
  %v13938 = vpack.c.bf16 %v12373, %v12371
  %v13939 = vpack.c.bf16 %v13670, %v13669
  %v13940 = vpack.c.bf16 %v13862, %v13861
  %v13941 = vpack.c.bf16 %v12903, %v12901
  %v13942 = vpack.c.bf16 %v13672, %v13671
  %v13943 = vpack.c.bf16 %v13864, %v13863
  %v13944 = vpack.c.bf16 %v13674, %v13673
  %v13945 = vpack.c.bf16 %v13866, %v13865
  %v13946 = vpack.c.bf16 %v12378, %v12376
  %v13947 = vpack.c.bf16 %v13676, %v13675
  %v13948 = vpack.c.bf16 %v13868, %v13867
  %v13949 = vpack.c.bf16 %v12388, %v12386
  %v13950 = vpack.c.bf16 %v13678, %v13677
  %v13951 = vpack.c.bf16 %v13870, %v13869
  %v13952 = vpack.c.bf16 %v12393, %v12391
  %v13953 = vpack.c.bf16 %v13680, %v13679
  %v13954 = vpack.c.bf16 %v13872, %v13871
  %v13955 = vpack.c.bf16 %v12398, %v12396
  %v13956 = vpack.c.bf16 %v13682, %v13681
  %v13957 = vpack.c.bf16 %v13874, %v13873
  %v13958 = vpack.c.bf16 %v12403, %v12401
  %v13959 = vpack.c.bf16 %v13684, %v13683
  %v13960 = vpack.c.bf16 %v13876, %v13875
  %v13961 = vpack.c.bf16 %v12408, %v12406
  %v13962 = vpack.c.bf16 %v13686, %v13685
  %v13963 = vpack.c.bf16 %v13878, %v13877
  %v13964 = vpack.c.bf16 %v12413, %v12411
  %v13965 = vpack.c.bf16 %v13688, %v13687
  %v13966 = vpack.c.bf16 %v13880, %v13879
  %v13967 = vpack.c.bf16 %v12418, %v12416
  %v13968 = vpack.c.bf16 %v13690, %v13689
  %v13969 = vpack.c.bf16 %v13882, %v13881
  %v13970 = vpack.c.bf16 %v12423, %v12421
  %v13971 = vpack.c.bf16 %v13692, %v13691
  %v13972 = vpack.c.bf16 %v13884, %v13883
  %v13973 = vpack.c.bf16 %v12428, %v12426
  %v13974 = vpack.c.bf16 %v13694, %v13693
  %v13975 = vpack.c.bf16 %v13886, %v13885
  %v13976 = vpack.c.bf16 %v12433, %v12431
  %v13977 = vpack.c.bf16 %v13696, %v13695
  %v13978 = vpack.c.bf16 %v13888, %v13887
  %v13979 = vpack.c.bf16 %v12438, %v12436
  %v13980 = vpack.c.bf16 %v13698, %v13697
  %v13981 = vpack.c.bf16 %v13890, %v13889
  %v13982 = vpack.c.bf16 %v12443, %v12441
  %v13983 = vpack.c.bf16 %v13700, %v13699
  %v13984 = vpack.c.bf16 %v13892, %v13891
  %v13985 = vpack.c.bf16 %v12448, %v12446
  %v13986 = vpack.c.bf16 %v13702, %v13701
  %v13987 = vpack.c.bf16 %v13894, %v13893
  %v13988 = vpack.c.bf16 %v12908, %v12906
  %v13989 = vpack.c.bf16 %v13704, %v13703
  %v13990 = vpack.c.bf16 %v13896, %v13895
  %v14027 = vunpack.c.l.b16 %v11425
  %v14028 = vunpack.c.l.b16 %v11426
  %v14029 = vunpack.c.l.b16 %v11427
  %v14030 = vunpack.c.l.b16 %v11428
  %v14031 = vunpack.c.l.b16 %v11429
  %v14032 = vunpack.c.l.b16 %v11430
  %v14033 = vunpack.c.l.b16 %v11431
  %v14034 = vunpack.c.l.b16 %v11432
  %v14035 = vunpack.c.l.b16 %v11433
  %v14036 = vunpack.c.l.b16 %v11434
  %v14037 = vunpack.c.l.b16 %v11435
  %v14038 = vunpack.c.l.b16 %v11436
  %v14039 = vunpack.c.l.b16 %v11437
  %v14040 = vunpack.c.l.b16 %v11438
  %v14041 = vunpack.c.l.b16 %v11439
  %v14042 = vunpack.c.l.b16 %v11440
  %v14043 = vunpack.c.l.b16 %v11441
  %v14044 = vunpack.c.l.b16 %v11442
  %v14045 = vunpack.c.l.b16 %v11443
  %v14046 = vunpack.c.l.b16 %v11444
  %v14047 = vunpack.c.l.b16 %v11445
  %v14048 = vunpack.c.l.b16 %v11446
  %v14049 = vunpack.c.l.b16 %v11447
  %v14050 = vunpack.c.l.b16 %v11448
  %v14051 = vunpack.c.l.b16 %v11449
  %v14052 = vunpack.c.l.b16 %v11450
  %v14053 = vunpack.c.l.b16 %v11451
  %v14054 = vunpack.c.l.b16 %v11452
  %v14055 = vunpack.c.l.b16 %v11453
  %v14056 = vunpack.c.l.b16 %v11454
  %v14057 = vunpack.c.l.b16 %v11455
  %v14058 = vunpack.c.l.b16 %v11456
  %v14059 = vunpack.c.l.b16 %v11457
  %v14060 = vunpack.c.l.b16 %v11458
  %v14061 = vunpack.c.l.b16 %v11459
  %v14062 = vunpack.c.l.b16 %v11460
  %v14063 = vpack.c.b16 %v14028, %v14027
  %v14064 = vpack.c.b16 %v14030, %v14029
  %v14065 = vpack.c.b16 %v14032, %v14031
  %v14066 = vpack.c.b16 %v14034, %v14033
  %v14067 = vpack.c.b16 %v14036, %v14035
  %v14068 = vpack.c.b16 %v14038, %v14037
  %v14069 = vpack.c.b16 %v14040, %v14039
  %v14070 = vpack.c.b16 %v14042, %v14041
  %v14071 = vpack.c.b16 %v14044, %v14043
  %v14072 = vpack.c.b16 %v14046, %v14045
  %v14073 = vpack.c.b16 %v14048, %v14047
  %v14074 = vpack.c.b16 %v14050, %v14049
  %v14075 = vpack.c.b16 %v14052, %v14051
  %v14076 = vpack.c.b16 %v14054, %v14053
  %v14077 = vpack.c.b16 %v14056, %v14055
  %v14078 = vpack.c.b16 %v14058, %v14057
  %v14079 = vpack.c.b16 %v14060, %v14059
  %v14080 = vpack.c.b16 %v14062, %v14061
  %v14100 = vsel %vm6419, %v13899, 0
  %v14103 = vsel %vm6419, %v13902, 0
  %v14106 = vsel %vm6419, %v13905, 0
  %v14109 = vsel %vm6419, %v13908, 0
  %v14112 = vsel %vm6419, %v13911, 0
  %v14115 = vsel %vm6419, %v13914, 0
  %v14118 = vsel %vm6419, %v13917, 0
  %v14121 = vsel %vm6419, %v13920, 0
  %v14124 = vsel %vm6419, %v13923, 0
  %v14127 = vsel %vm6419, %v13926, 0
  %v14130 = vsel %vm6419, %v13929, 0
  %v14133 = vsel %vm6419, %v13932, 0
  %v14136 = vsel %vm6419, %v13935, 0
  %v14139 = vsel %vm6419, %v13938, 0
  %v14142 = vsel %vm6419, %v13941, 0
  %v14145 = vsel %vm6419, %v13946, 0
  %v14148 = vsel %vm6419, %v13949, 0
  %v14151 = vsel %vm6419, %v13952, 0
  %v14154 = vsel %vm6419, %v13955, 0
  %v14157 = vsel %vm6419, %v13958, 0
  %v14160 = vsel %vm6419, %v13961, 0
  %v14163 = vsel %vm6419, %v13964, 0
  %v14166 = vsel %vm6419, %v13967, 0
  %v14169 = vsel %vm6419, %v13970, 0
  %v14172 = vsel %vm6419, %v13973, 0
  %v14175 = vsel %vm6419, %v13976, 0
  %v14178 = vsel %vm6419, %v13979, 0
  %v14181 = vsel %vm6419, %v13982, 0
  %v14184 = vsel %vm6419, %v13985, 0
  %v14187 = vsel %vm6419, %v13988, 0
  %14189 = vmatprep.subr.bf16.mxu0 0
  %14190 = vmatpush1.bf16.msra.mxu0 %v14070
  %14191 = vmatprep.subr.bf16.mxu0 0
  %14192 = vmatpush1.bf16.msra.mxu0 %v14069
  %14193 = vmatprep.subr.bf16.mxu0 0
  %14194 = vmatpush1.bf16.msra.mxu0 %v14068
  %14195 = vmatprep.subr.bf16.mxu0 0
  %14196 = vmatpush1.bf16.msra.mxu0 %v14067
  %14197 = vmatprep.subr.bf16.mxu0 0
  %14198 = vmatpush1.bf16.msra.mxu0 %v14066
  %14199 = vmatprep.subr.bf16.mxu0 0
  %14200 = vmatpush1.bf16.msra.mxu0 %v14065
  %14201 = vmatprep.subr.bf16.mxu0 0
  %14202 = vmatpush1.bf16.msra.mxu0 %v14064
  %14203 = vmatprep.subr.bf16.mxu0 0
  %14204 = vmatpush1.bf16.msra.mxu0 %v14063
  %14205 = vmatprep.subr.bf16.mxu0 0
  %14206 = vmatpush2.bf16.msra.mxu0 %v14078
  %14207 = vmatprep.subr.bf16.mxu0 0
  %14208 = vmatpush2.bf16.msra.mxu0 %v14077
  %14209 = vmatprep.subr.bf16.mxu0 0
  %14210 = vmatpush2.bf16.msra.mxu0 %v14076
  %14211 = vmatprep.subr.bf16.mxu0 0
  %14212 = vmatpush2.bf16.msra.mxu0 %v14075
  %14213 = vmatprep.subr.bf16.mxu0 0
  %14214 = vmatpush2.bf16.msra.mxu0 %v14074
  %14215 = vmatprep.subr.bf16.mxu0 0
  %14216 = vmatpush2.bf16.msra.mxu0 %v14073
  %14217 = vmatprep.subr.bf16.mxu0 0
  %14218 = vmatpush2.bf16.msra.mxu0 %v14072
  %14219 = vmatprep.subr.bf16.mxu0 0
  %14220 = vmatpush2.bf16.msra.mxu0 %v14071
  %14221 = vmatprep.mubr.bf16.mxu0 %v13898
  %14222 = vmatmul.mubr.bf16.gmra.mxu0 %v13897
  %v14223 = vpop.f32.mrf.mxu0
  %v14224 = vadd.f32 0.0, %v14223
  %v14225 = vpop.f32.mrf.mxu0
  %v14226 = vpop.f32.mrf.mxu0
  %v14227 = vadd.f32 0.0, %v14226
  %v14228 = vpop.f32.mrf.mxu0
  %14229 = vmatprep.mubr.bf16.mxu0 %v13901
  %14230 = vmatmul.mubr.bf16.gmra.mxu0 %v13900
  %v14231 = vpop.f32.mrf.mxu0
  %v14232 = vadd.f32 0.0, %v14231
  %v14233 = vpop.f32.mrf.mxu0
  %v14234 = vpop.f32.mrf.mxu0
  %v14235 = vadd.f32 0.0, %v14234
  %v14236 = vpop.f32.mrf.mxu0
  %14237 = vmatprep.mubr.bf16.mxu0 %v13904
  %14238 = vmatmul.mubr.bf16.gmra.mxu0 %v13903
  %v14239 = vpop.f32.mrf.mxu0
  %v14240 = vadd.f32 0.0, %v14239
  %v14241 = vpop.f32.mrf.mxu0
  %v14242 = vpop.f32.mrf.mxu0
  %v14243 = vadd.f32 0.0, %v14242
  %v14244 = vpop.f32.mrf.mxu0
  %14245 = vmatprep.mubr.bf16.mxu0 %v13907
  %14246 = vmatmul.mubr.bf16.gmra.mxu0 %v13906
  %v14247 = vpop.f32.mrf.mxu0
  %v14248 = vadd.f32 0.0, %v14247
  %v14249 = vpop.f32.mrf.mxu0
  %v14250 = vpop.f32.mrf.mxu0
  %v14251 = vadd.f32 0.0, %v14250
  %v14252 = vpop.f32.mrf.mxu0
  %14253 = vmatprep.mubr.bf16.mxu0 %v13910
  %14254 = vmatmul.mubr.bf16.gmra.mxu0 %v13909
  %v14255 = vpop.f32.mrf.mxu0
  %v14256 = vadd.f32 0.0, %v14255
  %v14257 = vpop.f32.mrf.mxu0
  %v14258 = vpop.f32.mrf.mxu0
  %v14259 = vadd.f32 0.0, %v14258
  %v14260 = vpop.f32.mrf.mxu0
  %14261 = vmatprep.mubr.bf16.mxu0 %v13913
  %14262 = vmatmul.mubr.bf16.gmra.mxu0 %v13912
  %v14263 = vpop.f32.mrf.mxu0
  %v14264 = vadd.f32 0.0, %v14263
  %v14265 = vpop.f32.mrf.mxu0
  %v14266 = vpop.f32.mrf.mxu0
  %v14267 = vadd.f32 0.0, %v14266
  %v14268 = vpop.f32.mrf.mxu0
  %14269 = vmatprep.mubr.bf16.mxu0 %v13916
  %14270 = vmatmul.mubr.bf16.gmra.mxu0 %v13915
  %v14271 = vpop.f32.mrf.mxu0
  %v14272 = vadd.f32 0.0, %v14271
  %v14273 = vpop.f32.mrf.mxu0
  %v14274 = vpop.f32.mrf.mxu0
  %v14275 = vadd.f32 0.0, %v14274
  %v14276 = vpop.f32.mrf.mxu0
  %14277 = vmatprep.mubr.bf16.mxu0 %v13919
  %14278 = vmatmul.mubr.bf16.gmra.mxu0 %v13918
  %v14279 = vpop.f32.mrf.mxu0
  %v14280 = vadd.f32 0.0, %v14279
  %v14281 = vpop.f32.mrf.mxu0
  %v14282 = vpop.f32.mrf.mxu0
  %v14283 = vadd.f32 0.0, %v14282
  %v14284 = vpop.f32.mrf.mxu0
  %14285 = vmatprep.mubr.bf16.mxu0 %v13922
  %14286 = vmatmul.mubr.bf16.gmra.mxu0 %v13921
  %v14287 = vpop.f32.mrf.mxu0
  %v14288 = vadd.f32 0.0, %v14287
  %v14289 = vpop.f32.mrf.mxu0
  %v14290 = vpop.f32.mrf.mxu0
  %v14291 = vadd.f32 0.0, %v14290
  %v14292 = vpop.f32.mrf.mxu0
  %14293 = vmatprep.mubr.bf16.mxu0 %v13925
  %14294 = vmatmul.mubr.bf16.gmra.mxu0 %v13924
  %v14295 = vpop.f32.mrf.mxu0
  %v14296 = vadd.f32 0.0, %v14295
  %v14297 = vpop.f32.mrf.mxu0
  %v14298 = vpop.f32.mrf.mxu0
  %v14299 = vadd.f32 0.0, %v14298
  %v14300 = vpop.f32.mrf.mxu0
  %14301 = vmatprep.mubr.bf16.mxu0 %v13928
  %14302 = vmatmul.mubr.bf16.gmra.mxu0 %v13927
  %v14303 = vpop.f32.mrf.mxu0
  %v14304 = vadd.f32 0.0, %v14303
  %v14305 = vpop.f32.mrf.mxu0
  %v14306 = vpop.f32.mrf.mxu0
  %v14307 = vadd.f32 0.0, %v14306
  %v14308 = vpop.f32.mrf.mxu0
  %14309 = vmatprep.mubr.bf16.mxu0 %v13931
  %14310 = vmatmul.mubr.bf16.gmra.mxu0 %v13930
  %v14311 = vpop.f32.mrf.mxu0
  %v14312 = vadd.f32 0.0, %v14311
  %v14313 = vpop.f32.mrf.mxu0
  %v14314 = vpop.f32.mrf.mxu0
  %v14315 = vadd.f32 0.0, %v14314
  %v14316 = vpop.f32.mrf.mxu0
  %14317 = vmatprep.mubr.bf16.mxu0 %v13934
  %14318 = vmatmul.mubr.bf16.gmra.mxu0 %v13933
  %v14319 = vpop.f32.mrf.mxu0
  %v14320 = vadd.f32 0.0, %v14319
  %v14321 = vpop.f32.mrf.mxu0
  %v14322 = vpop.f32.mrf.mxu0
  %v14323 = vadd.f32 0.0, %v14322
  %v14324 = vpop.f32.mrf.mxu0
  %14325 = vmatprep.mubr.bf16.mxu0 %v13937
  %14326 = vmatmul.mubr.bf16.gmra.mxu0 %v13936
  %v14327 = vpop.f32.mrf.mxu0
  %v14328 = vadd.f32 0.0, %v14327
  %v14329 = vpop.f32.mrf.mxu0
  %v14330 = vpop.f32.mrf.mxu0
  %v14331 = vadd.f32 0.0, %v14330
  %v14332 = vpop.f32.mrf.mxu0
  %14333 = vmatprep.mubr.bf16.mxu0 %v13940
  %14334 = vmatmul.mubr.bf16.gmra.mxu0 %v13939
  %v14335 = vpop.f32.mrf.mxu0
  %v14336 = vadd.f32 0.0, %v14335
  %v14337 = vpop.f32.mrf.mxu0
  %v14338 = vpop.f32.mrf.mxu0
  %v14339 = vadd.f32 0.0, %v14338
  %v14340 = vpop.f32.mrf.mxu0
  %14341 = vmatprep.mubr.bf16.mxu0 %v13943
  %14342 = vmatmul.mubr.bf16.gmra.mxu0 %v13942
  %v14343 = vpop.f32.mrf.mxu0
  %v14344 = vadd.f32 0.0, %v14343
  %v14345 = vpop.f32.mrf.mxu0
  %v14346 = vpop.f32.mrf.mxu0
  %v14347 = vadd.f32 0.0, %v14346
  %v14348 = vpop.f32.mrf.mxu0
  %14349 = vmatprep.mubr.bf16.mxu0 %v13945
  %14350 = vmatmul.mubr.bf16.gmra.mxu0 %v13944
  %v14351 = vpop.f32.mrf.mxu0
  %v14352 = vadd.f32 0.0, %v14351
  %v14353 = vpop.f32.mrf.mxu0
  %v14354 = vpop.f32.mrf.mxu0
  %v14355 = vadd.f32 0.0, %v14354
  %v14356 = vpop.f32.mrf.mxu0
  %14357 = vmatprep.mubr.bf16.mxu0 %v13948
  %14358 = vmatmul.mubr.bf16.gmra.mxu0 %v13947
  %v14359 = vpop.f32.mrf.mxu0
  %v14360 = vadd.f32 0.0, %v14359
  %v14361 = vpop.f32.mrf.mxu0
  %v14362 = vpop.f32.mrf.mxu0
  %v14363 = vadd.f32 0.0, %v14362
  %v14364 = vpop.f32.mrf.mxu0
  %14365 = vmatprep.mubr.bf16.mxu0 %v13951
  %14366 = vmatmul.mubr.bf16.gmra.mxu0 %v13950
  %v14367 = vpop.f32.mrf.mxu0
  %v14368 = vadd.f32 0.0, %v14367
  %v14369 = vpop.f32.mrf.mxu0
  %v14370 = vpop.f32.mrf.mxu0
  %v14371 = vadd.f32 0.0, %v14370
  %v14372 = vpop.f32.mrf.mxu0
  %14373 = vmatprep.mubr.bf16.mxu0 %v13954
  %14374 = vmatmul.mubr.bf16.gmra.mxu0 %v13953
  %v14375 = vpop.f32.mrf.mxu0
  %v14376 = vadd.f32 0.0, %v14375
  %v14377 = vpop.f32.mrf.mxu0
  %v14378 = vpop.f32.mrf.mxu0
  %v14379 = vadd.f32 0.0, %v14378
  %v14380 = vpop.f32.mrf.mxu0
  %14381 = vmatprep.mubr.bf16.mxu0 %v13957
  %14382 = vmatmul.mubr.bf16.gmra.mxu0 %v13956
  %v14383 = vpop.f32.mrf.mxu0
  %v14384 = vadd.f32 0.0, %v14383
  %v14385 = vpop.f32.mrf.mxu0
  %v14386 = vpop.f32.mrf.mxu0
  %v14387 = vadd.f32 0.0, %v14386
  %v14388 = vpop.f32.mrf.mxu0
  %14389 = vmatprep.mubr.bf16.mxu0 %v13960
  %14390 = vmatmul.mubr.bf16.gmra.mxu0 %v13959
  %v14391 = vpop.f32.mrf.mxu0
  %v14392 = vadd.f32 0.0, %v14391
  %v14393 = vpop.f32.mrf.mxu0
  %v14394 = vpop.f32.mrf.mxu0
  %v14395 = vadd.f32 0.0, %v14394
  %v14396 = vpop.f32.mrf.mxu0
  %14397 = vmatprep.mubr.bf16.mxu0 %v13963
  %14398 = vmatmul.mubr.bf16.gmra.mxu0 %v13962
  %v14399 = vpop.f32.mrf.mxu0
  %v14400 = vadd.f32 0.0, %v14399
  %v14401 = vpop.f32.mrf.mxu0
  %v14402 = vpop.f32.mrf.mxu0
  %v14403 = vadd.f32 0.0, %v14402
  %v14404 = vpop.f32.mrf.mxu0
  %14405 = vmatprep.mubr.bf16.mxu0 %v13966
  %14406 = vmatmul.mubr.bf16.gmra.mxu0 %v13965
  %v14407 = vpop.f32.mrf.mxu0
  %v14408 = vadd.f32 0.0, %v14407
  %v14409 = vpop.f32.mrf.mxu0
  %v14410 = vpop.f32.mrf.mxu0
  %v14411 = vadd.f32 0.0, %v14410
  %v14412 = vpop.f32.mrf.mxu0
  %14413 = vmatprep.mubr.bf16.mxu0 %v13969
  %14414 = vmatmul.mubr.bf16.gmra.mxu0 %v13968
  %v14415 = vpop.f32.mrf.mxu0
  %v14416 = vadd.f32 0.0, %v14415
  %v14417 = vpop.f32.mrf.mxu0
  %v14418 = vpop.f32.mrf.mxu0
  %v14419 = vadd.f32 0.0, %v14418
  %v14420 = vpop.f32.mrf.mxu0
  %14421 = vmatprep.mubr.bf16.mxu0 %v13972
  %14422 = vmatmul.mubr.bf16.gmra.mxu0 %v13971
  %v14423 = vpop.f32.mrf.mxu0
  %v14424 = vadd.f32 0.0, %v14423
  %v14425 = vpop.f32.mrf.mxu0
  %v14426 = vpop.f32.mrf.mxu0
  %v14427 = vadd.f32 0.0, %v14426
  %v14428 = vpop.f32.mrf.mxu0
  %14429 = vmatprep.mubr.bf16.mxu0 %v13975
  %14430 = vmatmul.mubr.bf16.gmra.mxu0 %v13974
  %v14431 = vpop.f32.mrf.mxu0
  %v14432 = vadd.f32 0.0, %v14431
  %v14433 = vpop.f32.mrf.mxu0
  %v14434 = vpop.f32.mrf.mxu0
  %v14435 = vadd.f32 0.0, %v14434
  %v14436 = vpop.f32.mrf.mxu0
  %14437 = vmatprep.mubr.bf16.mxu0 %v13978
  %14438 = vmatmul.mubr.bf16.gmra.mxu0 %v13977
  %v14439 = vpop.f32.mrf.mxu0
  %v14440 = vadd.f32 0.0, %v14439
  %v14441 = vpop.f32.mrf.mxu0
  %v14442 = vpop.f32.mrf.mxu0
  %v14443 = vadd.f32 0.0, %v14442
  %v14444 = vpop.f32.mrf.mxu0
  %14445 = vmatprep.mubr.bf16.mxu0 %v13981
  %14446 = vmatmul.mubr.bf16.gmra.mxu0 %v13980
  %v14447 = vpop.f32.mrf.mxu0
  %v14448 = vadd.f32 0.0, %v14447
  %v14449 = vpop.f32.mrf.mxu0
  %v14450 = vpop.f32.mrf.mxu0
  %v14451 = vadd.f32 0.0, %v14450
  %v14452 = vpop.f32.mrf.mxu0
  %14453 = vmatprep.mubr.bf16.mxu0 %v13984
  %14454 = vmatmul.mubr.bf16.gmra.mxu0 %v13983
  %v14455 = vpop.f32.mrf.mxu0
  %v14456 = vadd.f32 0.0, %v14455
  %v14457 = vpop.f32.mrf.mxu0
  %v14458 = vpop.f32.mrf.mxu0
  %v14459 = vadd.f32 0.0, %v14458
  %v14460 = vpop.f32.mrf.mxu0
  %14461 = vmatprep.mubr.bf16.mxu0 %v13987
  %14462 = vmatmul.mubr.bf16.gmra.mxu0 %v13986
  %v14463 = vpop.f32.mrf.mxu0
  %v14464 = vadd.f32 0.0, %v14463
  %v14465 = vpop.f32.mrf.mxu0
  %v14466 = vpop.f32.mrf.mxu0
  %v14467 = vadd.f32 0.0, %v14466
  %v14468 = vpop.f32.mrf.mxu0
  %14469 = vmatprep.mubr.bf16.mxu0 %v13990
  %14470 = vmatmul.mubr.bf16.gmra.mxu0 %v13989
  %v14471 = vpop.f32.mrf.mxu0
  %v14472 = vadd.f32 0.0, %v14471
  %v14473 = vpop.f32.mrf.mxu0
  %v14474 = vpop.f32.mrf.mxu0
  %v14475 = vadd.f32 0.0, %v14474
  %v14476 = vpop.f32.mrf.mxu0
  %14477 = vdwg.mxu0
  %14478 = vmatprep.subr.bf16.mxu0 0
  %14479 = vmatpush1.bf16.msra.mxu0 0
  %14480 = vmatprep.subr.bf16.mxu0 0
  %14481 = vmatpush1.bf16.msra.mxu0 0
  %14482 = vmatprep.subr.bf16.mxu0 0
  %14483 = vmatpush1.bf16.msra.mxu0 0
  %14484 = vmatprep.subr.bf16.mxu0 0
  %14485 = vmatpush1.bf16.msra.mxu0 0
  %14486 = vmatprep.subr.bf16.mxu0 0
  %14487 = vmatpush1.bf16.msra.mxu0 0
  %14488 = vmatprep.subr.bf16.mxu0 0
  %14489 = vmatpush1.bf16.msra.mxu0 0
  %14490 = vmatprep.subr.bf16.mxu0 0
  %14491 = vmatpush1.bf16.msra.mxu0 %v14080
  %14492 = vmatprep.subr.bf16.mxu0 0
  %14493 = vmatpush1.bf16.msra.mxu0 %v14079
  %14494 = vmatprep.subr.bf16.mxu0 0
  %14495 = vmatpush2.bf16.msra.mxu0 0
  %14496 = vmatprep.subr.bf16.mxu0 0
  %14497 = vmatpush2.bf16.msra.mxu0 0
  %14498 = vmatprep.subr.bf16.mxu0 0
  %14499 = vmatpush2.bf16.msra.mxu0 0
  %14500 = vmatprep.subr.bf16.mxu0 0
  %14501 = vmatpush2.bf16.msra.mxu0 0
  %14502 = vmatprep.subr.bf16.mxu0 0
  %14503 = vmatpush2.bf16.msra.mxu0 0
  %14504 = vmatprep.subr.bf16.mxu0 0
  %14505 = vmatpush2.bf16.msra.mxu0 0
  %14506 = vmatprep.subr.bf16.mxu0 0
  %14507 = vmatpush2.bf16.msra.mxu0 0
  %14508 = vmatprep.subr.bf16.mxu0 0
  %14509 = vmatpush2.bf16.msra.mxu0 0
  %14510 = vmatprep.mubr.bf16.mxu0 0
  %14511 = vmatmul.mubr.bf16.gmra.mxu0 %v14100
  %v14512 = vpop.f32.mrf.mxu0
  %v14513 = vadd.f32 %v14224, %v14512
  %v14514 = vpop.f32.mrf.mxu0
  %v14515 = vpop.f32.mrf.mxu0
  %v14516 = vadd.f32 %v14227, %v14515
  %v14517 = vpop.f32.mrf.mxu0
  %14518 = vmatprep.mubr.bf16.mxu0 0
  %14519 = vmatmul.mubr.bf16.gmra.mxu0 %v14103
  %v14520 = vpop.f32.mrf.mxu0
  %v14521 = vadd.f32 %v14232, %v14520
  %v14522 = vpop.f32.mrf.mxu0
  %v14523 = vpop.f32.mrf.mxu0
  %v14524 = vadd.f32 %v14235, %v14523
  %v14525 = vpop.f32.mrf.mxu0
  %14526 = vmatprep.mubr.bf16.mxu0 0
  %14527 = vmatmul.mubr.bf16.gmra.mxu0 %v14106
  %v14528 = vpop.f32.mrf.mxu0
  %v14529 = vadd.f32 %v14240, %v14528
  %v14530 = vpop.f32.mrf.mxu0
  %v14531 = vpop.f32.mrf.mxu0
  %v14532 = vadd.f32 %v14243, %v14531
  %v14533 = vpop.f32.mrf.mxu0
  %14534 = vmatprep.mubr.bf16.mxu0 0
  %14535 = vmatmul.mubr.bf16.gmra.mxu0 %v14109
  %v14536 = vpop.f32.mrf.mxu0
  %v14537 = vadd.f32 %v14248, %v14536
  %v14538 = vpop.f32.mrf.mxu0
  %v14539 = vpop.f32.mrf.mxu0
  %v14540 = vadd.f32 %v14251, %v14539
  %v14541 = vpop.f32.mrf.mxu0
  %14542 = vmatprep.mubr.bf16.mxu0 0
  %14543 = vmatmul.mubr.bf16.gmra.mxu0 %v14112
  %v14544 = vpop.f32.mrf.mxu0
  %v14545 = vadd.f32 %v14256, %v14544
  %v14546 = vpop.f32.mrf.mxu0
  %v14547 = vpop.f32.mrf.mxu0
  %v14548 = vadd.f32 %v14259, %v14547
  %v14549 = vpop.f32.mrf.mxu0
  %14550 = vmatprep.mubr.bf16.mxu0 0
  %14551 = vmatmul.mubr.bf16.gmra.mxu0 %v14115
  %v14552 = vpop.f32.mrf.mxu0
  %v14553 = vadd.f32 %v14264, %v14552
  %v14554 = vpop.f32.mrf.mxu0
  %v14555 = vpop.f32.mrf.mxu0
  %v14556 = vadd.f32 %v14267, %v14555
  %v14557 = vpop.f32.mrf.mxu0
  %14558 = vmatprep.mubr.bf16.mxu0 0
  %14559 = vmatmul.mubr.bf16.gmra.mxu0 %v14118
  %v14560 = vpop.f32.mrf.mxu0
  %v14561 = vadd.f32 %v14272, %v14560
  %v14562 = vpop.f32.mrf.mxu0
  %v14563 = vpop.f32.mrf.mxu0
  %v14564 = vadd.f32 %v14275, %v14563
  %v14565 = vpop.f32.mrf.mxu0
  %14566 = vmatprep.mubr.bf16.mxu0 0
  %14567 = vmatmul.mubr.bf16.gmra.mxu0 %v14121
  %v14568 = vpop.f32.mrf.mxu0
  %v14569 = vadd.f32 %v14280, %v14568
  %v14570 = vpop.f32.mrf.mxu0
  %v14571 = vpop.f32.mrf.mxu0
  %v14572 = vadd.f32 %v14283, %v14571
  %v14573 = vpop.f32.mrf.mxu0
  %14574 = vmatprep.mubr.bf16.mxu0 0
  %14575 = vmatmul.mubr.bf16.gmra.mxu0 %v14124
  %v14576 = vpop.f32.mrf.mxu0
  %v14577 = vadd.f32 %v14288, %v14576
  %v14578 = vpop.f32.mrf.mxu0
  %v14579 = vpop.f32.mrf.mxu0
  %v14580 = vadd.f32 %v14291, %v14579
  %v14581 = vpop.f32.mrf.mxu0
  %14582 = vmatprep.mubr.bf16.mxu0 0
  %14583 = vmatmul.mubr.bf16.gmra.mxu0 %v14127
  %v14584 = vpop.f32.mrf.mxu0
  %v14585 = vadd.f32 %v14296, %v14584
  %v14586 = vpop.f32.mrf.mxu0
  %v14587 = vpop.f32.mrf.mxu0
  %v14588 = vadd.f32 %v14299, %v14587
  %v14589 = vpop.f32.mrf.mxu0
  %14590 = vmatprep.mubr.bf16.mxu0 0
  %14591 = vmatmul.mubr.bf16.gmra.mxu0 %v14130
  %v14592 = vpop.f32.mrf.mxu0
  %v14593 = vadd.f32 %v14304, %v14592
  %v14594 = vpop.f32.mrf.mxu0
  %v14595 = vpop.f32.mrf.mxu0
  %v14596 = vadd.f32 %v14307, %v14595
  %v14597 = vpop.f32.mrf.mxu0
  %14598 = vmatprep.mubr.bf16.mxu0 0
  %14599 = vmatmul.mubr.bf16.gmra.mxu0 %v14133
  %v14600 = vpop.f32.mrf.mxu0
  %v14601 = vadd.f32 %v14312, %v14600
  %v14602 = vpop.f32.mrf.mxu0
  %v14603 = vpop.f32.mrf.mxu0
  %v14604 = vadd.f32 %v14315, %v14603
  %v14605 = vpop.f32.mrf.mxu0
  %14606 = vmatprep.mubr.bf16.mxu0 0
  %14607 = vmatmul.mubr.bf16.gmra.mxu0 %v14136
  %v14608 = vpop.f32.mrf.mxu0
  %v14609 = vadd.f32 %v14320, %v14608
  %v14610 = vpop.f32.mrf.mxu0
  %v14611 = vpop.f32.mrf.mxu0
  %v14612 = vadd.f32 %v14323, %v14611
  %v14613 = vpop.f32.mrf.mxu0
  %14614 = vmatprep.mubr.bf16.mxu0 0
  %14615 = vmatmul.mubr.bf16.gmra.mxu0 %v14139
  %v14616 = vpop.f32.mrf.mxu0
  %v14617 = vadd.f32 %v14328, %v14616
  %v14618 = vpop.f32.mrf.mxu0
  %v14619 = vpop.f32.mrf.mxu0
  %v14620 = vadd.f32 %v14331, %v14619
  %v14621 = vpop.f32.mrf.mxu0
  %14622 = vmatprep.mubr.bf16.mxu0 0
  %14623 = vmatmul.mubr.bf16.gmra.mxu0 %v14142
  %v14624 = vpop.f32.mrf.mxu0
  %v14625 = vadd.f32 %v14336, %v14624
  %v14626 = vpop.f32.mrf.mxu0
  %v14627 = vpop.f32.mrf.mxu0
  %v14628 = vadd.f32 %v14339, %v14627
  %v14629 = vpop.f32.mrf.mxu0
  %14630 = vmatprep.mubr.bf16.mxu0 0
  %14631 = vmatmul.mubr.bf16.gmra.mxu0 %v14139
  %v14632 = vpop.f32.mrf.mxu0
  %v14633 = vadd.f32 %v14344, %v14632
  %v14634 = vpop.f32.mrf.mxu0
  %v14635 = vpop.f32.mrf.mxu0
  %v14636 = vadd.f32 %v14347, %v14635
  %v14637 = vpop.f32.mrf.mxu0
  %14638 = vmatprep.mubr.bf16.mxu0 0
  %14639 = vmatmul.mubr.bf16.gmra.mxu0 %v14145
  %v14640 = vpop.f32.mrf.mxu0
  %v14641 = vadd.f32 %v14352, %v14640
  %v14642 = vpop.f32.mrf.mxu0
  %v14643 = vpop.f32.mrf.mxu0
  %v14644 = vadd.f32 %v14355, %v14643
  %v14645 = vpop.f32.mrf.mxu0
  %14646 = vmatprep.mubr.bf16.mxu0 0
  %14647 = vmatmul.mubr.bf16.gmra.mxu0 %v14148
  %v14648 = vpop.f32.mrf.mxu0
  %v14649 = vadd.f32 %v14360, %v14648
  %v14650 = vpop.f32.mrf.mxu0
  %v14651 = vpop.f32.mrf.mxu0
  %v14652 = vadd.f32 %v14363, %v14651
  %v14653 = vpop.f32.mrf.mxu0
  %14654 = vmatprep.mubr.bf16.mxu0 0
  %14655 = vmatmul.mubr.bf16.gmra.mxu0 %v14151
  %v14656 = vpop.f32.mrf.mxu0
  %v14657 = vadd.f32 %v14368, %v14656
  %v14658 = vpop.f32.mrf.mxu0
  %v14659 = vpop.f32.mrf.mxu0
  %v14660 = vadd.f32 %v14371, %v14659
  %v14661 = vpop.f32.mrf.mxu0
  %14662 = vmatprep.mubr.bf16.mxu0 0
  %14663 = vmatmul.mubr.bf16.gmra.mxu0 %v14154
  %v14664 = vpop.f32.mrf.mxu0
  %v14665 = vadd.f32 %v14376, %v14664
  %v14666 = vpop.f32.mrf.mxu0
  %v14667 = vpop.f32.mrf.mxu0
  %v14668 = vadd.f32 %v14379, %v14667
  %v14669 = vpop.f32.mrf.mxu0
  %14670 = vmatprep.mubr.bf16.mxu0 0
  %14671 = vmatmul.mubr.bf16.gmra.mxu0 %v14157
  %v14672 = vpop.f32.mrf.mxu0
  %v14673 = vadd.f32 %v14384, %v14672
  %v14674 = vpop.f32.mrf.mxu0
  %v14675 = vpop.f32.mrf.mxu0
  %v14676 = vadd.f32 %v14387, %v14675
  %v14677 = vpop.f32.mrf.mxu0
  %14678 = vmatprep.mubr.bf16.mxu0 0
  %14679 = vmatmul.mubr.bf16.gmra.mxu0 %v14160
  %v14680 = vpop.f32.mrf.mxu0
  %v14681 = vadd.f32 %v14392, %v14680
  %v14682 = vpop.f32.mrf.mxu0
  %v14683 = vpop.f32.mrf.mxu0
  %v14684 = vadd.f32 %v14395, %v14683
  %v14685 = vpop.f32.mrf.mxu0
  %14686 = vmatprep.mubr.bf16.mxu0 0
  %14687 = vmatmul.mubr.bf16.gmra.mxu0 %v14163
  %v14688 = vpop.f32.mrf.mxu0
  %v14689 = vadd.f32 %v14400, %v14688
  %v14690 = vpop.f32.mrf.mxu0
  %v14691 = vpop.f32.mrf.mxu0
  %v14692 = vadd.f32 %v14403, %v14691
  %v14693 = vpop.f32.mrf.mxu0
  %14694 = vmatprep.mubr.bf16.mxu0 0
  %14695 = vmatmul.mubr.bf16.gmra.mxu0 %v14166
  %v14696 = vpop.f32.mrf.mxu0
  %v14697 = vadd.f32 %v14408, %v14696
  %v14698 = vpop.f32.mrf.mxu0
  %v14699 = vpop.f32.mrf.mxu0
  %v14700 = vadd.f32 %v14411, %v14699
  %v14701 = vpop.f32.mrf.mxu0
  %14702 = vmatprep.mubr.bf16.mxu0 0
  %14703 = vmatmul.mubr.bf16.gmra.mxu0 %v14169
  %v14704 = vpop.f32.mrf.mxu0
  %v14705 = vadd.f32 %v14416, %v14704
  %v14706 = vpop.f32.mrf.mxu0
  %v14707 = vpop.f32.mrf.mxu0
  %v14708 = vadd.f32 %v14419, %v14707
  %v14709 = vpop.f32.mrf.mxu0
  %14710 = vmatprep.mubr.bf16.mxu0 0
  %14711 = vmatmul.mubr.bf16.gmra.mxu0 %v14172
  %v14712 = vpop.f32.mrf.mxu0
  %v14713 = vadd.f32 %v14424, %v14712
  %v14714 = vpop.f32.mrf.mxu0
  %v14715 = vpop.f32.mrf.mxu0
  %v14716 = vadd.f32 %v14427, %v14715
  %v14717 = vpop.f32.mrf.mxu0
  %14718 = vmatprep.mubr.bf16.mxu0 0
  %14719 = vmatmul.mubr.bf16.gmra.mxu0 %v14175
  %v14720 = vpop.f32.mrf.mxu0
  %v14721 = vadd.f32 %v14432, %v14720
  %v14722 = vpop.f32.mrf.mxu0
  %v14723 = vpop.f32.mrf.mxu0
  %v14724 = vadd.f32 %v14435, %v14723
  %v14725 = vpop.f32.mrf.mxu0
  %14726 = vmatprep.mubr.bf16.mxu0 0
  %14727 = vmatmul.mubr.bf16.gmra.mxu0 %v14178
  %v14728 = vpop.f32.mrf.mxu0
  %v14729 = vadd.f32 %v14440, %v14728
  %v14730 = vpop.f32.mrf.mxu0
  %v14731 = vpop.f32.mrf.mxu0
  %v14732 = vadd.f32 %v14443, %v14731
  %v14733 = vpop.f32.mrf.mxu0
  %14734 = vmatprep.mubr.bf16.mxu0 0
  %14735 = vmatmul.mubr.bf16.gmra.mxu0 %v14181
  %v14736 = vpop.f32.mrf.mxu0
  %v14737 = vadd.f32 %v14448, %v14736
  %v14738 = vpop.f32.mrf.mxu0
  %v14739 = vpop.f32.mrf.mxu0
  %v14740 = vadd.f32 %v14451, %v14739
  %v14741 = vpop.f32.mrf.mxu0
  %14742 = vmatprep.mubr.bf16.mxu0 0
  %14743 = vmatmul.mubr.bf16.gmra.mxu0 %v14184
  %v14744 = vpop.f32.mrf.mxu0
  %v14745 = vadd.f32 %v14456, %v14744
  %v14746 = vpop.f32.mrf.mxu0
  %v14747 = vpop.f32.mrf.mxu0
  %v14748 = vadd.f32 %v14459, %v14747
  %v14749 = vpop.f32.mrf.mxu0
  %14750 = vmatprep.mubr.bf16.mxu0 0
  %14751 = vmatmul.mubr.bf16.gmra.mxu0 %v14187
  %v14752 = vpop.f32.mrf.mxu0
  %v14753 = vadd.f32 %v14464, %v14752
  %v14754 = vpop.f32.mrf.mxu0
  %v14755 = vpop.f32.mrf.mxu0
  %v14756 = vadd.f32 %v14467, %v14755
  %v14757 = vpop.f32.mrf.mxu0
  %14758 = vmatprep.mubr.bf16.mxu0 0
  %14759 = vmatmul.mubr.bf16.gmra.mxu0 %v14184
  %v14760 = vpop.f32.mrf.mxu0
  %v14761 = vadd.f32 %v14472, %v14760
  %v14762 = vpop.f32.mrf.mxu0
  %v14763 = vpop.f32.mrf.mxu0
  %v14764 = vadd.f32 %v14475, %v14763
  %v14765 = vpop.f32.mrf.mxu0
  %14766 = vdwg.mxu0
  %v14767 = vadd.f32 %v14513, %v14516
  %v14768 = vadd.f32 %v14767, %v14521
  %v14769 = vadd.f32 %v14768, %v14524
  %v14770 = vadd.f32 %v14769, %v14529
  %v14771 = vadd.f32 %v14770, %v14532
  %v14772 = vadd.f32 %v14771, %v14537
  %v14773 = vadd.f32 %v14772, %v14540
  %v14774 = vadd.f32 %v14773, %v14545
  %v14775 = vadd.f32 %v14774, %v14548
  %v14776 = vadd.f32 %v14775, %v14553
  %v14777 = vadd.f32 %v14776, %v14556
  %v14778 = vadd.f32 %v14777, %v14561
  %v14779 = vadd.f32 %v14778, %v14564
  %v14780 = vadd.f32 %v14779, %v14569
  %v14781 = vadd.f32 %v14780, %v14572
  %v14782 = vadd.f32 %v14781, %v14577
  %v14783 = vadd.f32 %v14782, %v14580
  %v14784 = vadd.f32 %v14783, %v14585
  %v14785 = vadd.f32 %v14784, %v14588
  %v14786 = vadd.f32 %v14785, %v14593
  %v14787 = vadd.f32 %v14786, %v14596
  %v14788 = vadd.f32 %v14787, %v14601
  %v14789 = vadd.f32 %v14788, %v14604
  %v14790 = vadd.f32 %v14789, %v14609
  %v14791 = vadd.f32 %v14790, %v14612
  %v14792 = vadd.f32 %v14791, %v14617
  %v14793 = vadd.f32 %v14792, %v14620
  %v14794 = vadd.f32 %v14793, %v14625
  %v14795 = vadd.f32 %v14794, %v14628
  %v14796 = vadd.f32 %v14795, %v14633
  %v14797 = vadd.f32 %v14796, %v14636
  %v14798 = vadd.f32 %v14797, %v14641
  %v14799 = vadd.f32 %v14798, %v14644
  %v14800 = vadd.f32 %v14799, %v14649
  %v14801 = vadd.f32 %v14800, %v14652
  %v14802 = vadd.f32 %v14801, %v14657
  %v14803 = vadd.f32 %v14802, %v14660
  %v14804 = vadd.f32 %v14803, %v14665
  %v14805 = vadd.f32 %v14804, %v14668
  %v14806 = vadd.f32 %v14805, %v14673
  %v14807 = vadd.f32 %v14806, %v14676
  %v14808 = vadd.f32 %v14807, %v14681
  %v14809 = vadd.f32 %v14808, %v14684
  %v14810 = vadd.f32 %v14809, %v14689
  %v14811 = vadd.f32 %v14810, %v14692
  %v14812 = vadd.f32 %v14811, %v14697
  %v14813 = vadd.f32 %v14812, %v14700
  %v14814 = vadd.f32 %v14813, %v14705
  %v14815 = vadd.f32 %v14814, %v14708
  %v14816 = vadd.f32 %v14815, %v14713
  %v14817 = vadd.f32 %v14816, %v14716
  %v14818 = vadd.f32 %v14817, %v14721
  %v14819 = vadd.f32 %v14818, %v14724
  %v14820 = vadd.f32 %v14819, %v14729
  %v14821 = vadd.f32 %v14820, %v14732
  %v14822 = vadd.f32 %v14821, %v14737
  %v14823 = vadd.f32 %v14822, %v14740
  %v14824 = vadd.f32 %v14823, %v14745
  %v14825 = vadd.f32 %v14824, %v14748
  %v14826 = vadd.f32 %v14825, %v14753
  %v14827 = vadd.f32 %v14826, %v14756
  %v14828 = vadd.f32 %v14827, %v14761
  %v14829 = vadd.f32 %v14828, %v14764
  %v14830 = vrot.slane %v14829, 4
  %v14831 = vadd.f32 %v14829, %v14830
  %v14832 = vrot.slane %v14831, 2
  %v14833 = vadd.f32 %v14831, %v14832
  %v14834 = vrot.slane %v14833, 1
  %v14835 = vadd.f32 %v14833, %v14834
  %v14836 = vmul.f32 %v14513, %v14513
  %v14837 = vmul.f32 %v14516, %v14516
  %v14838 = vmul.f32 %v14521, %v14521
  %v14839 = vmul.f32 %v14524, %v14524
  %v14840 = vmul.f32 %v14529, %v14529
  %v14841 = vmul.f32 %v14532, %v14532
  %v14842 = vmul.f32 %v14537, %v14537
  %v14843 = vmul.f32 %v14540, %v14540
  %v14844 = vmul.f32 %v14545, %v14545
  %v14845 = vmul.f32 %v14548, %v14548
  %v14846 = vmul.f32 %v14553, %v14553
  %v14847 = vmul.f32 %v14556, %v14556
  %v14848 = vmul.f32 %v14561, %v14561
  %v14849 = vmul.f32 %v14564, %v14564
  %v14850 = vmul.f32 %v14569, %v14569
  %v14851 = vmul.f32 %v14572, %v14572
  %v14852 = vmul.f32 %v14577, %v14577
  %v14853 = vmul.f32 %v14580, %v14580
  %v14854 = vmul.f32 %v14585, %v14585
  %v14855 = vmul.f32 %v14588, %v14588
  %v14856 = vmul.f32 %v14593, %v14593
  %v14857 = vmul.f32 %v14596, %v14596
  %v14858 = vmul.f32 %v14601, %v14601
  %v14859 = vmul.f32 %v14604, %v14604
  %v14860 = vmul.f32 %v14609, %v14609
  %v14861 = vmul.f32 %v14612, %v14612
  %v14862 = vmul.f32 %v14617, %v14617
  %v14863 = vmul.f32 %v14620, %v14620
  %v14864 = vmul.f32 %v14625, %v14625
  %v14865 = vmul.f32 %v14628, %v14628
  %v14866 = vmul.f32 %v14633, %v14633
  %v14867 = vmul.f32 %v14636, %v14636
  %v14868 = vmul.f32 %v14641, %v14641
  %v14869 = vmul.f32 %v14644, %v14644
  %v14870 = vmul.f32 %v14649, %v14649
  %v14871 = vmul.f32 %v14652, %v14652
  %v14872 = vmul.f32 %v14657, %v14657
  %v14873 = vmul.f32 %v14660, %v14660
  %v14874 = vmul.f32 %v14665, %v14665
  %v14875 = vmul.f32 %v14668, %v14668
  %v14876 = vmul.f32 %v14673, %v14673
  %v14877 = vmul.f32 %v14676, %v14676
  %v14878 = vmul.f32 %v14681, %v14681
  %v14879 = vmul.f32 %v14684, %v14684
  %v14880 = vmul.f32 %v14689, %v14689
  %v14881 = vmul.f32 %v14692, %v14692
  %v14882 = vmul.f32 %v14697, %v14697
  %v14883 = vmul.f32 %v14700, %v14700
  %v14884 = vmul.f32 %v14705, %v14705
  %v14885 = vmul.f32 %v14708, %v14708
  %v14886 = vmul.f32 %v14713, %v14713
  %v14887 = vmul.f32 %v14716, %v14716
  %v14888 = vmul.f32 %v14721, %v14721
  %v14889 = vmul.f32 %v14724, %v14724
  %v14890 = vmul.f32 %v14729, %v14729
  %v14891 = vmul.f32 %v14732, %v14732
  %v14892 = vmul.f32 %v14737, %v14737
  %v14893 = vmul.f32 %v14740, %v14740
  %v14894 = vmul.f32 %v14745, %v14745
  %v14895 = vmul.f32 %v14748, %v14748
  %v14896 = vmul.f32 %v14753, %v14753
  %v14897 = vmul.f32 %v14756, %v14756
  %v14898 = vmul.f32 %v14761, %v14761
  %v14899 = vmul.f32 %v14764, %v14764
  %v14900 = vadd.f32 %v14836, %v14837
  %v14901 = vadd.f32 %v14900, %v14838
  %v14902 = vadd.f32 %v14901, %v14839
  %v14903 = vadd.f32 %v14902, %v14840
  %v14904 = vadd.f32 %v14903, %v14841
  %v14905 = vadd.f32 %v14904, %v14842
  %v14906 = vadd.f32 %v14905, %v14843
  %v14907 = vadd.f32 %v14906, %v14844
  %v14908 = vadd.f32 %v14907, %v14845
  %v14909 = vadd.f32 %v14908, %v14846
  %v14910 = vadd.f32 %v14909, %v14847
  %v14911 = vadd.f32 %v14910, %v14848
  %v14912 = vadd.f32 %v14911, %v14849
  %v14913 = vadd.f32 %v14912, %v14850
  %v14914 = vadd.f32 %v14913, %v14851
  %v14915 = vadd.f32 %v14914, %v14852
  %v14916 = vadd.f32 %v14915, %v14853
  %v14917 = vadd.f32 %v14916, %v14854
  %v14918 = vadd.f32 %v14917, %v14855
  %v14919 = vadd.f32 %v14918, %v14856
  %v14920 = vadd.f32 %v14919, %v14857
  %v14921 = vadd.f32 %v14920, %v14858
  %v14922 = vadd.f32 %v14921, %v14859
  %v14923 = vadd.f32 %v14922, %v14860
  %v14924 = vadd.f32 %v14923, %v14861
  %v14925 = vadd.f32 %v14924, %v14862
  %v14926 = vadd.f32 %v14925, %v14863
  %v14927 = vadd.f32 %v14926, %v14864
  %v14928 = vadd.f32 %v14927, %v14865
  %v14929 = vadd.f32 %v14928, %v14866
  %v14930 = vadd.f32 %v14929, %v14867
  %v14931 = vadd.f32 %v14930, %v14868
  %v14932 = vadd.f32 %v14931, %v14869
  %v14933 = vadd.f32 %v14932, %v14870
  %v14934 = vadd.f32 %v14933, %v14871
  %v14935 = vadd.f32 %v14934, %v14872
  %v14936 = vadd.f32 %v14935, %v14873
  %v14937 = vadd.f32 %v14936, %v14874
  %v14938 = vadd.f32 %v14937, %v14875
  %v14939 = vadd.f32 %v14938, %v14876
  %v14940 = vadd.f32 %v14939, %v14877
  %v14941 = vadd.f32 %v14940, %v14878
  %v14942 = vadd.f32 %v14941, %v14879
  %v14943 = vadd.f32 %v14942, %v14880
  %v14944 = vadd.f32 %v14943, %v14881
  %v14945 = vadd.f32 %v14944, %v14882
  %v14946 = vadd.f32 %v14945, %v14883
  %v14947 = vadd.f32 %v14946, %v14884
  %v14948 = vadd.f32 %v14947, %v14885
  %v14949 = vadd.f32 %v14948, %v14886
  %v14950 = vadd.f32 %v14949, %v14887
  %v14951 = vadd.f32 %v14950, %v14888
  %v14952 = vadd.f32 %v14951, %v14889
  %v14953 = vadd.f32 %v14952, %v14890
  %v14954 = vadd.f32 %v14953, %v14891
  %v14955 = vadd.f32 %v14954, %v14892
  %v14956 = vadd.f32 %v14955, %v14893
  %v14957 = vadd.f32 %v14956, %v14894
  %v14958 = vadd.f32 %v14957, %v14895
  %v14959 = vadd.f32 %v14958, %v14896
  %v14960 = vadd.f32 %v14959, %v14897
  %v14961 = vadd.f32 %v14960, %v14898
  %v14962 = vadd.f32 %v14961, %v14899
  %v14963 = vrot.slane %v14962, 4
  %v14964 = vadd.f32 %v14962, %v14963
  %v14965 = vrot.slane %v14964, 2
  %v14966 = vadd.f32 %v14964, %v14965
  %v14967 = vrot.slane %v14966, 1
  %v14968 = vadd.f32 %v14966, %v14967
  %v14969 = vmul.f32 %v14835, %v3702
  %v14970 = vmul.f32 %v14968, %v3702
  %v14971 = vmul.f32 %v14969, %v14969
  %v14972 = vsub.f32 %v14970, %v14971
  %v14973 = vmax.f32 %v14972, 0.0
  %v14974 = vadd.f32 %v14973, 1e-05
  %v14975 = vrsqrt.pop %v14974
  %v14976 = vmul.f32 %v11461, %v14975
  %v14977 = vmul.f32 %v14969, %v14976
  %v14978 = vsub.f32 %v11462, %v14977
  %v14980 = vlaneseq
  %v14981 = vshrl.u32 %v14980, 7
  %v14982 = vsub.s32 0, %v14981
  %v14983 = vrot.slane %v14976, %v14982
  %v14985 = vmul.f32 %v14513, %v14983
  %v14986 = vmul.f32 %v14516, %v14983
  %v14987 = vmul.f32 %v14521, %v14983
  %v14988 = vmul.f32 %v14524, %v14983
  %v14989 = vmul.f32 %v14529, %v14983
  %v14990 = vmul.f32 %v14532, %v14983
  %v14991 = vmul.f32 %v14537, %v14983
  %v14992 = vmul.f32 %v14540, %v14983
  %v14993 = vmul.f32 %v14545, %v14983
  %v14994 = vmul.f32 %v14548, %v14983
  %v14995 = vmul.f32 %v14553, %v14983
  %v14996 = vmul.f32 %v14556, %v14983
  %v14997 = vmul.f32 %v14561, %v14983
  %v14998 = vmul.f32 %v14564, %v14983
  %v14999 = vmul.f32 %v14569, %v14983
  %v15000 = vmul.f32 %v14572, %v14983
  %v15001 = vmul.f32 %v14577, %v14983
  %v15002 = vmul.f32 %v14580, %v14983
  %v15003 = vmul.f32 %v14585, %v14983
  %v15004 = vmul.f32 %v14588, %v14983
  %v15005 = vmul.f32 %v14593, %v14983
  %v15006 = vmul.f32 %v14596, %v14983
  %v15007 = vmul.f32 %v14601, %v14983
  %v15008 = vmul.f32 %v14604, %v14983
  %v15009 = vmul.f32 %v14609, %v14983
  %v15010 = vmul.f32 %v14612, %v14983
  %v15011 = vmul.f32 %v14617, %v14983
  %v15012 = vmul.f32 %v14620, %v14983
  %v15013 = vmul.f32 %v14625, %v14983
  %v15014 = vmul.f32 %v14628, %v14983
  %v15015 = vmul.f32 %v14633, %v14983
  %v15016 = vmul.f32 %v14636, %v14983
  %v15017 = vmul.f32 %v14641, %v14983
  %v15018 = vmul.f32 %v14644, %v14983
  %v15019 = vmul.f32 %v14649, %v14983
  %v15020 = vmul.f32 %v14652, %v14983
  %v15021 = vmul.f32 %v14657, %v14983
  %v15022 = vmul.f32 %v14660, %v14983
  %v15023 = vmul.f32 %v14665, %v14983
  %v15024 = vmul.f32 %v14668, %v14983
  %v15025 = vmul.f32 %v14673, %v14983
  %v15026 = vmul.f32 %v14676, %v14983
  %v15027 = vmul.f32 %v14681, %v14983
  %v15028 = vmul.f32 %v14684, %v14983
  %v15029 = vmul.f32 %v14689, %v14983
  %v15030 = vmul.f32 %v14692, %v14983
  %v15031 = vmul.f32 %v14697, %v14983
  %v15032 = vmul.f32 %v14700, %v14983
  %v15033 = vmul.f32 %v14705, %v14983
  %v15034 = vmul.f32 %v14708, %v14983
  %v15035 = vmul.f32 %v14713, %v14983
  %v15036 = vmul.f32 %v14716, %v14983
  %v15037 = vmul.f32 %v14721, %v14983
  %v15038 = vmul.f32 %v14724, %v14983
  %v15039 = vmul.f32 %v14729, %v14983
  %v15040 = vmul.f32 %v14732, %v14983
  %v15041 = vmul.f32 %v14737, %v14983
  %v15042 = vmul.f32 %v14740, %v14983
  %v15043 = vmul.f32 %v14745, %v14983
  %v15044 = vmul.f32 %v14748, %v14983
  %v15045 = vmul.f32 %v14753, %v14983
  %v15046 = vmul.f32 %v14756, %v14983
  %v15047 = vmul.f32 %v14761, %v14983
  %v15048 = vmul.f32 %v14764, %v14983
  %v15050 = vlaneseq
  %v15051 = vshrl.u32 %v15050, 7
  %v15052 = vsub.s32 0, %v15051
  %v15053 = vrot.slane %v14978, %v15052
  %v15055 = vadd.f32 %v14985, %v15053
  %v15056 = vadd.f32 %v14986, %v15053
  %v15057 = vadd.f32 %v14987, %v15053
  %v15058 = vadd.f32 %v14988, %v15053
  %v15059 = vadd.f32 %v14989, %v15053
  %v15060 = vadd.f32 %v14990, %v15053
  %v15061 = vadd.f32 %v14991, %v15053
  %v15062 = vadd.f32 %v14992, %v15053
  %v15063 = vadd.f32 %v14993, %v15053
  %v15064 = vadd.f32 %v14994, %v15053
  %v15065 = vadd.f32 %v14995, %v15053
  %v15066 = vadd.f32 %v14996, %v15053
  %v15067 = vadd.f32 %v14997, %v15053
  %v15068 = vadd.f32 %v14998, %v15053
  %v15069 = vadd.f32 %v14999, %v15053
  %v15070 = vadd.f32 %v15000, %v15053
  %v15071 = vadd.f32 %v15001, %v15053
  %v15072 = vadd.f32 %v15002, %v15053
  %v15073 = vadd.f32 %v15003, %v15053
  %v15074 = vadd.f32 %v15004, %v15053
  %v15075 = vadd.f32 %v15005, %v15053
  %v15076 = vadd.f32 %v15006, %v15053
  %v15077 = vadd.f32 %v15007, %v15053
  %v15078 = vadd.f32 %v15008, %v15053
  %v15079 = vadd.f32 %v15009, %v15053
  %v15080 = vadd.f32 %v15010, %v15053
  %v15081 = vadd.f32 %v15011, %v15053
  %v15082 = vadd.f32 %v15012, %v15053
  %v15083 = vadd.f32 %v15013, %v15053
  %v15084 = vadd.f32 %v15014, %v15053
  %v15085 = vadd.f32 %v15015, %v15053
  %v15086 = vadd.f32 %v15016, %v15053
  %v15087 = vadd.f32 %v15017, %v15053
  %v15088 = vadd.f32 %v15018, %v15053
  %v15089 = vadd.f32 %v15019, %v15053
  %v15090 = vadd.f32 %v15020, %v15053
  %v15091 = vadd.f32 %v15021, %v15053
  %v15092 = vadd.f32 %v15022, %v15053
  %v15093 = vadd.f32 %v15023, %v15053
  %v15094 = vadd.f32 %v15024, %v15053
  %v15095 = vadd.f32 %v15025, %v15053
  %v15096 = vadd.f32 %v15026, %v15053
  %v15097 = vadd.f32 %v15027, %v15053
  %v15098 = vadd.f32 %v15028, %v15053
  %v15099 = vadd.f32 %v15029, %v15053
  %v15100 = vadd.f32 %v15030, %v15053
  %v15101 = vadd.f32 %v15031, %v15053
  %v15102 = vadd.f32 %v15032, %v15053
  %v15103 = vadd.f32 %v15033, %v15053
  %v15104 = vadd.f32 %v15034, %v15053
  %v15105 = vadd.f32 %v15035, %v15053
  %v15106 = vadd.f32 %v15036, %v15053
  %v15107 = vadd.f32 %v15037, %v15053
  %v15108 = vadd.f32 %v15038, %v15053
  %v15109 = vadd.f32 %v15039, %v15053
  %v15110 = vadd.f32 %v15040, %v15053
  %v15111 = vadd.f32 %v15041, %v15053
  %v15112 = vadd.f32 %v15042, %v15053
  %v15113 = vadd.f32 %v15043, %v15053
  %v15114 = vadd.f32 %v15044, %v15053
  %v15115 = vadd.f32 %v15045, %v15053
  %v15116 = vadd.f32 %v15046, %v15053
  %v15117 = vadd.f32 %v15047, %v15053
  %v15118 = vadd.f32 %v15048, %v15053
  %v15119 = vmax.f32 %v15055, 0.0
  %v15120 = vmax.f32 %v15056, 0.0
  %v15121 = vmax.f32 %v15057, 0.0
  %v15122 = vmax.f32 %v15058, 0.0
  %v15123 = vmax.f32 %v15059, 0.0
  %v15124 = vmax.f32 %v15060, 0.0
  %v15125 = vmax.f32 %v15061, 0.0
  %v15126 = vmax.f32 %v15062, 0.0
  %v15127 = vmax.f32 %v15063, 0.0
  %v15128 = vmax.f32 %v15064, 0.0
  %v15129 = vmax.f32 %v15065, 0.0
  %v15130 = vmax.f32 %v15066, 0.0
  %v15131 = vmax.f32 %v15067, 0.0
  %v15132 = vmax.f32 %v15068, 0.0
  %v15133 = vmax.f32 %v15069, 0.0
  %v15134 = vmax.f32 %v15070, 0.0
  %v15135 = vmax.f32 %v15071, 0.0
  %v15136 = vmax.f32 %v15072, 0.0
  %v15137 = vmax.f32 %v15073, 0.0
  %v15138 = vmax.f32 %v15074, 0.0
  %v15139 = vmax.f32 %v15075, 0.0
  %v15140 = vmax.f32 %v15076, 0.0
  %v15141 = vmax.f32 %v15077, 0.0
  %v15142 = vmax.f32 %v15078, 0.0
  %v15143 = vmax.f32 %v15079, 0.0
  %v15144 = vmax.f32 %v15080, 0.0
  %v15145 = vmax.f32 %v15081, 0.0
  %v15146 = vmax.f32 %v15082, 0.0
  %v15147 = vmax.f32 %v15083, 0.0
  %v15148 = vmax.f32 %v15084, 0.0
  %v15149 = vmax.f32 %v15085, 0.0
  %v15150 = vmax.f32 %v15086, 0.0
  %v15151 = vmax.f32 %v15087, 0.0
  %v15152 = vmax.f32 %v15088, 0.0
  %v15153 = vmax.f32 %v15089, 0.0
  %v15154 = vmax.f32 %v15090, 0.0
  %v15155 = vmax.f32 %v15091, 0.0
  %v15156 = vmax.f32 %v15092, 0.0
  %v15157 = vmax.f32 %v15093, 0.0
  %v15158 = vmax.f32 %v15094, 0.0
  %v15159 = vmax.f32 %v15095, 0.0
  %v15160 = vmax.f32 %v15096, 0.0
  %v15161 = vmax.f32 %v15097, 0.0
  %v15162 = vmax.f32 %v15098, 0.0
  %v15163 = vmax.f32 %v15099, 0.0
  %v15164 = vmax.f32 %v15100, 0.0
  %v15165 = vmax.f32 %v15101, 0.0
  %v15166 = vmax.f32 %v15102, 0.0
  %v15167 = vmax.f32 %v15103, 0.0
  %v15168 = vmax.f32 %v15104, 0.0
  %v15169 = vmax.f32 %v15105, 0.0
  %v15170 = vmax.f32 %v15106, 0.0
  %v15171 = vmax.f32 %v15107, 0.0
  %v15172 = vmax.f32 %v15108, 0.0
  %v15173 = vmax.f32 %v15109, 0.0
  %v15174 = vmax.f32 %v15110, 0.0
  %v15175 = vmax.f32 %v15111, 0.0
  %v15176 = vmax.f32 %v15112, 0.0
  %v15177 = vmax.f32 %v15113, 0.0
  %v15178 = vmax.f32 %v15114, 0.0
  %v15179 = vmax.f32 %v15115, 0.0
  %v15180 = vmax.f32 %v15116, 0.0
  %v15181 = vmax.f32 %v15117, 0.0
  %v15182 = vmax.f32 %v15118, 0.0
  %15183 = vst [vmem:[%s13] sm:$0xff] %v15119
  %15184 = vst [vmem:[%s13 + $0x8] sm:$0xff] %v15120
  %15185 = vst [vmem:[%s13 + $0x10] sm:$0xff] %v15121
  %15186 = vst [vmem:[%s13 + $0x18] sm:$0xff] %v15122
  %15187 = vst [vmem:[%s13 + $0x20] sm:$0xff] %v15123
  %15188 = vst [vmem:[%s13 + $0x28] sm:$0xff] %v15124
  %15189 = vst [vmem:[%s13 + $0x30] sm:$0xff] %v15125
  %15190 = vst [vmem:[%s13 + $0x38] sm:$0xff] %v15126
  %15191 = vst [vmem:[%s13 + $0x40] sm:$0xff] %v15127
  %15192 = vst [vmem:[%s13 + $0x48] sm:$0xff] %v15128
  %15193 = vst [vmem:[%s13 + $0x50] sm:$0xff] %v15129
  %15194 = vst [vmem:[%s13 + $0x58] sm:$0xff] %v15130
  %15195 = vst [vmem:[%s13 + $0x60] sm:$0xff] %v15131
  %15196 = vst [vmem:[%s13 + $0x68] sm:$0xff] %v15132
  %15197 = vst [vmem:[%s13 + $0x70] sm:$0xff] %v15133
  %15198 = vst [vmem:[%s13 + $0x78] sm:$0xff] %v15134
  %15199 = vst [vmem:[%s13 + $0x80] sm:$0xff] %v15135
  %15200 = vst [vmem:[%s13 + $0x88] sm:$0xff] %v15136
  %15201 = vst [vmem:[%s13 + $0x90] sm:$0xff] %v15137
  %15202 = vst [vmem:[%s13 + $0x98] sm:$0xff] %v15138
  %15203 = vst [vmem:[%s13 + $0xa0] sm:$0xff] %v15139
  %15204 = vst [vmem:[%s13 + $0xa8] sm:$0xff] %v15140
  %15205 = vst [vmem:[%s13 + $0xb0] sm:$0xff] %v15141
  %15206 = vst [vmem:[%s13 + $0xb8] sm:$0xff] %v15142
  %15207 = vst [vmem:[%s13 + $0xc0] sm:$0xff] %v15143
  %15208 = vst [vmem:[%s13 + $0xc8] sm:$0xff] %v15144
  %15209 = vst [vmem:[%s13 + $0xd0] sm:$0xff] %v15145
  %15210 = vst [vmem:[%s13 + $0xd8] sm:$0xff] %v15146
  %15211 = vst [vmem:[%s13 + $0xe0] sm:$0xff] %v15147
  %15212 = vst [vmem:[%s13 + $0xe8] sm:$0xff] %v15148
  %15213 = vst [vmem:[%s13 + $0xf0] sm:$0xff] %v15149
  %15214 = vst [vmem:[%s13 + $0xf8] sm:$0xff] %v15150
  %15215 = vst [vmem:[%s13 + $0x100] sm:$0xff] %v15151
  %15216 = vst [vmem:[%s13 + $0x108] sm:$0xff] %v15152
  %15217 = vst [vmem:[%s13 + $0x110] sm:$0xff] %v15153
  %15218 = vst [vmem:[%s13 + $0x118] sm:$0xff] %v15154
  %15219 = vst [vmem:[%s13 + $0x120] sm:$0xff] %v15155
  %15220 = vst [vmem:[%s13 + $0x128] sm:$0xff] %v15156
  %15221 = vst [vmem:[%s13 + $0x130] sm:$0xff] %v15157
  %15222 = vst [vmem:[%s13 + $0x138] sm:$0xff] %v15158
  %15223 = vst [vmem:[%s13 + $0x140] sm:$0xff] %v15159
  %15224 = vst [vmem:[%s13 + $0x148] sm:$0xff] %v15160
  %15225 = vst [vmem:[%s13 + $0x150] sm:$0xff] %v15161
  %15226 = vst [vmem:[%s13 + $0x158] sm:$0xff] %v15162
  %15227 = vst [vmem:[%s13 + $0x160] sm:$0xff] %v15163
  %15228 = vst [vmem:[%s13 + $0x168] sm:$0xff] %v15164
  %15229 = vst [vmem:[%s13 + $0x170] sm:$0xff] %v15165
  %15230 = vst [vmem:[%s13 + $0x178] sm:$0xff] %v15166
  %15231 = vst [vmem:[%s13 + $0x180] sm:$0xff] %v15167
  %15232 = vst [vmem:[%s13 + $0x188] sm:$0xff] %v15168
  %15233 = vst [vmem:[%s13 + $0x190] sm:$0xff] %v15169
  %15234 = vst [vmem:[%s13 + $0x198] sm:$0xff] %v15170
  %15235 = vst [vmem:[%s13 + $0x1a0] sm:$0xff] %v15171
  %15236 = vst [vmem:[%s13 + $0x1a8] sm:$0xff] %v15172
  %15237 = vst [vmem:[%s13 + $0x1b0] sm:$0xff] %v15173
  %15238 = vst [vmem:[%s13 + $0x1b8] sm:$0xff] %v15174
  %15239 = vst [vmem:[%s13 + $0x1c0] sm:$0xff] %v15175
  %15240 = vst [vmem:[%s13 + $0x1c8] sm:$0xff] %v15176
  %15241 = vst [vmem:[%s13 + $0x1d0] sm:$0xff] %v15177
  %15242 = vst [vmem:[%s13 + $0x1d8] sm:$0xff] %v15178
  %15243 = vst [vmem:[%s13 + $0x1e0] sm:$0xff] %v15179
  %15244 = vst [vmem:[%s13 + $0x1e8] sm:$0xff] %v15180
  %15245 = vst [vmem:[%s13 + $0x1f0] sm:$0xff] %v15181
  %15246 = vst [vmem:[%s13 + $0x1f8] sm:$0xff] %v15182
  // Predicated region
  $region54: #{masks_forward.1} parent=0 // pred_check
    _
  $region55: #{masks_forward.1} parent=0 // pred_check_branch
    %15248 = sbr.rel (0) target = $region57
  $region56: #{masks_forward.1} parent=0 // pred_region
    _
  $region57: #{masks_forward.1} parent=0 // pred_fallthru
    _
  // Predicated region
  $region58: #{masks_forward.1} parent=0 // pred_check
    _
  $region59: #{masks_forward.1} parent=0 // pred_check_branch
    %15250 = sbr.rel (0) target = $region61
  $region60: #{masks_forward.1} parent=0 // pred_region
    _
  $region61: #{masks_forward.1} parent=0 // pred_fallthru
    _

</llo_original>
